<compile_context>
chip_gen: v7x
topology: tpu7x:2x2x1
jax: 0.10.0
libtpu: 0.0.40
codegen_flags: <defaults>
</compile_context>

<pallas_src>
import functools

import numpy as np
import jax
import jax.numpy as jnp
from jax import lax
from jax.experimental import pallas as pl
from jax.experimental.pallas import tpu as pltpu

BN_EPS = 1e-5
LRELU_SLOPE = 0.2
ACT_DTYPE = jnp.bfloat16      # storage / matmul dtype for activations & conv weights


@functools.lru_cache(maxsize=None)
def _vmem_limit_bytes():
    # Generation-aware scoped-VMEM request: half the physical VMEM, capped at
    # 64 MiB (=> 64 MiB on 128-MiB v5e/v6e, 32 MiB on 64-MiB v7x TensorCores).
    try:
        info_fn = getattr(pltpu, "get_tpu_info", None)
        if info_fn is not None:
            cap = int(getattr(info_fn(), "vmem_capacity_bytes", 0) or 0)
            if cap > 0:
                return min(64 * 1024 * 1024, cap // 2)
    except Exception:
        pass
    return 32 * 1024 * 1024   # conservative fallback: fits every TPU generation


def _cparams(semantics):
    return pltpu.CompilerParams(dimension_semantics=semantics,
                                vmem_limit_bytes=_vmem_limit_bytes())


# ----------------------------- Pallas kernels --------------------------------

def conv_stats_kernel(xs_ref, w_ref, b_ref, y_ref, stats_ref, *, ko, th, wout):
    """One row-tile of one image: conv as ko*ko shifted matmuls over the
    space-to-depth input, + bias, + numerically stable per-tile BN partials.

    xs_ref:    (1, th+ko-1, Wh, s*s*Cin)  bf16 row tile (with halo)
    w_ref:     (ko*ko, s*s*Cin, Cout)     bf16 per-offset weights (invalid taps zero)
    b_ref:     (1, Cout)                  f32
    y_ref:     (th*Wout, Cout)            pre-BN output rows (bf16 storage)
    stats_ref: (1, 2, Cout)               [row sum, sum((y - tile_mean)^2)]
    """
    cin4 = w_ref.shape[1]
    cout = w_ref.shape[2]
    m = th * wout
    acc = jnp.zeros((m, cout), jnp.float32)
    for oi in range(ko):
        for oj in range(ko):
            win = xs_ref[0, oi:oi + th, oj:oj + wout, :]          # (th, Wout, Cin4)
            acc = acc + jnp.dot(win.reshape(m, cin4), w_ref[oi * ko + oj],
                                preferred_element_type=jnp.float32)
    y = acc + b_ref[...]
    y_ref[...] = y.astype(y_ref.dtype)
    s1 = jnp.sum(y, axis=0, keepdims=True)                        # (1, Cout)
    d = y - s1 * (1.0 / m)
    m2 = jnp.sum(d * d, axis=0, keepdims=True)                    # (1, Cout)
    stats_ref[0] = jnp.concatenate([s1, m2], axis=0)


def bn_apply_kernel(y_ref, scale_ref, shift_ref, o_ref):
    """Lane-dense BN affine + LeakyReLU(0.2) on a (tm, Wout*Cout) tile;
    scale/shift are already tiled Wout times along the lane dim."""
    y = y_ref[...].astype(jnp.float32)
    out = y * scale_ref[...] + shift_ref[...]
    o_ref[...] = jnp.where(out >= 0.0, out, LRELU_SLOPE * out).astype(o_ref.dtype)


def fused_conv_bn_lrelu_kernel(x_ref, w_ref, b_ref, gb_ref, o_ref):
    """Single-block fused conv(matmul)+bias + train-mode BN + LeakyReLU for
    tiny layers (exact row count -> exact batch stats, centered variance)."""
    y = jnp.dot(x_ref[...], w_ref[...],
                preferred_element_type=jnp.float32) + b_ref[...]
    mean = jnp.mean(y, axis=0, keepdims=True)
    d = y - mean
    var = jnp.mean(d * d, axis=0, keepdims=True)
    out = d * (gb_ref[0:1] * lax.rsqrt(var + BN_EPS)) + gb_ref[1:2]
    o_ref[...] = jnp.where(out >= 0.0, out, LRELU_SLOPE * out).astype(o_ref.dtype)


def head_kernel(x_ref, w_ref, b_ref, eps_ref, z_ref):
    """Fused mu / logvar Linear layers + reparameterization (one pallas_call);
    both weight matrices ride in one stacked (2, F, L) operand."""
    x = x_ref[...]
    mu = jnp.dot(x, w_ref[0], preferred_element_type=jnp.float32) + b_ref[0:1]
    logvar = jnp.dot(x, w_ref[1], preferred_element_type=jnp.float32) + b_ref[1:2]
    z_ref[...] = eps_ref[...] * jnp.exp(logvar * 0.5) + mu


# ----------------------------- host-side glue ---------------------------------

def make_offset_weights(w, k, s, dtype):
    """PyTorch conv weight (Cout, Cin, k, k) -> (ko*ko, s*s*Cin, Cout) weights
    matching the space-to-depth channel ordering; missing taps are zero."""
    Cout, Cin = int(w.shape[0]), int(w.shape[1])
    ko = -(-k // s)
    offs = []
    for oi in range(ko):
        for oj in range(ko):
            rows = []
            for pi in range(s):
                for pj in range(s):
                    di, dj = s * oi + pi, s * oj + pj
                    if di < k and dj < k:
                        rows.append(jnp.transpose(w[:, :, di, dj]))   # (Cin, Cout)
                    else:
                        rows.append(jnp.zeros((Cin, Cout), w.dtype))
            offs.append(jnp.concatenate(rows, axis=0))                # (s*s*Cin, Cout)
    return jnp.stack(offs, axis=0).astype(dtype)                      # (ko*ko, s*s*Cin, Cout)


def space_to_depth_row_tiles(x, k, s, p, Hout, Wout, th, ko):
    """NHWC x -> (N*n_tiles, th+ko-1, Wh, s*s*C): space-to-depth (s*s phases
    folded into the lane dim), pre-split into overlapping row tiles so the conv
    grid never needs overlapping BlockSpec windows (halo overhead ~(th+1)/th)."""
    N, H, W, C = x.shape
    Hh, Wh = Hout + ko - 1, Wout + ko - 1
    Hp, Wp = s * Hh, s * Wh
    assert Hp >= H + 2 * p and Wp >= W + 2 * p
    x_pad = jnp.pad(x, ((0, 0), (p, Hp - H - p), (p, Wp - W - p), (0, 0)))
    xs = x_pad.reshape(N, Hh, s, Wh, s, C)
    xs = xs.transpose(0, 1, 3, 2, 4, 5).reshape(N, Hh, Wh, s * s * C)
    th_in = th + ko - 1
    n_tiles = Hout // th
    tiles = [xs[:, t * th:t * th + th_in] for t in range(n_tiles)]
    xs_t = jnp.stack(tiles, axis=1)                 # (N, n_tiles, th_in, Wh, ssC)
    return xs_t.reshape(N * n_tiles, th_in, Wh, s * s * C)


def im2col_nhwc(x, k, s, p):
    """NHWC im2col (only used for the tiny late layers)."""
    N, H, W, C = x.shape
    Hout = (H + 2 * p - k) // s + 1
    Wout = (W + 2 * p - k) // s + 1
    x_pad = jnp.pad(x, ((0, 0), (p, p), (p, p), (0, 0)))
    taps = []
    for di in range(k):
        for dj in range(k):
            taps.append(lax.slice(
                x_pad,
                (0, di, dj, 0),
                (N, di + s * (Hout - 1) + 1, dj + s * (Wout - 1) + 1, C),
                (1, s, s, 1)))
    pat = jnp.stack(taps, axis=3)                    # (N, Hout, Wout, k*k, C)
    return pat.reshape(N * Hout * Wout, k * k * C)


def _bn_scale_shift(stats, gamma, beta, rows_per_tile, m_total):
    """Combine per-tile (sum, centered M2) partials into BN scale/shift using
    Chan's parallel-variance formula (train-mode biased variance)."""
    sums, m2s = stats[:, 0, :], stats[:, 1, :]
    mean_t = sums / rows_per_tile
    mean = jnp.sum(sums, axis=0) / m_total
    var = (jnp.sum(m2s, axis=0)
           + rows_per_tile * jnp.sum((mean_t - mean) ** 2, axis=0)) / m_total
    scale = gamma * lax.rsqrt(var + BN_EPS)
    shift = beta - mean * scale
    return scale, shift


def _pick_row_tile(Hout, Wout, Cout):
    """Row-tile height: keep the f32 accumulator around <=32 vregs while
    leaving >=4 row tiles per image for pipelining / megacore sharding."""
    lane_groups = -(-Cout // 128)
    rows_target = max(8, 256 // lane_groups)
    th = max(1, rows_target // max(1, Wout))
    th = min(th, max(1, Hout // 4))
    while Hout % th:
        th -= 1
    return th


# ----------------------------- layer wrappers ---------------------------------

def bn_lrelu_apply(y, scale, shift, N, Hout, Wout, Cout, out_dtype):
    """Tiled, lane-dense BN affine + LeakyReLU over the pre-BN slab."""
    rows, lane = N * Hout, Wout * Cout
    y2 = y.reshape(rows, lane)                         # free: contiguous reshape
    scale_l = jnp.tile(scale.astype(jnp.float32), Wout).reshape(1, lane)
    shift_l = jnp.tile(shift.astype(jnp.float32), Wout).reshape(1, lane)
    # Large lane-dense row tiles (~2 MiB of f32 work per tile, >=8 rows).
    tm = max(8, min(rows, (2 * 1024 * 1024) // (lane * 4)) // 8 * 8)
    rows_pad = pl.cdiv(rows, tm) * tm
    if rows_pad != rows:
        y2 = jnp.pad(y2, ((0, rows_pad - rows), (0, 0)))
    out = pl.pallas_call(
        bn_apply_kernel,
        out_shape=jax.ShapeDtypeStruct((rows_pad, lane), out_dtype),
        grid=(rows_pad // tm,),
        in_specs=[
            pl.BlockSpec((tm, lane), lambda i: (i, 0)),
            pl.BlockSpec((1, lane), lambda i: (0, 0)),
            pl.BlockSpec((1, lane), lambda i: (0, 0)),
        ],
        out_specs=pl.BlockSpec((tm, lane), lambda i: (i, 0)),
        compiler_params=_cparams(("parallel",)),
    )(y2, scale_l, shift_l)
    if rows_pad != rows:
        out = out[:rows]
    return out.reshape(N, Hout, Wout, Cout)


def conv_bn_lrelu_big(x, w, b, gamma, beta, k, s, p):
    """Row-tiled streamed conv (no im2col) with fused BN partial stats, then a
    lane-dense tiled BN-affine + LeakyReLU pass."""
    N, H, W, Cin = x.shape
    Cout = int(w.shape[0])
    Hout = (H + 2 * p - k) // s + 1
    Wout = (W + 2 * p - k) // s + 1
    ko = -(-k // s)
    Cin4 = s * s * Cin
    Wh = Wout + ko - 1
    th = _pick_row_tile(Hout, Wout, Cout)
    th_in = th + ko - 1
    n_tiles = Hout // th
    rows_tile = th * Wout
    M = N * Hout * Wout

    xs_t = space_to_depth_row_tiles(x, k, s, p, Hout, Wout, th, ko)   # bf16
    w_off = make_offset_weights(w, k, s, x.dtype)                     # bf16
    b2 = b.reshape(1, Cout).astype(jnp.float32)

    y, stats = pl.pallas_call(
        functools.partial(conv_stats_kernel, ko=ko, th=th, wout=Wout),
        out_shape=(jax.ShapeDtypeStruct((M, Cout), ACT_DTYPE),
                   jax.ShapeDtypeStruct((N * n_tiles, 2, Cout), jnp.float32)),
        grid=(N, n_tiles),
        in_specs=[
            pl.BlockSpec((1, th_in, Wh, Cin4),
                         lambda n, t: (n * n_tiles + t, 0, 0, 0)),
            pl.BlockSpec((ko * ko, Cin4, Cout), lambda n, t: (0, 0, 0)),
            pl.BlockSpec((1, Cout), lambda n, t: (0, 0)),
        ],
        out_specs=(
            pl.BlockSpec((rows_tile, Cout), lambda n, t: (n * n_tiles + t, 0)),
            pl.BlockSpec((1, 2, Cout), lambda n, t: (n * n_tiles + t, 0, 0)),
        ),
        compiler_params=_cparams(("parallel", "parallel")),
    )(xs_t, w_off, b2)

    scale, shift = _bn_scale_shift(stats, gamma, beta, float(rows_tile), float(M))
    # TODO(synk): a further ~25-35% HBM saving would come from writing this
    # BN-apply output directly in the next layer's space-to-depth layout
    # (needs a manual-DMA scatter kernel); left as a follow-up.
    return bn_lrelu_apply(y, scale, shift, N, Hout, Wout, Cout, ACT_DTYPE)


def conv_bn_lrelu_small(x, w, b, gamma, beta, k, s, p):
    """Late layers (tiny M): single fully-fused pallas_call per layer."""
    N, H, W, Cin = x.shape
    Cout = int(w.shape[0])
    Hout = (H + 2 * p - k) // s + 1
    Wout = (W + 2 * p - k) // s + 1
    patches = im2col_nhwc(x, k, s, p)                    # bf16 (M, k*k*Cin)
    M, K = patches.shape
    w_mat = jnp.transpose(w, (2, 3, 1, 0)).reshape(K, Cout).astype(x.dtype)
    gb = jnp.stack([gamma, beta], axis=0).astype(jnp.float32)
    out = pl.pallas_call(
        fused_conv_bn_lrelu_kernel,
        out_shape=jax.ShapeDtypeStruct((M, Cout), ACT_DTYPE),
        grid=(1,),
        in_specs=[
            pl.BlockSpec((M, K), lambda i: (0, 0)),
            pl.BlockSpec((K, Cout), lambda i: (0, 0)),
            pl.BlockSpec((1, Cout), lambda i: (0, 0)),
            pl.BlockSpec((2, Cout), lambda i: (0, 0)),
        ],
        out_specs=pl.BlockSpec((M, Cout), lambda i: (0, 0)),
        compiler_params=_cparams(("arbitrary",)),
    )(patches, w_mat, b.reshape(1, Cout).astype(jnp.float32), gb)
    return out.reshape(N, Hout, Wout, Cout)


def conv_block(x, w, b, gamma, beta, k, s, p):
    N, H, W, _ = x.shape
    Hout = (H + 2 * p - k) // s + 1
    Wout = (W + 2 * p - k) // s + 1
    M = N * Hout * Wout
    if M > 256 and Wout % 8 == 0:
        return conv_bn_lrelu_big(x, w, b, gamma, beta, k, s, p)
    if M <= 512:
        return conv_bn_lrelu_small(x, w, b, gamma, beta, k, s, p)
    # TODO(synk): generic M-tiled fallback for large-M layers whose Wout is not
    # a multiple of 8 (never hit by this architecture).
    raise NotImplementedError("unsupported conv shape for this Pallas port")


def head_reparam(x, w_mu, b_mu, w_lv, b_lv, eps):
    B, F = x.shape
    L = int(w_mu.shape[0])
    w = jnp.stack([w_mu.T, w_lv.T], axis=0).astype(jnp.float32)   # (2, F, L)
    bb = jnp.stack([b_mu, b_lv], axis=0).astype(jnp.float32)      # (2, L)
    return pl.pallas_call(
        head_kernel,
        out_shape=jax.ShapeDtypeStruct((B, L), jnp.float32),
        grid=(1,),
        in_specs=[
            pl.BlockSpec((B, F), lambda i: (0, 0)),
            pl.BlockSpec((2, F, L), lambda i: (0, 0, 0)),
            pl.BlockSpec((2, L), lambda i: (0, 0)),
            pl.BlockSpec((B, L), lambda i: (0, 0)),
        ],
        out_specs=pl.BlockSpec((B, L), lambda i: (0, 0)),
        compiler_params=_cparams(("arbitrary",)),
    )(x, w, bb, eps)


# ----------------------------- forward ----------------------------------------

def encoder_forward(params, img, eps):
    x = jnp.transpose(img, (0, 2, 3, 1)).astype(ACT_DTYPE)   # NCHW -> NHWC, once
    for (w, b, gamma, beta, k, s, p) in params["convs"]:
        x = conv_block(x, w, b, gamma, beta, k, s, p)
    B = x.shape[0]
    x = x.reshape(B, -1).astype(jnp.float32)                 # spatial is 1x1 -> (B, nf*8)
    # TODO(synk): torch.randn inside the reference forward is nondeterministic;
    # here eps is a deterministic jax.random normal supplied by the caller.
    return head_reparam(x, params["w_mu"], params["b_mu"],
                        params["w_lv"], params["b_lv"], eps)


# ----------------------------- parameter init ---------------------------------

def build_params(key, in_ch, nf, latent_dim):
    specs = [
        (in_ch,  nf,     3, 2, 1),
        (nf,     nf * 2, 3, 2, 1),
        (nf * 2, nf * 4, 3, 2, 1),
        (nf * 4, nf * 8, 3, 2, 1),
        (nf * 8, nf * 8, 3, 2, 1),
        (nf * 8, nf * 8, 3, 2, 1),
        (nf * 8, nf * 8, 2, 1, 0),
    ]
    convs = []
    for (ci, co, k, s, p) in specs:
        key, k1, k2 = jax.random.split(key, 3)
        fan_in = ci * k * k
        bound = 1.0 / np.sqrt(fan_in)
        w = jax.random.uniform(k1, (co, ci, k, k), jnp.float32, -bound, bound)
        b = jax.random.uniform(k2, (co,), jnp.float32, -bound, bound)
        gamma = jnp.ones((co,), jnp.float32)
        beta = jnp.zeros((co,), jnp.float32)
        convs.append((w, b, gamma, beta, k, s, p))
    feat = nf * 8
    key, k1, k2, k3, k4 = jax.random.split(key, 5)
    bound = 1.0 / np.sqrt(feat)
    w_mu = jax.random.uniform(k1, (latent_dim, feat), jnp.float32, -bound, bound)
    b_mu = jax.random.uniform(k2, (latent_dim,), jnp.float32, -bound, bound)
    w_lv = jax.random.uniform(k3, (latent_dim, feat), jnp.float32, -bound, bound)
    b_lv = jax.random.uniform(k4, (latent_dim,), jnp.float32, -bound, bound)
    return dict(convs=convs, w_mu=w_mu, b_mu=b_mu, w_lv=w_lv, b_lv=b_lv)


# ----------------------------- main --------------------------------------------

if __name__ == "__main__":
    key = jax.random.PRNGKey(0)
    kx, kp, ke = jax.random.split(key, 3)

    # Smallest shapes consistent with the architecture: 6 stride-2 convs
    # followed by a 2x2 valid conv need spatial 128 to reach 1x1.
    B, in_ch, nf, latent_dim, S = 2, 3, 4, 8, 128

    img = jax.random.normal(kx, (B, in_ch, S, S), jnp.float32)
    params = build_params(kp, in_ch, nf, latent_dim)
    eps = jax.random.normal(ke, (B, latent_dim), jnp.float32)

    fwd = jax.jit(lambda im, ep: encoder_forward(params, im, ep))
    z = jax.block_until_ready(fwd(img, eps))
    assert z.shape == (B, latent_dim)
    assert bool(jnp.all(jnp.isfinite(z)))
    print("KERNEL_OK")
</pallas_src>

<mosaic_0001>
module attributes {stable_mosaic.version = 11 : i64} {
  func.func @conv_stats_kernel(%arg0: i32, %arg1: i32, %arg2: memref<1x5x65x12xbf16, #tpu.memory_space<vmem>>, %arg3: memref<4x12x4xbf16, #tpu.memory_space<vmem>>, %arg4: memref<1x4xf32, #tpu.memory_space<vmem>>, %arg5: memref<256x4xbf16, #tpu.memory_space<vmem>>, %arg6: memref<1x2x4xf32, #tpu.memory_space<vmem>>) attributes {dimension_semantics = [#tpu.dimension_semantics<parallel>, #tpu.dimension_semantics<parallel>], iteration_bounds = array<i64: 2, 16>, scalar_prefetch = 0 : i64, scratch_operands = 0 : i64, tpu.core_type = #tpu.core_type<tc>, window_params = [{transform_indices = @transform_0, window_bounds = array<i64: 1, 5, 65, 12>}, {pipeline_mode = #tpu.pipeline_mode<synchronous>, transform_indices = @transform_1, window_bounds = array<i64: 4, 12, 4>}, {pipeline_mode = #tpu.pipeline_mode<synchronous>, transform_indices = @transform_2, window_bounds = array<i64: 1, 4>}, {transform_indices = @transform_3, window_bounds = array<i64: 256, 4>}, {transform_indices = @transform_4, window_bounds = array<i64: 1, 2, 4>}]} {
    %cst = arith.constant 0.000000e+00 : f32
    %0 = vector.broadcast %cst : f32 to vector<256x4xf32>
    %c0 = arith.constant 0 : index
    %c0_0 = arith.constant 0 : index
    %c0_1 = arith.constant 0 : index
    %c0_2 = arith.constant 0 : index
    %1 = vector.load %arg2[%c0, %c0_0, %c0_1, %c0_2] : memref<1x5x65x12xbf16, #tpu.memory_space<vmem>>, vector<1x4x64x12xbf16>
    %2 = vector.shape_cast %1 : vector<1x4x64x12xbf16> to vector<4x64x12xbf16>
    %3 = vector.shape_cast %2 : vector<4x64x12xbf16> to vector<256x12xbf16>
    %c0_3 = arith.constant 0 : index
    %c0_4 = arith.constant 0 : index
    %c0_5 = arith.constant 0 : index
    %4 = vector.load %arg3[%c0_3, %c0_4, %c0_5] : memref<4x12x4xbf16, #tpu.memory_space<vmem>>, vector<1x12x4xbf16>
    %5 = vector.shape_cast %4 : vector<1x12x4xbf16> to vector<12x4xbf16>
    %cst_6 = arith.constant dense<0.000000e+00> : vector<256x4xf32>
    %6 = tpu.matmul %3, %5, %cst_6 {dimension_numbers = #tpu.dot_dimension_numbers<[1], [0], [0], [1], [0, 0, 1, 1], [], []>} : vector<256x12xbf16>, vector<12x4xbf16>, vector<256x4xf32> -> vector<256x4xf32>
    %7 = arith.addf %0, %6 : vector<256x4xf32>
    %c0_7 = arith.constant 0 : index
    %c0_8 = arith.constant 0 : index
    %c1 = arith.constant 1 : index
    %c0_9 = arith.constant 0 : index
    %8 = vector.load %arg2[%c0_7, %c0_8, %c1, %c0_9] : memref<1x5x65x12xbf16, #tpu.memory_space<vmem>>, vector<1x4x64x12xbf16>
    %9 = vector.shape_cast %8 : vector<1x4x64x12xbf16> to vector<4x64x12xbf16>
    %10 = vector.shape_cast %9 : vector<4x64x12xbf16> to vector<256x12xbf16>
    %c1_10 = arith.constant 1 : index
    %c0_11 = arith.constant 0 : index
    %c0_12 = arith.constant 0 : index
    %11 = vector.load %arg3[%c1_10, %c0_11, %c0_12] : memref<4x12x4xbf16, #tpu.memory_space<vmem>>, vector<1x12x4xbf16>
    %12 = vector.shape_cast %11 : vector<1x12x4xbf16> to vector<12x4xbf16>
    %cst_13 = arith.constant dense<0.000000e+00> : vector<256x4xf32>
    %13 = tpu.matmul %10, %12, %cst_13 {dimension_numbers = #tpu.dot_dimension_numbers<[1], [0], [0], [1], [0, 0, 1, 1], [], []>} : vector<256x12xbf16>, vector<12x4xbf16>, vector<256x4xf32> -> vector<256x4xf32>
    %14 = arith.addf %7, %13 : vector<256x4xf32>
    %c0_14 = arith.constant 0 : index
    %c1_15 = arith.constant 1 : index
    %c0_16 = arith.constant 0 : index
    %c0_17 = arith.constant 0 : index
    %15 = vector.load %arg2[%c0_14, %c1_15, %c0_16, %c0_17] : memref<1x5x65x12xbf16, #tpu.memory_space<vmem>>, vector<1x4x64x12xbf16>
    %16 = vector.shape_cast %15 : vector<1x4x64x12xbf16> to vector<4x64x12xbf16>
    %17 = vector.shape_cast %16 : vector<4x64x12xbf16> to vector<256x12xbf16>
    %c2 = arith.constant 2 : index
    %c0_18 = arith.constant 0 : index
    %c0_19 = arith.constant 0 : index
    %18 = vector.load %arg3[%c2, %c0_18, %c0_19] : memref<4x12x4xbf16, #tpu.memory_space<vmem>>, vector<1x12x4xbf16>
    %19 = vector.shape_cast %18 : vector<1x12x4xbf16> to vector<12x4xbf16>
    %cst_20 = arith.constant dense<0.000000e+00> : vector<256x4xf32>
    %20 = tpu.matmul %17, %19, %cst_20 {dimension_numbers = #tpu.dot_dimension_numbers<[1], [0], [0], [1], [0, 0, 1, 1], [], []>} : vector<256x12xbf16>, vector<12x4xbf16>, vector<256x4xf32> -> vector<256x4xf32>
    %21 = arith.addf %14, %20 : vector<256x4xf32>
    %c0_21 = arith.constant 0 : index
    %c1_22 = arith.constant 1 : index
    %c1_23 = arith.constant 1 : index
    %c0_24 = arith.constant 0 : index
    %22 = vector.load %arg2[%c0_21, %c1_22, %c1_23, %c0_24] : memref<1x5x65x12xbf16, #tpu.memory_space<vmem>>, vector<1x4x64x12xbf16>
    %23 = vector.shape_cast %22 : vector<1x4x64x12xbf16> to vector<4x64x12xbf16>
    %24 = vector.shape_cast %23 : vector<4x64x12xbf16> to vector<256x12xbf16>
    %c3 = arith.constant 3 : index
    %c0_25 = arith.constant 0 : index
    %c0_26 = arith.constant 0 : index
    %25 = vector.load %arg3[%c3, %c0_25, %c0_26] : memref<4x12x4xbf16, #tpu.memory_space<vmem>>, vector<1x12x4xbf16>
    %26 = vector.shape_cast %25 : vector<1x12x4xbf16> to vector<12x4xbf16>
    %cst_27 = arith.constant dense<0.000000e+00> : vector<256x4xf32>
    %27 = tpu.matmul %24, %26, %cst_27 {dimension_numbers = #tpu.dot_dimension_numbers<[1], [0], [0], [1], [0, 0, 1, 1], [], []>} : vector<256x12xbf16>, vector<12x4xbf16>, vector<256x4xf32> -> vector<256x4xf32>
    %28 = arith.addf %21, %27 : vector<256x4xf32>
    %c0_28 = arith.constant 0 : index
    %c0_29 = arith.constant 0 : index
    %29 = vector.load %arg4[%c0_28, %c0_29] : memref<1x4xf32, #tpu.memory_space<vmem>>, vector<1x4xf32>
    %30 = vector.broadcast %29 : vector<1x4xf32> to vector<256x4xf32>
    %31 = arith.addf %28, %30 : vector<256x4xf32>
    %32 = arith.truncf %31 : vector<256x4xf32> to vector<256x4xbf16>
    %c0_30 = arith.constant 0 : index
    %c0_31 = arith.constant 0 : index
    %33 = vector.load %arg5[%c0_30, %c0_31] : memref<256x4xbf16, #tpu.memory_space<vmem>>, vector<256x4xbf16>
    tpu.vector_store %arg5[%c0_30, %c0_31], %32 {strides = array<i32>} : memref<256x4xbf16, #tpu.memory_space<vmem>>, vector<256x4xbf16>,
    %cst_32 = arith.constant dense<0.000000e+00> : vector<4xf32>
    %34 = vector.multi_reduction <add>, %31, %cst_32 [0] : vector<256x4xf32> to vector<4xf32>
    %35 = vector.shape_cast %34 : vector<4xf32> to vector<1x4xf32>
    %cst_33 = arith.constant 3.906250e-03 : f32
    %36 = vector.broadcast %cst_33 : f32 to vector<1x4xf32>
    %37 = arith.mulf %35, %36 : vector<1x4xf32>
    %38 = vector.broadcast %37 : vector<1x4xf32> to vector<256x4xf32>
    %39 = arith.subf %31, %38 : vector<256x4xf32>
    %40 = arith.mulf %39, %39 : vector<256x4xf32>
    %cst_34 = arith.constant dense<0.000000e+00> : vector<4xf32>
    %41 = vector.multi_reduction <add>, %40, %cst_34 [0] : vector<256x4xf32> to vector<4xf32>
    %42 = vector.shape_cast %41 : vector<4xf32> to vector<1x4xf32>
    %43 = tpu.concatenate %35, %42 in 0 : vector<1x4xf32>, vector<1x4xf32> -> vector<2x4xf32>
    %c0_35 = arith.constant 0 : index
    %c0_36 = arith.constant 0 : index
    %c0_37 = arith.constant 0 : index
    %44 = vector.load %arg6[%c0_35, %c0_36, %c0_37] : memref<1x2x4xf32, #tpu.memory_space<vmem>>, vector<1x2x4xf32>
    %45 = vector.shape_cast %44 : vector<1x2x4xf32> to vector<2x4xf32>
    %46 = vector.shape_cast %43 : vector<2x4xf32> to vector<1x2x4xf32>
    tpu.vector_store %arg6[%c0_35, %c0_36, %c0_37], %46 {strides = array<i32>} : memref<1x2x4xf32, #tpu.memory_space<vmem>>, vector<1x2x4xf32>,
    return
  }
  func.func @transform_0(%arg0: i32, %arg1: i32) -> (i32, i32, i32, i32) {
    %c16_i32 = arith.constant 16 : i32
    %0 = arith.muli %arg0, %c16_i32 : i32
    %1 = arith.addi %0, %arg1 : i32
    %c0_i32 = arith.constant 0 : i32
    %c0_i32_0 = arith.constant 0 : i32
    %c0_i32_1 = arith.constant 0 : i32
    %c0_i32_2 = arith.constant 0 : i32
    return %1, %c0_i32, %c0_i32_0, %c0_i32_1 : i32, i32, i32, i32
  }
  func.func @transform_1(%arg0: i32, %arg1: i32) -> (i32, i32, i32) {
    %c0_i32 = arith.constant 0 : i32
    %c0_i32_0 = arith.constant 0 : i32
    %c0_i32_1 = arith.constant 0 : i32
    %c0_i32_2 = arith.constant 0 : i32
    return %c0_i32, %c0_i32_0, %c0_i32_1 : i32, i32, i32
  }
  func.func @transform_2(%arg0: i32, %arg1: i32) -> (i32, i32) {
    %c0_i32 = arith.constant 0 : i32
    %c0_i32_0 = arith.constant 0 : i32
    %c0_i32_1 = arith.constant 0 : i32
    return %c0_i32, %c0_i32_0 : i32, i32
  }
  func.func @transform_3(%arg0: i32, %arg1: i32) -> (i32, i32) {
    %c16_i32 = arith.constant 16 : i32
    %0 = arith.muli %arg0, %c16_i32 : i32
    %1 = arith.addi %0, %arg1 : i32
    %c0_i32 = arith.constant 0 : i32
    %c0_i32_0 = arith.constant 0 : i32
    return %1, %c0_i32 : i32, i32
  }
  func.func @transform_4(%arg0: i32, %arg1: i32) -> (i32, i32, i32) {
    %c16_i32 = arith.constant 16 : i32
    %0 = arith.muli %arg0, %c16_i32 : i32
    %1 = arith.addi %0, %arg1 : i32
    %c0_i32 = arith.constant 0 : i32
    %c0_i32_0 = arith.constant 0 : i32
    %c0_i32_1 = arith.constant 0 : i32
    return %1, %c0_i32, %c0_i32_0 : i32, i32, i32
  }
}

module attributes {stable_mosaic.version = 11 : i64} {
  func.func @bn_apply_kernel(%arg0: i32, %arg1: memref<128x256xbf16, #tpu.memory_space<vmem>>, %arg2: memref<1x256xf32, #tpu.memory_space<vmem>>, %arg3: memref<1x256xf32, #tpu.memory_space<vmem>>, %arg4: memref<128x256xbf16, #tpu.memory_space<vmem>>) attributes {dimension_semantics = [#tpu.dimension_semantics<parallel>], iteration_bounds = array<i64: 1>, scalar_prefetch = 0 : i64, scratch_operands = 0 : i64, tpu.core_type = #tpu.core_type<tc>, window_params = [{transform_indices = @transform_0, window_bounds = array<i64: 128, 256>}, {pipeline_mode = #tpu.pipeline_mode<synchronous>, transform_indices = @transform_1, window_bounds = array<i64: 1, 256>}, {pipeline_mode = #tpu.pipeline_mode<synchronous>, transform_indices = @transform_2, window_bounds = array<i64: 1, 256>}, {transform_indices = @transform_3, window_bounds = array<i64: 128, 256>}]} {
    %c0 = arith.constant 0 : index
    %c0_0 = arith.constant 0 : index
    %0 = vector.load %arg1[%c0, %c0_0] : memref<128x256xbf16, #tpu.memory_space<vmem>>, vector<128x256xbf16>
    %1 = arith.extf %0 : vector<128x256xbf16> to vector<128x256xf32>
    %c0_1 = arith.constant 0 : index
    %c0_2 = arith.constant 0 : index
    %2 = vector.load %arg2[%c0_1, %c0_2] : memref<1x256xf32, #tpu.memory_space<vmem>>, vector<1x256xf32>
    %3 = vector.broadcast %2 : vector<1x256xf32> to vector<128x256xf32>
    %4 = arith.mulf %1, %3 : vector<128x256xf32>
    %c0_3 = arith.constant 0 : index
    %c0_4 = arith.constant 0 : index
    %5 = vector.load %arg3[%c0_3, %c0_4] : memref<1x256xf32, #tpu.memory_space<vmem>>, vector<1x256xf32>
    %6 = vector.broadcast %5 : vector<1x256xf32> to vector<128x256xf32>
    %7 = arith.addf %4, %6 : vector<128x256xf32>
    %cst = arith.constant 0.000000e+00 : f32
    %8 = vector.broadcast %cst : f32 to vector<128x256xf32>
    %9 = arith.cmpf oge, %7, %8 : vector<128x256xf32>
    %cst_5 = arith.constant 2.000000e-01 : f32
    %10 = vector.broadcast %cst_5 : f32 to vector<128x256xf32>
    %11 = arith.mulf %10, %7 : vector<128x256xf32>
    %12 = arith.select %9, %7, %11 : vector<128x256xi1>, vector<128x256xf32>
    %13 = arith.truncf %12 : vector<128x256xf32> to vector<128x256xbf16>
    %c0_6 = arith.constant 0 : index
    %c0_7 = arith.constant 0 : index
    %14 = vector.load %arg4[%c0_6, %c0_7] : memref<128x256xbf16, #tpu.memory_space<vmem>>, vector<128x256xbf16>
    tpu.vector_store %arg4[%c0_6, %c0_7], %13 {strides = array<i32>} : memref<128x256xbf16, #tpu.memory_space<vmem>>, vector<128x256xbf16>,
    return
  }
  func.func @transform_0(%arg0: i32) -> (i32, i32) {
    %c0_i32 = arith.constant 0 : i32
    %c0_i32_0 = arith.constant 0 : i32
    return %arg0, %c0_i32 : i32, i32
  }
  func.func @transform_1(%arg0: i32) -> (i32, i32) {
    %c0_i32 = arith.constant 0 : i32
    %c0_i32_0 = arith.constant 0 : i32
    %c0_i32_1 = arith.constant 0 : i32
    return %c0_i32, %c0_i32_0 : i32, i32
  }
  func.func @transform_2(%arg0: i32) -> (i32, i32) {
    %c0_i32 = arith.constant 0 : i32
    %c0_i32_0 = arith.constant 0 : i32
    %c0_i32_1 = arith.constant 0 : i32
    return %c0_i32, %c0_i32_0 : i32, i32
  }
  func.func @transform_3(%arg0: i32) -> (i32, i32) {
    %c0_i32 = arith.constant 0 : i32
    %c0_i32_0 = arith.constant 0 : i32
    return %arg0, %c0_i32 : i32, i32
  }
}

module attributes {stable_mosaic.version = 11 : i64} {
  func.func @conv_stats_kernel(%arg0: i32, %arg1: i32, %arg2: memref<1x9x33x16xbf16, #tpu.memory_space<vmem>>, %arg3: memref<4x16x8xbf16, #tpu.memory_space<vmem>>, %arg4: memref<1x8xf32, #tpu.memory_space<vmem>>, %arg5: memref<256x8xbf16, #tpu.memory_space<vmem>>, %arg6: memref<1x2x8xf32, #tpu.memory_space<vmem>>) attributes {dimension_semantics = [#tpu.dimension_semantics<parallel>, #tpu.dimension_semantics<parallel>], iteration_bounds = array<i64: 2, 4>, scalar_prefetch = 0 : i64, scratch_operands = 0 : i64, tpu.core_type = #tpu.core_type<tc>, window_params = [{transform_indices = @transform_0, window_bounds = array<i64: 1, 9, 33, 16>}, {pipeline_mode = #tpu.pipeline_mode<synchronous>, transform_indices = @transform_1, window_bounds = array<i64: 4, 16, 8>}, {pipeline_mode = #tpu.pipeline_mode<synchronous>, transform_indices = @transform_2, window_bounds = array<i64: 1, 8>}, {transform_indices = @transform_3, window_bounds = array<i64: 256, 8>}, {transform_indices = @transform_4, window_bounds = array<i64: 1, 2, 8>}]} {
    %cst = arith.constant 0.000000e+00 : f32
    %0 = vector.broadcast %cst : f32 to vector<256x8xf32>
    %c0 = arith.constant 0 : index
    %c0_0 = arith.constant 0 : index
    %c0_1 = arith.constant 0 : index
    %c0_2 = arith.constant 0 : index
    %1 = vector.load %arg2[%c0, %c0_0, %c0_1, %c0_2] : memref<1x9x33x16xbf16, #tpu.memory_space<vmem>>, vector<1x8x32x16xbf16>
    %2 = vector.shape_cast %1 : vector<1x8x32x16xbf16> to vector<8x32x16xbf16>
    %3 = vector.shape_cast %2 : vector<8x32x16xbf16> to vector<256x16xbf16>
    %c0_3 = arith.constant 0 : index
    %c0_4 = arith.constant 0 : index
    %c0_5 = arith.constant 0 : index
    %4 = vector.load %arg3[%c0_3, %c0_4, %c0_5] : memref<4x16x8xbf16, #tpu.memory_space<vmem>>, vector<1x16x8xbf16>
    %5 = vector.shape_cast %4 : vector<1x16x8xbf16> to vector<16x8xbf16>
    %cst_6 = arith.constant dense<0.000000e+00> : vector<256x8xf32>
    %6 = tpu.matmul %3, %5, %cst_6 {dimension_numbers = #tpu.dot_dimension_numbers<[1], [0], [0], [1], [0, 0, 1, 1], [], []>} : vector<256x16xbf16>, vector<16x8xbf16>, vector<256x8xf32> -> vector<256x8xf32>
    %7 = arith.addf %0, %6 : vector<256x8xf32>
    %c0_7 = arith.constant 0 : index
    %c0_8 = arith.constant 0 : index
    %c1 = arith.constant 1 : index
    %c0_9 = arith.constant 0 : index
    %8 = vector.load %arg2[%c0_7, %c0_8, %c1, %c0_9] : memref<1x9x33x16xbf16, #tpu.memory_space<vmem>>, vector<1x8x32x16xbf16>
    %9 = vector.shape_cast %8 : vector<1x8x32x16xbf16> to vector<8x32x16xbf16>
    %10 = vector.shape_cast %9 : vector<8x32x16xbf16> to vector<256x16xbf16>
    %c1_10 = arith.constant 1 : index
    %c0_11 = arith.constant 0 : index
    %c0_12 = arith.constant 0 : index
    %11 = vector.load %arg3[%c1_10, %c0_11, %c0_12] : memref<4x16x8xbf16, #tpu.memory_space<vmem>>, vector<1x16x8xbf16>
    %12 = vector.shape_cast %11 : vector<1x16x8xbf16> to vector<16x8xbf16>
    %cst_13 = arith.constant dense<0.000000e+00> : vector<256x8xf32>
    %13 = tpu.matmul %10, %12, %cst_13 {dimension_numbers = #tpu.dot_dimension_numbers<[1], [0], [0], [1], [0, 0, 1, 1], [], []>} : vector<256x16xbf16>, vector<16x8xbf16>, vector<256x8xf32> -> vector<256x8xf32>
    %14 = arith.addf %7, %13 : vector<256x8xf32>
    %c0_14 = arith.constant 0 : index
    %c1_15 = arith.constant 1 : index
    %c0_16 = arith.constant 0 : index
    %c0_17 = arith.constant 0 : index
    %15 = vector.load %arg2[%c0_14, %c1_15, %c0_16, %c0_17] : memref<1x9x33x16xbf16, #tpu.memory_space<vmem>>, vector<1x8x32x16xbf16>
    %16 = vector.shape_cast %15 : vector<1x8x32x16xbf16> to vector<8x32x16xbf16>
    %17 = vector.shape_cast %16 : vector<8x32x16xbf16> to vector<256x16xbf16>
    %c2 = arith.constant 2 : index
    %c0_18 = arith.constant 0 : index
    %c0_19 = arith.constant 0 : index
    %18 = vector.load %arg3[%c2, %c0_18, %c0_19] : memref<4x16x8xbf16, #tpu.memory_space<vmem>>, vector<1x16x8xbf16>
    %19 = vector.shape_cast %18 : vector<1x16x8xbf16> to vector<16x8xbf16>
    %cst_20 = arith.constant dense<0.000000e+00> : vector<256x8xf32>
    %20 = tpu.matmul %17, %19, %cst_20 {dimension_numbers = #tpu.dot_dimension_numbers<[1], [0], [0], [1], [0, 0, 1, 1], [], []>} : vector<256x16xbf16>, vector<16x8xbf16>, vector<256x8xf32> -> vector<256x8xf32>
    %21 = arith.addf %14, %20 : vector<256x8xf32>
    %c0_21 = arith.constant 0 : index
    %c1_22 = arith.constant 1 : index
    %c1_23 = arith.constant 1 : index
    %c0_24 = arith.constant 0 : index
    %22 = vector.load %arg2[%c0_21, %c1_22, %c1_23, %c0_24] : memref<1x9x33x16xbf16, #tpu.memory_space<vmem>>, vector<1x8x32x16xbf16>
    %23 = vector.shape_cast %22 : vector<1x8x32x16xbf16> to vector<8x32x16xbf16>
    %24 = vector.shape_cast %23 : vector<8x32x16xbf16> to vector<256x16xbf16>
    %c3 = arith.constant 3 : index
    %c0_25 = arith.constant 0 : index
    %c0_26 = arith.constant 0 : index
    %25 = vector.load %arg3[%c3, %c0_25, %c0_26] : memref<4x16x8xbf16, #tpu.memory_space<vmem>>, vector<1x16x8xbf16>
    %26 = vector.shape_cast %25 : vector<1x16x8xbf16> to vector<16x8xbf16>
    %cst_27 = arith.constant dense<0.000000e+00> : vector<256x8xf32>
    %27 = tpu.matmul %24, %26, %cst_27 {dimension_numbers = #tpu.dot_dimension_numbers<[1], [0], [0], [1], [0, 0, 1, 1], [], []>} : vector<256x16xbf16>, vector<16x8xbf16>, vector<256x8xf32> -> vector<256x8xf32>
    %28 = arith.addf %21, %27 : vector<256x8xf32>
    %c0_28 = arith.constant 0 : index
    %c0_29 = arith.constant 0 : index
    %29 = vector.load %arg4[%c0_28, %c0_29] : memref<1x8xf32, #tpu.memory_space<vmem>>, vector<1x8xf32>
    %30 = vector.broadcast %29 : vector<1x8xf32> to vector<256x8xf32>
    %31 = arith.addf %28, %30 : vector<256x8xf32>
    %32 = arith.truncf %31 : vector<256x8xf32> to vector<256x8xbf16>
    %c0_30 = arith.constant 0 : index
    %c0_31 = arith.constant 0 : index
    %33 = vector.load %arg5[%c0_30, %c0_31] : memref<256x8xbf16, #tpu.memory_space<vmem>>, vector<256x8xbf16>
    tpu.vector_store %arg5[%c0_30, %c0_31], %32 {strides = array<i32>} : memref<256x8xbf16, #tpu.memory_space<vmem>>, vector<256x8xbf16>,
    %cst_32 = arith.constant dense<0.000000e+00> : vector<8xf32>
    %34 = vector.multi_reduction <add>, %31, %cst_32 [0] : vector<256x8xf32> to vector<8xf32>
    %35 = vector.shape_cast %34 : vector<8xf32> to vector<1x8xf32>
    %cst_33 = arith.constant 3.906250e-03 : f32
    %36 = vector.broadcast %cst_33 : f32 to vector<1x8xf32>
    %37 = arith.mulf %35, %36 : vector<1x8xf32>
    %38 = vector.broadcast %37 : vector<1x8xf32> to vector<256x8xf32>
    %39 = arith.subf %31, %38 : vector<256x8xf32>
    %40 = arith.mulf %39, %39 : vector<256x8xf32>
    %cst_34 = arith.constant dense<0.000000e+00> : vector<8xf32>
    %41 = vector.multi_reduction <add>, %40, %cst_34 [0] : vector<256x8xf32> to vector<8xf32>
    %42 = vector.shape_cast %41 : vector<8xf32> to vector<1x8xf32>
    %43 = tpu.concatenate %35, %42 in 0 : vector<1x8xf32>, vector<1x8xf32> -> vector<2x8xf32>
    %c0_35 = arith.constant 0 : index
    %c0_36 = arith.constant 0 : index
    %c0_37 = arith.constant 0 : index
    %44 = vector.load %arg6[%c0_35, %c0_36, %c0_37] : memref<1x2x8xf32, #tpu.memory_space<vmem>>, vector<1x2x8xf32>
    %45 = vector.shape_cast %44 : vector<1x2x8xf32> to vector<2x8xf32>
    %46 = vector.shape_cast %43 : vector<2x8xf32> to vector<1x2x8xf32>
    tpu.vector_store %arg6[%c0_35, %c0_36, %c0_37], %46 {strides = array<i32>} : memref<1x2x8xf32, #tpu.memory_space<vmem>>, vector<1x2x8xf32>,
    return
  }
  func.func @transform_0(%arg0: i32, %arg1: i32) -> (i32, i32, i32, i32) {
    %c4_i32 = arith.constant 4 : i32
    %0 = arith.muli %arg0, %c4_i32 : i32
    %1 = arith.addi %0, %arg1 : i32
    %c0_i32 = arith.constant 0 : i32
    %c0_i32_0 = arith.constant 0 : i32
    %c0_i32_1 = arith.constant 0 : i32
    %c0_i32_2 = arith.constant 0 : i32
    return %1, %c0_i32, %c0_i32_0, %c0_i32_1 : i32, i32, i32, i32
  }
  func.func @transform_1(%arg0: i32, %arg1: i32) -> (i32, i32, i32) {
    %c0_i32 = arith.constant 0 : i32
    %c0_i32_0 = arith.constant 0 : i32
    %c0_i32_1 = arith.constant 0 : i32
    %c0_i32_2 = arith.constant 0 : i32
    return %c0_i32, %c0_i32_0, %c0_i32_1 : i32, i32, i32
  }
  func.func @transform_2(%arg0: i32, %arg1: i32) -> (i32, i32) {
    %c0_i32 = arith.constant 0 : i32
    %c0_i32_0 = arith.constant 0 : i32
    %c0_i32_1 = arith.constant 0 : i32
    return %c0_i32, %c0_i32_0 : i32, i32
  }
  func.func @transform_3(%arg0: i32, %arg1: i32) -> (i32, i32) {
    %c4_i32 = arith.constant 4 : i32
    %0 = arith.muli %arg0, %c4_i32 : i32
    %1 = arith.addi %0, %arg1 : i32
    %c0_i32 = arith.constant 0 : i32
    %c0_i32_0 = arith.constant 0 : i32
    return %1, %c0_i32 : i32, i32
  }
  func.func @transform_4(%arg0: i32, %arg1: i32) -> (i32, i32, i32) {
    %c4_i32 = arith.constant 4 : i32
    %0 = arith.muli %arg0, %c4_i32 : i32
    %1 = arith.addi %0, %arg1 : i32
    %c0_i32 = arith.constant 0 : i32
    %c0_i32_0 = arith.constant 0 : i32
    %c0_i32_1 = arith.constant 0 : i32
    return %1, %c0_i32, %c0_i32_0 : i32, i32, i32
  }
}

module attributes {stable_mosaic.version = 11 : i64} {
  func.func @bn_apply_kernel(%arg0: i32, %arg1: memref<64x256xbf16, #tpu.memory_space<vmem>>, %arg2: memref<1x256xf32, #tpu.memory_space<vmem>>, %arg3: memref<1x256xf32, #tpu.memory_space<vmem>>, %arg4: memref<64x256xbf16, #tpu.memory_space<vmem>>) attributes {dimension_semantics = [#tpu.dimension_semantics<parallel>], iteration_bounds = array<i64: 1>, scalar_prefetch = 0 : i64, scratch_operands = 0 : i64, tpu.core_type = #tpu.core_type<tc>, window_params = [{transform_indices = @transform_0, window_bounds = array<i64: 64, 256>}, {pipeline_mode = #tpu.pipeline_mode<synchronous>, transform_indices = @transform_1, window_bounds = array<i64: 1, 256>}, {pipeline_mode = #tpu.pipeline_mode<synchronous>, transform_indices = @transform_2, window_bounds = array<i64: 1, 256>}, {transform_indices = @transform_3, window_bounds = array<i64: 64, 256>}]} {
    %c0 = arith.constant 0 : index
    %c0_0 = arith.constant 0 : index
    %0 = vector.load %arg1[%c0, %c0_0] : memref<64x256xbf16, #tpu.memory_space<vmem>>, vector<64x256xbf16>
    %1 = arith.extf %0 : vector<64x256xbf16> to vector<64x256xf32>
    %c0_1 = arith.constant 0 : index
    %c0_2 = arith.constant 0 : index
    %2 = vector.load %arg2[%c0_1, %c0_2] : memref<1x256xf32, #tpu.memory_space<vmem>>, vector<1x256xf32>
    %3 = vector.broadcast %2 : vector<1x256xf32> to vector<64x256xf32>
    %4 = arith.mulf %1, %3 : vector<64x256xf32>
    %c0_3 = arith.constant 0 : index
    %c0_4 = arith.constant 0 : index
    %5 = vector.load %arg3[%c0_3, %c0_4] : memref<1x256xf32, #tpu.memory_space<vmem>>, vector<1x256xf32>
    %6 = vector.broadcast %5 : vector<1x256xf32> to vector<64x256xf32>
    %7 = arith.addf %4, %6 : vector<64x256xf32>
    %cst = arith.constant 0.000000e+00 : f32
    %8 = vector.broadcast %cst : f32 to vector<64x256xf32>
    %9 = arith.cmpf oge, %7, %8 : vector<64x256xf32>
    %cst_5 = arith.constant 2.000000e-01 : f32
    %10 = vector.broadcast %cst_5 : f32 to vector<64x256xf32>
    %11 = arith.mulf %10, %7 : vector<64x256xf32>
    %12 = arith.select %9, %7, %11 : vector<64x256xi1>, vector<64x256xf32>
    %13 = arith.truncf %12 : vector<64x256xf32> to vector<64x256xbf16>
    %c0_6 = arith.constant 0 : index
    %c0_7 = arith.constant 0 : index
    %14 = vector.load %arg4[%c0_6, %c0_7] : memref<64x256xbf16, #tpu.memory_space<vmem>>, vector<64x256xbf16>
    tpu.vector_store %arg4[%c0_6, %c0_7], %13 {strides = array<i32>} : memref<64x256xbf16, #tpu.memory_space<vmem>>, vector<64x256xbf16>,
    return
  }
  func.func @transform_0(%arg0: i32) -> (i32, i32) {
    %c0_i32 = arith.constant 0 : i32
    %c0_i32_0 = arith.constant 0 : i32
    return %arg0, %c0_i32 : i32, i32
  }
  func.func @transform_1(%arg0: i32) -> (i32, i32) {
    %c0_i32 = arith.constant 0 : i32
    %c0_i32_0 = arith.constant 0 : i32
    %c0_i32_1 = arith.constant 0 : i32
    return %c0_i32, %c0_i32_0 : i32, i32
  }
  func.func @transform_2(%arg0: i32) -> (i32, i32) {
    %c0_i32 = arith.constant 0 : i32
    %c0_i32_0 = arith.constant 0 : i32
    %c0_i32_1 = arith.constant 0 : i32
    return %c0_i32, %c0_i32_0 : i32, i32
  }
  func.func @transform_3(%arg0: i32) -> (i32, i32) {
    %c0_i32 = arith.constant 0 : i32
    %c0_i32_0 = arith.constant 0 : i32
    return %arg0, %c0_i32 : i32, i32
  }
}

module attributes {stable_mosaic.version = 11 : i64} {
  func.func @conv_stats_kernel(%arg0: i32, %arg1: i32, %arg2: memref<1x5x17x32xbf16, #tpu.memory_space<vmem>>, %arg3: memref<4x32x16xbf16, #tpu.memory_space<vmem>>, %arg4: memref<1x16xf32, #tpu.memory_space<vmem>>, %arg5: memref<64x16xbf16, #tpu.memory_space<vmem>>, %arg6: memref<1x2x16xf32, #tpu.memory_space<vmem>>) attributes {dimension_semantics = [#tpu.dimension_semantics<parallel>, #tpu.dimension_semantics<parallel>], iteration_bounds = array<i64: 2, 4>, scalar_prefetch = 0 : i64, scratch_operands = 0 : i64, tpu.core_type = #tpu.core_type<tc>, window_params = [{transform_indices = @transform_0, window_bounds = array<i64: 1, 5, 17, 32>}, {pipeline_mode = #tpu.pipeline_mode<synchronous>, transform_indices = @transform_1, window_bounds = array<i64: 4, 32, 16>}, {pipeline_mode = #tpu.pipeline_mode<synchronous>, transform_indices = @transform_2, window_bounds = array<i64: 1, 16>}, {transform_indices = @transform_3, window_bounds = array<i64: 64, 16>}, {transform_indices = @transform_4, window_bounds = array<i64: 1, 2, 16>}]} {
    %cst = arith.constant 0.000000e+00 : f32
    %0 = vector.broadcast %cst : f32 to vector<64x16xf32>
    %c0 = arith.constant 0 : index
    %c0_0 = arith.constant 0 : index
    %c0_1 = arith.constant 0 : index
    %c0_2 = arith.constant 0 : index
    %1 = vector.load %arg2[%c0, %c0_0, %c0_1, %c0_2] : memref<1x5x17x32xbf16, #tpu.memory_space<vmem>>, vector<1x4x16x32xbf16>
    %2 = vector.shape_cast %1 : vector<1x4x16x32xbf16> to vector<4x16x32xbf16>
    %3 = vector.shape_cast %2 : vector<4x16x32xbf16> to vector<64x32xbf16>
    %c0_3 = arith.constant 0 : index
    %c0_4 = arith.constant 0 : index
    %c0_5 = arith.constant 0 : index
    %4 = vector.load %arg3[%c0_3, %c0_4, %c0_5] : memref<4x32x16xbf16, #tpu.memory_space<vmem>>, vector<1x32x16xbf16>
    %5 = vector.shape_cast %4 : vector<1x32x16xbf16> to vector<32x16xbf16>
    %cst_6 = arith.constant dense<0.000000e+00> : vector<64x16xf32>
    %6 = tpu.matmul %3, %5, %cst_6 {dimension_numbers = #tpu.dot_dimension_numbers<[1], [0], [0], [1], [0, 0, 1, 1], [], []>} : vector<64x32xbf16>, vector<32x16xbf16>, vector<64x16xf32> -> vector<64x16xf32>
    %7 = arith.addf %0, %6 : vector<64x16xf32>
    %c0_7 = arith.constant 0 : index
    %c0_8 = arith.constant 0 : index
    %c1 = arith.constant 1 : index
    %c0_9 = arith.constant 0 : index
    %8 = vector.load %arg2[%c0_7, %c0_8, %c1, %c0_9] : memref<1x5x17x32xbf16, #tpu.memory_space<vmem>>, vector<1x4x16x32xbf16>
    %9 = vector.shape_cast %8 : vector<1x4x16x32xbf16> to vector<4x16x32xbf16>
    %10 = vector.shape_cast %9 : vector<4x16x32xbf16> to vector<64x32xbf16>
    %c1_10 = arith.constant 1 : index
    %c0_11 = arith.constant 0 : index
    %c0_12 = arith.constant 0 : index
    %11 = vector.load %arg3[%c1_10, %c0_11, %c0_12] : memref<4x32x16xbf16, #tpu.memory_space<vmem>>, vector<1x32x16xbf16>
    %12 = vector.shape_cast %11 : vector<1x32x16xbf16> to vector<32x16xbf16>
    %cst_13 = arith.constant dense<0.000000e+00> : vector<64x16xf32>
    %13 = tpu.matmul %10, %12, %cst_13 {dimension_numbers = #tpu.dot_dimension_numbers<[1], [0], [0], [1], [0, 0, 1, 1], [], []>} : vector<64x32xbf16>, vector<32x16xbf16>, vector<64x16xf32> -> vector<64x16xf32>
    %14 = arith.addf %7, %13 : vector<64x16xf32>
    %c0_14 = arith.constant 0 : index
    %c1_15 = arith.constant 1 : index
    %c0_16 = arith.constant 0 : index
    %c0_17 = arith.constant 0 : index
    %15 = vector.load %arg2[%c0_14, %c1_15, %c0_16, %c0_17] : memref<1x5x17x32xbf16, #tpu.memory_space<vmem>>, vector<1x4x16x32xbf16>
    %16 = vector.shape_cast %15 : vector<1x4x16x32xbf16> to vector<4x16x32xbf16>
    %17 = vector.shape_cast %16 : vector<4x16x32xbf16> to vector<64x32xbf16>
    %c2 = arith.constant 2 : index
    %c0_18 = arith.constant 0 : index
    %c0_19 = arith.constant 0 : index
    %18 = vector.load %arg3[%c2, %c0_18, %c0_19] : memref<4x32x16xbf16, #tpu.memory_space<vmem>>, vector<1x32x16xbf16>
    %19 = vector.shape_cast %18 : vector<1x32x16xbf16> to vector<32x16xbf16>
    %cst_20 = arith.constant dense<0.000000e+00> : vector<64x16xf32>
    %20 = tpu.matmul %17, %19, %cst_20 {dimension_numbers = #tpu.dot_dimension_numbers<[1], [0], [0], [1], [0, 0, 1, 1], [], []>} : vector<64x32xbf16>, vector<32x16xbf16>, vector<64x16xf32> -> vector<64x16xf32>
    %21 = arith.addf %14, %20 : vector<64x16xf32>
    %c0_21 = arith.constant 0 : index
    %c1_22 = arith.constant 1 : index
    %c1_23 = arith.constant 1 : index
    %c0_24 = arith.constant 0 : index
    %22 = vector.load %arg2[%c0_21, %c1_22, %c1_23, %c0_24] : memref<1x5x17x32xbf16, #tpu.memory_space<vmem>>, vector<1x4x16x32xbf16>
    %23 = vector.shape_cast %22 : vector<1x4x16x32xbf16> to vector<4x16x32xbf16>
    %24 = vector.shape_cast %23 : vector<4x16x32xbf16> to vector<64x32xbf16>
    %c3 = arith.constant 3 : index
    %c0_25 = arith.constant 0 : index
    %c0_26 = arith.constant 0 : index
    %25 = vector.load %arg3[%c3, %c0_25, %c0_26] : memref<4x32x16xbf16, #tpu.memory_space<vmem>>, vector<1x32x16xbf16>
    %26 = vector.shape_cast %25 : vector<1x32x16xbf16> to vector<32x16xbf16>
    %cst_27 = arith.constant dense<0.000000e+00> : vector<64x16xf32>
    %27 = tpu.matmul %24, %26, %cst_27 {dimension_numbers = #tpu.dot_dimension_numbers<[1], [0], [0], [1], [0, 0, 1, 1], [], []>} : vector<64x32xbf16>, vector<32x16xbf16>, vector<64x16xf32> -> vector<64x16xf32>
    %28 = arith.addf %21, %27 : vector<64x16xf32>
    %c0_28 = arith.constant 0 : index
    %c0_29 = arith.constant 0 : index
    %29 = vector.load %arg4[%c0_28, %c0_29] : memref<1x16xf32, #tpu.memory_space<vmem>>, vector<1x16xf32>
    %30 = vector.broadcast %29 : vector<1x16xf32> to vector<64x16xf32>
    %31 = arith.addf %28, %30 : vector<64x16xf32>
    %32 = arith.truncf %31 : vector<64x16xf32> to vector<64x16xbf16>
    %c0_30 = arith.constant 0 : index
    %c0_31 = arith.constant 0 : index
    %33 = vector.load %arg5[%c0_30, %c0_31] : memref<64x16xbf16, #tpu.memory_space<vmem>>, vector<64x16xbf16>
    tpu.vector_store %arg5[%c0_30, %c0_31], %32 {strides = array<i32>} : memref<64x16xbf16, #tpu.memory_space<vmem>>, vector<64x16xbf16>,
    %cst_32 = arith.constant dense<0.000000e+00> : vector<16xf32>
    %34 = vector.multi_reduction <add>, %31, %cst_32 [0] : vector<64x16xf32> to vector<16xf32>
    %35 = vector.shape_cast %34 : vector<16xf32> to vector<1x16xf32>
    %cst_33 = arith.constant 1.562500e-02 : f32
    %36 = vector.broadcast %cst_33 : f32 to vector<1x16xf32>
    %37 = arith.mulf %35, %36 : vector<1x16xf32>
    %38 = vector.broadcast %37 : vector<1x16xf32> to vector<64x16xf32>
    %39 = arith.subf %31, %38 : vector<64x16xf32>
    %40 = arith.mulf %39, %39 : vector<64x16xf32>
    %cst_34 = arith.constant dense<0.000000e+00> : vector<16xf32>
    %41 = vector.multi_reduction <add>, %40, %cst_34 [0] : vector<64x16xf32> to vector<16xf32>
    %42 = vector.shape_cast %41 : vector<16xf32> to vector<1x16xf32>
    %43 = tpu.concatenate %35, %42 in 0 : vector<1x16xf32>, vector<1x16xf32> -> vector<2x16xf32>
    %c0_35 = arith.constant 0 : index
    %c0_36 = arith.constant 0 : index
    %c0_37 = arith.constant 0 : index
    %44 = vector.load %arg6[%c0_35, %c0_36, %c0_37] : memref<1x2x16xf32, #tpu.memory_space<vmem>>, vector<1x2x16xf32>
    %45 = vector.shape_cast %44 : vector<1x2x16xf32> to vector<2x16xf32>
    %46 = vector.shape_cast %43 : vector<2x16xf32> to vector<1x2x16xf32>
    tpu.vector_store %arg6[%c0_35, %c0_36, %c0_37], %46 {strides = array<i32>} : memref<1x2x16xf32, #tpu.memory_space<vmem>>, vector<1x2x16xf32>,
    return
  }
  func.func @transform_0(%arg0: i32, %arg1: i32) -> (i32, i32, i32, i32) {
    %c4_i32 = arith.constant 4 : i32
    %0 = arith.muli %arg0, %c4_i32 : i32
    %1 = arith.addi %0, %arg1 : i32
    %c0_i32 = arith.constant 0 : i32
    %c0_i32_0 = arith.constant 0 : i32
    %c0_i32_1 = arith.constant 0 : i32
    %c0_i32_2 = arith.constant 0 : i32
    return %1, %c0_i32, %c0_i32_0, %c0_i32_1 : i32, i32, i32, i32
  }
  func.func @transform_1(%arg0: i32, %arg1: i32) -> (i32, i32, i32) {
    %c0_i32 = arith.constant 0 : i32
    %c0_i32_0 = arith.constant 0 : i32
    %c0_i32_1 = arith.constant 0 : i32
    %c0_i32_2 = arith.constant 0 : i32
    return %c0_i32, %c0_i32_0, %c0_i32_1 : i32, i32, i32
  }
  func.func @transform_2(%arg0: i32, %arg1: i32) -> (i32, i32) {
    %c0_i32 = arith.constant 0 : i32
    %c0_i32_0 = arith.constant 0 : i32
    %c0_i32_1 = arith.constant 0 : i32
    return %c0_i32, %c0_i32_0 : i32, i32
  }
  func.func @transform_3(%arg0: i32, %arg1: i32) -> (i32, i32) {
    %c4_i32 = arith.constant 4 : i32
    %0 = arith.muli %arg0, %c4_i32 : i32
    %1 = arith.addi %0, %arg1 : i32
    %c0_i32 = arith.constant 0 : i32
    %c0_i32_0 = arith.constant 0 : i32
    return %1, %c0_i32 : i32, i32
  }
  func.func @transform_4(%arg0: i32, %arg1: i32) -> (i32, i32, i32) {
    %c4_i32 = arith.constant 4 : i32
    %0 = arith.muli %arg0, %c4_i32 : i32
    %1 = arith.addi %0, %arg1 : i32
    %c0_i32 = arith.constant 0 : i32
    %c0_i32_0 = arith.constant 0 : i32
    %c0_i32_1 = arith.constant 0 : i32
    return %1, %c0_i32, %c0_i32_0 : i32, i32, i32
  }
}

module attributes {stable_mosaic.version = 11 : i64} {
  func.func @bn_apply_kernel(%arg0: i32, %arg1: memref<32x256xbf16, #tpu.memory_space<vmem>>, %arg2: memref<1x256xf32, #tpu.memory_space<vmem>>, %arg3: memref<1x256xf32, #tpu.memory_space<vmem>>, %arg4: memref<32x256xbf16, #tpu.memory_space<vmem>>) attributes {dimension_semantics = [#tpu.dimension_semantics<parallel>], iteration_bounds = array<i64: 1>, scalar_prefetch = 0 : i64, scratch_operands = 0 : i64, tpu.core_type = #tpu.core_type<tc>, window_params = [{transform_indices = @transform_0, window_bounds = array<i64: 32, 256>}, {pipeline_mode = #tpu.pipeline_mode<synchronous>, transform_indices = @transform_1, window_bounds = array<i64: 1, 256>}, {pipeline_mode = #tpu.pipeline_mode<synchronous>, transform_indices = @transform_2, window_bounds = array<i64: 1, 256>}, {transform_indices = @transform_3, window_bounds = array<i64: 32, 256>}]} {
    %c0 = arith.constant 0 : index
    %c0_0 = arith.constant 0 : index
    %0 = vector.load %arg1[%c0, %c0_0] : memref<32x256xbf16, #tpu.memory_space<vmem>>, vector<32x256xbf16>
    %1 = arith.extf %0 : vector<32x256xbf16> to vector<32x256xf32>
    %c0_1 = arith.constant 0 : index
    %c0_2 = arith.constant 0 : index
    %2 = vector.load %arg2[%c0_1, %c0_2] : memref<1x256xf32, #tpu.memory_space<vmem>>, vector<1x256xf32>
    %3 = vector.broadcast %2 : vector<1x256xf32> to vector<32x256xf32>
    %4 = arith.mulf %1, %3 : vector<32x256xf32>
    %c0_3 = arith.constant 0 : index
    %c0_4 = arith.constant 0 : index
    %5 = vector.load %arg3[%c0_3, %c0_4] : memref<1x256xf32, #tpu.memory_space<vmem>>, vector<1x256xf32>
    %6 = vector.broadcast %5 : vector<1x256xf32> to vector<32x256xf32>
    %7 = arith.addf %4, %6 : vector<32x256xf32>
    %cst = arith.constant 0.000000e+00 : f32
    %8 = vector.broadcast %cst : f32 to vector<32x256xf32>
    %9 = arith.cmpf oge, %7, %8 : vector<32x256xf32>
    %cst_5 = arith.constant 2.000000e-01 : f32
    %10 = vector.broadcast %cst_5 : f32 to vector<32x256xf32>
    %11 = arith.mulf %10, %7 : vector<32x256xf32>
    %12 = arith.select %9, %7, %11 : vector<32x256xi1>, vector<32x256xf32>
    %13 = arith.truncf %12 : vector<32x256xf32> to vector<32x256xbf16>
    %c0_6 = arith.constant 0 : index
    %c0_7 = arith.constant 0 : index
    %14 = vector.load %arg4[%c0_6, %c0_7] : memref<32x256xbf16, #tpu.memory_space<vmem>>, vector<32x256xbf16>
    tpu.vector_store %arg4[%c0_6, %c0_7], %13 {strides = array<i32>} : memref<32x256xbf16, #tpu.memory_space<vmem>>, vector<32x256xbf16>,
    return
  }
  func.func @transform_0(%arg0: i32) -> (i32, i32) {
    %c0_i32 = arith.constant 0 : i32
    %c0_i32_0 = arith.constant 0 : i32
    return %arg0, %c0_i32 : i32, i32
  }
  func.func @transform_1(%arg0: i32) -> (i32, i32) {
    %c0_i32 = arith.constant 0 : i32
    %c0_i32_0 = arith.constant 0 : i32
    %c0_i32_1 = arith.constant 0 : i32
    return %c0_i32, %c0_i32_0 : i32, i32
  }
  func.func @transform_2(%arg0: i32) -> (i32, i32) {
    %c0_i32 = arith.constant 0 : i32
    %c0_i32_0 = arith.constant 0 : i32
    %c0_i32_1 = arith.constant 0 : i32
    return %c0_i32, %c0_i32_0 : i32, i32
  }
  func.func @transform_3(%arg0: i32) -> (i32, i32) {
    %c0_i32 = arith.constant 0 : i32
    %c0_i32_0 = arith.constant 0 : i32
    return %arg0, %c0_i32 : i32, i32
  }
}

module attributes {stable_mosaic.version = 11 : i64} {
  func.func @fused_conv_bn_lrelu_kernel(%arg0: i32, %arg1: memref<128x144xbf16, #tpu.memory_space<vmem>>, %arg2: memref<144x32xbf16, #tpu.memory_space<vmem>>, %arg3: memref<1x32xf32, #tpu.memory_space<vmem>>, %arg4: memref<2x32xf32, #tpu.memory_space<vmem>>, %arg5: memref<128x32xbf16, #tpu.memory_space<vmem>>) attributes {dimension_semantics = [#tpu.dimension_semantics<arbitrary>], iteration_bounds = array<i64: 1>, scalar_prefetch = 0 : i64, scratch_operands = 0 : i64, tpu.core_type = #tpu.core_type<tc>, window_params = [{pipeline_mode = #tpu.pipeline_mode<synchronous>, transform_indices = @transform_0, window_bounds = array<i64: 128, 144>}, {pipeline_mode = #tpu.pipeline_mode<synchronous>, transform_indices = @transform_1, window_bounds = array<i64: 144, 32>}, {pipeline_mode = #tpu.pipeline_mode<synchronous>, transform_indices = @transform_2, window_bounds = array<i64: 1, 32>}, {pipeline_mode = #tpu.pipeline_mode<synchronous>, transform_indices = @transform_3, window_bounds = array<i64: 2, 32>}, {pipeline_mode = #tpu.pipeline_mode<synchronous>, transform_indices = @transform_4, window_bounds = array<i64: 128, 32>}]} {
    %c0 = arith.constant 0 : index
    %c0_0 = arith.constant 0 : index
    %0 = vector.load %arg1[%c0, %c0_0] : memref<128x144xbf16, #tpu.memory_space<vmem>>, vector<128x144xbf16>
    %c0_1 = arith.constant 0 : index
    %c0_2 = arith.constant 0 : index
    %1 = vector.load %arg2[%c0_1, %c0_2] : memref<144x32xbf16, #tpu.memory_space<vmem>>, vector<144x32xbf16>
    %cst = arith.constant dense<0.000000e+00> : vector<128x32xf32>
    %2 = tpu.matmul %0, %1, %cst {dimension_numbers = #tpu.dot_dimension_numbers<[1], [0], [0], [1], [0, 0, 1, 1], [], []>} : vector<128x144xbf16>, vector<144x32xbf16>, vector<128x32xf32> -> vector<128x32xf32>
    %c0_3 = arith.constant 0 : index
    %c0_4 = arith.constant 0 : index
    %3 = vector.load %arg3[%c0_3, %c0_4] : memref<1x32xf32, #tpu.memory_space<vmem>>, vector<1x32xf32>
    %4 = vector.broadcast %3 : vector<1x32xf32> to vector<128x32xf32>
    %5 = arith.addf %2, %4 : vector<128x32xf32>
    %cst_5 = arith.constant dense<0.000000e+00> : vector<32xf32>
    %6 = vector.multi_reduction <add>, %5, %cst_5 [0] : vector<128x32xf32> to vector<32xf32>
    %7 = vector.shape_cast %6 : vector<32xf32> to vector<1x32xf32>
    %cst_6 = arith.constant 1.280000e+02 : f32
    %8 = vector.broadcast %cst_6 : f32 to vector<1x32xf32>
    %9 = arith.divf %7, %8 : vector<1x32xf32>
    %10 = vector.broadcast %9 : vector<1x32xf32> to vector<128x32xf32>
    %11 = arith.subf %5, %10 : vector<128x32xf32>
    %12 = arith.mulf %11, %11 : vector<128x32xf32>
    %cst_7 = arith.constant dense<0.000000e+00> : vector<32xf32>
    %13 = vector.multi_reduction <add>, %12, %cst_7 [0] : vector<128x32xf32> to vector<32xf32>
    %14 = vector.shape_cast %13 : vector<32xf32> to vector<1x32xf32>
    %cst_8 = arith.constant 1.280000e+02 : f32
    %15 = vector.broadcast %cst_8 : f32 to vector<1x32xf32>
    %16 = arith.divf %14, %15 : vector<1x32xf32>
    %c0_9 = arith.constant 0 : index
    %c0_10 = arith.constant 0 : index
    %17 = vector.load %arg4[%c0_9, %c0_10] : memref<2x32xf32, #tpu.memory_space<vmem>>, vector<1x32xf32>
    %cst_11 = arith.constant 9.99999974E-6 : f32
    %18 = vector.broadcast %cst_11 : f32 to vector<1x32xf32>
    %19 = arith.addf %16, %18 : vector<1x32xf32>
    %20 = math.rsqrt %19 : vector<1x32xf32>
    %21 = arith.mulf %17, %20 : vector<1x32xf32>
    %22 = vector.broadcast %21 : vector<1x32xf32> to vector<128x32xf32>
    %23 = arith.mulf %11, %22 : vector<128x32xf32>
    %c1 = arith.constant 1 : index
    %c0_12 = arith.constant 0 : index
    %24 = vector.load %arg4[%c1, %c0_12] : memref<2x32xf32, #tpu.memory_space<vmem>>, vector<1x32xf32>
    %25 = vector.broadcast %24 : vector<1x32xf32> to vector<128x32xf32>
    %26 = arith.addf %23, %25 : vector<128x32xf32>
    %cst_13 = arith.constant 0.000000e+00 : f32
    %27 = vector.broadcast %cst_13 : f32 to vector<128x32xf32>
    %28 = arith.cmpf oge, %26, %27 : vector<128x32xf32>
    %cst_14 = arith.constant 2.000000e-01 : f32
    %29 = vector.broadcast %cst_14 : f32 to vector<128x32xf32>
    %30 = arith.mulf %29, %26 : vector<128x32xf32>
    %31 = arith.select %28, %26, %30 : vector<128x32xi1>, vector<128x32xf32>
    %32 = arith.truncf %31 : vector<128x32xf32> to vector<128x32xbf16>
    %c0_15 = arith.constant 0 : index
    %c0_16 = arith.constant 0 : index
    %33 = vector.load %arg5[%c0_15, %c0_16] : memref<128x32xbf16, #tpu.memory_space<vmem>>, vector<128x32xbf16>
    tpu.vector_store %arg5[%c0_15, %c0_16], %32 {strides = array<i32>} : memref<128x32xbf16, #tpu.memory_space<vmem>>, vector<128x32xbf16>,
    return
  }
  func.func @transform_0(%arg0: i32) -> (i32, i32) {
    %c0_i32 = arith.constant 0 : i32
    %c0_i32_0 = arith.constant 0 : i32
    %c0_i32_1 = arith.constant 0 : i32
    return %c0_i32, %c0_i32_0 : i32, i32
  }
  func.func @transform_1(%arg0: i32) -> (i32, i32) {
    %c0_i32 = arith.constant 0 : i32
    %c0_i32_0 = arith.constant 0 : i32
    %c0_i32_1 = arith.constant 0 : i32
    return %c0_i32, %c0_i32_0 : i32, i32
  }
  func.func @transform_2(%arg0: i32) -> (i32, i32) {
    %c0_i32 = arith.constant 0 : i32
    %c0_i32_0 = arith.constant 0 : i32
    %c0_i32_1 = arith.constant 0 : i32
    return %c0_i32, %c0_i32_0 : i32, i32
  }
  func.func @transform_3(%arg0: i32) -> (i32, i32) {
    %c0_i32 = arith.constant 0 : i32
    %c0_i32_0 = arith.constant 0 : i32
    %c0_i32_1 = arith.constant 0 : i32
    return %c0_i32, %c0_i32_0 : i32, i32
  }
  func.func @transform_4(%arg0: i32) -> (i32, i32) {
    %c0_i32 = arith.constant 0 : i32
    %c0_i32_0 = arith.constant 0 : i32
    %c0_i32_1 = arith.constant 0 : i32
    return %c0_i32, %c0_i32_0 : i32, i32
  }
}

module attributes {stable_mosaic.version = 11 : i64} {
  func.func @fused_conv_bn_lrelu_kernel(%arg0: i32, %arg1: memref<32x288xbf16, #tpu.memory_space<vmem>>, %arg2: memref<288x32xbf16, #tpu.memory_space<vmem>>, %arg3: memref<1x32xf32, #tpu.memory_space<vmem>>, %arg4: memref<2x32xf32, #tpu.memory_space<vmem>>, %arg5: memref<32x32xbf16, #tpu.memory_space<vmem>>) attributes {dimension_semantics = [#tpu.dimension_semantics<arbitrary>], iteration_bounds = array<i64: 1>, scalar_prefetch = 0 : i64, scratch_operands = 0 : i64, tpu.core_type = #tpu.core_type<tc>, window_params = [{pipeline_mode = #tpu.pipeline_mode<synchronous>, transform_indices = @transform_0, window_bounds = array<i64: 32, 288>}, {pipeline_mode = #tpu.pipeline_mode<synchronous>, transform_indices = @transform_1, window_bounds = array<i64: 288, 32>}, {pipeline_mode = #tpu.pipeline_mode<synchronous>, transform_indices = @transform_2, window_bounds = array<i64: 1, 32>}, {pipeline_mode = #tpu.pipeline_mode<synchronous>, transform_indices = @transform_3, window_bounds = array<i64: 2, 32>}, {pipeline_mode = #tpu.pipeline_mode<synchronous>, transform_indices = @transform_4, window_bounds = array<i64: 32, 32>}]} {
    %c0 = arith.constant 0 : index
    %c0_0 = arith.constant 0 : index
    %0 = vector.load %arg1[%c0, %c0_0] : memref<32x288xbf16, #tpu.memory_space<vmem>>, vector<32x288xbf16>
    %c0_1 = arith.constant 0 : index
    %c0_2 = arith.constant 0 : index
    %1 = vector.load %arg2[%c0_1, %c0_2] : memref<288x32xbf16, #tpu.memory_space<vmem>>, vector<288x32xbf16>
    %cst = arith.constant dense<0.000000e+00> : vector<32x32xf32>
    %2 = tpu.matmul %0, %1, %cst {dimension_numbers = #tpu.dot_dimension_numbers<[1], [0], [0], [1], [0, 0, 1, 1], [], []>} : vector<32x288xbf16>, vector<288x32xbf16>, vector<32x32xf32> -> vector<32x32xf32>
    %c0_3 = arith.constant 0 : index
    %c0_4 = arith.constant 0 : index
    %3 = vector.load %arg3[%c0_3, %c0_4] : memref<1x32xf32, #tpu.memory_space<vmem>>, vector<1x32xf32>
    %4 = vector.broadcast %3 : vector<1x32xf32> to vector<32x32xf32>
    %5 = arith.addf %2, %4 : vector<32x32xf32>
    %cst_5 = arith.constant dense<0.000000e+00> : vector<32xf32>
    %6 = vector.multi_reduction <add>, %5, %cst_5 [0] : vector<32x32xf32> to vector<32xf32>
    %7 = vector.shape_cast %6 : vector<32xf32> to vector<1x32xf32>
    %cst_6 = arith.constant 3.200000e+01 : f32
    %8 = vector.broadcast %cst_6 : f32 to vector<1x32xf32>
    %9 = arith.divf %7, %8 : vector<1x32xf32>
    %10 = vector.broadcast %9 : vector<1x32xf32> to vector<32x32xf32>
    %11 = arith.subf %5, %10 : vector<32x32xf32>
    %12 = arith.mulf %11, %11 : vector<32x32xf32>
    %cst_7 = arith.constant dense<0.000000e+00> : vector<32xf32>
    %13 = vector.multi_reduction <add>, %12, %cst_7 [0] : vector<32x32xf32> to vector<32xf32>
    %14 = vector.shape_cast %13 : vector<32xf32> to vector<1x32xf32>
    %cst_8 = arith.constant 3.200000e+01 : f32
    %15 = vector.broadcast %cst_8 : f32 to vector<1x32xf32>
    %16 = arith.divf %14, %15 : vector<1x32xf32>
    %c0_9 = arith.constant 0 : index
    %c0_10 = arith.constant 0 : index
    %17 = vector.load %arg4[%c0_9, %c0_10] : memref<2x32xf32, #tpu.memory_space<vmem>>, vector<1x32xf32>
    %cst_11 = arith.constant 9.99999974E-6 : f32
    %18 = vector.broadcast %cst_11 : f32 to vector<1x32xf32>
    %19 = arith.addf %16, %18 : vector<1x32xf32>
    %20 = math.rsqrt %19 : vector<1x32xf32>
    %21 = arith.mulf %17, %20 : vector<1x32xf32>
    %22 = vector.broadcast %21 : vector<1x32xf32> to vector<32x32xf32>
    %23 = arith.mulf %11, %22 : vector<32x32xf32>
    %c1 = arith.constant 1 : index
    %c0_12 = arith.constant 0 : index
    %24 = vector.load %arg4[%c1, %c0_12] : memref<2x32xf32, #tpu.memory_space<vmem>>, vector<1x32xf32>
    %25 = vector.broadcast %24 : vector<1x32xf32> to vector<32x32xf32>
    %26 = arith.addf %23, %25 : vector<32x32xf32>
    %cst_13 = arith.constant 0.000000e+00 : f32
    %27 = vector.broadcast %cst_13 : f32 to vector<32x32xf32>
    %28 = arith.cmpf oge, %26, %27 : vector<32x32xf32>
    %cst_14 = arith.constant 2.000000e-01 : f32
    %29 = vector.broadcast %cst_14 : f32 to vector<32x32xf32>
    %30 = arith.mulf %29, %26 : vector<32x32xf32>
    %31 = arith.select %28, %26, %30 : vector<32x32xi1>, vector<32x32xf32>
    %32 = arith.truncf %31 : vector<32x32xf32> to vector<32x32xbf16>
    %c0_15 = arith.constant 0 : index
    %c0_16 = arith.constant 0 : index
    %33 = vector.load %arg5[%c0_15, %c0_16] : memref<32x32xbf16, #tpu.memory_space<vmem>>, vector<32x32xbf16>
    tpu.vector_store %arg5[%c0_15, %c0_16], %32 {strides = array<i32>} : memref<32x32xbf16, #tpu.memory_space<vmem>>, vector<32x32xbf16>,
    return
  }
  func.func @transform_0(%arg0: i32) -> (i32, i32) {
    %c0_i32 = arith.constant 0 : i32
    %c0_i32_0 = arith.constant 0 : i32
    %c0_i32_1 = arith.constant 0 : i32
    return %c0_i32, %c0_i32_0 : i32, i32
  }
  func.func @transform_1(%arg0: i32) -> (i32, i32) {
    %c0_i32 = arith.constant 0 : i32
    %c0_i32_0 = arith.constant 0 : i32
    %c0_i32_1 = arith.constant 0 : i32
    return %c0_i32, %c0_i32_0 : i32, i32
  }
  func.func @transform_2(%arg0: i32) -> (i32, i32) {
    %c0_i32 = arith.constant 0 : i32
    %c0_i32_0 = arith.constant 0 : i32
    %c0_i32_1 = arith.constant 0 : i32
    return %c0_i32, %c0_i32_0 : i32, i32
  }
  func.func @transform_3(%arg0: i32) -> (i32, i32) {
    %c0_i32 = arith.constant 0 : i32
    %c0_i32_0 = arith.constant 0 : i32
    %c0_i32_1 = arith.constant 0 : i32
    return %c0_i32, %c0_i32_0 : i32, i32
  }
  func.func @transform_4(%arg0: i32) -> (i32, i32) {
    %c0_i32 = arith.constant 0 : i32
    %c0_i32_0 = arith.constant 0 : i32
    %c0_i32_1 = arith.constant 0 : i32
    return %c0_i32, %c0_i32_0 : i32, i32
  }
}

module attributes {stable_mosaic.version = 11 : i64} {
  func.func @fused_conv_bn_lrelu_kernel(%arg0: i32, %arg1: memref<8x288xbf16, #tpu.memory_space<vmem>>, %arg2: memref<288x32xbf16, #tpu.memory_space<vmem>>, %arg3: memref<1x32xf32, #tpu.memory_space<vmem>>, %arg4: memref<2x32xf32, #tpu.memory_space<vmem>>, %arg5: memref<8x32xbf16, #tpu.memory_space<vmem>>) attributes {dimension_semantics = [#tpu.dimension_semantics<arbitrary>], iteration_bounds = array<i64: 1>, scalar_prefetch = 0 : i64, scratch_operands = 0 : i64, tpu.core_type = #tpu.core_type<tc>, window_params = [{pipeline_mode = #tpu.pipeline_mode<synchronous>, transform_indices = @transform_0, window_bounds = array<i64: 8, 288>}, {pipeline_mode = #tpu.pipeline_mode<synchronous>, transform_indices = @transform_1, window_bounds = array<i64: 288, 32>}, {pipeline_mode = #tpu.pipeline_mode<synchronous>, transform_indices = @transform_2, window_bounds = array<i64: 1, 32>}, {pipeline_mode = #tpu.pipeline_mode<synchronous>, transform_indices = @transform_3, window_bounds = array<i64: 2, 32>}, {pipeline_mode = #tpu.pipeline_mode<synchronous>, transform_indices = @transform_4, window_bounds = array<i64: 8, 32>}]} {
    %c0 = arith.constant 0 : index
    %c0_0 = arith.constant 0 : index
    %0 = vector.load %arg1[%c0, %c0_0] : memref<8x288xbf16, #tpu.memory_space<vmem>>, vector<8x288xbf16>
    %c0_1 = arith.constant 0 : index
    %c0_2 = arith.constant 0 : index
    %1 = vector.load %arg2[%c0_1, %c0_2] : memref<288x32xbf16, #tpu.memory_space<vmem>>, vector<288x32xbf16>
    %cst = arith.constant dense<0.000000e+00> : vector<8x32xf32>
    %2 = tpu.matmul %0, %1, %cst {dimension_numbers = #tpu.dot_dimension_numbers<[1], [0], [0], [1], [0, 0, 1, 1], [], []>} : vector<8x288xbf16>, vector<288x32xbf16>, vector<8x32xf32> -> vector<8x32xf32>
    %c0_3 = arith.constant 0 : index
    %c0_4 = arith.constant 0 : index
    %3 = vector.load %arg3[%c0_3, %c0_4] : memref<1x32xf32, #tpu.memory_space<vmem>>, vector<1x32xf32>
    %4 = vector.broadcast %3 : vector<1x32xf32> to vector<8x32xf32>
    %5 = arith.addf %2, %4 : vector<8x32xf32>
    %cst_5 = arith.constant dense<0.000000e+00> : vector<32xf32>
    %6 = vector.multi_reduction <add>, %5, %cst_5 [0] : vector<8x32xf32> to vector<32xf32>
    %7 = vector.shape_cast %6 : vector<32xf32> to vector<1x32xf32>
    %cst_6 = arith.constant 8.000000e+00 : f32
    %8 = vector.broadcast %cst_6 : f32 to vector<1x32xf32>
    %9 = arith.divf %7, %8 : vector<1x32xf32>
    %10 = vector.broadcast %9 : vector<1x32xf32> to vector<8x32xf32>
    %11 = arith.subf %5, %10 : vector<8x32xf32>
    %12 = arith.mulf %11, %11 : vector<8x32xf32>
    %cst_7 = arith.constant dense<0.000000e+00> : vector<32xf32>
    %13 = vector.multi_reduction <add>, %12, %cst_7 [0] : vector<8x32xf32> to vector<32xf32>
    %14 = vector.shape_cast %13 : vector<32xf32> to vector<1x32xf32>
    %cst_8 = arith.constant 8.000000e+00 : f32
    %15 = vector.broadcast %cst_8 : f32 to vector<1x32xf32>
    %16 = arith.divf %14, %15 : vector<1x32xf32>
    %c0_9 = arith.constant 0 : index
    %c0_10 = arith.constant 0 : index
    %17 = vector.load %arg4[%c0_9, %c0_10] : memref<2x32xf32, #tpu.memory_space<vmem>>, vector<1x32xf32>
    %cst_11 = arith.constant 9.99999974E-6 : f32
    %18 = vector.broadcast %cst_11 : f32 to vector<1x32xf32>
    %19 = arith.addf %16, %18 : vector<1x32xf32>
    %20 = math.rsqrt %19 : vector<1x32xf32>
    %21 = arith.mulf %17, %20 : vector<1x32xf32>
    %22 = vector.broadcast %21 : vector<1x32xf32> to vector<8x32xf32>
    %23 = arith.mulf %11, %22 : vector<8x32xf32>
    %c1 = arith.constant 1 : index
    %c0_12 = arith.constant 0 : index
    %24 = vector.load %arg4[%c1, %c0_12] : memref<2x32xf32, #tpu.memory_space<vmem>>, vector<1x32xf32>
    %25 = vector.broadcast %24 : vector<1x32xf32> to vector<8x32xf32>
    %26 = arith.addf %23, %25 : vector<8x32xf32>
    %cst_13 = arith.constant 0.000000e+00 : f32
    %27 = vector.broadcast %cst_13 : f32 to vector<8x32xf32>
    %28 = arith.cmpf oge, %26, %27 : vector<8x32xf32>
    %cst_14 = arith.constant 2.000000e-01 : f32
    %29 = vector.broadcast %cst_14 : f32 to vector<8x32xf32>
    %30 = arith.mulf %29, %26 : vector<8x32xf32>
    %31 = arith.select %28, %26, %30 : vector<8x32xi1>, vector<8x32xf32>
    %32 = arith.truncf %31 : vector<8x32xf32> to vector<8x32xbf16>
    %c0_15 = arith.constant 0 : index
    %c0_16 = arith.constant 0 : index
    %33 = vector.load %arg5[%c0_15, %c0_16] : memref<8x32xbf16, #tpu.memory_space<vmem>>, vector<8x32xbf16>
    tpu.vector_store %arg5[%c0_15, %c0_16], %32 {strides = array<i32>} : memref<8x32xbf16, #tpu.memory_space<vmem>>, vector<8x32xbf16>,
    return
  }
  func.func @transform_0(%arg0: i32) -> (i32, i32) {
    %c0_i32 = arith.constant 0 : i32
    %c0_i32_0 = arith.constant 0 : i32
    %c0_i32_1 = arith.constant 0 : i32
    return %c0_i32, %c0_i32_0 : i32, i32
  }
  func.func @transform_1(%arg0: i32) -> (i32, i32) {
    %c0_i32 = arith.constant 0 : i32
    %c0_i32_0 = arith.constant 0 : i32
    %c0_i32_1 = arith.constant 0 : i32
    return %c0_i32, %c0_i32_0 : i32, i32
  }
  func.func @transform_2(%arg0: i32) -> (i32, i32) {
    %c0_i32 = arith.constant 0 : i32
    %c0_i32_0 = arith.constant 0 : i32
    %c0_i32_1 = arith.constant 0 : i32
    return %c0_i32, %c0_i32_0 : i32, i32
  }
  func.func @transform_3(%arg0: i32) -> (i32, i32) {
    %c0_i32 = arith.constant 0 : i32
    %c0_i32_0 = arith.constant 0 : i32
    %c0_i32_1 = arith.constant 0 : i32
    return %c0_i32, %c0_i32_0 : i32, i32
  }
  func.func @transform_4(%arg0: i32) -> (i32, i32) {
    %c0_i32 = arith.constant 0 : i32
    %c0_i32_0 = arith.constant 0 : i32
    %c0_i32_1 = arith.constant 0 : i32
    return %c0_i32, %c0_i32_0 : i32, i32
  }
}

module attributes {stable_mosaic.version = 11 : i64} {
  func.func @fused_conv_bn_lrelu_kernel(%arg0: i32, %arg1: memref<2x128xbf16, #tpu.memory_space<vmem>>, %arg2: memref<128x32xbf16, #tpu.memory_space<vmem>>, %arg3: memref<1x32xf32, #tpu.memory_space<vmem>>, %arg4: memref<2x32xf32, #tpu.memory_space<vmem>>, %arg5: memref<2x32xbf16, #tpu.memory_space<vmem>>) attributes {dimension_semantics = [#tpu.dimension_semantics<arbitrary>], iteration_bounds = array<i64: 1>, scalar_prefetch = 0 : i64, scratch_operands = 0 : i64, tpu.core_type = #tpu.core_type<tc>, window_params = [{pipeline_mode = #tpu.pipeline_mode<synchronous>, transform_indices = @transform_0, window_bounds = array<i64: 2, 128>}, {pipeline_mode = #tpu.pipeline_mode<synchronous>, transform_indices = @transform_1, window_bounds = array<i64: 128, 32>}, {pipeline_mode = #tpu.pipeline_mode<synchronous>, transform_indices = @transform_2, window_bounds = array<i64: 1, 32>}, {pipeline_mode = #tpu.pipeline_mode<synchronous>, transform_indices = @transform_3, window_bounds = array<i64: 2, 32>}, {pipeline_mode = #tpu.pipeline_mode<synchronous>, transform_indices = @transform_4, window_bounds = array<i64: 2, 32>}]} {
    %c0 = arith.constant 0 : index
    %c0_0 = arith.constant 0 : index
    %0 = vector.load %arg1[%c0, %c0_0] : memref<2x128xbf16, #tpu.memory_space<vmem>>, vector<2x128xbf16>
    %c0_1 = arith.constant 0 : index
    %c0_2 = arith.constant 0 : index
    %1 = vector.load %arg2[%c0_1, %c0_2] : memref<128x32xbf16, #tpu.memory_space<vmem>>, vector<128x32xbf16>
    %cst = arith.constant dense<0.000000e+00> : vector<2x32xf32>
    %2 = tpu.matmul %0, %1, %cst {dimension_numbers = #tpu.dot_dimension_numbers<[1], [0], [0], [1], [0, 0, 1, 1], [], []>} : vector<2x128xbf16>, vector<128x32xbf16>, vector<2x32xf32> -> vector<2x32xf32>
    %c0_3 = arith.constant 0 : index
    %c0_4 = arith.constant 0 : index
    %3 = vector.load %arg3[%c0_3, %c0_4] : memref<1x32xf32, #tpu.memory_space<vmem>>, vector<1x32xf32>
    %4 = vector.broadcast %3 : vector<1x32xf32> to vector<2x32xf32>
    %5 = arith.addf %2, %4 : vector<2x32xf32>
    %cst_5 = arith.constant dense<0.000000e+00> : vector<32xf32>
    %6 = vector.multi_reduction <add>, %5, %cst_5 [0] : vector<2x32xf32> to vector<32xf32>
    %7 = vector.shape_cast %6 : vector<32xf32> to vector<1x32xf32>
    %cst_6 = arith.constant 2.000000e+00 : f32
    %8 = vector.broadcast %cst_6 : f32 to vector<1x32xf32>
    %9 = arith.divf %7, %8 : vector<1x32xf32>
    %10 = vector.broadcast %9 : vector<1x32xf32> to vector<2x32xf32>
    %11 = arith.subf %5, %10 : vector<2x32xf32>
    %12 = arith.mulf %11, %11 : vector<2x32xf32>
    %cst_7 = arith.constant dense<0.000000e+00> : vector<32xf32>
    %13 = vector.multi_reduction <add>, %12, %cst_7 [0] : vector<2x32xf32> to vector<32xf32>
    %14 = vector.shape_cast %13 : vector<32xf32> to vector<1x32xf32>
    %cst_8 = arith.constant 2.000000e+00 : f32
    %15 = vector.broadcast %cst_8 : f32 to vector<1x32xf32>
    %16 = arith.divf %14, %15 : vector<1x32xf32>
    %c0_9 = arith.constant 0 : index
    %c0_10 = arith.constant 0 : index
    %17 = vector.load %arg4[%c0_9, %c0_10] : memref<2x32xf32, #tpu.memory_space<vmem>>, vector<1x32xf32>
    %cst_11 = arith.constant 9.99999974E-6 : f32
    %18 = vector.broadcast %cst_11 : f32 to vector<1x32xf32>
    %19 = arith.addf %16, %18 : vector<1x32xf32>
    %20 = math.rsqrt %19 : vector<1x32xf32>
    %21 = arith.mulf %17, %20 : vector<1x32xf32>
    %22 = vector.broadcast %21 : vector<1x32xf32> to vector<2x32xf32>
    %23 = arith.mulf %11, %22 : vector<2x32xf32>
    %c1 = arith.constant 1 : index
    %c0_12 = arith.constant 0 : index
    %24 = vector.load %arg4[%c1, %c0_12] : memref<2x32xf32, #tpu.memory_space<vmem>>, vector<1x32xf32>
    %25 = vector.broadcast %24 : vector<1x32xf32> to vector<2x32xf32>
    %26 = arith.addf %23, %25 : vector<2x32xf32>
    %cst_13 = arith.constant 0.000000e+00 : f32
    %27 = vector.broadcast %cst_13 : f32 to vector<2x32xf32>
    %28 = arith.cmpf oge, %26, %27 : vector<2x32xf32>
    %cst_14 = arith.constant 2.000000e-01 : f32
    %29 = vector.broadcast %cst_14 : f32 to vector<2x32xf32>
    %30 = arith.mulf %29, %26 : vector<2x32xf32>
    %31 = arith.select %28, %26, %30 : vector<2x32xi1>, vector<2x32xf32>
    %32 = arith.truncf %31 : vector<2x32xf32> to vector<2x32xbf16>
    %c0_15 = arith.constant 0 : index
    %c0_16 = arith.constant 0 : index
    %33 = vector.load %arg5[%c0_15, %c0_16] : memref<2x32xbf16, #tpu.memory_space<vmem>>, vector<2x32xbf16>
    tpu.vector_store %arg5[%c0_15, %c0_16], %32 {strides = array<i32>} : memref<2x32xbf16, #tpu.memory_space<vmem>>, vector<2x32xbf16>,
    return
  }
  func.func @transform_0(%arg0: i32) -> (i32, i32) {
    %c0_i32 = arith.constant 0 : i32
    %c0_i32_0 = arith.constant 0 : i32
    %c0_i32_1 = arith.constant 0 : i32
    return %c0_i32, %c0_i32_0 : i32, i32
  }
  func.func @transform_1(%arg0: i32) -> (i32, i32) {
    %c0_i32 = arith.constant 0 : i32
    %c0_i32_0 = arith.constant 0 : i32
    %c0_i32_1 = arith.constant 0 : i32
    return %c0_i32, %c0_i32_0 : i32, i32
  }
  func.func @transform_2(%arg0: i32) -> (i32, i32) {
    %c0_i32 = arith.constant 0 : i32
    %c0_i32_0 = arith.constant 0 : i32
    %c0_i32_1 = arith.constant 0 : i32
    return %c0_i32, %c0_i32_0 : i32, i32
  }
  func.func @transform_3(%arg0: i32) -> (i32, i32) {
    %c0_i32 = arith.constant 0 : i32
    %c0_i32_0 = arith.constant 0 : i32
    %c0_i32_1 = arith.constant 0 : i32
    return %c0_i32, %c0_i32_0 : i32, i32
  }
  func.func @transform_4(%arg0: i32) -> (i32, i32) {
    %c0_i32 = arith.constant 0 : i32
    %c0_i32_0 = arith.constant 0 : i32
    %c0_i32_1 = arith.constant 0 : i32
    return %c0_i32, %c0_i32_0 : i32, i32
  }
}

module attributes {stable_mosaic.version = 11 : i64} {
  func.func @head_kernel(%arg0: i32, %arg1: memref<2x32xf32, #tpu.memory_space<vmem>>, %arg2: memref<2x32x8xf32, #tpu.memory_space<vmem>>, %arg3: memref<2x8xf32, #tpu.memory_space<vmem>>, %arg4: memref<2x8xf32, #tpu.memory_space<vmem>>, %arg5: memref<2x8xf32, #tpu.memory_space<vmem>>) attributes {dimension_semantics = [#tpu.dimension_semantics<arbitrary>], iteration_bounds = array<i64: 1>, scalar_prefetch = 0 : i64, scratch_operands = 0 : i64, tpu.core_type = #tpu.core_type<tc>, window_params = [{pipeline_mode = #tpu.pipeline_mode<synchronous>, transform_indices = @transform_0, window_bounds = array<i64: 2, 32>}, {pipeline_mode = #tpu.pipeline_mode<synchronous>, transform_indices = @transform_1, window_bounds = array<i64: 2, 32, 8>}, {pipeline_mode = #tpu.pipeline_mode<synchronous>, transform_indices = @transform_2, window_bounds = array<i64: 2, 8>}, {pipeline_mode = #tpu.pipeline_mode<synchronous>, transform_indices = @transform_3, window_bounds = array<i64: 2, 8>}, {pipeline_mode = #tpu.pipeline_mode<synchronous>, transform_indices = @transform_4, window_bounds = array<i64: 2, 8>}]} {
    %c0 = arith.constant 0 : index
    %c0_0 = arith.constant 0 : index
    %0 = vector.load %arg1[%c0, %c0_0] : memref<2x32xf32, #tpu.memory_space<vmem>>, vector<2x32xf32>
    %c0_1 = arith.constant 0 : index
    %c0_2 = arith.constant 0 : index
    %c0_3 = arith.constant 0 : index
    %1 = vector.load %arg2[%c0_1, %c0_2, %c0_3] : memref<2x32x8xf32, #tpu.memory_space<vmem>>, vector<1x32x8xf32>
    %2 = vector.shape_cast %1 : vector<1x32x8xf32> to vector<32x8xf32>
    %cst = arith.constant dense<0.000000e+00> : vector<2x8xf32>
    %3 = tpu.matmul %0, %2, %cst {dimension_numbers = #tpu.dot_dimension_numbers<[1], [0], [0], [1], [0, 0, 1, 1], [], []>} : vector<2x32xf32>, vector<32x8xf32>, vector<2x8xf32> -> vector<2x8xf32>
    %c0_4 = arith.constant 0 : index
    %c0_5 = arith.constant 0 : index
    %4 = vector.load %arg3[%c0_4, %c0_5] : memref<2x8xf32, #tpu.memory_space<vmem>>, vector<1x8xf32>
    %5 = vector.broadcast %4 : vector<1x8xf32> to vector<2x8xf32>
    %6 = arith.addf %3, %5 : vector<2x8xf32>
    %c1 = arith.constant 1 : index
    %c0_6 = arith.constant 0 : index
    %c0_7 = arith.constant 0 : index
    %7 = vector.load %arg2[%c1, %c0_6, %c0_7] : memref<2x32x8xf32, #tpu.memory_space<vmem>>, vector<1x32x8xf32>
    %8 = vector.shape_cast %7 : vector<1x32x8xf32> to vector<32x8xf32>
    %cst_8 = arith.constant dense<0.000000e+00> : vector<2x8xf32>
    %9 = tpu.matmul %0, %8, %cst_8 {dimension_numbers = #tpu.dot_dimension_numbers<[1], [0], [0], [1], [0, 0, 1, 1], [], []>} : vector<2x32xf32>, vector<32x8xf32>, vector<2x8xf32> -> vector<2x8xf32>
    %c1_9 = arith.constant 1 : index
    %c0_10 = arith.constant 0 : index
    %10 = vector.load %arg3[%c1_9, %c0_10] : memref<2x8xf32, #tpu.memory_space<vmem>>, vector<1x8xf32>
    %11 = vector.broadcast %10 : vector<1x8xf32> to vector<2x8xf32>
    %12 = arith.addf %9, %11 : vector<2x8xf32>
    %c0_11 = arith.constant 0 : index
    %c0_12 = arith.constant 0 : index
    %13 = vector.load %arg4[%c0_11, %c0_12] : memref<2x8xf32, #tpu.memory_space<vmem>>, vector<2x8xf32>
    %cst_13 = arith.constant 5.000000e-01 : f32
    %14 = vector.broadcast %cst_13 : f32 to vector<2x8xf32>
    %15 = arith.mulf %12, %14 : vector<2x8xf32>
    %16 = math.exp %15 : vector<2x8xf32>
    %17 = arith.mulf %13, %16 : vector<2x8xf32>
    %18 = arith.addf %17, %6 : vector<2x8xf32>
    %c0_14 = arith.constant 0 : index
    %c0_15 = arith.constant 0 : index
    %19 = vector.load %arg5[%c0_14, %c0_15] : memref<2x8xf32, #tpu.memory_space<vmem>>, vector<2x8xf32>
    tpu.vector_store %arg5[%c0_14, %c0_15], %18 {strides = array<i32>} : memref<2x8xf32, #tpu.memory_space<vmem>>, vector<2x8xf32>,
    return
  }
  func.func @transform_0(%arg0: i32) -> (i32, i32) {
    %c0_i32 = arith.constant 0 : i32
    %c0_i32_0 = arith.constant 0 : i32
    %c0_i32_1 = arith.constant 0 : i32
    return %c0_i32, %c0_i32_0 : i32, i32
  }
  func.func @transform_1(%arg0: i32) -> (i32, i32, i32) {
    %c0_i32 = arith.constant 0 : i32
    %c0_i32_0 = arith.constant 0 : i32
    %c0_i32_1 = arith.constant 0 : i32
    %c0_i32_2 = arith.constant 0 : i32
    return %c0_i32, %c0_i32_0, %c0_i32_1 : i32, i32, i32
  }
  func.func @transform_2(%arg0: i32) -> (i32, i32) {
    %c0_i32 = arith.constant 0 : i32
    %c0_i32_0 = arith.constant 0 : i32
    %c0_i32_1 = arith.constant 0 : i32
    return %c0_i32, %c0_i32_0 : i32, i32
  }
  func.func @transform_3(%arg0: i32) -> (i32, i32) {
    %c0_i32 = arith.constant 0 : i32
    %c0_i32_0 = arith.constant 0 : i32
    %c0_i32_1 = arith.constant 0 : i32
    return %c0_i32, %c0_i32_0 : i32, i32
  }
  func.func @transform_4(%arg0: i32) -> (i32, i32) {
    %c0_i32 = arith.constant 0 : i32
    %c0_i32_0 = arith.constant 0 : i32
    %c0_i32_1 = arith.constant 0 : i32
    return %c0_i32, %c0_i32_0 : i32, i32
  }
}

</mosaic_0001>

<llo_original>
// kernel: _lambda_.11
$region0: #{_lambda_.11}
  #allocation0 [shape = 'u32[]', space=smem, size = 0x4, offset = 0x4, fixed_abs, tag = 'smem constant byte address 0x4 - core index']
  #allocation1 [shape = 'u32[144,128]{1,0:T(1,128)}', space=vmem, size = 0x12000, scoped, tag = 'internal scratch']
  %s0 = inlined_call_operand.vmem [shape: bf16[32,5,65,12], index: 0, kind: input, shape index: {}]
  %s1 = inlined_call_operand.vmem [shape: bf16[4,12,4], index: 1, kind: input, shape index: {}]
  %s2 = inlined_call_operand.vmem [shape: f32[1,4], index: 2, kind: input, shape index: {}]
  %s3 = inlined_call_operand.vmem [shape: bf16[8192,4], index: 3, kind: output, shape index: {0}]
  %s4 = inlined_call_operand.vmem [shape: f32[32,2,4], index: 4, kind: output, shape index: {1}]
  %5 = xla_tuple %s3, %s4
  %s6 = sld [smem:[#allocation0]]
  $region53: #{_lambda_.11} parent=0
    _
  %s8 = ssub.s32 1, %s6
  %s9 = scalar_select 0, %s8, %s6
  loop: start=0, step=1, limit=34
  $region2: #{_lambda_.11} parent=0 // loop_pre_header
    _
  $region3: #{_lambda_.11} parent=0 // loop_header
    %s11 = sphi 0, %s15
    %p12 = scmp.ge.s32.totalorder %s11, 34
    %s18 = sphi 0, %s30
    %s19 = sphi 0, %s26
    %s20 = sphi 0, %s18
    %s21 = sphi 0, %s19
    %s22 = sphi 0, %s20
    %s23 = sphi 0, %s21
    %s37 = sphi 0, %s39
    %s40 = sphi 0, %s37
    %s41 = sphi 0, %s40
    %s57 = sphi 0, %s41
    %s61 = sphi 0, %s61
    %s63 = sphi 0, %s61
    %s64 = sphi 0, %s63
    %s78 = sphi 0, %s64
    %s82 = sphi 0, %s82
    %s84 = sphi 0, %s82
    %s85 = sphi 0, %s84
    %s99 = sphi 0, %s85
    %s109 = sphi 0, %s111
    %s112 = sphi 0, %s109
    %s113 = sphi 0, %s112
    %s129 = sphi 0, %s113
    %s139 = sphi 0, %s141
    %s142 = sphi 0, %s139
    %s143 = sphi 0, %s142
    %s159 = sphi 0, %s143
  $region4: #{_lambda_.11} parent=0 // loop_header_branch
    %14 = sbr.rel (%p12) target = $region8
  $region5: #{_lambda_.11} parent=0 // loop_body
    %s16 = ssub.s32 %s11, 1
    %s17 = ssub.s32 %s11, 2
    %s24 = sadd.s32 1, %s19
    %p25 = scmp.ge.s32.totalorder %s24, 16
    %s26 = scalar_select %p25, 0, %s24
    %s27 = sadd.s32 1, %s18
    %s28 = scalar_select %p25, %s27, %s18
    %p29 = scmp.ge.s32.totalorder %s28, 2
    %s30 = scalar_select %p29, 0, %s28
    %s31 = smul.u32 %s18, 16
    %s32 = sadd.s32 %s31, %s19
    %s33 = smul.u32 %s30, 16
    %s34 = sadd.s32 %s33, %s26
    %s35 = ssub.s32 %s32, %s34
    %p36 = scmp.eq.s32.totalorder %s35, 0
    %s38 = sadd.s32 %s37, 1
    %s39 = scalar_select %p36, %s37, %s38
    %p42 = pneg %p36
    %p43 = scmp.eq.s32.totalorder %s11, 31
    %p44 = por %p42, %p43
    %p45 = scmp.ne.s32.totalorder %s37, %s40
    %p46 = scmp.eq.s32.totalorder %s11, 0
    %p47 = por %p45, %p46
    %p48 = scmp.ne.s32.totalorder %s37, %s40
    %p49 = scmp.eq.s32.totalorder %s16, 31
    %p50 = por %p48, %p49
    %p51 = scmp.ne.s32.totalorder %s40, %s41
    %p52 = scmp.eq.s32.totalorder %s16, 0
    %p53 = por %p51, %p52
    %p54 = scmp.ne.s32.totalorder %s40, %s41
    %p55 = scmp.eq.s32.totalorder %s17, 31
    %p56 = por %p54, %p55
    %p58 = scmp.ne.s32.totalorder %s41, %s57
    %p59 = scmp.eq.s32.totalorder %s17, 0
    %p60 = por %p58, %p59
    %s62 = sadd.s32 %s61, 1
    %p65 = scmp.eq.s32.totalorder %s11, 31
    %p66 = scmp.ne.s32.totalorder %s61, %s63
    %p67 = scmp.eq.s32.totalorder %s11, 0
    %p68 = por %p66, %p67
    %p69 = scmp.ne.s32.totalorder %s61, %s63
    %p70 = scmp.eq.s32.totalorder %s16, 31
    %p71 = por %p69, %p70
    %p72 = scmp.ne.s32.totalorder %s63, %s64
    %p73 = scmp.eq.s32.totalorder %s16, 0
    %p74 = por %p72, %p73
    %p75 = scmp.ne.s32.totalorder %s63, %s64
    %p76 = scmp.eq.s32.totalorder %s17, 31
    %p77 = por %p75, %p76
    %p79 = scmp.ne.s32.totalorder %s64, %s78
    %p80 = scmp.eq.s32.totalorder %s17, 0
    %p81 = por %p79, %p80
    %s83 = sadd.s32 %s82, 1
    %p86 = scmp.eq.s32.totalorder %s11, 31
    %p87 = scmp.ne.s32.totalorder %s82, %s84
    %p88 = scmp.eq.s32.totalorder %s11, 0
    %p89 = por %p87, %p88
    %p90 = scmp.ne.s32.totalorder %s82, %s84
    %p91 = scmp.eq.s32.totalorder %s16, 31
    %p92 = por %p90, %p91
    %p93 = scmp.ne.s32.totalorder %s84, %s85
    %p94 = scmp.eq.s32.totalorder %s16, 0
    %p95 = por %p93, %p94
    %p96 = scmp.ne.s32.totalorder %s84, %s85
    %p97 = scmp.eq.s32.totalorder %s17, 31
    %p98 = por %p96, %p97
    %p100 = scmp.ne.s32.totalorder %s85, %s99
    %p101 = scmp.eq.s32.totalorder %s17, 0
    %p102 = por %p100, %p101
    %s103 = smul.u32 %s18, 16
    %s104 = sadd.s32 %s103, %s19
    %s105 = smul.u32 %s30, 16
    %s106 = sadd.s32 %s105, %s26
    %s107 = ssub.s32 %s104, %s106
    %p108 = scmp.eq.s32.totalorder %s107, 0
    %s110 = sadd.s32 %s109, 1
    %s111 = scalar_select %p108, %s109, %s110
    %p114 = pneg %p108
    %p115 = scmp.eq.s32.totalorder %s11, 31
    %p116 = por %p114, %p115
    %p117 = scmp.ne.s32.totalorder %s109, %s112
    %p118 = scmp.eq.s32.totalorder %s11, 0
    %p119 = por %p117, %p118
    %p120 = scmp.ne.s32.totalorder %s109, %s112
    %p121 = scmp.eq.s32.totalorder %s16, 31
    %p122 = por %p120, %p121
    %p123 = scmp.ne.s32.totalorder %s112, %s113
    %p124 = scmp.eq.s32.totalorder %s16, 0
    %p125 = por %p123, %p124
    %p126 = scmp.ne.s32.totalorder %s112, %s113
    %p127 = scmp.eq.s32.totalorder %s17, 31
    %p128 = por %p126, %p127
    %p130 = scmp.ne.s32.totalorder %s113, %s129
    %p131 = scmp.eq.s32.totalorder %s17, 0
    %p132 = por %p130, %p131
    %s133 = smul.u32 %s18, 16
    %s134 = sadd.s32 %s133, %s19
    %s135 = smul.u32 %s30, 16
    %s136 = sadd.s32 %s135, %s26
    %s137 = ssub.s32 %s134, %s136
    %p138 = scmp.eq.s32.totalorder %s137, 0
    %s140 = sadd.s32 %s139, 1
    %s141 = scalar_select %p138, %s139, %s140
    %p144 = pneg %p138
    %p145 = scmp.eq.s32.totalorder %s11, 31
    %p146 = por %p144, %p145
    %p147 = scmp.ne.s32.totalorder %s139, %s142
    %p148 = scmp.eq.s32.totalorder %s11, 0
    %p149 = por %p147, %p148
    %p150 = scmp.ne.s32.totalorder %s139, %s142
    %p151 = scmp.eq.s32.totalorder %s16, 31
    %p152 = por %p150, %p151
    %p153 = scmp.ne.s32.totalorder %s142, %s143
    %p154 = scmp.eq.s32.totalorder %s16, 0
    %p155 = por %p153, %p154
    %p156 = scmp.ne.s32.totalorder %s142, %s143
    %p157 = scmp.eq.s32.totalorder %s17, 31
    %p158 = por %p156, %p157
    %p160 = scmp.ne.s32.totalorder %s143, %s159
    %p161 = scmp.eq.s32.totalorder %s17, 0
    %p162 = por %p160, %p161
    %p163 = scmp.le.s32.totalorder 1, %s11
    %p164 = scmp.lt.s32.totalorder %s11, 33
    %p165 = pnand %p163, %p164
    %p166 = pneg %p165
    // Predicated region
    $region9: #{_lambda_.11} parent=5 // pred_check
      _
    $region10: #{_lambda_.11} parent=5 // pred_check_branch
      %168 = sbr.rel (%p165) target = $region12
    $region11: #{_lambda_.11} parent=5 // pred_region
      %s169 = ssub.s32 %s11, 1
      // Predicated region
      $region13: #{_lambda_.11} parent=11 // pred_check
        %p170 = pneg %p74
      $region14: #{_lambda_.11} parent=11 // pred_check_branch
        %172 = sbr.rel (%p170) target = $region16
      $region15: #{_lambda_.11} parent=11 // pred_region
        _
      $region16: #{_lambda_.11} parent=11 // pred_fallthru
        _
      // Predicated region
      $region17: #{_lambda_.11} parent=11 // pred_check
        %p173 = pneg %p95
      $region18: #{_lambda_.11} parent=11 // pred_check_branch
        %175 = sbr.rel (%p173) target = $region20
      $region19: #{_lambda_.11} parent=11 // pred_region
        _
      $region20: #{_lambda_.11} parent=11 // pred_fallthru
        _
    $region12: #{_lambda_.11} parent=5 // pred_fallthru
      _
    %p176 = scmp.lt.s32.totalorder %s11, 32
    // Predicated region
    $region21: #{_lambda_.11} parent=5 // pred_check
      %p177 = pneg %p176
    $region22: #{_lambda_.11} parent=5 // pred_check_branch
      %179 = sbr.rel (%p177) target = $region24
    $region23: #{_lambda_.11} parent=5 // pred_region
      // Predicated region
      $region25: #{_lambda_.11} parent=23 // pred_check
        %p180 = pneg %p47
      $region26: #{_lambda_.11} parent=23 // pred_check_branch
        %182 = sbr.rel (%p180) target = $region28
      $region27: #{_lambda_.11} parent=23 // pred_region
        %s183 = smul.u32 %s18, 16
        %s184 = sadd.s32 %s183, %s19
        %p185 = scmp.lt.s32.totalorder %s184, 31
        %s186 = scalar_select %p185, %s184, 31
        %s187 = smul.addr %s186, 45
        %s188 = smul.addr %s187, 4
        %s189 = scalar_lea.vmem %s0, %s188
        %s190 = smul.u32 %s18, 16
        %s191 = sadd.s32 %s190, %s19
      $region28: #{_lambda_.11} parent=23 // pred_fallthru
        _
    $region24: #{_lambda_.11} parent=5 // pred_fallthru
      _
    %p192 = scmp.le.s32.totalorder 1, %s11
    %p193 = scmp.lt.s32.totalorder %s11, 33
    %p194 = pnand %p192, %p193
    %p195 = pneg %p194
    // Predicated region
    $region29: #{_lambda_.11} parent=5 // pred_check
      _
    $region30: #{_lambda_.11} parent=5 // pred_check_branch
      %197 = sbr.rel (%p194) target = $region32
    $region31: #{_lambda_.11} parent=5 // pred_region
      %s198 = ssub.s32 %s11, 1
      %s199 = smul.u32 %s20, 16
      %s200 = sadd.s32 %s199, %s21
      %p201 = scmp.lt.s32.totalorder %s200, 31
      %s202 = scalar_select %p201, %s200, 31
      %s203 = smul.addr %s202, 45
      %s204 = smul.addr %s203, 4
      %s205 = scalar_lea.vmem %s0, %s204
      %p206 = pneg %p53
      %p207 = pneg %p50
      %p208 = pneg %p74
      %p209 = pneg %p71
      %p210 = pneg %p95
      %p211 = pneg %p92
      %p212 = pneg %p125
      %p213 = pneg %p122
      %s214 = smul.u32 %s20, 16
      %s215 = sadd.s32 %s214, %s21
      %s216 = smul.u32 32, %s215
      %p217 = scmp.lt.s32.totalorder %s216, 1023
      %s218 = scalar_select %p217, %s216, 1023
      %s219 = smul.addr %s218, 4
      %s220 = scalar_lea.vmem %s3, %s219
      %p221 = pneg %p155
      %p222 = pneg %p152
      %s223 = smul.u32 %s20, 16
      %s224 = sadd.s32 %s223, %s21
      %p225 = scmp.lt.s32.totalorder %s224, 31
      %s226 = scalar_select %p225, %s224, 31
      %s227 = smul.addr %s226, 2
      %s228 = scalar_lea.vmem %s4, %s227
      %s229 = smul.u32 %s20, 16
      %s230 = sadd.s32 %s229, %s21
      %p231 = scmp.lt.s32.totalorder %s230, 31
      %s232 = scalar_select %p231, %s230, 31
      %s233 = smul.addr %s232, 45
      %s234 = smul.addr %s233, 4
      %s235 = scalar_lea.vmem %s0, %s234
      %s236 = smul.u32 %s20, 16
      %s237 = sadd.s32 %s236, %s21
      %s238 = smul.u32 %s20, 16
      %s239 = sadd.s32 %s238, %s21
      %s240 = smul.u32 32, %s239
      %p241 = scmp.lt.s32.totalorder %s240, 1023
      %s242 = scalar_select %p241, %s240, 1023
      %s243 = smul.addr %s242, 4
      %s244 = scalar_lea.vmem %s3, %s243
      %s245 = smul.u32 %s20, 16
      %s246 = sadd.s32 %s245, %s21
      %s247 = smul.u32 32, %s246
      %s248 = smul.u32 %s20, 16
      %s249 = sadd.s32 %s248, %s21
      %p250 = scmp.lt.s32.totalorder %s249, 31
      %s251 = scalar_select %p250, %s249, 31
      %s252 = smul.addr %s251, 2
      %s253 = scalar_lea.vmem %s4, %s252
      %s254 = smul.u32 %s20, 16
      %s255 = sadd.s32 %s254, %s21
      %v257 = vld [vmem:[%s235] sm:$0xf]
      %v258 = vld [vmem:[%s235 + $0x4] sm:$0xf]
      %v259 = vld [vmem:[%s235 + $0x8] sm:$0xf]
      %v260 = vld [vmem:[%s235 + $0xc] sm:$0xf]
      %v261 = vld [vmem:[%s235 + $0x10] sm:$0xf]
      %v262 = vld [vmem:[%s235 + $0x14] sm:$0xf]
      %v263 = vld [vmem:[%s235 + $0x18] sm:$0xf]
      %v264 = vld [vmem:[%s235 + $0x1c] sm:$0xf]
      %v265 = vld [vmem:[%s235 + $0x24] sm:$0xf]
      %v266 = vld [vmem:[%s235 + $0x28] sm:$0xf]
      %v267 = vld [vmem:[%s235 + $0x2c] sm:$0xf]
      %v268 = vld [vmem:[%s235 + $0x30] sm:$0xf]
      %v269 = vld [vmem:[%s235 + $0x34] sm:$0xf]
      %v270 = vld [vmem:[%s235 + $0x38] sm:$0xf]
      %v271 = vld [vmem:[%s235 + $0x3c] sm:$0xf]
      %v272 = vld [vmem:[%s235 + $0x40] sm:$0xf]
      %v273 = vld [vmem:[%s235 + $0x48] sm:$0xf]
      %v274 = vld [vmem:[%s235 + $0x4c] sm:$0xf]
      %v275 = vld [vmem:[%s235 + $0x50] sm:$0xf]
      %v276 = vld [vmem:[%s235 + $0x54] sm:$0xf]
      %v277 = vld [vmem:[%s235 + $0x58] sm:$0xf]
      %v278 = vld [vmem:[%s235 + $0x5c] sm:$0xf]
      %v279 = vld [vmem:[%s235 + $0x60] sm:$0xf]
      %v280 = vld [vmem:[%s235 + $0x64] sm:$0xf]
      %v281 = vld [vmem:[%s235 + $0x6c] sm:$0xf]
      %v282 = vld [vmem:[%s235 + $0x70] sm:$0xf]
      %v283 = vld [vmem:[%s235 + $0x74] sm:$0xf]
      %v284 = vld [vmem:[%s235 + $0x78] sm:$0xf]
      %v285 = vld [vmem:[%s235 + $0x7c] sm:$0xf]
      %v286 = vld [vmem:[%s235 + $0x80] sm:$0xf]
      %v287 = vld [vmem:[%s235 + $0x84] sm:$0xf]
      %v288 = vld [vmem:[%s235 + $0x88] sm:$0xf]
      %v289 = vld [vmem:[%s1] sm:$0xf]
      %v290 = vld [vmem:[%s1 + $0x4] sm:$0x3]
      %v291 = vld [vmem:[%s235 + $0x20] sm:$0x1]
      %v292 = vld [vmem:[%s235 + $0x44] sm:$0x1]
      %v293 = vld [vmem:[%s235 + $0x68] sm:$0x1]
      %v294 = vld [vmem:[%s235 + $0x8c] sm:$0x1]
      %vm295 = vsmask.f32 3328
      %vm296 = vsmask.f32 7440
      %vm297 = vmor %vm295, %vm296
      %v299 = vshrl.u32 %v257, 16
      %v301 = vrot.slane %v299, 4
      %v302 = vshll.u32 %v257, 16
      %v304 = vrot.slane %v302, 5
      %v305 = vor.u32 %v301, %v304
      %v306 = vrot.slane %v305, 4
      %v308 = vshll.u32 %v258, 16
      %v310 = vrot.slane %v308, 5
      %v311 = vsel %vm297, %v306, %v310
      %v312 = vshrl.u32 %v258, 16
      %v314 = vrot.slane %v312, 4
      %v315 = vor.u32 %v314, %v310
      %v316 = vrot.slane %v315, 4
      %v318 = vshll.u32 %v259, 16
      %v320 = vrot.slane %v318, 5
      %v321 = vsel %vm297, %v316, %v320
      %v322 = vshrl.u32 %v259, 16
      %v324 = vrot.slane %v322, 4
      %v325 = vor.u32 %v324, %v320
      %v326 = vrot.slane %v325, 4
      %v328 = vshll.u32 %v260, 16
      %v330 = vrot.slane %v328, 5
      %v331 = vsel %vm297, %v326, %v330
      %v332 = vshrl.u32 %v260, 16
      %v334 = vrot.slane %v332, 4
      %v335 = vor.u32 %v334, %v330
      %v336 = vrot.slane %v335, 4
      %v338 = vshll.u32 %v261, 16
      %v340 = vrot.slane %v338, 5
      %v341 = vsel %vm297, %v336, %v340
      %v342 = vshrl.u32 %v261, 16
      %v344 = vrot.slane %v342, 4
      %v345 = vor.u32 %v344, %v340
      %v346 = vrot.slane %v345, 4
      %v348 = vshll.u32 %v262, 16
      %v350 = vrot.slane %v348, 5
      %v351 = vsel %vm297, %v346, %v350
      %v352 = vshrl.u32 %v262, 16
      %v354 = vrot.slane %v352, 4
      %v355 = vor.u32 %v354, %v350
      %v356 = vrot.slane %v355, 4
      %v358 = vshll.u32 %v263, 16
      %v360 = vrot.slane %v358, 5
      %v361 = vsel %vm297, %v356, %v360
      %v362 = vshrl.u32 %v263, 16
      %v364 = vrot.slane %v362, 4
      %v365 = vor.u32 %v364, %v360
      %v366 = vrot.slane %v365, 4
      %v368 = vshll.u32 %v264, 16
      %v370 = vrot.slane %v368, 5
      %v371 = vsel %vm297, %v366, %v370
      %v372 = vshrl.u32 %v264, 16
      %v374 = vrot.slane %v372, 4
      %v375 = vor.u32 %v374, %v370
      %v376 = vrot.slane %v375, 4
      %v378 = vshll.u32 %v291, 16
      %v380 = vrot.slane %v378, 5
      %v381 = vsel %vm297, %v376, %v380
      %v383 = vshrl.u32 %v265, 16
      %v385 = vrot.slane %v383, 4
      %v386 = vshll.u32 %v265, 16
      %v388 = vrot.slane %v386, 5
      %v389 = vor.u32 %v385, %v388
      %v390 = vrot.slane %v389, 4
      %v392 = vshll.u32 %v266, 16
      %v394 = vrot.slane %v392, 5
      %v395 = vsel %vm297, %v390, %v394
      %v396 = vshrl.u32 %v266, 16
      %v398 = vrot.slane %v396, 4
      %v399 = vor.u32 %v398, %v394
      %v400 = vrot.slane %v399, 4
      %v402 = vshll.u32 %v267, 16
      %v404 = vrot.slane %v402, 5
      %v405 = vsel %vm297, %v400, %v404
      %v406 = vshrl.u32 %v267, 16
      %v408 = vrot.slane %v406, 4
      %v409 = vor.u32 %v408, %v404
      %v410 = vrot.slane %v409, 4
      %v412 = vshll.u32 %v268, 16
      %v414 = vrot.slane %v412, 5
      %v415 = vsel %vm297, %v410, %v414
      %v416 = vshrl.u32 %v268, 16
      %v418 = vrot.slane %v416, 4
      %v419 = vor.u32 %v418, %v414
      %v420 = vrot.slane %v419, 4
      %v422 = vshll.u32 %v269, 16
      %v424 = vrot.slane %v422, 5
      %v425 = vsel %vm297, %v420, %v424
      %v426 = vshrl.u32 %v269, 16
      %v428 = vrot.slane %v426, 4
      %v429 = vor.u32 %v428, %v424
      %v430 = vrot.slane %v429, 4
      %v432 = vshll.u32 %v270, 16
      %v434 = vrot.slane %v432, 5
      %v435 = vsel %vm297, %v430, %v434
      %v436 = vshrl.u32 %v270, 16
      %v438 = vrot.slane %v436, 4
      %v439 = vor.u32 %v438, %v434
      %v440 = vrot.slane %v439, 4
      %v442 = vshll.u32 %v271, 16
      %v444 = vrot.slane %v442, 5
      %v445 = vsel %vm297, %v440, %v444
      %v446 = vshrl.u32 %v271, 16
      %v448 = vrot.slane %v446, 4
      %v449 = vor.u32 %v448, %v444
      %v450 = vrot.slane %v449, 4
      %v452 = vshll.u32 %v272, 16
      %v454 = vrot.slane %v452, 5
      %v455 = vsel %vm297, %v450, %v454
      %v456 = vshrl.u32 %v272, 16
      %v458 = vrot.slane %v456, 4
      %v459 = vor.u32 %v458, %v454
      %v460 = vrot.slane %v459, 4
      %v462 = vshll.u32 %v292, 16
      %v464 = vrot.slane %v462, 5
      %v465 = vsel %vm297, %v460, %v464
      %v467 = vshrl.u32 %v273, 16
      %v469 = vrot.slane %v467, 4
      %v470 = vshll.u32 %v273, 16
      %v472 = vrot.slane %v470, 5
      %v473 = vor.u32 %v469, %v472
      %v474 = vrot.slane %v473, 4
      %v476 = vshll.u32 %v274, 16
      %v478 = vrot.slane %v476, 5
      %v479 = vsel %vm297, %v474, %v478
      %v480 = vshrl.u32 %v274, 16
      %v482 = vrot.slane %v480, 4
      %v483 = vor.u32 %v482, %v478
      %v484 = vrot.slane %v483, 4
      %v486 = vshll.u32 %v275, 16
      %v488 = vrot.slane %v486, 5
      %v489 = vsel %vm297, %v484, %v488
      %v490 = vshrl.u32 %v275, 16
      %v492 = vrot.slane %v490, 4
      %v493 = vor.u32 %v492, %v488
      %v494 = vrot.slane %v493, 4
      %v496 = vshll.u32 %v276, 16
      %v498 = vrot.slane %v496, 5
      %v499 = vsel %vm297, %v494, %v498
      %v500 = vshrl.u32 %v276, 16
      %v502 = vrot.slane %v500, 4
      %v503 = vor.u32 %v502, %v498
      %v504 = vrot.slane %v503, 4
      %v506 = vshll.u32 %v277, 16
      %v508 = vrot.slane %v506, 5
      %v509 = vsel %vm297, %v504, %v508
      %v510 = vshrl.u32 %v277, 16
      %v512 = vrot.slane %v510, 4
      %v513 = vor.u32 %v512, %v508
      %v514 = vrot.slane %v513, 4
      %v516 = vshll.u32 %v278, 16
      %v518 = vrot.slane %v516, 5
      %v519 = vsel %vm297, %v514, %v518
      %v520 = vshrl.u32 %v278, 16
      %v522 = vrot.slane %v520, 4
      %v523 = vor.u32 %v522, %v518
      %v524 = vrot.slane %v523, 4
      %v526 = vshll.u32 %v279, 16
      %v528 = vrot.slane %v526, 5
      %v529 = vsel %vm297, %v524, %v528
      %v530 = vshrl.u32 %v279, 16
      %v532 = vrot.slane %v530, 4
      %v533 = vor.u32 %v532, %v528
      %v534 = vrot.slane %v533, 4
      %v536 = vshll.u32 %v280, 16
      %v538 = vrot.slane %v536, 5
      %v539 = vsel %vm297, %v534, %v538
      %v540 = vshrl.u32 %v280, 16
      %v542 = vrot.slane %v540, 4
      %v543 = vor.u32 %v542, %v538
      %v544 = vrot.slane %v543, 4
      %v546 = vshll.u32 %v293, 16
      %v548 = vrot.slane %v546, 5
      %v549 = vsel %vm297, %v544, %v548
      %v551 = vshrl.u32 %v281, 16
      %v553 = vrot.slane %v551, 4
      %v554 = vshll.u32 %v281, 16
      %v556 = vrot.slane %v554, 5
      %v557 = vor.u32 %v553, %v556
      %v558 = vrot.slane %v557, 4
      %v560 = vshll.u32 %v282, 16
      %v562 = vrot.slane %v560, 5
      %v563 = vsel %vm297, %v558, %v562
      %v564 = vshrl.u32 %v282, 16
      %v566 = vrot.slane %v564, 4
      %v567 = vor.u32 %v566, %v562
      %v568 = vrot.slane %v567, 4
      %v570 = vshll.u32 %v283, 16
      %v572 = vrot.slane %v570, 5
      %v573 = vsel %vm297, %v568, %v572
      %v574 = vshrl.u32 %v283, 16
      %v576 = vrot.slane %v574, 4
      %v577 = vor.u32 %v576, %v572
      %v578 = vrot.slane %v577, 4
      %v580 = vshll.u32 %v284, 16
      %v582 = vrot.slane %v580, 5
      %v583 = vsel %vm297, %v578, %v582
      %v584 = vshrl.u32 %v284, 16
      %v586 = vrot.slane %v584, 4
      %v587 = vor.u32 %v586, %v582
      %v588 = vrot.slane %v587, 4
      %v590 = vshll.u32 %v285, 16
      %v592 = vrot.slane %v590, 5
      %v593 = vsel %vm297, %v588, %v592
      %v594 = vshrl.u32 %v285, 16
      %v596 = vrot.slane %v594, 4
      %v597 = vor.u32 %v596, %v592
      %v598 = vrot.slane %v597, 4
      %v600 = vshll.u32 %v286, 16
      %v602 = vrot.slane %v600, 5
      %v603 = vsel %vm297, %v598, %v602
      %v604 = vshrl.u32 %v286, 16
      %v606 = vrot.slane %v604, 4
      %v607 = vor.u32 %v606, %v602
      %v608 = vrot.slane %v607, 4
      %v610 = vshll.u32 %v287, 16
      %v612 = vrot.slane %v610, 5
      %v613 = vsel %vm297, %v608, %v612
      %v614 = vshrl.u32 %v287, 16
      %v616 = vrot.slane %v614, 4
      %v617 = vor.u32 %v616, %v612
      %v618 = vrot.slane %v617, 4
      %v620 = vshll.u32 %v288, 16
      %v622 = vrot.slane %v620, 5
      %v623 = vsel %vm297, %v618, %v622
      %v624 = vshrl.u32 %v288, 16
      %v626 = vrot.slane %v624, 4
      %v627 = vor.u32 %v626, %v622
      %v628 = vrot.slane %v627, 4
      %v630 = vshll.u32 %v294, 16
      %v632 = vrot.slane %v630, 5
      %v633 = vsel %vm297, %v628, %v632
      %s634 = scalar_lea.vmem %s1, 8
      %v635 = vld [vmem:[%s634] sm:$0xf]
      %v636 = vld [vmem:[%s634 + $0x4] sm:$0x3]
      %v637 = vunpack.c.l.b16 %v311
      %v638 = vunpack.c.l.b16 %v321
      %v639 = vunpack.c.l.b16 %v331
      %v640 = vunpack.c.l.b16 %v341
      %v641 = vunpack.c.l.b16 %v351
      %v642 = vunpack.c.l.b16 %v361
      %v643 = vunpack.c.l.b16 %v371
      %v644 = vunpack.c.l.b16 %v381
      %v645 = vunpack.c.l.b16 %v395
      %v646 = vunpack.c.l.b16 %v405
      %v647 = vunpack.c.l.b16 %v415
      %v648 = vunpack.c.l.b16 %v425
      %v649 = vunpack.c.l.b16 %v435
      %v650 = vunpack.c.l.b16 %v445
      %v651 = vunpack.c.l.b16 %v455
      %v652 = vunpack.c.l.b16 %v465
      %v653 = vunpack.c.l.b16 %v479
      %v654 = vunpack.c.l.b16 %v489
      %v655 = vunpack.c.l.b16 %v499
      %v656 = vunpack.c.l.b16 %v509
      %v657 = vunpack.c.l.b16 %v519
      %v658 = vunpack.c.l.b16 %v529
      %v659 = vunpack.c.l.b16 %v539
      %v660 = vunpack.c.l.b16 %v549
      %v661 = vunpack.c.l.b16 %v563
      %v662 = vunpack.c.l.b16 %v573
      %v663 = vunpack.c.l.b16 %v583
      %v664 = vunpack.c.l.b16 %v593
      %v665 = vunpack.c.l.b16 %v603
      %v666 = vunpack.c.l.b16 %v613
      %v667 = vunpack.c.l.b16 %v623
      %v668 = vunpack.c.l.b16 %v633
      %v669 = vpack.c.b16 %v638, %v637
      %v670 = vpack.c.b16 %v640, %v639
      %v671 = vpack.c.b16 %v642, %v641
      %v672 = vpack.c.b16 %v644, %v643
      %v673 = vpack.c.b16 %v646, %v645
      %v674 = vpack.c.b16 %v648, %v647
      %v675 = vpack.c.b16 %v650, %v649
      %v676 = vpack.c.b16 %v652, %v651
      %v677 = vpack.c.b16 %v654, %v653
      %v678 = vpack.c.b16 %v656, %v655
      %v679 = vpack.c.b16 %v658, %v657
      %v680 = vpack.c.b16 %v660, %v659
      %v681 = vpack.c.b16 %v662, %v661
      %v682 = vpack.c.b16 %v664, %v663
      %v683 = vpack.c.b16 %v666, %v665
      %v684 = vpack.c.b16 %v668, %v667
      %v687 = vunpack.c.l.b16 %v635
      %v688 = vunpack.c.l.b16 %v636
      %v689 = vpack.c.b16 %v688, %v687
      %vm690 = vcmask 97280
      %v692 = vsel %vm690, %v669, 0
      %v695 = vsel %vm690, %v670, 0
      %v698 = vsel %vm690, %v671, 0
      %v701 = vsel %vm690, %v672, 0
      %v704 = vsel %vm690, %v673, 0
      %v707 = vsel %vm690, %v674, 0
      %v710 = vsel %vm690, %v675, 0
      %v713 = vsel %vm690, %v676, 0
      %v716 = vsel %vm690, %v677, 0
      %v719 = vsel %vm690, %v678, 0
      %v722 = vsel %vm690, %v679, 0
      %v725 = vsel %vm690, %v680, 0
      %v728 = vsel %vm690, %v681, 0
      %v731 = vsel %vm690, %v682, 0
      %v734 = vsel %vm690, %v683, 0
      %v737 = vsel %vm690, %v684, 0
      %vm739 = vcmask 1045504
      %v741 = vsel %vm739, %v689, 0
      %743 = vmatprep.subr.bf16.mxu0 0
      %744 = vmatpush1.bf16.msra.mxu0 %v741
      %745 = vmatprep.subr.bf16.mxu0 0
      %746 = vmatpush1.bf16.msra.mxu0 0
      %747 = vmatprep.subr.bf16.mxu0 0
      %748 = vmatpush1.bf16.msra.mxu0 0
      %749 = vmatprep.subr.bf16.mxu0 0
      %750 = vmatpush1.bf16.msra.mxu0 0
      %751 = vmatprep.subr.bf16.mxu0 0
      %752 = vmatpush1.bf16.msra.mxu0 0
      %753 = vmatprep.subr.bf16.mxu0 0
      %754 = vmatpush1.bf16.msra.mxu0 0
      %755 = vmatprep.subr.bf16.mxu0 0
      %756 = vmatpush1.bf16.msra.mxu0 0
      %757 = vmatprep.subr.bf16.mxu0 0
      %758 = vmatpush1.bf16.msra.mxu0 0
      %759 = vmatprep.subr.bf16.mxu0 0
      %760 = vmatpush1.bf16.msra.mxu0 0
      %761 = vmatprep.subr.bf16.mxu0 0
      %762 = vmatpush1.bf16.msra.mxu0 0
      %763 = vmatprep.subr.bf16.mxu0 0
      %764 = vmatpush1.bf16.msra.mxu0 0
      %765 = vmatprep.subr.bf16.mxu0 0
      %766 = vmatpush1.bf16.msra.mxu0 0
      %767 = vmatprep.subr.bf16.mxu0 0
      %768 = vmatpush1.bf16.msra.mxu0 0
      %769 = vmatprep.subr.bf16.mxu0 0
      %770 = vmatpush1.bf16.msra.mxu0 0
      %771 = vmatprep.subr.bf16.mxu0 0
      %772 = vmatpush1.bf16.msra.mxu0 0
      %773 = vmatprep.subr.bf16.mxu0 0
      %774 = vmatpush1.bf16.msra.mxu0 0
      %775 = vmatprep.mubr.bf16.mxu0 0
      %776 = vmatmul.mubr.bf16.gmra.mrb[0].mxu0 %v692
      %v777 = vpop.f32.mrb[0].mxu0
      %v778 = vadd.f32 0.0, %v777
      %v779 = vpop.f32.mrb[0].mxu0
      %v780 = vpop.f32.mrb[0].mxu0
      %v781 = vadd.f32 0.0, %v780
      %v782 = vpop.f32.mrb[0].mxu0
      %783 = vmatprep.mubr.bf16.mxu0 0
      %784 = vmatmul.mubr.bf16.gmra.mrb[0].mxu0 %v695
      %v785 = vpop.f32.mrb[0].mxu0
      %v786 = vadd.f32 0.0, %v785
      %v787 = vpop.f32.mrb[0].mxu0
      %v788 = vpop.f32.mrb[0].mxu0
      %v789 = vadd.f32 0.0, %v788
      %v790 = vpop.f32.mrb[0].mxu0
      %791 = vmatprep.mubr.bf16.mxu0 0
      %792 = vmatmul.mubr.bf16.gmra.mrb[0].mxu0 %v698
      %v793 = vpop.f32.mrb[0].mxu0
      %v794 = vadd.f32 0.0, %v793
      %v795 = vpop.f32.mrb[0].mxu0
      %v796 = vpop.f32.mrb[0].mxu0
      %v797 = vadd.f32 0.0, %v796
      %v798 = vpop.f32.mrb[0].mxu0
      %799 = vmatprep.mubr.bf16.mxu0 0
      %800 = vmatmul.mubr.bf16.gmra.mrb[0].mxu0 %v701
      %v801 = vpop.f32.mrb[0].mxu0
      %v802 = vadd.f32 0.0, %v801
      %v803 = vpop.f32.mrb[0].mxu0
      %v804 = vpop.f32.mrb[0].mxu0
      %v805 = vadd.f32 0.0, %v804
      %v806 = vpop.f32.mrb[0].mxu0
      %807 = vmatprep.mubr.bf16.mxu0 0
      %808 = vmatmul.mubr.bf16.gmra.mrb[0].mxu0 %v704
      %v809 = vpop.f32.mrb[0].mxu0
      %v810 = vadd.f32 0.0, %v809
      %v811 = vpop.f32.mrb[0].mxu0
      %v812 = vpop.f32.mrb[0].mxu0
      %v813 = vadd.f32 0.0, %v812
      %v814 = vpop.f32.mrb[0].mxu0
      %815 = vmatprep.mubr.bf16.mxu0 0
      %816 = vmatmul.mubr.bf16.gmra.mrb[0].mxu0 %v707
      %v817 = vpop.f32.mrb[0].mxu0
      %v818 = vadd.f32 0.0, %v817
      %v819 = vpop.f32.mrb[0].mxu0
      %v820 = vpop.f32.mrb[0].mxu0
      %v821 = vadd.f32 0.0, %v820
      %v822 = vpop.f32.mrb[0].mxu0
      %823 = vmatprep.mubr.bf16.mxu0 0
      %824 = vmatmul.mubr.bf16.gmra.mrb[0].mxu0 %v710
      %v825 = vpop.f32.mrb[0].mxu0
      %v826 = vadd.f32 0.0, %v825
      %v827 = vpop.f32.mrb[0].mxu0
      %v828 = vpop.f32.mrb[0].mxu0
      %v829 = vadd.f32 0.0, %v828
      %v830 = vpop.f32.mrb[0].mxu0
      %831 = vmatprep.mubr.bf16.mxu0 0
      %832 = vmatmul.mubr.bf16.gmra.mrb[0].mxu0 %v713
      %v833 = vpop.f32.mrb[0].mxu0
      %v834 = vadd.f32 0.0, %v833
      %v835 = vpop.f32.mrb[0].mxu0
      %v836 = vpop.f32.mrb[0].mxu0
      %v837 = vadd.f32 0.0, %v836
      %v838 = vpop.f32.mrb[0].mxu0
      %839 = vmatprep.mubr.bf16.mxu0 0
      %840 = vmatmul.mubr.bf16.gmra.mrb[0].mxu0 %v716
      %v841 = vpop.f32.mrb[0].mxu0
      %v842 = vadd.f32 0.0, %v841
      %v843 = vpop.f32.mrb[0].mxu0
      %v844 = vpop.f32.mrb[0].mxu0
      %v845 = vadd.f32 0.0, %v844
      %v846 = vpop.f32.mrb[0].mxu0
      %847 = vmatprep.mubr.bf16.mxu0 0
      %848 = vmatmul.mubr.bf16.gmra.mrb[0].mxu0 %v719
      %v849 = vpop.f32.mrb[0].mxu0
      %v850 = vadd.f32 0.0, %v849
      %v851 = vpop.f32.mrb[0].mxu0
      %v852 = vpop.f32.mrb[0].mxu0
      %v853 = vadd.f32 0.0, %v852
      %v854 = vpop.f32.mrb[0].mxu0
      %855 = vmatprep.mubr.bf16.mxu0 0
      %856 = vmatmul.mubr.bf16.gmra.mrb[0].mxu0 %v722
      %v857 = vpop.f32.mrb[0].mxu0
      %v858 = vadd.f32 0.0, %v857
      %v859 = vpop.f32.mrb[0].mxu0
      %v860 = vpop.f32.mrb[0].mxu0
      %v861 = vadd.f32 0.0, %v860
      %v862 = vpop.f32.mrb[0].mxu0
      %863 = vmatprep.mubr.bf16.mxu0 0
      %864 = vmatmul.mubr.bf16.gmra.mrb[0].mxu0 %v725
      %v865 = vpop.f32.mrb[0].mxu0
      %v866 = vadd.f32 0.0, %v865
      %v867 = vpop.f32.mrb[0].mxu0
      %v868 = vpop.f32.mrb[0].mxu0
      %v869 = vadd.f32 0.0, %v868
      %v870 = vpop.f32.mrb[0].mxu0
      %871 = vmatprep.mubr.bf16.mxu0 0
      %872 = vmatmul.mubr.bf16.gmra.mrb[0].mxu0 %v728
      %v873 = vpop.f32.mrb[0].mxu0
      %v874 = vadd.f32 0.0, %v873
      %v875 = vpop.f32.mrb[0].mxu0
      %v876 = vpop.f32.mrb[0].mxu0
      %v877 = vadd.f32 0.0, %v876
      %v878 = vpop.f32.mrb[0].mxu0
      %879 = vmatprep.mubr.bf16.mxu0 0
      %880 = vmatmul.mubr.bf16.gmra.mrb[0].mxu0 %v731
      %v881 = vpop.f32.mrb[0].mxu0
      %v882 = vadd.f32 0.0, %v881
      %v883 = vpop.f32.mrb[0].mxu0
      %v884 = vpop.f32.mrb[0].mxu0
      %v885 = vadd.f32 0.0, %v884
      %v886 = vpop.f32.mrb[0].mxu0
      %887 = vmatprep.mubr.bf16.mxu0 0
      %888 = vmatmul.mubr.bf16.gmra.mrb[0].mxu0 %v734
      %v889 = vpop.f32.mrb[0].mxu0
      %v890 = vadd.f32 0.0, %v889
      %v891 = vpop.f32.mrb[0].mxu0
      %v892 = vpop.f32.mrb[0].mxu0
      %v893 = vadd.f32 0.0, %v892
      %v894 = vpop.f32.mrb[0].mxu0
      %895 = vmatprep.mubr.bf16.mxu0 0
      %896 = vmatmul.mubr.bf16.gmra.mrb[0].mxu0 %v737
      %v897 = vpop.f32.mrb[0].mxu0
      %v898 = vadd.f32 0.0, %v897
      %v899 = vpop.f32.mrb[0].mxu0
      %v900 = vpop.f32.mrb[0].mxu0
      %v901 = vadd.f32 0.0, %v900
      %v902 = vpop.f32.mrb[0].mxu0
      %903 = vdwg.mxu0
      %v936 = vunpack.c.l.b16 %v257
      %v937 = vunpack.c.l.b16 %v258
      %v938 = vunpack.c.l.b16 %v259
      %v939 = vunpack.c.l.b16 %v260
      %v940 = vunpack.c.l.b16 %v261
      %v941 = vunpack.c.l.b16 %v262
      %v942 = vunpack.c.l.b16 %v263
      %v943 = vunpack.c.l.b16 %v264
      %v944 = vunpack.c.l.b16 %v265
      %v945 = vunpack.c.l.b16 %v266
      %v946 = vunpack.c.l.b16 %v267
      %v947 = vunpack.c.l.b16 %v268
      %v948 = vunpack.c.l.b16 %v269
      %v949 = vunpack.c.l.b16 %v270
      %v950 = vunpack.c.l.b16 %v271
      %v951 = vunpack.c.l.b16 %v272
      %v952 = vunpack.c.l.b16 %v273
      %v953 = vunpack.c.l.b16 %v274
      %v954 = vunpack.c.l.b16 %v275
      %v955 = vunpack.c.l.b16 %v276
      %v956 = vunpack.c.l.b16 %v277
      %v957 = vunpack.c.l.b16 %v278
      %v958 = vunpack.c.l.b16 %v279
      %v959 = vunpack.c.l.b16 %v280
      %v960 = vunpack.c.l.b16 %v281
      %v961 = vunpack.c.l.b16 %v282
      %v962 = vunpack.c.l.b16 %v283
      %v963 = vunpack.c.l.b16 %v284
      %v964 = vunpack.c.l.b16 %v285
      %v965 = vunpack.c.l.b16 %v286
      %v966 = vunpack.c.l.b16 %v287
      %v967 = vunpack.c.l.b16 %v288
      %v968 = vpack.c.b16 %v937, %v936
      %v969 = vpack.c.b16 %v939, %v938
      %v970 = vpack.c.b16 %v941, %v940
      %v971 = vpack.c.b16 %v943, %v942
      %v972 = vpack.c.b16 %v945, %v944
      %v973 = vpack.c.b16 %v947, %v946
      %v974 = vpack.c.b16 %v949, %v948
      %v975 = vpack.c.b16 %v951, %v950
      %v976 = vpack.c.b16 %v953, %v952
      %v977 = vpack.c.b16 %v955, %v954
      %v978 = vpack.c.b16 %v957, %v956
      %v979 = vpack.c.b16 %v959, %v958
      %v980 = vpack.c.b16 %v961, %v960
      %v981 = vpack.c.b16 %v963, %v962
      %v982 = vpack.c.b16 %v965, %v964
      %v983 = vpack.c.b16 %v967, %v966
      %v986 = vunpack.c.l.b16 %v289
      %v987 = vunpack.c.l.b16 %v290
      %v988 = vpack.c.b16 %v987, %v986
      %v990 = vsel %vm690, %v968, 0
      %v993 = vsel %vm690, %v969, 0
      %v996 = vsel %vm690, %v970, 0
      %v999 = vsel %vm690, %v971, 0
      %v1002 = vsel %vm690, %v972, 0
      %v1005 = vsel %vm690, %v973, 0
      %v1008 = vsel %vm690, %v974, 0
      %v1011 = vsel %vm690, %v975, 0
      %v1014 = vsel %vm690, %v976, 0
      %v1017 = vsel %vm690, %v977, 0
      %v1020 = vsel %vm690, %v978, 0
      %v1023 = vsel %vm690, %v979, 0
      %v1026 = vsel %vm690, %v980, 0
      %v1029 = vsel %vm690, %v981, 0
      %v1032 = vsel %vm690, %v982, 0
      %v1035 = vsel %vm690, %v983, 0
      %v1038 = vsel %vm739, %v988, 0
      %1040 = vmatprep.subr.bf16.mxu0 0
      %1041 = vmatpush1.bf16.msra.mxu0 %v1038
      %1042 = vmatprep.subr.bf16.mxu0 0
      %1043 = vmatpush1.bf16.msra.mxu0 0
      %1044 = vmatprep.subr.bf16.mxu0 0
      %1045 = vmatpush1.bf16.msra.mxu0 0
      %1046 = vmatprep.subr.bf16.mxu0 0
      %1047 = vmatpush1.bf16.msra.mxu0 0
      %1048 = vmatprep.subr.bf16.mxu0 0
      %1049 = vmatpush1.bf16.msra.mxu0 0
      %1050 = vmatprep.subr.bf16.mxu0 0
      %1051 = vmatpush1.bf16.msra.mxu0 0
      %1052 = vmatprep.subr.bf16.mxu0 0
      %1053 = vmatpush1.bf16.msra.mxu0 0
      %1054 = vmatprep.subr.bf16.mxu0 0
      %1055 = vmatpush1.bf16.msra.mxu0 0
      %1056 = vmatprep.subr.bf16.mxu0 0
      %1057 = vmatpush1.bf16.msra.mxu0 0
      %1058 = vmatprep.subr.bf16.mxu0 0
      %1059 = vmatpush1.bf16.msra.mxu0 0
      %1060 = vmatprep.subr.bf16.mxu0 0
      %1061 = vmatpush1.bf16.msra.mxu0 0
      %1062 = vmatprep.subr.bf16.mxu0 0
      %1063 = vmatpush1.bf16.msra.mxu0 0
      %1064 = vmatprep.subr.bf16.mxu0 0
      %1065 = vmatpush1.bf16.msra.mxu0 0
      %1066 = vmatprep.subr.bf16.mxu0 0
      %1067 = vmatpush1.bf16.msra.mxu0 0
      %1068 = vmatprep.subr.bf16.mxu0 0
      %1069 = vmatpush1.bf16.msra.mxu0 0
      %1070 = vmatprep.subr.bf16.mxu0 0
      %1071 = vmatpush1.bf16.msra.mxu0 0
      %1072 = vmatprep.mubr.bf16.mxu0 0
      %1073 = vmatmul.mubr.bf16.gmra.mrb[0].mxu0 %v990
      %v1074 = vpop.f32.mrb[0].mxu0
      %v1075 = vadd.f32 %v778, %v1074
      %v1076 = vpop.f32.mrb[0].mxu0
      %v1077 = vpop.f32.mrb[0].mxu0
      %v1078 = vadd.f32 %v781, %v1077
      %v1079 = vpop.f32.mrb[0].mxu0
      %1080 = vmatprep.mubr.bf16.mxu0 0
      %1081 = vmatmul.mubr.bf16.gmra.mrb[0].mxu0 %v993
      %v1082 = vpop.f32.mrb[0].mxu0
      %v1083 = vadd.f32 %v786, %v1082
      %v1084 = vpop.f32.mrb[0].mxu0
      %v1085 = vpop.f32.mrb[0].mxu0
      %v1086 = vadd.f32 %v789, %v1085
      %v1087 = vpop.f32.mrb[0].mxu0
      %1088 = vmatprep.mubr.bf16.mxu0 0
      %1089 = vmatmul.mubr.bf16.gmra.mrb[0].mxu0 %v996
      %v1090 = vpop.f32.mrb[0].mxu0
      %v1091 = vadd.f32 %v794, %v1090
      %v1092 = vpop.f32.mrb[0].mxu0
      %v1093 = vpop.f32.mrb[0].mxu0
      %v1094 = vadd.f32 %v797, %v1093
      %v1095 = vpop.f32.mrb[0].mxu0
      %1096 = vmatprep.mubr.bf16.mxu0 0
      %1097 = vmatmul.mubr.bf16.gmra.mrb[0].mxu0 %v999
      %v1098 = vpop.f32.mrb[0].mxu0
      %v1099 = vadd.f32 %v802, %v1098
      %v1100 = vpop.f32.mrb[0].mxu0
      %v1101 = vpop.f32.mrb[0].mxu0
      %v1102 = vadd.f32 %v805, %v1101
      %v1103 = vpop.f32.mrb[0].mxu0
      %1104 = vmatprep.mubr.bf16.mxu0 0
      %1105 = vmatmul.mubr.bf16.gmra.mrb[0].mxu0 %v1002
      %v1106 = vpop.f32.mrb[0].mxu0
      %v1107 = vadd.f32 %v810, %v1106
      %v1108 = vpop.f32.mrb[0].mxu0
      %v1109 = vpop.f32.mrb[0].mxu0
      %v1110 = vadd.f32 %v813, %v1109
      %v1111 = vpop.f32.mrb[0].mxu0
      %1112 = vmatprep.mubr.bf16.mxu0 0
      %1113 = vmatmul.mubr.bf16.gmra.mrb[0].mxu0 %v1005
      %v1114 = vpop.f32.mrb[0].mxu0
      %v1115 = vadd.f32 %v818, %v1114
      %v1116 = vpop.f32.mrb[0].mxu0
      %v1117 = vpop.f32.mrb[0].mxu0
      %v1118 = vadd.f32 %v821, %v1117
      %v1119 = vpop.f32.mrb[0].mxu0
      %1120 = vmatprep.mubr.bf16.mxu0 0
      %1121 = vmatmul.mubr.bf16.gmra.mrb[0].mxu0 %v1008
      %v1122 = vpop.f32.mrb[0].mxu0
      %v1123 = vadd.f32 %v826, %v1122
      %v1124 = vpop.f32.mrb[0].mxu0
      %v1125 = vpop.f32.mrb[0].mxu0
      %v1126 = vadd.f32 %v829, %v1125
      %v1127 = vpop.f32.mrb[0].mxu0
      %1128 = vmatprep.mubr.bf16.mxu0 0
      %1129 = vmatmul.mubr.bf16.gmra.mrb[0].mxu0 %v1011
      %v1130 = vpop.f32.mrb[0].mxu0
      %v1131 = vadd.f32 %v834, %v1130
      %v1132 = vpop.f32.mrb[0].mxu0
      %v1133 = vpop.f32.mrb[0].mxu0
      %v1134 = vadd.f32 %v837, %v1133
      %v1135 = vpop.f32.mrb[0].mxu0
      %1136 = vmatprep.mubr.bf16.mxu0 0
      %1137 = vmatmul.mubr.bf16.gmra.mrb[0].mxu0 %v1014
      %v1138 = vpop.f32.mrb[0].mxu0
      %v1139 = vadd.f32 %v842, %v1138
      %v1140 = vpop.f32.mrb[0].mxu0
      %v1141 = vpop.f32.mrb[0].mxu0
      %v1142 = vadd.f32 %v845, %v1141
      %v1143 = vpop.f32.mrb[0].mxu0
      %1144 = vmatprep.mubr.bf16.mxu0 0
      %1145 = vmatmul.mubr.bf16.gmra.mrb[0].mxu0 %v1017
      %v1146 = vpop.f32.mrb[0].mxu0
      %v1147 = vadd.f32 %v850, %v1146
      %v1148 = vpop.f32.mrb[0].mxu0
      %v1149 = vpop.f32.mrb[0].mxu0
      %v1150 = vadd.f32 %v853, %v1149
      %v1151 = vpop.f32.mrb[0].mxu0
      %1152 = vmatprep.mubr.bf16.mxu0 0
      %1153 = vmatmul.mubr.bf16.gmra.mrb[0].mxu0 %v1020
      %v1154 = vpop.f32.mrb[0].mxu0
      %v1155 = vadd.f32 %v858, %v1154
      %v1156 = vpop.f32.mrb[0].mxu0
      %v1157 = vpop.f32.mrb[0].mxu0
      %v1158 = vadd.f32 %v861, %v1157
      %v1159 = vpop.f32.mrb[0].mxu0
      %1160 = vmatprep.mubr.bf16.mxu0 0
      %1161 = vmatmul.mubr.bf16.gmra.mrb[0].mxu0 %v1023
      %v1162 = vpop.f32.mrb[0].mxu0
      %v1163 = vadd.f32 %v866, %v1162
      %v1164 = vpop.f32.mrb[0].mxu0
      %v1165 = vpop.f32.mrb[0].mxu0
      %v1166 = vadd.f32 %v869, %v1165
      %v1167 = vpop.f32.mrb[0].mxu0
      %1168 = vmatprep.mubr.bf16.mxu0 0
      %1169 = vmatmul.mubr.bf16.gmra.mrb[0].mxu0 %v1026
      %v1170 = vpop.f32.mrb[0].mxu0
      %v1171 = vadd.f32 %v874, %v1170
      %v1172 = vpop.f32.mrb[0].mxu0
      %v1173 = vpop.f32.mrb[0].mxu0
      %v1174 = vadd.f32 %v877, %v1173
      %v1175 = vpop.f32.mrb[0].mxu0
      %1176 = vmatprep.mubr.bf16.mxu0 0
      %1177 = vmatmul.mubr.bf16.gmra.mrb[0].mxu0 %v1029
      %v1178 = vpop.f32.mrb[0].mxu0
      %v1179 = vadd.f32 %v882, %v1178
      %v1180 = vpop.f32.mrb[0].mxu0
      %v1181 = vpop.f32.mrb[0].mxu0
      %v1182 = vadd.f32 %v885, %v1181
      %v1183 = vpop.f32.mrb[0].mxu0
      %1184 = vmatprep.mubr.bf16.mxu0 0
      %1185 = vmatmul.mubr.bf16.gmra.mrb[0].mxu0 %v1032
      %v1186 = vpop.f32.mrb[0].mxu0
      %v1187 = vadd.f32 %v890, %v1186
      %v1188 = vpop.f32.mrb[0].mxu0
      %v1189 = vpop.f32.mrb[0].mxu0
      %v1190 = vadd.f32 %v893, %v1189
      %v1191 = vpop.f32.mrb[0].mxu0
      %1192 = vmatprep.mubr.bf16.mxu0 0
      %1193 = vmatmul.mubr.bf16.gmra.mrb[0].mxu0 %v1035
      %v1194 = vpop.f32.mrb[0].mxu0
      %v1195 = vadd.f32 %v898, %v1194
      %v1196 = vpop.f32.mrb[0].mxu0
      %v1197 = vpop.f32.mrb[0].mxu0
      %v1198 = vadd.f32 %v901, %v1197
      %v1199 = vpop.f32.mrb[0].mxu0
      %1200 = vdwg.mxu0
      %s1201 = scalar_lea.vmem %s235, 36
      %v1202 = vld [vmem:[%s1201] sm:$0xf]
      %v1203 = vld [vmem:[%s1201 + $0x4] sm:$0xf]
      %v1204 = vld [vmem:[%s1201 + $0x8] sm:$0xf]
      %v1205 = vld [vmem:[%s1201 + $0xc] sm:$0xf]
      %v1206 = vld [vmem:[%s1201 + $0x10] sm:$0xf]
      %v1207 = vld [vmem:[%s1201 + $0x14] sm:$0xf]
      %v1208 = vld [vmem:[%s1201 + $0x18] sm:$0xf]
      %v1209 = vld [vmem:[%s1201 + $0x1c] sm:$0xf]
      %v1210 = vld [vmem:[%s1201 + $0x24] sm:$0xf]
      %v1211 = vld [vmem:[%s1201 + $0x28] sm:$0xf]
      %v1212 = vld [vmem:[%s1201 + $0x2c] sm:$0xf]
      %v1213 = vld [vmem:[%s1201 + $0x30] sm:$0xf]
      %v1214 = vld [vmem:[%s1201 + $0x34] sm:$0xf]
      %v1215 = vld [vmem:[%s1201 + $0x38] sm:$0xf]
      %v1216 = vld [vmem:[%s1201 + $0x3c] sm:$0xf]
      %v1217 = vld [vmem:[%s1201 + $0x40] sm:$0xf]
      %v1218 = vld [vmem:[%s1201 + $0x48] sm:$0xf]
      %v1219 = vld [vmem:[%s1201 + $0x4c] sm:$0xf]
      %v1220 = vld [vmem:[%s1201 + $0x50] sm:$0xf]
      %v1221 = vld [vmem:[%s1201 + $0x54] sm:$0xf]
      %v1222 = vld [vmem:[%s1201 + $0x58] sm:$0xf]
      %v1223 = vld [vmem:[%s1201 + $0x5c] sm:$0xf]
      %v1224 = vld [vmem:[%s1201 + $0x60] sm:$0xf]
      %v1225 = vld [vmem:[%s1201 + $0x64] sm:$0xf]
      %v1226 = vld [vmem:[%s1201 + $0x6c] sm:$0xf]
      %v1227 = vld [vmem:[%s1201 + $0x70] sm:$0xf]
      %v1228 = vld [vmem:[%s1201 + $0x74] sm:$0xf]
      %v1229 = vld [vmem:[%s1201 + $0x78] sm:$0xf]
      %v1230 = vld [vmem:[%s1201 + $0x7c] sm:$0xf]
      %v1231 = vld [vmem:[%s1201 + $0x80] sm:$0xf]
      %v1232 = vld [vmem:[%s1201 + $0x84] sm:$0xf]
      %v1233 = vld [vmem:[%s1201 + $0x88] sm:$0xf]
      %s1234 = scalar_lea.vmem %s1, 16
      %v1235 = vld [vmem:[%s1234] sm:$0xf]
      %v1236 = vld [vmem:[%s1234 + $0x4] sm:$0x3]
      %v1269 = vunpack.c.l.b16 %v1202
      %v1270 = vunpack.c.l.b16 %v1203
      %v1271 = vunpack.c.l.b16 %v1204
      %v1272 = vunpack.c.l.b16 %v1205
      %v1273 = vunpack.c.l.b16 %v1206
      %v1274 = vunpack.c.l.b16 %v1207
      %v1275 = vunpack.c.l.b16 %v1208
      %v1276 = vunpack.c.l.b16 %v1209
      %v1277 = vunpack.c.l.b16 %v1210
      %v1278 = vunpack.c.l.b16 %v1211
      %v1279 = vunpack.c.l.b16 %v1212
      %v1280 = vunpack.c.l.b16 %v1213
      %v1281 = vunpack.c.l.b16 %v1214
      %v1282 = vunpack.c.l.b16 %v1215
      %v1283 = vunpack.c.l.b16 %v1216
      %v1284 = vunpack.c.l.b16 %v1217
      %v1285 = vunpack.c.l.b16 %v1218
      %v1286 = vunpack.c.l.b16 %v1219
      %v1287 = vunpack.c.l.b16 %v1220
      %v1288 = vunpack.c.l.b16 %v1221
      %v1289 = vunpack.c.l.b16 %v1222
      %v1290 = vunpack.c.l.b16 %v1223
      %v1291 = vunpack.c.l.b16 %v1224
      %v1292 = vunpack.c.l.b16 %v1225
      %v1293 = vunpack.c.l.b16 %v1226
      %v1294 = vunpack.c.l.b16 %v1227
      %v1295 = vunpack.c.l.b16 %v1228
      %v1296 = vunpack.c.l.b16 %v1229
      %v1297 = vunpack.c.l.b16 %v1230
      %v1298 = vunpack.c.l.b16 %v1231
      %v1299 = vunpack.c.l.b16 %v1232
      %v1300 = vunpack.c.l.b16 %v1233
      %v1301 = vpack.c.b16 %v1270, %v1269
      %v1302 = vpack.c.b16 %v1272, %v1271
      %v1303 = vpack.c.b16 %v1274, %v1273
      %v1304 = vpack.c.b16 %v1276, %v1275
      %v1305 = vpack.c.b16 %v1278, %v1277
      %v1306 = vpack.c.b16 %v1280, %v1279
      %v1307 = vpack.c.b16 %v1282, %v1281
      %v1308 = vpack.c.b16 %v1284, %v1283
      %v1309 = vpack.c.b16 %v1286, %v1285
      %v1310 = vpack.c.b16 %v1288, %v1287
      %v1311 = vpack.c.b16 %v1290, %v1289
      %v1312 = vpack.c.b16 %v1292, %v1291
      %v1313 = vpack.c.b16 %v1294, %v1293
      %v1314 = vpack.c.b16 %v1296, %v1295
      %v1315 = vpack.c.b16 %v1298, %v1297
      %v1316 = vpack.c.b16 %v1300, %v1299
      %v1319 = vunpack.c.l.b16 %v1235
      %v1320 = vunpack.c.l.b16 %v1236
      %v1321 = vpack.c.b16 %v1320, %v1319
      %v1323 = vsel %vm690, %v1301, 0
      %v1326 = vsel %vm690, %v1302, 0
      %v1329 = vsel %vm690, %v1303, 0
      %v1332 = vsel %vm690, %v1304, 0
      %v1335 = vsel %vm690, %v1305, 0
      %v1338 = vsel %vm690, %v1306, 0
      %v1341 = vsel %vm690, %v1307, 0
      %v1344 = vsel %vm690, %v1308, 0
      %v1347 = vsel %vm690, %v1309, 0
      %v1350 = vsel %vm690, %v1310, 0
      %v1353 = vsel %vm690, %v1311, 0
      %v1356 = vsel %vm690, %v1312, 0
      %v1359 = vsel %vm690, %v1313, 0
      %v1362 = vsel %vm690, %v1314, 0
      %v1365 = vsel %vm690, %v1315, 0
      %v1368 = vsel %vm690, %v1316, 0
      %v1371 = vsel %vm739, %v1321, 0
      %1373 = vmatprep.subr.bf16.mxu0 0
      %1374 = vmatpush1.bf16.msra.mxu0 %v1371
      %1375 = vmatprep.subr.bf16.mxu0 0
      %1376 = vmatpush1.bf16.msra.mxu0 0
      %1377 = vmatprep.subr.bf16.mxu0 0
      %1378 = vmatpush1.bf16.msra.mxu0 0
      %1379 = vmatprep.subr.bf16.mxu0 0
      %1380 = vmatpush1.bf16.msra.mxu0 0
      %1381 = vmatprep.subr.bf16.mxu0 0
      %1382 = vmatpush1.bf16.msra.mxu0 0
      %1383 = vmatprep.subr.bf16.mxu0 0
      %1384 = vmatpush1.bf16.msra.mxu0 0
      %1385 = vmatprep.subr.bf16.mxu0 0
      %1386 = vmatpush1.bf16.msra.mxu0 0
      %1387 = vmatprep.subr.bf16.mxu0 0
      %1388 = vmatpush1.bf16.msra.mxu0 0
      %1389 = vmatprep.subr.bf16.mxu0 0
      %1390 = vmatpush1.bf16.msra.mxu0 0
      %1391 = vmatprep.subr.bf16.mxu0 0
      %1392 = vmatpush1.bf16.msra.mxu0 0
      %1393 = vmatprep.subr.bf16.mxu0 0
      %1394 = vmatpush1.bf16.msra.mxu0 0
      %1395 = vmatprep.subr.bf16.mxu0 0
      %1396 = vmatpush1.bf16.msra.mxu0 0
      %1397 = vmatprep.subr.bf16.mxu0 0
      %1398 = vmatpush1.bf16.msra.mxu0 0
      %1399 = vmatprep.subr.bf16.mxu0 0
      %1400 = vmatpush1.bf16.msra.mxu0 0
      %1401 = vmatprep.subr.bf16.mxu0 0
      %1402 = vmatpush1.bf16.msra.mxu0 0
      %1403 = vmatprep.subr.bf16.mxu0 0
      %1404 = vmatpush1.bf16.msra.mxu0 0
      %1405 = vmatprep.mubr.bf16.mxu0 0
      %1406 = vmatmul.mubr.bf16.gmra.mrb[0].mxu0 %v1323
      %v1407 = vpop.f32.mrb[0].mxu0
      %v1408 = vadd.f32 0.0, %v1407
      %v1409 = vpop.f32.mrb[0].mxu0
      %v1410 = vpop.f32.mrb[0].mxu0
      %v1411 = vadd.f32 0.0, %v1410
      %v1412 = vpop.f32.mrb[0].mxu0
      %1413 = vmatprep.mubr.bf16.mxu0 0
      %1414 = vmatmul.mubr.bf16.gmra.mrb[0].mxu0 %v1326
      %v1415 = vpop.f32.mrb[0].mxu0
      %v1416 = vadd.f32 0.0, %v1415
      %v1417 = vpop.f32.mrb[0].mxu0
      %v1418 = vpop.f32.mrb[0].mxu0
      %v1419 = vadd.f32 0.0, %v1418
      %v1420 = vpop.f32.mrb[0].mxu0
      %1421 = vmatprep.mubr.bf16.mxu0 0
      %1422 = vmatmul.mubr.bf16.gmra.mrb[0].mxu0 %v1329
      %v1423 = vpop.f32.mrb[0].mxu0
      %v1424 = vadd.f32 0.0, %v1423
      %v1425 = vpop.f32.mrb[0].mxu0
      %v1426 = vpop.f32.mrb[0].mxu0
      %v1427 = vadd.f32 0.0, %v1426
      %v1428 = vpop.f32.mrb[0].mxu0
      %1429 = vmatprep.mubr.bf16.mxu0 0
      %1430 = vmatmul.mubr.bf16.gmra.mrb[0].mxu0 %v1332
      %v1431 = vpop.f32.mrb[0].mxu0
      %v1432 = vadd.f32 0.0, %v1431
      %v1433 = vpop.f32.mrb[0].mxu0
      %v1434 = vpop.f32.mrb[0].mxu0
      %v1435 = vadd.f32 0.0, %v1434
      %v1436 = vpop.f32.mrb[0].mxu0
      %1437 = vmatprep.mubr.bf16.mxu0 0
      %1438 = vmatmul.mubr.bf16.gmra.mrb[0].mxu0 %v1335
      %v1439 = vpop.f32.mrb[0].mxu0
      %v1440 = vadd.f32 0.0, %v1439
      %v1441 = vpop.f32.mrb[0].mxu0
      %v1442 = vpop.f32.mrb[0].mxu0
      %v1443 = vadd.f32 0.0, %v1442
      %v1444 = vpop.f32.mrb[0].mxu0
      %1445 = vmatprep.mubr.bf16.mxu0 0
      %1446 = vmatmul.mubr.bf16.gmra.mrb[0].mxu0 %v1338
      %v1447 = vpop.f32.mrb[0].mxu0
      %v1448 = vadd.f32 0.0, %v1447
      %v1449 = vpop.f32.mrb[0].mxu0
      %v1450 = vpop.f32.mrb[0].mxu0
      %v1451 = vadd.f32 0.0, %v1450
      %v1452 = vpop.f32.mrb[0].mxu0
      %1453 = vmatprep.mubr.bf16.mxu0 0
      %1454 = vmatmul.mubr.bf16.gmra.mrb[0].mxu0 %v1341
      %v1455 = vpop.f32.mrb[0].mxu0
      %v1456 = vadd.f32 0.0, %v1455
      %v1457 = vpop.f32.mrb[0].mxu0
      %v1458 = vpop.f32.mrb[0].mxu0
      %v1459 = vadd.f32 0.0, %v1458
      %v1460 = vpop.f32.mrb[0].mxu0
      %1461 = vmatprep.mubr.bf16.mxu0 0
      %1462 = vmatmul.mubr.bf16.gmra.mrb[0].mxu0 %v1344
      %v1463 = vpop.f32.mrb[0].mxu0
      %v1464 = vadd.f32 0.0, %v1463
      %v1465 = vpop.f32.mrb[0].mxu0
      %v1466 = vpop.f32.mrb[0].mxu0
      %v1467 = vadd.f32 0.0, %v1466
      %v1468 = vpop.f32.mrb[0].mxu0
      %1469 = vmatprep.mubr.bf16.mxu0 0
      %1470 = vmatmul.mubr.bf16.gmra.mrb[0].mxu0 %v1347
      %v1471 = vpop.f32.mrb[0].mxu0
      %v1472 = vadd.f32 0.0, %v1471
      %v1473 = vpop.f32.mrb[0].mxu0
      %v1474 = vpop.f32.mrb[0].mxu0
      %v1475 = vadd.f32 0.0, %v1474
      %v1476 = vpop.f32.mrb[0].mxu0
      %1477 = vmatprep.mubr.bf16.mxu0 0
      %1478 = vmatmul.mubr.bf16.gmra.mrb[0].mxu0 %v1350
      %v1479 = vpop.f32.mrb[0].mxu0
      %v1480 = vadd.f32 0.0, %v1479
      %v1481 = vpop.f32.mrb[0].mxu0
      %v1482 = vpop.f32.mrb[0].mxu0
      %v1483 = vadd.f32 0.0, %v1482
      %v1484 = vpop.f32.mrb[0].mxu0
      %1485 = vmatprep.mubr.bf16.mxu0 0
      %1486 = vmatmul.mubr.bf16.gmra.mrb[0].mxu0 %v1353
      %v1487 = vpop.f32.mrb[0].mxu0
      %v1488 = vadd.f32 0.0, %v1487
      %v1489 = vpop.f32.mrb[0].mxu0
      %v1490 = vpop.f32.mrb[0].mxu0
      %v1491 = vadd.f32 0.0, %v1490
      %v1492 = vpop.f32.mrb[0].mxu0
      %1493 = vmatprep.mubr.bf16.mxu0 0
      %1494 = vmatmul.mubr.bf16.gmra.mrb[0].mxu0 %v1356
      %v1495 = vpop.f32.mrb[0].mxu0
      %v1496 = vadd.f32 0.0, %v1495
      %v1497 = vpop.f32.mrb[0].mxu0
      %v1498 = vpop.f32.mrb[0].mxu0
      %v1499 = vadd.f32 0.0, %v1498
      %v1500 = vpop.f32.mrb[0].mxu0
      %1501 = vmatprep.mubr.bf16.mxu0 0
      %1502 = vmatmul.mubr.bf16.gmra.mrb[0].mxu0 %v1359
      %v1503 = vpop.f32.mrb[0].mxu0
      %v1504 = vadd.f32 0.0, %v1503
      %v1505 = vpop.f32.mrb[0].mxu0
      %v1506 = vpop.f32.mrb[0].mxu0
      %v1507 = vadd.f32 0.0, %v1506
      %v1508 = vpop.f32.mrb[0].mxu0
      %1509 = vmatprep.mubr.bf16.mxu0 0
      %1510 = vmatmul.mubr.bf16.gmra.mrb[0].mxu0 %v1362
      %v1511 = vpop.f32.mrb[0].mxu0
      %v1512 = vadd.f32 0.0, %v1511
      %v1513 = vpop.f32.mrb[0].mxu0
      %v1514 = vpop.f32.mrb[0].mxu0
      %v1515 = vadd.f32 0.0, %v1514
      %v1516 = vpop.f32.mrb[0].mxu0
      %1517 = vmatprep.mubr.bf16.mxu0 0
      %1518 = vmatmul.mubr.bf16.gmra.mrb[0].mxu0 %v1365
      %v1519 = vpop.f32.mrb[0].mxu0
      %v1520 = vadd.f32 0.0, %v1519
      %v1521 = vpop.f32.mrb[0].mxu0
      %v1522 = vpop.f32.mrb[0].mxu0
      %v1523 = vadd.f32 0.0, %v1522
      %v1524 = vpop.f32.mrb[0].mxu0
      %1525 = vmatprep.mubr.bf16.mxu0 0
      %1526 = vmatmul.mubr.bf16.gmra.mrb[0].mxu0 %v1368
      %v1527 = vpop.f32.mrb[0].mxu0
      %v1528 = vadd.f32 0.0, %v1527
      %v1529 = vpop.f32.mrb[0].mxu0
      %v1530 = vpop.f32.mrb[0].mxu0
      %v1531 = vadd.f32 0.0, %v1530
      %v1532 = vpop.f32.mrb[0].mxu0
      %1533 = vdwg.mxu0
      %v1534 = vadd.f32 %v1075, %v1408
      %v1535 = vadd.f32 %v1078, %v1411
      %v1536 = vadd.f32 %v1083, %v1416
      %v1537 = vadd.f32 %v1086, %v1419
      %v1538 = vadd.f32 %v1091, %v1424
      %v1539 = vadd.f32 %v1094, %v1427
      %v1540 = vadd.f32 %v1099, %v1432
      %v1541 = vadd.f32 %v1102, %v1435
      %v1542 = vadd.f32 %v1107, %v1440
      %v1543 = vadd.f32 %v1110, %v1443
      %v1544 = vadd.f32 %v1115, %v1448
      %v1545 = vadd.f32 %v1118, %v1451
      %v1546 = vadd.f32 %v1123, %v1456
      %v1547 = vadd.f32 %v1126, %v1459
      %v1548 = vadd.f32 %v1131, %v1464
      %v1549 = vadd.f32 %v1134, %v1467
      %v1550 = vadd.f32 %v1139, %v1472
      %v1551 = vadd.f32 %v1142, %v1475
      %v1552 = vadd.f32 %v1147, %v1480
      %v1553 = vadd.f32 %v1150, %v1483
      %v1554 = vadd.f32 %v1155, %v1488
      %v1555 = vadd.f32 %v1158, %v1491
      %v1556 = vadd.f32 %v1163, %v1496
      %v1557 = vadd.f32 %v1166, %v1499
      %v1558 = vadd.f32 %v1171, %v1504
      %v1559 = vadd.f32 %v1174, %v1507
      %v1560 = vadd.f32 %v1179, %v1512
      %v1561 = vadd.f32 %v1182, %v1515
      %v1562 = vadd.f32 %v1187, %v1520
      %v1563 = vadd.f32 %v1190, %v1523
      %v1564 = vadd.f32 %v1195, %v1528
      %v1565 = vadd.f32 %v1198, %v1531
      %v1566 = vld [vmem:[%s1201] sm:$0xf]
      %v1567 = vld [vmem:[%s1201 + $0x4] sm:$0xf]
      %v1568 = vld [vmem:[%s1201 + $0x8] sm:$0xf]
      %v1569 = vld [vmem:[%s1201 + $0xc] sm:$0xf]
      %v1570 = vld [vmem:[%s1201 + $0x10] sm:$0xf]
      %v1571 = vld [vmem:[%s1201 + $0x14] sm:$0xf]
      %v1572 = vld [vmem:[%s1201 + $0x18] sm:$0xf]
      %v1573 = vld [vmem:[%s1201 + $0x1c] sm:$0xf]
      %v1574 = vld [vmem:[%s1201 + $0x20] sm:$0x1]
      %v1575 = vld [vmem:[%s1201 + $0x24] sm:$0xf]
      %v1576 = vld [vmem:[%s1201 + $0x28] sm:$0xf]
      %v1577 = vld [vmem:[%s1201 + $0x2c] sm:$0xf]
      %v1578 = vld [vmem:[%s1201 + $0x30] sm:$0xf]
      %v1579 = vld [vmem:[%s1201 + $0x34] sm:$0xf]
      %v1580 = vld [vmem:[%s1201 + $0x38] sm:$0xf]
      %v1581 = vld [vmem:[%s1201 + $0x3c] sm:$0xf]
      %v1582 = vld [vmem:[%s1201 + $0x40] sm:$0xf]
      %v1583 = vld [vmem:[%s1201 + $0x44] sm:$0x1]
      %v1584 = vld [vmem:[%s1201 + $0x48] sm:$0xf]
      %v1585 = vld [vmem:[%s1201 + $0x4c] sm:$0xf]
      %v1586 = vld [vmem:[%s1201 + $0x50] sm:$0xf]
      %v1587 = vld [vmem:[%s1201 + $0x54] sm:$0xf]
      %v1588 = vld [vmem:[%s1201 + $0x58] sm:$0xf]
      %v1589 = vld [vmem:[%s1201 + $0x5c] sm:$0xf]
      %v1590 = vld [vmem:[%s1201 + $0x60] sm:$0xf]
      %v1591 = vld [vmem:[%s1201 + $0x64] sm:$0xf]
      %v1592 = vld [vmem:[%s1201 + $0x68] sm:$0x1]
      %v1593 = vld [vmem:[%s1201 + $0x6c] sm:$0xf]
      %v1594 = vld [vmem:[%s1201 + $0x70] sm:$0xf]
      %v1595 = vld [vmem:[%s1201 + $0x74] sm:$0xf]
      %v1596 = vld [vmem:[%s1201 + $0x78] sm:$0xf]
      %v1597 = vld [vmem:[%s1201 + $0x7c] sm:$0xf]
      %v1598 = vld [vmem:[%s1201 + $0x80] sm:$0xf]
      %v1599 = vld [vmem:[%s1201 + $0x84] sm:$0xf]
      %v1600 = vld [vmem:[%s1201 + $0x88] sm:$0xf]
      %v1601 = vld [vmem:[%s1201 + $0x8c] sm:$0x1]
      %v1603 = vshrl.u32 %v1566, 16
      %v1605 = vrot.slane %v1603, 4
      %v1606 = vshll.u32 %v1566, 16
      %v1608 = vrot.slane %v1606, 5
      %v1609 = vor.u32 %v1605, %v1608
      %v1610 = vrot.slane %v1609, 4
      %v1612 = vshll.u32 %v1567, 16
      %v1614 = vrot.slane %v1612, 5
      %v1615 = vsel %vm297, %v1610, %v1614
      %v1616 = vshrl.u32 %v1567, 16
      %v1618 = vrot.slane %v1616, 4
      %v1619 = vor.u32 %v1618, %v1614
      %v1620 = vrot.slane %v1619, 4
      %v1622 = vshll.u32 %v1568, 16
      %v1624 = vrot.slane %v1622, 5
      %v1625 = vsel %vm297, %v1620, %v1624
      %v1626 = vshrl.u32 %v1568, 16
      %v1628 = vrot.slane %v1626, 4
      %v1629 = vor.u32 %v1628, %v1624
      %v1630 = vrot.slane %v1629, 4
      %v1632 = vshll.u32 %v1569, 16
      %v1634 = vrot.slane %v1632, 5
      %v1635 = vsel %vm297, %v1630, %v1634
      %v1636 = vshrl.u32 %v1569, 16
      %v1638 = vrot.slane %v1636, 4
      %v1639 = vor.u32 %v1638, %v1634
      %v1640 = vrot.slane %v1639, 4
      %v1642 = vshll.u32 %v1570, 16
      %v1644 = vrot.slane %v1642, 5
      %v1645 = vsel %vm297, %v1640, %v1644
      %v1646 = vshrl.u32 %v1570, 16
      %v1648 = vrot.slane %v1646, 4
      %v1649 = vor.u32 %v1648, %v1644
      %v1650 = vrot.slane %v1649, 4
      %v1652 = vshll.u32 %v1571, 16
      %v1654 = vrot.slane %v1652, 5
      %v1655 = vsel %vm297, %v1650, %v1654
      %v1656 = vshrl.u32 %v1571, 16
      %v1658 = vrot.slane %v1656, 4
      %v1659 = vor.u32 %v1658, %v1654
      %v1660 = vrot.slane %v1659, 4
      %v1662 = vshll.u32 %v1572, 16
      %v1664 = vrot.slane %v1662, 5
      %v1665 = vsel %vm297, %v1660, %v1664
      %v1666 = vshrl.u32 %v1572, 16
      %v1668 = vrot.slane %v1666, 4
      %v1669 = vor.u32 %v1668, %v1664
      %v1670 = vrot.slane %v1669, 4
      %v1672 = vshll.u32 %v1573, 16
      %v1674 = vrot.slane %v1672, 5
      %v1675 = vsel %vm297, %v1670, %v1674
      %v1676 = vshrl.u32 %v1573, 16
      %v1678 = vrot.slane %v1676, 4
      %v1679 = vor.u32 %v1678, %v1674
      %v1680 = vrot.slane %v1679, 4
      %v1682 = vshll.u32 %v1574, 16
      %v1684 = vrot.slane %v1682, 5
      %v1685 = vsel %vm297, %v1680, %v1684
      %v1687 = vshrl.u32 %v1575, 16
      %v1689 = vrot.slane %v1687, 4
      %v1690 = vshll.u32 %v1575, 16
      %v1692 = vrot.slane %v1690, 5
      %v1693 = vor.u32 %v1689, %v1692
      %v1694 = vrot.slane %v1693, 4
      %v1696 = vshll.u32 %v1576, 16
      %v1698 = vrot.slane %v1696, 5
      %v1699 = vsel %vm297, %v1694, %v1698
      %v1700 = vshrl.u32 %v1576, 16
      %v1702 = vrot.slane %v1700, 4
      %v1703 = vor.u32 %v1702, %v1698
      %v1704 = vrot.slane %v1703, 4
      %v1706 = vshll.u32 %v1577, 16
      %v1708 = vrot.slane %v1706, 5
      %v1709 = vsel %vm297, %v1704, %v1708
      %v1710 = vshrl.u32 %v1577, 16
      %v1712 = vrot.slane %v1710, 4
      %v1713 = vor.u32 %v1712, %v1708
      %v1714 = vrot.slane %v1713, 4
      %v1716 = vshll.u32 %v1578, 16
      %v1718 = vrot.slane %v1716, 5
      %v1719 = vsel %vm297, %v1714, %v1718
      %v1720 = vshrl.u32 %v1578, 16
      %v1722 = vrot.slane %v1720, 4
      %v1723 = vor.u32 %v1722, %v1718
      %v1724 = vrot.slane %v1723, 4
      %v1726 = vshll.u32 %v1579, 16
      %v1728 = vrot.slane %v1726, 5
      %v1729 = vsel %vm297, %v1724, %v1728
      %v1730 = vshrl.u32 %v1579, 16
      %v1732 = vrot.slane %v1730, 4
      %v1733 = vor.u32 %v1732, %v1728
      %v1734 = vrot.slane %v1733, 4
      %v1736 = vshll.u32 %v1580, 16
      %v1738 = vrot.slane %v1736, 5
      %v1739 = vsel %vm297, %v1734, %v1738
      %v1740 = vshrl.u32 %v1580, 16
      %v1742 = vrot.slane %v1740, 4
      %v1743 = vor.u32 %v1742, %v1738
      %v1744 = vrot.slane %v1743, 4
      %v1746 = vshll.u32 %v1581, 16
      %v1748 = vrot.slane %v1746, 5
      %v1749 = vsel %vm297, %v1744, %v1748
      %v1750 = vshrl.u32 %v1581, 16
      %v1752 = vrot.slane %v1750, 4
      %v1753 = vor.u32 %v1752, %v1748
      %v1754 = vrot.slane %v1753, 4
      %v1756 = vshll.u32 %v1582, 16
      %v1758 = vrot.slane %v1756, 5
      %v1759 = vsel %vm297, %v1754, %v1758
      %v1760 = vshrl.u32 %v1582, 16
      %v1762 = vrot.slane %v1760, 4
      %v1763 = vor.u32 %v1762, %v1758
      %v1764 = vrot.slane %v1763, 4
      %v1766 = vshll.u32 %v1583, 16
      %v1768 = vrot.slane %v1766, 5
      %v1769 = vsel %vm297, %v1764, %v1768
      %v1771 = vshrl.u32 %v1584, 16
      %v1773 = vrot.slane %v1771, 4
      %v1774 = vshll.u32 %v1584, 16
      %v1776 = vrot.slane %v1774, 5
      %v1777 = vor.u32 %v1773, %v1776
      %v1778 = vrot.slane %v1777, 4
      %v1780 = vshll.u32 %v1585, 16
      %v1782 = vrot.slane %v1780, 5
      %v1783 = vsel %vm297, %v1778, %v1782
      %v1784 = vshrl.u32 %v1585, 16
      %v1786 = vrot.slane %v1784, 4
      %v1787 = vor.u32 %v1786, %v1782
      %v1788 = vrot.slane %v1787, 4
      %v1790 = vshll.u32 %v1586, 16
      %v1792 = vrot.slane %v1790, 5
      %v1793 = vsel %vm297, %v1788, %v1792
      %v1794 = vshrl.u32 %v1586, 16
      %v1796 = vrot.slane %v1794, 4
      %v1797 = vor.u32 %v1796, %v1792
      %v1798 = vrot.slane %v1797, 4
      %v1800 = vshll.u32 %v1587, 16
      %v1802 = vrot.slane %v1800, 5
      %v1803 = vsel %vm297, %v1798, %v1802
      %v1804 = vshrl.u32 %v1587, 16
      %v1806 = vrot.slane %v1804, 4
      %v1807 = vor.u32 %v1806, %v1802
      %v1808 = vrot.slane %v1807, 4
      %v1810 = vshll.u32 %v1588, 16
      %v1812 = vrot.slane %v1810, 5
      %v1813 = vsel %vm297, %v1808, %v1812
      %v1814 = vshrl.u32 %v1588, 16
      %v1816 = vrot.slane %v1814, 4
      %v1817 = vor.u32 %v1816, %v1812
      %v1818 = vrot.slane %v1817, 4
      %v1820 = vshll.u32 %v1589, 16
      %v1822 = vrot.slane %v1820, 5
      %v1823 = vsel %vm297, %v1818, %v1822
      %v1824 = vshrl.u32 %v1589, 16
      %v1826 = vrot.slane %v1824, 4
      %v1827 = vor.u32 %v1826, %v1822
      %v1828 = vrot.slane %v1827, 4
      %v1830 = vshll.u32 %v1590, 16
      %v1832 = vrot.slane %v1830, 5
      %v1833 = vsel %vm297, %v1828, %v1832
      %v1834 = vshrl.u32 %v1590, 16
      %v1836 = vrot.slane %v1834, 4
      %v1837 = vor.u32 %v1836, %v1832
      %v1838 = vrot.slane %v1837, 4
      %v1840 = vshll.u32 %v1591, 16
      %v1842 = vrot.slane %v1840, 5
      %v1843 = vsel %vm297, %v1838, %v1842
      %v1844 = vshrl.u32 %v1591, 16
      %v1846 = vrot.slane %v1844, 4
      %v1847 = vor.u32 %v1846, %v1842
      %v1848 = vrot.slane %v1847, 4
      %v1850 = vshll.u32 %v1592, 16
      %v1852 = vrot.slane %v1850, 5
      %v1853 = vsel %vm297, %v1848, %v1852
      %v1855 = vshrl.u32 %v1593, 16
      %v1857 = vrot.slane %v1855, 4
      %v1858 = vshll.u32 %v1593, 16
      %v1860 = vrot.slane %v1858, 5
      %v1861 = vor.u32 %v1857, %v1860
      %v1862 = vrot.slane %v1861, 4
      %v1864 = vshll.u32 %v1594, 16
      %v1866 = vrot.slane %v1864, 5
      %v1867 = vsel %vm297, %v1862, %v1866
      %v1868 = vshrl.u32 %v1594, 16
      %v1870 = vrot.slane %v1868, 4
      %v1871 = vor.u32 %v1870, %v1866
      %v1872 = vrot.slane %v1871, 4
      %v1874 = vshll.u32 %v1595, 16
      %v1876 = vrot.slane %v1874, 5
      %v1877 = vsel %vm297, %v1872, %v1876
      %v1878 = vshrl.u32 %v1595, 16
      %v1880 = vrot.slane %v1878, 4
      %v1881 = vor.u32 %v1880, %v1876
      %v1882 = vrot.slane %v1881, 4
      %v1884 = vshll.u32 %v1596, 16
      %v1886 = vrot.slane %v1884, 5
      %v1887 = vsel %vm297, %v1882, %v1886
      %v1888 = vshrl.u32 %v1596, 16
      %v1890 = vrot.slane %v1888, 4
      %v1891 = vor.u32 %v1890, %v1886
      %v1892 = vrot.slane %v1891, 4
      %v1894 = vshll.u32 %v1597, 16
      %v1896 = vrot.slane %v1894, 5
      %v1897 = vsel %vm297, %v1892, %v1896
      %v1898 = vshrl.u32 %v1597, 16
      %v1900 = vrot.slane %v1898, 4
      %v1901 = vor.u32 %v1900, %v1896
      %v1902 = vrot.slane %v1901, 4
      %v1904 = vshll.u32 %v1598, 16
      %v1906 = vrot.slane %v1904, 5
      %v1907 = vsel %vm297, %v1902, %v1906
      %v1908 = vshrl.u32 %v1598, 16
      %v1910 = vrot.slane %v1908, 4
      %v1911 = vor.u32 %v1910, %v1906
      %v1912 = vrot.slane %v1911, 4
      %v1914 = vshll.u32 %v1599, 16
      %v1916 = vrot.slane %v1914, 5
      %v1917 = vsel %vm297, %v1912, %v1916
      %v1918 = vshrl.u32 %v1599, 16
      %v1920 = vrot.slane %v1918, 4
      %v1921 = vor.u32 %v1920, %v1916
      %v1922 = vrot.slane %v1921, 4
      %v1924 = vshll.u32 %v1600, 16
      %v1926 = vrot.slane %v1924, 5
      %v1927 = vsel %vm297, %v1922, %v1926
      %v1928 = vshrl.u32 %v1600, 16
      %v1930 = vrot.slane %v1928, 4
      %v1931 = vor.u32 %v1930, %v1926
      %v1932 = vrot.slane %v1931, 4
      %v1934 = vshll.u32 %v1601, 16
      %v1936 = vrot.slane %v1934, 5
      %v1937 = vsel %vm297, %v1932, %v1936
      %s1938 = scalar_lea.vmem %s1, 24
      %v1939 = vld [vmem:[%s1938] sm:$0xf]
      %v1940 = vld [vmem:[%s1938 + $0x4] sm:$0x3]
      %v1941 = vunpack.c.l.b16 %v1615
      %v1942 = vunpack.c.l.b16 %v1625
      %v1943 = vunpack.c.l.b16 %v1635
      %v1944 = vunpack.c.l.b16 %v1645
      %v1945 = vunpack.c.l.b16 %v1655
      %v1946 = vunpack.c.l.b16 %v1665
      %v1947 = vunpack.c.l.b16 %v1675
      %v1948 = vunpack.c.l.b16 %v1685
      %v1949 = vunpack.c.l.b16 %v1699
      %v1950 = vunpack.c.l.b16 %v1709
      %v1951 = vunpack.c.l.b16 %v1719
      %v1952 = vunpack.c.l.b16 %v1729
      %v1953 = vunpack.c.l.b16 %v1739
      %v1954 = vunpack.c.l.b16 %v1749
      %v1955 = vunpack.c.l.b16 %v1759
      %v1956 = vunpack.c.l.b16 %v1769
      %v1957 = vunpack.c.l.b16 %v1783
      %v1958 = vunpack.c.l.b16 %v1793
      %v1959 = vunpack.c.l.b16 %v1803
      %v1960 = vunpack.c.l.b16 %v1813
      %v1961 = vunpack.c.l.b16 %v1823
      %v1962 = vunpack.c.l.b16 %v1833
      %v1963 = vunpack.c.l.b16 %v1843
      %v1964 = vunpack.c.l.b16 %v1853
      %v1965 = vunpack.c.l.b16 %v1867
      %v1966 = vunpack.c.l.b16 %v1877
      %v1967 = vunpack.c.l.b16 %v1887
      %v1968 = vunpack.c.l.b16 %v1897
      %v1969 = vunpack.c.l.b16 %v1907
      %v1970 = vunpack.c.l.b16 %v1917
      %v1971 = vunpack.c.l.b16 %v1927
      %v1972 = vunpack.c.l.b16 %v1937
      %v1973 = vpack.c.b16 %v1942, %v1941
      %v1974 = vpack.c.b16 %v1944, %v1943
      %v1975 = vpack.c.b16 %v1946, %v1945
      %v1976 = vpack.c.b16 %v1948, %v1947
      %v1977 = vpack.c.b16 %v1950, %v1949
      %v1978 = vpack.c.b16 %v1952, %v1951
      %v1979 = vpack.c.b16 %v1954, %v1953
      %v1980 = vpack.c.b16 %v1956, %v1955
      %v1981 = vpack.c.b16 %v1958, %v1957
      %v1982 = vpack.c.b16 %v1960, %v1959
      %v1983 = vpack.c.b16 %v1962, %v1961
      %v1984 = vpack.c.b16 %v1964, %v1963
      %v1985 = vpack.c.b16 %v1966, %v1965
      %v1986 = vpack.c.b16 %v1968, %v1967
      %v1987 = vpack.c.b16 %v1970, %v1969
      %v1988 = vpack.c.b16 %v1972, %v1971
      %v1991 = vunpack.c.l.b16 %v1939
      %v1992 = vunpack.c.l.b16 %v1940
      %v1993 = vpack.c.b16 %v1992, %v1991
      %v1995 = vsel %vm690, %v1973, 0
      %v1998 = vsel %vm690, %v1974, 0
      %v2001 = vsel %vm690, %v1975, 0
      %v2004 = vsel %vm690, %v1976, 0
      %v2007 = vsel %vm690, %v1977, 0
      %v2010 = vsel %vm690, %v1978, 0
      %v2013 = vsel %vm690, %v1979, 0
      %v2016 = vsel %vm690, %v1980, 0
      %v2019 = vsel %vm690, %v1981, 0
      %v2022 = vsel %vm690, %v1982, 0
      %v2025 = vsel %vm690, %v1983, 0
      %v2028 = vsel %vm690, %v1984, 0
      %v2031 = vsel %vm690, %v1985, 0
      %v2034 = vsel %vm690, %v1986, 0
      %v2037 = vsel %vm690, %v1987, 0
      %v2040 = vsel %vm690, %v1988, 0
      %v2043 = vsel %vm739, %v1993, 0
      %2045 = vmatprep.subr.bf16.mxu0 0
      %2046 = vmatpush1.bf16.msra.mxu0 %v2043
      %2047 = vmatprep.subr.bf16.mxu0 0
      %2048 = vmatpush1.bf16.msra.mxu0 0
      %2049 = vmatprep.subr.bf16.mxu0 0
      %2050 = vmatpush1.bf16.msra.mxu0 0
      %2051 = vmatprep.subr.bf16.mxu0 0
      %2052 = vmatpush1.bf16.msra.mxu0 0
      %2053 = vmatprep.subr.bf16.mxu0 0
      %2054 = vmatpush1.bf16.msra.mxu0 0
      %2055 = vmatprep.subr.bf16.mxu0 0
      %2056 = vmatpush1.bf16.msra.mxu0 0
      %2057 = vmatprep.subr.bf16.mxu0 0
      %2058 = vmatpush1.bf16.msra.mxu0 0
      %2059 = vmatprep.subr.bf16.mxu0 0
      %2060 = vmatpush1.bf16.msra.mxu0 0
      %2061 = vmatprep.subr.bf16.mxu0 0
      %2062 = vmatpush1.bf16.msra.mxu0 0
      %2063 = vmatprep.subr.bf16.mxu0 0
      %2064 = vmatpush1.bf16.msra.mxu0 0
      %2065 = vmatprep.subr.bf16.mxu0 0
      %2066 = vmatpush1.bf16.msra.mxu0 0
      %2067 = vmatprep.subr.bf16.mxu0 0
      %2068 = vmatpush1.bf16.msra.mxu0 0
      %2069 = vmatprep.subr.bf16.mxu0 0
      %2070 = vmatpush1.bf16.msra.mxu0 0
      %2071 = vmatprep.subr.bf16.mxu0 0
      %2072 = vmatpush1.bf16.msra.mxu0 0
      %2073 = vmatprep.subr.bf16.mxu0 0
      %2074 = vmatpush1.bf16.msra.mxu0 0
      %2075 = vmatprep.subr.bf16.mxu0 0
      %2076 = vmatpush1.bf16.msra.mxu0 0
      %2077 = vmatprep.mubr.bf16.mxu0 0
      %2078 = vmatmul.mubr.bf16.gmra.mrb[0].mxu0 %v1995
      %v2079 = vpop.f32.mrb[0].mxu0
      %v2080 = vadd.f32 0.0, %v2079
      %v2081 = vpop.f32.mrb[0].mxu0
      %v2082 = vpop.f32.mrb[0].mxu0
      %v2083 = vadd.f32 0.0, %v2082
      %v2084 = vpop.f32.mrb[0].mxu0
      %2085 = vmatprep.mubr.bf16.mxu0 0
      %2086 = vmatmul.mubr.bf16.gmra.mrb[0].mxu0 %v1998
      %v2087 = vpop.f32.mrb[0].mxu0
      %v2088 = vadd.f32 0.0, %v2087
      %v2089 = vpop.f32.mrb[0].mxu0
      %v2090 = vpop.f32.mrb[0].mxu0
      %v2091 = vadd.f32 0.0, %v2090
      %v2092 = vpop.f32.mrb[0].mxu0
      %2093 = vmatprep.mubr.bf16.mxu0 0
      %2094 = vmatmul.mubr.bf16.gmra.mrb[0].mxu0 %v2001
      %v2095 = vpop.f32.mrb[0].mxu0
      %v2096 = vadd.f32 0.0, %v2095
      %v2097 = vpop.f32.mrb[0].mxu0
      %v2098 = vpop.f32.mrb[0].mxu0
      %v2099 = vadd.f32 0.0, %v2098
      %v2100 = vpop.f32.mrb[0].mxu0
      %2101 = vmatprep.mubr.bf16.mxu0 0
      %2102 = vmatmul.mubr.bf16.gmra.mrb[0].mxu0 %v2004
      %v2103 = vpop.f32.mrb[0].mxu0
      %v2104 = vadd.f32 0.0, %v2103
      %v2105 = vpop.f32.mrb[0].mxu0
      %v2106 = vpop.f32.mrb[0].mxu0
      %v2107 = vadd.f32 0.0, %v2106
      %v2108 = vpop.f32.mrb[0].mxu0
      %2109 = vmatprep.mubr.bf16.mxu0 0
      %2110 = vmatmul.mubr.bf16.gmra.mrb[0].mxu0 %v2007
      %v2111 = vpop.f32.mrb[0].mxu0
      %v2112 = vadd.f32 0.0, %v2111
      %v2113 = vpop.f32.mrb[0].mxu0
      %v2114 = vpop.f32.mrb[0].mxu0
      %v2115 = vadd.f32 0.0, %v2114
      %v2116 = vpop.f32.mrb[0].mxu0
      %2117 = vmatprep.mubr.bf16.mxu0 0
      %2118 = vmatmul.mubr.bf16.gmra.mrb[0].mxu0 %v2010
      %v2119 = vpop.f32.mrb[0].mxu0
      %v2120 = vadd.f32 0.0, %v2119
      %v2121 = vpop.f32.mrb[0].mxu0
      %v2122 = vpop.f32.mrb[0].mxu0
      %v2123 = vadd.f32 0.0, %v2122
      %v2124 = vpop.f32.mrb[0].mxu0
      %2125 = vmatprep.mubr.bf16.mxu0 0
      %2126 = vmatmul.mubr.bf16.gmra.mrb[0].mxu0 %v2013
      %v2127 = vpop.f32.mrb[0].mxu0
      %v2128 = vadd.f32 0.0, %v2127
      %v2129 = vpop.f32.mrb[0].mxu0
      %v2130 = vpop.f32.mrb[0].mxu0
      %v2131 = vadd.f32 0.0, %v2130
      %v2132 = vpop.f32.mrb[0].mxu0
      %2133 = vmatprep.mubr.bf16.mxu0 0
      %2134 = vmatmul.mubr.bf16.gmra.mrb[0].mxu0 %v2016
      %v2135 = vpop.f32.mrb[0].mxu0
      %v2136 = vadd.f32 0.0, %v2135
      %v2137 = vpop.f32.mrb[0].mxu0
      %v2138 = vpop.f32.mrb[0].mxu0
      %v2139 = vadd.f32 0.0, %v2138
      %v2140 = vpop.f32.mrb[0].mxu0
      %2141 = vmatprep.mubr.bf16.mxu0 0
      %2142 = vmatmul.mubr.bf16.gmra.mrb[0].mxu0 %v2019
      %v2143 = vpop.f32.mrb[0].mxu0
      %v2144 = vadd.f32 0.0, %v2143
      %v2145 = vpop.f32.mrb[0].mxu0
      %v2146 = vpop.f32.mrb[0].mxu0
      %v2147 = vadd.f32 0.0, %v2146
      %v2148 = vpop.f32.mrb[0].mxu0
      %2149 = vmatprep.mubr.bf16.mxu0 0
      %2150 = vmatmul.mubr.bf16.gmra.mrb[0].mxu0 %v2022
      %v2151 = vpop.f32.mrb[0].mxu0
      %v2152 = vadd.f32 0.0, %v2151
      %v2153 = vpop.f32.mrb[0].mxu0
      %v2154 = vpop.f32.mrb[0].mxu0
      %v2155 = vadd.f32 0.0, %v2154
      %v2156 = vpop.f32.mrb[0].mxu0
      %2157 = vmatprep.mubr.bf16.mxu0 0
      %2158 = vmatmul.mubr.bf16.gmra.mrb[0].mxu0 %v2025
      %v2159 = vpop.f32.mrb[0].mxu0
      %v2160 = vadd.f32 0.0, %v2159
      %v2161 = vpop.f32.mrb[0].mxu0
      %v2162 = vpop.f32.mrb[0].mxu0
      %v2163 = vadd.f32 0.0, %v2162
      %v2164 = vpop.f32.mrb[0].mxu0
      %2165 = vmatprep.mubr.bf16.mxu0 0
      %2166 = vmatmul.mubr.bf16.gmra.mrb[0].mxu0 %v2028
      %v2167 = vpop.f32.mrb[0].mxu0
      %v2168 = vadd.f32 0.0, %v2167
      %v2169 = vpop.f32.mrb[0].mxu0
      %v2170 = vpop.f32.mrb[0].mxu0
      %v2171 = vadd.f32 0.0, %v2170
      %v2172 = vpop.f32.mrb[0].mxu0
      %2173 = vmatprep.mubr.bf16.mxu0 0
      %2174 = vmatmul.mubr.bf16.gmra.mrb[0].mxu0 %v2031
      %v2175 = vpop.f32.mrb[0].mxu0
      %v2176 = vadd.f32 0.0, %v2175
      %v2177 = vpop.f32.mrb[0].mxu0
      %v2178 = vpop.f32.mrb[0].mxu0
      %v2179 = vadd.f32 0.0, %v2178
      %v2180 = vpop.f32.mrb[0].mxu0
      %2181 = vmatprep.mubr.bf16.mxu0 0
      %2182 = vmatmul.mubr.bf16.gmra.mrb[0].mxu0 %v2034
      %v2183 = vpop.f32.mrb[0].mxu0
      %v2184 = vadd.f32 0.0, %v2183
      %v2185 = vpop.f32.mrb[0].mxu0
      %v2186 = vpop.f32.mrb[0].mxu0
      %v2187 = vadd.f32 0.0, %v2186
      %v2188 = vpop.f32.mrb[0].mxu0
      %2189 = vmatprep.mubr.bf16.mxu0 0
      %2190 = vmatmul.mubr.bf16.gmra.mrb[0].mxu0 %v2037
      %v2191 = vpop.f32.mrb[0].mxu0
      %v2192 = vadd.f32 0.0, %v2191
      %v2193 = vpop.f32.mrb[0].mxu0
      %v2194 = vpop.f32.mrb[0].mxu0
      %v2195 = vadd.f32 0.0, %v2194
      %v2196 = vpop.f32.mrb[0].mxu0
      %2197 = vmatprep.mubr.bf16.mxu0 0
      %2198 = vmatmul.mubr.bf16.gmra.mrb[0].mxu0 %v2040
      %v2199 = vpop.f32.mrb[0].mxu0
      %v2200 = vadd.f32 0.0, %v2199
      %v2201 = vpop.f32.mrb[0].mxu0
      %v2202 = vpop.f32.mrb[0].mxu0
      %v2203 = vadd.f32 0.0, %v2202
      %v2204 = vpop.f32.mrb[0].mxu0
      %2205 = vdwg.mxu0
      %v2206 = vadd.f32 %v1534, %v2080
      %v2207 = vadd.f32 %v1535, %v2083
      %v2208 = vadd.f32 %v1536, %v2088
      %v2209 = vadd.f32 %v1537, %v2091
      %v2210 = vadd.f32 %v1538, %v2096
      %v2211 = vadd.f32 %v1539, %v2099
      %v2212 = vadd.f32 %v1540, %v2104
      %v2213 = vadd.f32 %v1541, %v2107
      %v2214 = vadd.f32 %v1542, %v2112
      %v2215 = vadd.f32 %v1543, %v2115
      %v2216 = vadd.f32 %v1544, %v2120
      %v2217 = vadd.f32 %v1545, %v2123
      %v2218 = vadd.f32 %v1546, %v2128
      %v2219 = vadd.f32 %v1547, %v2131
      %v2220 = vadd.f32 %v1548, %v2136
      %v2221 = vadd.f32 %v1549, %v2139
      %v2222 = vadd.f32 %v1550, %v2144
      %v2223 = vadd.f32 %v1551, %v2147
      %v2224 = vadd.f32 %v1552, %v2152
      %v2225 = vadd.f32 %v1553, %v2155
      %v2226 = vadd.f32 %v1554, %v2160
      %v2227 = vadd.f32 %v1555, %v2163
      %v2228 = vadd.f32 %v1556, %v2168
      %v2229 = vadd.f32 %v1557, %v2171
      %v2230 = vadd.f32 %v1558, %v2176
      %v2231 = vadd.f32 %v1559, %v2179
      %v2232 = vadd.f32 %v1560, %v2184
      %v2233 = vadd.f32 %v1561, %v2187
      %v2234 = vadd.f32 %v1562, %v2192
      %v2235 = vadd.f32 %v1563, %v2195
      %v2236 = vadd.f32 %v1564, %v2200
      %v2237 = vadd.f32 %v1565, %v2203
      %v2238 = vld [vmem:[%s2] sm:$0x1]
      %v2240 = vlaneseq
      %v2241 = vshrl.u32 %v2240, 7
      %v2242 = vsub.s32 0, %v2241
      %v2243 = vrot.slane %v2238, %v2242
      %v2245 = vadd.f32 %v2206, %v2243
      %v2246 = vadd.f32 %v2207, %v2243
      %v2247 = vadd.f32 %v2208, %v2243
      %v2248 = vadd.f32 %v2209, %v2243
      %v2249 = vadd.f32 %v2210, %v2243
      %v2250 = vadd.f32 %v2211, %v2243
      %v2251 = vadd.f32 %v2212, %v2243
      %v2252 = vadd.f32 %v2213, %v2243
      %v2253 = vadd.f32 %v2214, %v2243
      %v2254 = vadd.f32 %v2215, %v2243
      %v2255 = vadd.f32 %v2216, %v2243
      %v2256 = vadd.f32 %v2217, %v2243
      %v2257 = vadd.f32 %v2218, %v2243
      %v2258 = vadd.f32 %v2219, %v2243
      %v2259 = vadd.f32 %v2220, %v2243
      %v2260 = vadd.f32 %v2221, %v2243
      %v2261 = vadd.f32 %v2222, %v2243
      %v2262 = vadd.f32 %v2223, %v2243
      %v2263 = vadd.f32 %v2224, %v2243
      %v2264 = vadd.f32 %v2225, %v2243
      %v2265 = vadd.f32 %v2226, %v2243
      %v2266 = vadd.f32 %v2227, %v2243
      %v2267 = vadd.f32 %v2228, %v2243
      %v2268 = vadd.f32 %v2229, %v2243
      %v2269 = vadd.f32 %v2230, %v2243
      %v2270 = vadd.f32 %v2231, %v2243
      %v2271 = vadd.f32 %v2232, %v2243
      %v2272 = vadd.f32 %v2233, %v2243
      %v2273 = vadd.f32 %v2234, %v2243
      %v2274 = vadd.f32 %v2235, %v2243
      %v2275 = vadd.f32 %v2236, %v2243
      %v2276 = vadd.f32 %v2237, %v2243
      %v2277 = vpack.c.bf16 %v2246, %v2245
      %v2278 = vpack.c.bf16 %v2248, %v2247
      %v2279 = vpack.c.bf16 %v2250, %v2249
      %v2280 = vpack.c.bf16 %v2252, %v2251
      %v2281 = vpack.c.bf16 %v2254, %v2253
      %v2282 = vpack.c.bf16 %v2256, %v2255
      %v2283 = vpack.c.bf16 %v2258, %v2257
      %v2284 = vpack.c.bf16 %v2260, %v2259
      %v2285 = vpack.c.bf16 %v2262, %v2261
      %v2286 = vpack.c.bf16 %v2264, %v2263
      %v2287 = vpack.c.bf16 %v2266, %v2265
      %v2288 = vpack.c.bf16 %v2268, %v2267
      %v2289 = vpack.c.bf16 %v2270, %v2269
      %v2290 = vpack.c.bf16 %v2272, %v2271
      %v2291 = vpack.c.bf16 %v2274, %v2273
      %v2292 = vpack.c.bf16 %v2276, %v2275
      %v2309 = vunpack.c.l.b16 %v2277
      %v2310 = vunpack.c.h.b16 %v2277
      %v2311 = vunpack.c.l.b16 %v2278
      %v2312 = vunpack.c.h.b16 %v2278
      %v2313 = vunpack.c.l.b16 %v2279
      %v2314 = vunpack.c.h.b16 %v2279
      %v2315 = vunpack.c.l.b16 %v2280
      %v2316 = vunpack.c.h.b16 %v2280
      %v2317 = vunpack.c.l.b16 %v2281
      %v2318 = vunpack.c.h.b16 %v2281
      %v2319 = vunpack.c.l.b16 %v2282
      %v2320 = vunpack.c.h.b16 %v2282
      %v2321 = vunpack.c.l.b16 %v2283
      %v2322 = vunpack.c.h.b16 %v2283
      %v2323 = vunpack.c.l.b16 %v2284
      %v2324 = vunpack.c.h.b16 %v2284
      %v2325 = vunpack.c.l.b16 %v2285
      %v2326 = vunpack.c.h.b16 %v2285
      %v2327 = vunpack.c.l.b16 %v2286
      %v2328 = vunpack.c.h.b16 %v2286
      %v2329 = vunpack.c.l.b16 %v2287
      %v2330 = vunpack.c.h.b16 %v2287
      %v2331 = vunpack.c.l.b16 %v2288
      %v2332 = vunpack.c.h.b16 %v2288
      %v2333 = vunpack.c.l.b16 %v2289
      %v2334 = vunpack.c.h.b16 %v2289
      %v2335 = vunpack.c.l.b16 %v2290
      %v2336 = vunpack.c.h.b16 %v2290
      %v2337 = vunpack.c.l.b16 %v2291
      %v2338 = vunpack.c.h.b16 %v2291
      %v2339 = vunpack.c.l.b16 %v2292
      %v2340 = vunpack.c.h.b16 %v2292
      %v2341 = vpack.c.b16 %v2309, %v2309
      %v2342 = vpack.c.b16 %v2310, %v2310
      %v2343 = vpack.c.b16 %v2311, %v2311
      %v2344 = vpack.c.b16 %v2312, %v2312
      %v2345 = vpack.c.b16 %v2313, %v2313
      %v2346 = vpack.c.b16 %v2314, %v2314
      %v2347 = vpack.c.b16 %v2315, %v2315
      %v2348 = vpack.c.b16 %v2316, %v2316
      %v2349 = vpack.c.b16 %v2317, %v2317
      %v2350 = vpack.c.b16 %v2318, %v2318
      %v2351 = vpack.c.b16 %v2319, %v2319
      %v2352 = vpack.c.b16 %v2320, %v2320
      %v2353 = vpack.c.b16 %v2321, %v2321
      %v2354 = vpack.c.b16 %v2322, %v2322
      %v2355 = vpack.c.b16 %v2323, %v2323
      %v2356 = vpack.c.b16 %v2324, %v2324
      %v2357 = vpack.c.b16 %v2325, %v2325
      %v2358 = vpack.c.b16 %v2326, %v2326
      %v2359 = vpack.c.b16 %v2327, %v2327
      %v2360 = vpack.c.b16 %v2328, %v2328
      %v2361 = vpack.c.b16 %v2329, %v2329
      %v2362 = vpack.c.b16 %v2330, %v2330
      %v2363 = vpack.c.b16 %v2331, %v2331
      %v2364 = vpack.c.b16 %v2332, %v2332
      %v2365 = vpack.c.b16 %v2333, %v2333
      %v2366 = vpack.c.b16 %v2334, %v2334
      %v2367 = vpack.c.b16 %v2335, %v2335
      %v2368 = vpack.c.b16 %v2336, %v2336
      %v2369 = vpack.c.b16 %v2337, %v2337
      %v2370 = vpack.c.b16 %v2338, %v2338
      %v2371 = vpack.c.b16 %v2339, %v2339
      %v2372 = vpack.c.b16 %v2340, %v2340
      %vm2405 = vcmask 27648
      %2406 = vst.msk [vmem:[%s244] sm:$0xf] %vm2405, %v2341
      %2407 = vst.msk [vmem:[%s244 + $0x4] sm:$0xf] %vm2405, %v2342
      %2408 = vst.msk [vmem:[%s244 + $0x8] sm:$0xf] %vm2405, %v2343
      %2409 = vst.msk [vmem:[%s244 + $0xc] sm:$0xf] %vm2405, %v2344
      %2410 = vst.msk [vmem:[%s244 + $0x10] sm:$0xf] %vm2405, %v2345
      %2411 = vst.msk [vmem:[%s244 + $0x14] sm:$0xf] %vm2405, %v2346
      %2412 = vst.msk [vmem:[%s244 + $0x18] sm:$0xf] %vm2405, %v2347
      %2413 = vst.msk [vmem:[%s244 + $0x1c] sm:$0xf] %vm2405, %v2348
      %2414 = vst.msk [vmem:[%s244 + $0x20] sm:$0xf] %vm2405, %v2349
      %2415 = vst.msk [vmem:[%s244 + $0x24] sm:$0xf] %vm2405, %v2350
      %2416 = vst.msk [vmem:[%s244 + $0x28] sm:$0xf] %vm2405, %v2351
      %2417 = vst.msk [vmem:[%s244 + $0x2c] sm:$0xf] %vm2405, %v2352
      %2418 = vst.msk [vmem:[%s244 + $0x30] sm:$0xf] %vm2405, %v2353
      %2419 = vst.msk [vmem:[%s244 + $0x34] sm:$0xf] %vm2405, %v2354
      %2420 = vst.msk [vmem:[%s244 + $0x38] sm:$0xf] %vm2405, %v2355
      %2421 = vst.msk [vmem:[%s244 + $0x3c] sm:$0xf] %vm2405, %v2356
      %2422 = vst.msk [vmem:[%s244 + $0x40] sm:$0xf] %vm2405, %v2357
      %2423 = vst.msk [vmem:[%s244 + $0x44] sm:$0xf] %vm2405, %v2358
      %2424 = vst.msk [vmem:[%s244 + $0x48] sm:$0xf] %vm2405, %v2359
      %2425 = vst.msk [vmem:[%s244 + $0x4c] sm:$0xf] %vm2405, %v2360
      %2426 = vst.msk [vmem:[%s244 + $0x50] sm:$0xf] %vm2405, %v2361
      %2427 = vst.msk [vmem:[%s244 + $0x54] sm:$0xf] %vm2405, %v2362
      %2428 = vst.msk [vmem:[%s244 + $0x58] sm:$0xf] %vm2405, %v2363
      %2429 = vst.msk [vmem:[%s244 + $0x5c] sm:$0xf] %vm2405, %v2364
      %2430 = vst.msk [vmem:[%s244 + $0x60] sm:$0xf] %vm2405, %v2365
      %2431 = vst.msk [vmem:[%s244 + $0x64] sm:$0xf] %vm2405, %v2366
      %2432 = vst.msk [vmem:[%s244 + $0x68] sm:$0xf] %vm2405, %v2367
      %2433 = vst.msk [vmem:[%s244 + $0x6c] sm:$0xf] %vm2405, %v2368
      %2434 = vst.msk [vmem:[%s244 + $0x70] sm:$0xf] %vm2405, %v2369
      %2435 = vst.msk [vmem:[%s244 + $0x74] sm:$0xf] %vm2405, %v2370
      %2436 = vst.msk [vmem:[%s244 + $0x78] sm:$0xf] %vm2405, %v2371
      %2437 = vst.msk [vmem:[%s244 + $0x7c] sm:$0xf] %vm2405, %v2372
      %vm2438 = vcmask 31744
      %v2439 = vsel %vm2438, %v2245, 0.0
      %v2440 = vsel %vm2438, %v2246, 0.0
      %v2441 = vadd.f32 %v2439, %v2440
      %v2442 = vsel %vm2438, %v2247, 0.0
      %v2443 = vadd.f32 %v2441, %v2442
      %v2444 = vsel %vm2438, %v2248, 0.0
      %v2445 = vadd.f32 %v2443, %v2444
      %v2446 = vsel %vm2438, %v2249, 0.0
      %v2447 = vadd.f32 %v2445, %v2446
      %v2448 = vsel %vm2438, %v2250, 0.0
      %v2449 = vadd.f32 %v2447, %v2448
      %v2450 = vsel %vm2438, %v2251, 0.0
      %v2451 = vadd.f32 %v2449, %v2450
      %v2452 = vsel %vm2438, %v2252, 0.0
      %v2453 = vadd.f32 %v2451, %v2452
      %v2454 = vsel %vm2438, %v2253, 0.0
      %v2455 = vadd.f32 %v2453, %v2454
      %v2456 = vsel %vm2438, %v2254, 0.0
      %v2457 = vadd.f32 %v2455, %v2456
      %v2458 = vsel %vm2438, %v2255, 0.0
      %v2459 = vadd.f32 %v2457, %v2458
      %v2460 = vsel %vm2438, %v2256, 0.0
      %v2461 = vadd.f32 %v2459, %v2460
      %v2462 = vsel %vm2438, %v2257, 0.0
      %v2463 = vadd.f32 %v2461, %v2462
      %v2464 = vsel %vm2438, %v2258, 0.0
      %v2465 = vadd.f32 %v2463, %v2464
      %v2466 = vsel %vm2438, %v2259, 0.0
      %v2467 = vadd.f32 %v2465, %v2466
      %v2468 = vsel %vm2438, %v2260, 0.0
      %v2469 = vadd.f32 %v2467, %v2468
      %v2470 = vsel %vm2438, %v2261, 0.0
      %v2471 = vadd.f32 %v2469, %v2470
      %v2472 = vsel %vm2438, %v2262, 0.0
      %v2473 = vadd.f32 %v2471, %v2472
      %v2474 = vsel %vm2438, %v2263, 0.0
      %v2475 = vadd.f32 %v2473, %v2474
      %v2476 = vsel %vm2438, %v2264, 0.0
      %v2477 = vadd.f32 %v2475, %v2476
      %v2478 = vsel %vm2438, %v2265, 0.0
      %v2479 = vadd.f32 %v2477, %v2478
      %v2480 = vsel %vm2438, %v2266, 0.0
      %v2481 = vadd.f32 %v2479, %v2480
      %v2482 = vsel %vm2438, %v2267, 0.0
      %v2483 = vadd.f32 %v2481, %v2482
      %v2484 = vsel %vm2438, %v2268, 0.0
      %v2485 = vadd.f32 %v2483, %v2484
      %v2486 = vsel %vm2438, %v2269, 0.0
      %v2487 = vadd.f32 %v2485, %v2486
      %v2488 = vsel %vm2438, %v2270, 0.0
      %v2489 = vadd.f32 %v2487, %v2488
      %v2490 = vsel %vm2438, %v2271, 0.0
      %v2491 = vadd.f32 %v2489, %v2490
      %v2492 = vsel %vm2438, %v2272, 0.0
      %v2493 = vadd.f32 %v2491, %v2492
      %v2494 = vsel %vm2438, %v2273, 0.0
      %v2495 = vadd.f32 %v2493, %v2494
      %v2496 = vsel %vm2438, %v2274, 0.0
      %v2497 = vadd.f32 %v2495, %v2496
      %v2498 = vsel %vm2438, %v2275, 0.0
      %v2499 = vadd.f32 %v2497, %v2498
      %v2500 = vsel %vm2438, %v2276, 0.0
      %v2501 = vadd.f32 %v2499, %v2500
      %v2502 = vrot.slane %v2501, 4
      %v2503 = vadd.f32 %v2501, %v2502
      %v2504 = vrot.slane %v2503, 2
      %v2505 = vadd.f32 %v2503, %v2504
      %v2506 = vrot.slane %v2505, 1
      %v2507 = vadd.f32 %v2505, %v2506
      %v2508 = vmul.f32 %v2507, 0.00390625
      %v2509 = vsub.f32 %v2245, %v2508
      %v2510 = vsub.f32 %v2246, %v2508
      %v2511 = vsub.f32 %v2247, %v2508
      %v2512 = vsub.f32 %v2248, %v2508
      %v2513 = vsub.f32 %v2249, %v2508
      %v2514 = vsub.f32 %v2250, %v2508
      %v2515 = vsub.f32 %v2251, %v2508
      %v2516 = vsub.f32 %v2252, %v2508
      %v2517 = vsub.f32 %v2253, %v2508
      %v2518 = vsub.f32 %v2254, %v2508
      %v2519 = vsub.f32 %v2255, %v2508
      %v2520 = vsub.f32 %v2256, %v2508
      %v2521 = vsub.f32 %v2257, %v2508
      %v2522 = vsub.f32 %v2258, %v2508
      %v2523 = vsub.f32 %v2259, %v2508
      %v2524 = vsub.f32 %v2260, %v2508
      %v2525 = vsub.f32 %v2261, %v2508
      %v2526 = vsub.f32 %v2262, %v2508
      %v2527 = vsub.f32 %v2263, %v2508
      %v2528 = vsub.f32 %v2264, %v2508
      %v2529 = vsub.f32 %v2265, %v2508
      %v2530 = vsub.f32 %v2266, %v2508
      %v2531 = vsub.f32 %v2267, %v2508
      %v2532 = vsub.f32 %v2268, %v2508
      %v2533 = vsub.f32 %v2269, %v2508
      %v2534 = vsub.f32 %v2270, %v2508
      %v2535 = vsub.f32 %v2271, %v2508
      %v2536 = vsub.f32 %v2272, %v2508
      %v2537 = vsub.f32 %v2273, %v2508
      %v2538 = vsub.f32 %v2274, %v2508
      %v2539 = vsub.f32 %v2275, %v2508
      %v2540 = vsub.f32 %v2276, %v2508
      %v2541 = vmul.f32 %v2509, %v2509
      %v2542 = vmul.f32 %v2510, %v2510
      %v2543 = vmul.f32 %v2511, %v2511
      %v2544 = vmul.f32 %v2512, %v2512
      %v2545 = vmul.f32 %v2513, %v2513
      %v2546 = vmul.f32 %v2514, %v2514
      %v2547 = vmul.f32 %v2515, %v2515
      %v2548 = vmul.f32 %v2516, %v2516
      %v2549 = vmul.f32 %v2517, %v2517
      %v2550 = vmul.f32 %v2518, %v2518
      %v2551 = vmul.f32 %v2519, %v2519
      %v2552 = vmul.f32 %v2520, %v2520
      %v2553 = vmul.f32 %v2521, %v2521
      %v2554 = vmul.f32 %v2522, %v2522
      %v2555 = vmul.f32 %v2523, %v2523
      %v2556 = vmul.f32 %v2524, %v2524
      %v2557 = vmul.f32 %v2525, %v2525
      %v2558 = vmul.f32 %v2526, %v2526
      %v2559 = vmul.f32 %v2527, %v2527
      %v2560 = vmul.f32 %v2528, %v2528
      %v2561 = vmul.f32 %v2529, %v2529
      %v2562 = vmul.f32 %v2530, %v2530
      %v2563 = vmul.f32 %v2531, %v2531
      %v2564 = vmul.f32 %v2532, %v2532
      %v2565 = vmul.f32 %v2533, %v2533
      %v2566 = vmul.f32 %v2534, %v2534
      %v2567 = vmul.f32 %v2535, %v2535
      %v2568 = vmul.f32 %v2536, %v2536
      %v2569 = vmul.f32 %v2537, %v2537
      %v2570 = vmul.f32 %v2538, %v2538
      %v2571 = vmul.f32 %v2539, %v2539
      %v2572 = vmul.f32 %v2540, %v2540
      %v2573 = vsel %vm2438, %v2541, 0.0
      %v2574 = vsel %vm2438, %v2542, 0.0
      %v2575 = vadd.f32 %v2573, %v2574
      %v2576 = vsel %vm2438, %v2543, 0.0
      %v2577 = vadd.f32 %v2575, %v2576
      %v2578 = vsel %vm2438, %v2544, 0.0
      %v2579 = vadd.f32 %v2577, %v2578
      %v2580 = vsel %vm2438, %v2545, 0.0
      %v2581 = vadd.f32 %v2579, %v2580
      %v2582 = vsel %vm2438, %v2546, 0.0
      %v2583 = vadd.f32 %v2581, %v2582
      %v2584 = vsel %vm2438, %v2547, 0.0
      %v2585 = vadd.f32 %v2583, %v2584
      %v2586 = vsel %vm2438, %v2548, 0.0
      %v2587 = vadd.f32 %v2585, %v2586
      %v2588 = vsel %vm2438, %v2549, 0.0
      %v2589 = vadd.f32 %v2587, %v2588
      %v2590 = vsel %vm2438, %v2550, 0.0
      %v2591 = vadd.f32 %v2589, %v2590
      %v2592 = vsel %vm2438, %v2551, 0.0
      %v2593 = vadd.f32 %v2591, %v2592
      %v2594 = vsel %vm2438, %v2552, 0.0
      %v2595 = vadd.f32 %v2593, %v2594
      %v2596 = vsel %vm2438, %v2553, 0.0
      %v2597 = vadd.f32 %v2595, %v2596
      %v2598 = vsel %vm2438, %v2554, 0.0
      %v2599 = vadd.f32 %v2597, %v2598
      %v2600 = vsel %vm2438, %v2555, 0.0
      %v2601 = vadd.f32 %v2599, %v2600
      %v2602 = vsel %vm2438, %v2556, 0.0
      %v2603 = vadd.f32 %v2601, %v2602
      %v2604 = vsel %vm2438, %v2557, 0.0
      %v2605 = vadd.f32 %v2603, %v2604
      %v2606 = vsel %vm2438, %v2558, 0.0
      %v2607 = vadd.f32 %v2605, %v2606
      %v2608 = vsel %vm2438, %v2559, 0.0
      %v2609 = vadd.f32 %v2607, %v2608
      %v2610 = vsel %vm2438, %v2560, 0.0
      %v2611 = vadd.f32 %v2609, %v2610
      %v2612 = vsel %vm2438, %v2561, 0.0
      %v2613 = vadd.f32 %v2611, %v2612
      %v2614 = vsel %vm2438, %v2562, 0.0
      %v2615 = vadd.f32 %v2613, %v2614
      %v2616 = vsel %vm2438, %v2563, 0.0
      %v2617 = vadd.f32 %v2615, %v2616
      %v2618 = vsel %vm2438, %v2564, 0.0
      %v2619 = vadd.f32 %v2617, %v2618
      %v2620 = vsel %vm2438, %v2565, 0.0
      %v2621 = vadd.f32 %v2619, %v2620
      %v2622 = vsel %vm2438, %v2566, 0.0
      %v2623 = vadd.f32 %v2621, %v2622
      %v2624 = vsel %vm2438, %v2567, 0.0
      %v2625 = vadd.f32 %v2623, %v2624
      %v2626 = vsel %vm2438, %v2568, 0.0
      %v2627 = vadd.f32 %v2625, %v2626
      %v2628 = vsel %vm2438, %v2569, 0.0
      %v2629 = vadd.f32 %v2627, %v2628
      %v2630 = vsel %vm2438, %v2570, 0.0
      %v2631 = vadd.f32 %v2629, %v2630
      %v2632 = vsel %vm2438, %v2571, 0.0
      %v2633 = vadd.f32 %v2631, %v2632
      %v2634 = vsel %vm2438, %v2572, 0.0
      %v2635 = vadd.f32 %v2633, %v2634
      %v2636 = vrot.slane %v2635, 4
      %v2637 = vadd.f32 %v2635, %v2636
      %v2638 = vrot.slane %v2637, 2
      %v2639 = vadd.f32 %v2637, %v2638
      %v2640 = vrot.slane %v2639, 1
      %v2641 = vadd.f32 %v2639, %v2640
      %vm2642 = vcmask 1040384
      %v2643 = vsel %vm2642, %v2507, %v2641
      %vm2644 = vcmask 25600
      %2645 = vst.msk [vmem:[%s253] sm:$0x3] %vm2644, %v2643
      %s2646 = smul.u32 %s20, 16
      %s2647 = sadd.s32 %s2646, %s21
      %s2648 = smul.u32 32, %s2647
      %p2649 = scmp.lt.s32.totalorder %s2648, 1023
      %s2650 = scalar_select %p2649, %s2648, 1023
      %s2651 = smul.addr %s2650, 4
      %s2652 = scalar_lea.vmem %s3, %s2651
      %s2653 = smul.u32 %s20, 16
      %s2654 = sadd.s32 %s2653, %s21
      %p2655 = scmp.lt.s32.totalorder %s2654, 31
      %s2656 = scalar_select %p2655, %s2654, 31
      %s2657 = smul.addr %s2656, 2
      %s2658 = scalar_lea.vmem %s4, %s2657
      // Predicated region
      $region33: #{_lambda_.11} parent=31 // pred_check
        %p2659 = pneg %p122
      $region34: #{_lambda_.11} parent=31 // pred_check_branch
        %2661 = sbr.rel (%p2659) target = $region36
      $region35: #{_lambda_.11} parent=31 // pred_region
        %s2662 = smul.u32 %s20, 16
        %s2663 = sadd.s32 %s2662, %s21
        %s2664 = smul.u32 32, %s2663
      $region36: #{_lambda_.11} parent=31 // pred_fallthru
        _
      // Predicated region
      $region37: #{_lambda_.11} parent=31 // pred_check
        %p2665 = pneg %p152
      $region38: #{_lambda_.11} parent=31 // pred_check_branch
        %2667 = sbr.rel (%p2665) target = $region40
      $region39: #{_lambda_.11} parent=31 // pred_region
        %s2668 = smul.u32 %s20, 16
        %s2669 = sadd.s32 %s2668, %s21
      $region40: #{_lambda_.11} parent=31 // pred_fallthru
        _
    $region32: #{_lambda_.11} parent=5 // pred_fallthru
      _
    %p2670 = scmp.le.s32.totalorder 2, %s11
    // Predicated region
    $region41: #{_lambda_.11} parent=5 // pred_check
      %p2671 = pneg %p2670
    $region42: #{_lambda_.11} parent=5 // pred_check_branch
      %2673 = sbr.rel (%p2671) target = $region44
    $region43: #{_lambda_.11} parent=5 // pred_region
      %s2674 = ssub.s32 %s11, 2
      // Predicated region
      $region45: #{_lambda_.11} parent=43 // pred_check
        %p2675 = pneg %p128
      $region46: #{_lambda_.11} parent=43 // pred_check_branch
        %2677 = sbr.rel (%p2675) target = $region48
      $region47: #{_lambda_.11} parent=43 // pred_region
        %s2678 = smul.u32 %s22, 16
        %s2679 = sadd.s32 %s2678, %s23
        %s2680 = smul.u32 32, %s2679
        %p2681 = scmp.lt.s32.totalorder %s2680, 1023
        %s2682 = scalar_select %p2681, %s2680, 1023
        %s2683 = smul.addr %s2682, 4
        %s2684 = scalar_lea.vmem %s3, %s2683
      $region48: #{_lambda_.11} parent=43 // pred_fallthru
        _
      // Predicated region
      $region49: #{_lambda_.11} parent=43 // pred_check
        %p2685 = pneg %p158
      $region50: #{_lambda_.11} parent=43 // pred_check_branch
        %2687 = sbr.rel (%p2685) target = $region52
      $region51: #{_lambda_.11} parent=43 // pred_region
        %s2688 = smul.u32 %s22, 16
        %s2689 = sadd.s32 %s2688, %s23
        %p2690 = scmp.lt.s32.totalorder %s2689, 31
        %s2691 = scalar_select %p2690, %s2689, 31
        %s2692 = smul.addr %s2691, 2
        %s2693 = scalar_lea.vmem %s4, %s2692
      $region52: #{_lambda_.11} parent=43 // pred_fallthru
        _
    $region44: #{_lambda_.11} parent=5 // pred_fallthru
      _
  $region6: #{_lambda_.11} parent=0 // loop_footer
    %s15 = sadd.s32 1, %s11
  $region7: #{_lambda_.11} parent=0 // loop_footer_branch
    %10 = sbr.rel target = $region3
  $region8: #{_lambda_.11} parent=0 // loop_exit
    _

// kernel: tile.38
$region0: #{tile.38}
  #allocation0 [shape = 's32[1]{0}', space=sflag, size = 0x4, scoped, tag = 'scoped memory for tile.38']
  %s0 = inlined_call_operand.vmem [shape: f32[4], index: 0, kind: input, shape index: {}]
  %s1 = inlined_call_operand.vmem [shape: f32[64,4], index: 1, kind: output, shape index: {}]
  // Predicated region
  $region2: #{tile.38} parent=0 // pred_check
    _
  $region3: #{tile.38} parent=0 // pred_check_branch
    %3 = sbr.rel (0) target = $region5
  $region4: #{tile.38} parent=0 // pred_region
    _
  $region5: #{tile.38} parent=0 // pred_fallthru
    _
  %v4 = vld [vmem:[%s0] ss:$0 sm:$0xff]
  %5 = vst [vmem:[%s1] sm:$0xff] %v4
  %s6 = scalar_lea.vmem %s1, 8
  %7 = vst [vmem:[%s6] sm:$0xff] %v4
  %s8 = scalar_lea.vmem %s1, 16
  %9 = vst [vmem:[%s8] sm:$0xff] %v4
  %s10 = scalar_lea.vmem %s1, 24
  %11 = vst [vmem:[%s10] sm:$0xff] %v4
  %s12 = scalar_lea.vmem %s1, 32
  %13 = vst [vmem:[%s12] sm:$0xff] %v4
  %s14 = scalar_lea.vmem %s1, 40
  %15 = vst [vmem:[%s14] sm:$0xff] %v4
  %s16 = scalar_lea.vmem %s1, 48
  %17 = vst [vmem:[%s16] sm:$0xff] %v4
  %s18 = scalar_lea.vmem %s1, 56
  %19 = vst [vmem:[%s18] sm:$0xff] %v4

// kernel: tile.39
$region0: #{tile.39}
  %s0 = inlined_call_operand.vmem [shape: f32[64,4], index: 0, kind: input, shape index: {}]
  %s1 = inlined_call_operand.vmem [shape: f32[1,256], index: 1, kind: output, shape index: {}]
  $region1: #{tile.39} parent=0
    #allocation0 [shape = 'u8[8192]{0}', space=vmem, size = 0x2000, scoped, tag = 'scoped mem for output reshape']
    %v2 = vld [vmem:[%s0] sm:$0x1]
    %s3 = scalar_lea.vmem %s0, 31
    %v4 = vld [vmem:[%s3] sm:$0x2]
    %vm5 = vcmask 1041409
    %v6 = vsel %vm5, %v4, %v2
    %vm7 = vcmask 31744
    %8 = vst.msk [vmem:[#allocation0] ss:$8 sm:$0x3] %vm7, %v6
    %s9 = scalar_lea.vmem %s0, 31
    %v10 = vld [vmem:[%s9] sm:$0x1]
    %s11 = scalar_lea.vmem %s0, 62
    %v12 = vld [vmem:[%s11] sm:$0x2]
    %vm13 = vcmask 1041409
    %v14 = vsel %vm13, %v12, %v10
    %15 = vrot.lane.b32.xlu0 %v14, 124
    %v16 = vpop.permute.xlu0 %15
    %vm17 = vcmask 1048544
    %18 = vst.msk [vmem:[#allocation0] ss:$8 sm:$0x3] %vm17, %v16
    %s19 = scalar_lea.vmem %s0, 30
    %v20 = vld [vmem:[%s19] sm:$0x1]
    %s21 = scalar_lea.vmem %s0, 61
    %v22 = vld [vmem:[%s21] sm:$0x2]
    %vm23 = vcmask 1041409
    %v24 = vsel %vm23, %v22, %v20
    %25 = vrot.lane.b32.xlu0 %v24, 120
    %v26 = vpop.permute.xlu0 %25
    %vm27 = vcmask 1015744
    %28 = vst.msk [vmem:[#allocation0] ss:$8 sm:$0x3] %vm27, %v26
    %s29 = scalar_lea.vmem %s0, 29
    %v30 = vld [vmem:[%s29] sm:$0x1]
    %s31 = scalar_lea.vmem %s0, 60
    %v32 = vld [vmem:[%s31] sm:$0x2]
    %vm33 = vcmask 1041409
    %v34 = vsel %vm33, %v32, %v30
    %35 = vrot.lane.b32.xlu0 %v34, 116
    %v36 = vpop.permute.xlu0 %35
    %vm37 = vcmask 982944
    %38 = vst.msk [vmem:[#allocation0] ss:$8 sm:$0x3] %vm37, %v36
    %s39 = scalar_lea.vmem %s0, 28
    %v40 = vld [vmem:[%s39] sm:$0x1]
    %s41 = scalar_lea.vmem %s0, 59
    %v42 = vld [vmem:[%s41] sm:$0x2]
    %vm43 = vcmask 1041409
    %v44 = vsel %vm43, %v42, %v40
    %45 = vrot.lane.b32.xlu0 %v44, 112
    %v46 = vpop.permute.xlu0 %45
    %vm47 = vcmask 950144
    %48 = vst.msk [vmem:[#allocation0] ss:$8 sm:$0x3] %vm47, %v46
    %s49 = scalar_lea.vmem %s0, 27
    %v50 = vld [vmem:[%s49] sm:$0x1]
    %s51 = scalar_lea.vmem %s0, 58
    %v52 = vld [vmem:[%s51] sm:$0x2]
    %vm53 = vcmask 1041409
    %v54 = vsel %vm53, %v52, %v50
    %55 = vrot.lane.b32.xlu0 %v54, 108
    %v56 = vpop.permute.xlu0 %55
    %vm57 = vcmask 917344
    %58 = vst.msk [vmem:[#allocation0] ss:$8 sm:$0x3] %vm57, %v56
    %s59 = scalar_lea.vmem %s0, 26
    %v60 = vld [vmem:[%s59] sm:$0x1]
    %s61 = scalar_lea.vmem %s0, 57
    %v62 = vld [vmem:[%s61] sm:$0x2]
    %vm63 = vcmask 1041409
    %v64 = vsel %vm63, %v62, %v60
    %65 = vrot.lane.b32.xlu0 %v64, 104
    %v66 = vpop.permute.xlu0 %65
    %vm67 = vcmask 884544
    %68 = vst.msk [vmem:[#allocation0] ss:$8 sm:$0x3] %vm67, %v66
    %s69 = scalar_lea.vmem %s0, 25
    %v70 = vld [vmem:[%s69] sm:$0x1]
    %s71 = scalar_lea.vmem %s0, 56
    %v72 = vld [vmem:[%s71] sm:$0x2]
    %vm73 = vcmask 1041409
    %v74 = vsel %vm73, %v72, %v70
    %75 = vrot.lane.b32.xlu0 %v74, 100
    %v76 = vpop.permute.xlu0 %75
    %vm77 = vcmask 851744
    %78 = vst.msk [vmem:[#allocation0] ss:$8 sm:$0x3] %vm77, %v76
    %s79 = scalar_lea.vmem %s0, 24
    %v80 = vld [vmem:[%s79] sm:$0x1]
    %s81 = scalar_lea.vmem %s0, 55
    %v82 = vld [vmem:[%s81] sm:$0x2]
    %vm83 = vcmask 1041409
    %v84 = vsel %vm83, %v82, %v80
    %85 = vrot.lane.b32.xlu0 %v84, 96
    %v86 = vpop.permute.xlu0 %85
    %vm87 = vcmask 818944
    %88 = vst.msk [vmem:[#allocation0] ss:$8 sm:$0x3] %vm87, %v86
    %s89 = scalar_lea.vmem %s0, 23
    %v90 = vld [vmem:[%s89] sm:$0x1]
    %s91 = scalar_lea.vmem %s0, 54
    %v92 = vld [vmem:[%s91] sm:$0x2]
    %vm93 = vcmask 1041409
    %v94 = vsel %vm93, %v92, %v90
    %95 = vrot.lane.b32.xlu0 %v94, 92
    %v96 = vpop.permute.xlu0 %95
    %vm97 = vcmask 786144
    %98 = vst.msk [vmem:[#allocation0] ss:$8 sm:$0x3] %vm97, %v96
    %s99 = scalar_lea.vmem %s0, 22
    %v100 = vld [vmem:[%s99] sm:$0x1]
    %s101 = scalar_lea.vmem %s0, 53
    %v102 = vld [vmem:[%s101] sm:$0x2]
    %vm103 = vcmask 1041409
    %v104 = vsel %vm103, %v102, %v100
    %105 = vrot.lane.b32.xlu0 %v104, 88
    %v106 = vpop.permute.xlu0 %105
    %vm107 = vcmask 753344
    %108 = vst.msk [vmem:[#allocation0] ss:$8 sm:$0x3] %vm107, %v106
    %s109 = scalar_lea.vmem %s0, 21
    %v110 = vld [vmem:[%s109] sm:$0x1]
    %s111 = scalar_lea.vmem %s0, 52
    %v112 = vld [vmem:[%s111] sm:$0x2]
    %vm113 = vcmask 1041409
    %v114 = vsel %vm113, %v112, %v110
    %115 = vrot.lane.b32.xlu0 %v114, 84
    %v116 = vpop.permute.xlu0 %115
    %vm117 = vcmask 720544
    %118 = vst.msk [vmem:[#allocation0] ss:$8 sm:$0x3] %vm117, %v116
    %s119 = scalar_lea.vmem %s0, 20
    %v120 = vld [vmem:[%s119] sm:$0x1]
    %s121 = scalar_lea.vmem %s0, 51
    %v122 = vld [vmem:[%s121] sm:$0x2]
    %vm123 = vcmask 1041409
    %v124 = vsel %vm123, %v122, %v120
    %125 = vrot.lane.b32.xlu0 %v124, 80
    %v126 = vpop.permute.xlu0 %125
    %vm127 = vcmask 687744
    %128 = vst.msk [vmem:[#allocation0] ss:$8 sm:$0x3] %vm127, %v126
    %s129 = scalar_lea.vmem %s0, 19
    %v130 = vld [vmem:[%s129] sm:$0x1]
    %s131 = scalar_lea.vmem %s0, 50
    %v132 = vld [vmem:[%s131] sm:$0x2]
    %vm133 = vcmask 1041409
    %v134 = vsel %vm133, %v132, %v130
    %135 = vrot.lane.b32.xlu0 %v134, 76
    %v136 = vpop.permute.xlu0 %135
    %vm137 = vcmask 654944
    %138 = vst.msk [vmem:[#allocation0] ss:$8 sm:$0x3] %vm137, %v136
    %s139 = scalar_lea.vmem %s0, 18
    %v140 = vld [vmem:[%s139] sm:$0x1]
    %s141 = scalar_lea.vmem %s0, 49
    %v142 = vld [vmem:[%s141] sm:$0x2]
    %vm143 = vcmask 1041409
    %v144 = vsel %vm143, %v142, %v140
    %145 = vrot.lane.b32.xlu0 %v144, 72
    %v146 = vpop.permute.xlu0 %145
    %vm147 = vcmask 622144
    %148 = vst.msk [vmem:[#allocation0] ss:$8 sm:$0x3] %vm147, %v146
    %s149 = scalar_lea.vmem %s0, 17
    %v150 = vld [vmem:[%s149] sm:$0x1]
    %s151 = scalar_lea.vmem %s0, 48
    %v152 = vld [vmem:[%s151] sm:$0x2]
    %vm153 = vcmask 1041409
    %v154 = vsel %vm153, %v152, %v150
    %155 = vrot.lane.b32.xlu0 %v154, 68
    %v156 = vpop.permute.xlu0 %155
    %vm157 = vcmask 589344
    %158 = vst.msk [vmem:[#allocation0] ss:$8 sm:$0x3] %vm157, %v156
    %s159 = scalar_lea.vmem %s0, 16
    %v160 = vld [vmem:[%s159] sm:$0x1]
    %s161 = scalar_lea.vmem %s0, 47
    %v162 = vld [vmem:[%s161] sm:$0x2]
    %vm163 = vcmask 1041409
    %v164 = vsel %vm163, %v162, %v160
    %165 = vrot.lane.b32.xlu0 %v164, 64
    %v166 = vpop.permute.xlu0 %165
    %vm167 = vcmask 556544
    %168 = vst.msk [vmem:[#allocation0] ss:$8 sm:$0x3] %vm167, %v166
    %s169 = scalar_lea.vmem %s0, 15
    %v170 = vld [vmem:[%s169] sm:$0x1]
    %s171 = scalar_lea.vmem %s0, 46
    %v172 = vld [vmem:[%s171] sm:$0x2]
    %vm173 = vcmask 1041409
    %v174 = vsel %vm173, %v172, %v170
    %175 = vrot.lane.b32.xlu0 %v174, 60
    %v176 = vpop.permute.xlu0 %175
    %vm177 = vcmask 523744
    %178 = vst.msk [vmem:[#allocation0] ss:$8 sm:$0x3] %vm177, %v176
    %s179 = scalar_lea.vmem %s0, 14
    %v180 = vld [vmem:[%s179] sm:$0x1]
    %s181 = scalar_lea.vmem %s0, 45
    %v182 = vld [vmem:[%s181] sm:$0x2]
    %vm183 = vcmask 1041409
    %v184 = vsel %vm183, %v182, %v180
    %185 = vrot.lane.b32.xlu0 %v184, 56
    %v186 = vpop.permute.xlu0 %185
    %vm187 = vcmask 490944
    %188 = vst.msk [vmem:[#allocation0] ss:$8 sm:$0x3] %vm187, %v186
    %s189 = scalar_lea.vmem %s0, 13
    %v190 = vld [vmem:[%s189] sm:$0x1]
    %s191 = scalar_lea.vmem %s0, 44
    %v192 = vld [vmem:[%s191] sm:$0x2]
    %vm193 = vcmask 1041409
    %v194 = vsel %vm193, %v192, %v190
    %195 = vrot.lane.b32.xlu0 %v194, 52
    %v196 = vpop.permute.xlu0 %195
    %vm197 = vcmask 458144
    %198 = vst.msk [vmem:[#allocation0] ss:$8 sm:$0x3] %vm197, %v196
    %s199 = scalar_lea.vmem %s0, 12
    %v200 = vld [vmem:[%s199] sm:$0x1]
    %s201 = scalar_lea.vmem %s0, 43
    %v202 = vld [vmem:[%s201] sm:$0x2]
    %vm203 = vcmask 1041409
    %v204 = vsel %vm203, %v202, %v200
    %205 = vrot.lane.b32.xlu0 %v204, 48
    %v206 = vpop.permute.xlu0 %205
    %vm207 = vcmask 425344
    %208 = vst.msk [vmem:[#allocation0] ss:$8 sm:$0x3] %vm207, %v206
    %s209 = scalar_lea.vmem %s0, 11
    %v210 = vld [vmem:[%s209] sm:$0x1]
    %s211 = scalar_lea.vmem %s0, 42
    %v212 = vld [vmem:[%s211] sm:$0x2]
    %vm213 = vcmask 1041409
    %v214 = vsel %vm213, %v212, %v210
    %215 = vrot.lane.b32.xlu0 %v214, 44
    %v216 = vpop.permute.xlu0 %215
    %vm217 = vcmask 392544
    %218 = vst.msk [vmem:[#allocation0] ss:$8 sm:$0x3] %vm217, %v216
    %s219 = scalar_lea.vmem %s0, 10
    %v220 = vld [vmem:[%s219] sm:$0x1]
    %s221 = scalar_lea.vmem %s0, 41
    %v222 = vld [vmem:[%s221] sm:$0x2]
    %vm223 = vcmask 1041409
    %v224 = vsel %vm223, %v222, %v220
    %225 = vrot.lane.b32.xlu0 %v224, 40
    %v226 = vpop.permute.xlu0 %225
    %vm227 = vcmask 359744
    %228 = vst.msk [vmem:[#allocation0] ss:$8 sm:$0x3] %vm227, %v226
    %s229 = scalar_lea.vmem %s0, 9
    %v230 = vld [vmem:[%s229] sm:$0x1]
    %s231 = scalar_lea.vmem %s0, 40
    %v232 = vld [vmem:[%s231] sm:$0x2]
    %vm233 = vcmask 1041409
    %v234 = vsel %vm233, %v232, %v230
    %235 = vrot.lane.b32.xlu0 %v234, 36
    %v236 = vpop.permute.xlu0 %235
    %vm237 = vcmask 326944
    %238 = vst.msk [vmem:[#allocation0] ss:$8 sm:$0x3] %vm237, %v236
    %s239 = scalar_lea.vmem %s0, 8
    %v240 = vld [vmem:[%s239] sm:$0x1]
    %s241 = scalar_lea.vmem %s0, 39
    %v242 = vld [vmem:[%s241] sm:$0x2]
    %vm243 = vcmask 1041409
    %v244 = vsel %vm243, %v242, %v240
    %245 = vrot.lane.b32.xlu0 %v244, 32
    %v246 = vpop.permute.xlu0 %245
    %vm247 = vcmask 294144
    %248 = vst.msk [vmem:[#allocation0] ss:$8 sm:$0x3] %vm247, %v246
    %s249 = scalar_lea.vmem %s0, 7
    %v250 = vld [vmem:[%s249] sm:$0x1]
    %s251 = scalar_lea.vmem %s0, 38
    %v252 = vld [vmem:[%s251] sm:$0x2]
    %vm253 = vcmask 1041409
    %v254 = vsel %vm253, %v252, %v250
    %255 = vrot.lane.b32.xlu0 %v254, 28
    %v256 = vpop.permute.xlu0 %255
    %vm257 = vcmask 261344
    %258 = vst.msk [vmem:[#allocation0] ss:$8 sm:$0x3] %vm257, %v256
    %s259 = scalar_lea.vmem %s0, 6
    %v260 = vld [vmem:[%s259] sm:$0x1]
    %s261 = scalar_lea.vmem %s0, 37
    %v262 = vld [vmem:[%s261] sm:$0x2]
    %vm263 = vcmask 1041409
    %v264 = vsel %vm263, %v262, %v260
    %265 = vrot.lane.b32.xlu0 %v264, 24
    %v266 = vpop.permute.xlu0 %265
    %vm267 = vcmask 228544
    %268 = vst.msk [vmem:[#allocation0] ss:$8 sm:$0x3] %vm267, %v266
    %s269 = scalar_lea.vmem %s0, 5
    %v270 = vld [vmem:[%s269] sm:$0x1]
    %s271 = scalar_lea.vmem %s0, 36
    %v272 = vld [vmem:[%s271] sm:$0x2]
    %vm273 = vcmask 1041409
    %v274 = vsel %vm273, %v272, %v270
    %275 = vrot.lane.b32.xlu0 %v274, 20
    %v276 = vpop.permute.xlu0 %275
    %vm277 = vcmask 195744
    %278 = vst.msk [vmem:[#allocation0] ss:$8 sm:$0x3] %vm277, %v276
    %s279 = scalar_lea.vmem %s0, 4
    %v280 = vld [vmem:[%s279] sm:$0x1]
    %s281 = scalar_lea.vmem %s0, 35
    %v282 = vld [vmem:[%s281] sm:$0x2]
    %vm283 = vcmask 1041409
    %v284 = vsel %vm283, %v282, %v280
    %285 = vrot.lane.b32.xlu0 %v284, 16
    %v286 = vpop.permute.xlu0 %285
    %vm287 = vcmask 162944
    %288 = vst.msk [vmem:[#allocation0] ss:$8 sm:$0x3] %vm287, %v286
    %s289 = scalar_lea.vmem %s0, 3
    %v290 = vld [vmem:[%s289] sm:$0x1]
    %s291 = scalar_lea.vmem %s0, 34
    %v292 = vld [vmem:[%s291] sm:$0x2]
    %vm293 = vcmask 1041409
    %v294 = vsel %vm293, %v292, %v290
    %295 = vrot.lane.b32.xlu0 %v294, 12
    %v296 = vpop.permute.xlu0 %295
    %vm297 = vcmask 130144
    %298 = vst.msk [vmem:[#allocation0] ss:$8 sm:$0x3] %vm297, %v296
    %s299 = scalar_lea.vmem %s0, 2
    %v300 = vld [vmem:[%s299] sm:$0x1]
    %s301 = scalar_lea.vmem %s0, 33
    %v302 = vld [vmem:[%s301] sm:$0x2]
    %vm303 = vcmask 1041409
    %v304 = vsel %vm303, %v302, %v300
    %305 = vrot.lane.b32.xlu0 %v304, 8
    %v306 = vpop.permute.xlu0 %305
    %vm307 = vcmask 97344
    %308 = vst.msk [vmem:[#allocation0] ss:$8 sm:$0x3] %vm307, %v306
    %s309 = scalar_lea.vmem %s0, 1
    %v310 = vld [vmem:[%s309] sm:$0x1]
    %s311 = scalar_lea.vmem %s0, 32
    %v312 = vld [vmem:[%s311] sm:$0x2]
    %vm313 = vcmask 1041409
    %v314 = vsel %vm313, %v312, %v310
    %315 = vrot.lane.b32.xlu0 %v314, 4
    %v316 = vpop.permute.xlu0 %315
    %vm317 = vcmask 64544
    %318 = vst.msk [vmem:[#allocation0] ss:$8 sm:$0x3] %vm317, %v316
    %s320 = sshllo.u32 0, 1
    %v322 = vld [vmem:[#allocation0] sm:%s320]
    %s323 = sshllo.u32 0, 1
    %324 = vst [vmem:[%s1] sm:%s323] %v322
    %s325 = scalar_lea.vmem [#allocation0], 8
    %v326 = vld [vmem:[%s325] sm:%s320]
    %s327 = sshllo.u32 0, 1
    %s328 = scalar_lea.vmem %s1, 1
    %329 = vst [vmem:[%s328] sm:%s327] %v326

// kernel: _lambda_.12
$region0: #{_lambda_.12}
  #allocation0 [shape = 'u32[]', space=smem, size = 0x4, offset = 0x4, fixed_abs, tag = 'smem constant byte address 0x4 - core index']
  #allocation1 [shape = 'u32[144,128]{1,0:T(1,128)}', space=vmem, size = 0x12000, scoped, tag = 'internal scratch']
  %s0 = inlined_call_operand.vmem [shape: bf16[128,256], index: 0, kind: input, shape index: {}]
  %s1 = inlined_call_operand.vmem [shape: f32[1,256], index: 1, kind: input, shape index: {}]
  %s2 = inlined_call_operand.vmem [shape: f32[1,256], index: 2, kind: input, shape index: {}]
  %s3 = inlined_call_operand.vmem [shape: bf16[128,256], index: 3, kind: output, shape index: {}]
  %s4 = sld [smem:[#allocation0]]
  $region22: #{_lambda_.12} parent=0
    _
  %s6 = ssub.s32 1, %s4
  %s7 = scalar_select 0, %s6, %s4
  // Predicated region
  $region2: #{_lambda_.12} parent=0 // pred_check
    _
  $region3: #{_lambda_.12} parent=0 // pred_check_branch
    %9 = sbr.rel (0) target = $region5
  $region4: #{_lambda_.12} parent=0 // pred_region
    _
  $region5: #{_lambda_.12} parent=0 // pred_fallthru
    _
  // Predicated region
  $region6: #{_lambda_.12} parent=0 // pred_check
    _
  $region7: #{_lambda_.12} parent=0 // pred_check_branch
    %11 = sbr.rel (0) target = $region9
  $region8: #{_lambda_.12} parent=0 // pred_region
    _
  $region9: #{_lambda_.12} parent=0 // pred_fallthru
    _
  // Predicated region
  $region10: #{_lambda_.12} parent=0 // pred_check
    _
  $region11: #{_lambda_.12} parent=0 // pred_check_branch
    %13 = sbr.rel (0) target = $region13
  $region12: #{_lambda_.12} parent=0 // pred_region
    _
  $region13: #{_lambda_.12} parent=0 // pred_fallthru
    _
  %v14 = vld [vmem:[%s0] sm:$0xff]
  %v15 = vld [vmem:[%s0 + $0x8] sm:$0xff]
  %v16 = vld [vmem:[%s0 + $0x10] sm:$0xff]
  %v17 = vld [vmem:[%s0 + $0x18] sm:$0xff]
  %v18 = vld [vmem:[%s0 + $0x20] sm:$0xff]
  %v19 = vld [vmem:[%s0 + $0x28] sm:$0xff]
  %v20 = vld [vmem:[%s0 + $0x30] sm:$0xff]
  %v21 = vld [vmem:[%s0 + $0x38] sm:$0xff]
  %v22 = vld [vmem:[%s0 + $0x40] sm:$0xff]
  %v23 = vld [vmem:[%s0 + $0x48] sm:$0xff]
  %v24 = vld [vmem:[%s0 + $0x50] sm:$0xff]
  %v25 = vld [vmem:[%s0 + $0x58] sm:$0xff]
  %v26 = vld [vmem:[%s0 + $0x60] sm:$0xff]
  %v27 = vld [vmem:[%s0 + $0x68] sm:$0xff]
  %v28 = vld [vmem:[%s0 + $0x70] sm:$0xff]
  %v29 = vld [vmem:[%s0 + $0x78] sm:$0xff]
  %v30 = vunpack.c.l.bf16 %v14
  %v31 = vunpack.c.h.bf16 %v14
  %v32 = vunpack.c.l.bf16 %v15
  %v33 = vunpack.c.h.bf16 %v15
  %v34 = vunpack.c.l.bf16 %v16
  %v35 = vunpack.c.h.bf16 %v16
  %v36 = vunpack.c.l.bf16 %v17
  %v37 = vunpack.c.h.bf16 %v17
  %v38 = vunpack.c.l.bf16 %v18
  %v39 = vunpack.c.h.bf16 %v18
  %v40 = vunpack.c.l.bf16 %v19
  %v41 = vunpack.c.h.bf16 %v19
  %v42 = vunpack.c.l.bf16 %v20
  %v43 = vunpack.c.h.bf16 %v20
  %v44 = vunpack.c.l.bf16 %v21
  %v45 = vunpack.c.h.bf16 %v21
  %v46 = vunpack.c.l.bf16 %v22
  %v47 = vunpack.c.h.bf16 %v22
  %v48 = vunpack.c.l.bf16 %v23
  %v49 = vunpack.c.h.bf16 %v23
  %v50 = vunpack.c.l.bf16 %v24
  %v51 = vunpack.c.h.bf16 %v24
  %v52 = vunpack.c.l.bf16 %v25
  %v53 = vunpack.c.h.bf16 %v25
  %v54 = vunpack.c.l.bf16 %v26
  %v55 = vunpack.c.h.bf16 %v26
  %v56 = vunpack.c.l.bf16 %v27
  %v57 = vunpack.c.h.bf16 %v27
  %v58 = vunpack.c.l.bf16 %v28
  %v59 = vunpack.c.h.bf16 %v28
  %v60 = vunpack.c.l.bf16 %v29
  %v61 = vunpack.c.h.bf16 %v29
  %v62 = vld [vmem:[%s1] sm:$0x3]
  %v64 = vlaneseq
  %v65 = vshrl.u32 %v64, 7
  %v66 = vsub.s32 0, %v65
  %v67 = vrot.slane %v62, %v66
  %v68 = vlaneseq
  %v69 = vshrl.u32 %v68, 7
  %v70 = vsub.s32 1, %v69
  %v71 = vrot.slane %v62, %v70
  %v74 = vmul.f32 %v30, %v67
  %v75 = vmul.f32 %v31, %v71
  %v76 = vmul.f32 %v32, %v67
  %v77 = vmul.f32 %v33, %v71
  %v78 = vmul.f32 %v34, %v67
  %v79 = vmul.f32 %v35, %v71
  %v80 = vmul.f32 %v36, %v67
  %v81 = vmul.f32 %v37, %v71
  %v82 = vmul.f32 %v38, %v67
  %v83 = vmul.f32 %v39, %v71
  %v84 = vmul.f32 %v40, %v67
  %v85 = vmul.f32 %v41, %v71
  %v86 = vmul.f32 %v42, %v67
  %v87 = vmul.f32 %v43, %v71
  %v88 = vmul.f32 %v44, %v67
  %v89 = vmul.f32 %v45, %v71
  %v90 = vmul.f32 %v46, %v67
  %v91 = vmul.f32 %v47, %v71
  %v92 = vmul.f32 %v48, %v67
  %v93 = vmul.f32 %v49, %v71
  %v94 = vmul.f32 %v50, %v67
  %v95 = vmul.f32 %v51, %v71
  %v96 = vmul.f32 %v52, %v67
  %v97 = vmul.f32 %v53, %v71
  %v98 = vmul.f32 %v54, %v67
  %v99 = vmul.f32 %v55, %v71
  %v100 = vmul.f32 %v56, %v67
  %v101 = vmul.f32 %v57, %v71
  %v102 = vmul.f32 %v58, %v67
  %v103 = vmul.f32 %v59, %v71
  %v104 = vmul.f32 %v60, %v67
  %v105 = vmul.f32 %v61, %v71
  %v106 = vld [vmem:[%s2] sm:$0x3]
  %v108 = vlaneseq
  %v109 = vshrl.u32 %v108, 7
  %v110 = vsub.s32 0, %v109
  %v111 = vrot.slane %v106, %v110
  %v112 = vlaneseq
  %v113 = vshrl.u32 %v112, 7
  %v114 = vsub.s32 1, %v113
  %v115 = vrot.slane %v106, %v114
  %v118 = vadd.f32 %v74, %v111
  %v119 = vadd.f32 %v75, %v115
  %v120 = vadd.f32 %v76, %v111
  %v121 = vadd.f32 %v77, %v115
  %v122 = vadd.f32 %v78, %v111
  %v123 = vadd.f32 %v79, %v115
  %v124 = vadd.f32 %v80, %v111
  %v125 = vadd.f32 %v81, %v115
  %v126 = vadd.f32 %v82, %v111
  %v127 = vadd.f32 %v83, %v115
  %v128 = vadd.f32 %v84, %v111
  %v129 = vadd.f32 %v85, %v115
  %v130 = vadd.f32 %v86, %v111
  %v131 = vadd.f32 %v87, %v115
  %v132 = vadd.f32 %v88, %v111
  %v133 = vadd.f32 %v89, %v115
  %v134 = vadd.f32 %v90, %v111
  %v135 = vadd.f32 %v91, %v115
  %v136 = vadd.f32 %v92, %v111
  %v137 = vadd.f32 %v93, %v115
  %v138 = vadd.f32 %v94, %v111
  %v139 = vadd.f32 %v95, %v115
  %v140 = vadd.f32 %v96, %v111
  %v141 = vadd.f32 %v97, %v115
  %v142 = vadd.f32 %v98, %v111
  %v143 = vadd.f32 %v99, %v115
  %v144 = vadd.f32 %v100, %v111
  %v145 = vadd.f32 %v101, %v115
  %v146 = vadd.f32 %v102, %v111
  %v147 = vadd.f32 %v103, %v115
  %v148 = vadd.f32 %v104, %v111
  %v149 = vadd.f32 %v105, %v115
  %vm150 = vcmp.ge.f32.partialorder %v118, 0.0
  %vm151 = vcmp.ge.f32.partialorder %v119, 0.0
  %vm152 = vcmp.ge.f32.partialorder %v120, 0.0
  %vm153 = vcmp.ge.f32.partialorder %v121, 0.0
  %vm154 = vcmp.ge.f32.partialorder %v122, 0.0
  %vm155 = vcmp.ge.f32.partialorder %v123, 0.0
  %vm156 = vcmp.ge.f32.partialorder %v124, 0.0
  %vm157 = vcmp.ge.f32.partialorder %v125, 0.0
  %vm158 = vcmp.ge.f32.partialorder %v126, 0.0
  %vm159 = vcmp.ge.f32.partialorder %v127, 0.0
  %vm160 = vcmp.ge.f32.partialorder %v128, 0.0
  %vm161 = vcmp.ge.f32.partialorder %v129, 0.0
  %vm162 = vcmp.ge.f32.partialorder %v130, 0.0
  %vm163 = vcmp.ge.f32.partialorder %v131, 0.0
  %vm164 = vcmp.ge.f32.partialorder %v132, 0.0
  %vm165 = vcmp.ge.f32.partialorder %v133, 0.0
  %vm166 = vcmp.ge.f32.partialorder %v134, 0.0
  %vm167 = vcmp.ge.f32.partialorder %v135, 0.0
  %vm168 = vcmp.ge.f32.partialorder %v136, 0.0
  %vm169 = vcmp.ge.f32.partialorder %v137, 0.0
  %vm170 = vcmp.ge.f32.partialorder %v138, 0.0
  %vm171 = vcmp.ge.f32.partialorder %v139, 0.0
  %vm172 = vcmp.ge.f32.partialorder %v140, 0.0
  %vm173 = vcmp.ge.f32.partialorder %v141, 0.0
  %vm174 = vcmp.ge.f32.partialorder %v142, 0.0
  %vm175 = vcmp.ge.f32.partialorder %v143, 0.0
  %vm176 = vcmp.ge.f32.partialorder %v144, 0.0
  %vm177 = vcmp.ge.f32.partialorder %v145, 0.0
  %vm178 = vcmp.ge.f32.partialorder %v146, 0.0
  %vm179 = vcmp.ge.f32.partialorder %v147, 0.0
  %vm180 = vcmp.ge.f32.partialorder %v148, 0.0
  %vm181 = vcmp.ge.f32.partialorder %v149, 0.0
  %v182 = vmul.f32 %v118, 0.2
  %v183 = vmul.f32 %v119, 0.2
  %v184 = vmul.f32 %v120, 0.2
  %v185 = vmul.f32 %v121, 0.2
  %v186 = vmul.f32 %v122, 0.2
  %v187 = vmul.f32 %v123, 0.2
  %v188 = vmul.f32 %v124, 0.2
  %v189 = vmul.f32 %v125, 0.2
  %v190 = vmul.f32 %v126, 0.2
  %v191 = vmul.f32 %v127, 0.2
  %v192 = vmul.f32 %v128, 0.2
  %v193 = vmul.f32 %v129, 0.2
  %v194 = vmul.f32 %v130, 0.2
  %v195 = vmul.f32 %v131, 0.2
  %v196 = vmul.f32 %v132, 0.2
  %v197 = vmul.f32 %v133, 0.2
  %v198 = vmul.f32 %v134, 0.2
  %v199 = vmul.f32 %v135, 0.2
  %v200 = vmul.f32 %v136, 0.2
  %v201 = vmul.f32 %v137, 0.2
  %v202 = vmul.f32 %v138, 0.2
  %v203 = vmul.f32 %v139, 0.2
  %v204 = vmul.f32 %v140, 0.2
  %v205 = vmul.f32 %v141, 0.2
  %v206 = vmul.f32 %v142, 0.2
  %v207 = vmul.f32 %v143, 0.2
  %v208 = vmul.f32 %v144, 0.2
  %v209 = vmul.f32 %v145, 0.2
  %v210 = vmul.f32 %v146, 0.2
  %v211 = vmul.f32 %v147, 0.2
  %v212 = vmul.f32 %v148, 0.2
  %v213 = vmul.f32 %v149, 0.2
  %v214 = vsel %vm150, %v118, %v182
  %v215 = vsel %vm151, %v119, %v183
  %v216 = vsel %vm152, %v120, %v184
  %v217 = vsel %vm153, %v121, %v185
  %v218 = vsel %vm154, %v122, %v186
  %v219 = vsel %vm155, %v123, %v187
  %v220 = vsel %vm156, %v124, %v188
  %v221 = vsel %vm157, %v125, %v189
  %v222 = vsel %vm158, %v126, %v190
  %v223 = vsel %vm159, %v127, %v191
  %v224 = vsel %vm160, %v128, %v192
  %v225 = vsel %vm161, %v129, %v193
  %v226 = vsel %vm162, %v130, %v194
  %v227 = vsel %vm163, %v131, %v195
  %v228 = vsel %vm164, %v132, %v196
  %v229 = vsel %vm165, %v133, %v197
  %v230 = vsel %vm166, %v134, %v198
  %v231 = vsel %vm167, %v135, %v199
  %v232 = vsel %vm168, %v136, %v200
  %v233 = vsel %vm169, %v137, %v201
  %v234 = vsel %vm170, %v138, %v202
  %v235 = vsel %vm171, %v139, %v203
  %v236 = vsel %vm172, %v140, %v204
  %v237 = vsel %vm173, %v141, %v205
  %v238 = vsel %vm174, %v142, %v206
  %v239 = vsel %vm175, %v143, %v207
  %v240 = vsel %vm176, %v144, %v208
  %v241 = vsel %vm177, %v145, %v209
  %v242 = vsel %vm178, %v146, %v210
  %v243 = vsel %vm179, %v147, %v211
  %v244 = vsel %vm180, %v148, %v212
  %v245 = vsel %vm181, %v149, %v213
  %v246 = vpack.c.bf16 %v216, %v214
  %v247 = vpack.c.bf16 %v217, %v215
  %v248 = vpack.c.bf16 %v220, %v218
  %v249 = vpack.c.bf16 %v221, %v219
  %v250 = vpack.c.bf16 %v224, %v222
  %v251 = vpack.c.bf16 %v225, %v223
  %v252 = vpack.c.bf16 %v228, %v226
  %v253 = vpack.c.bf16 %v229, %v227
  %v254 = vpack.c.bf16 %v232, %v230
  %v255 = vpack.c.bf16 %v233, %v231
  %v256 = vpack.c.bf16 %v236, %v234
  %v257 = vpack.c.bf16 %v237, %v235
  %v258 = vpack.c.bf16 %v240, %v238
  %v259 = vpack.c.bf16 %v241, %v239
  %v260 = vpack.c.bf16 %v244, %v242
  %v261 = vpack.c.bf16 %v245, %v243
  %v278 = vunpack.c.l.b16 %v246
  %v279 = vunpack.c.l.b16 %v247
  %v280 = vunpack.c.h.b16 %v246
  %v281 = vunpack.c.h.b16 %v247
  %v282 = vunpack.c.l.b16 %v248
  %v283 = vunpack.c.l.b16 %v249
  %v284 = vunpack.c.h.b16 %v248
  %v285 = vunpack.c.h.b16 %v249
  %v286 = vunpack.c.l.b16 %v250
  %v287 = vunpack.c.l.b16 %v251
  %v288 = vunpack.c.h.b16 %v250
  %v289 = vunpack.c.h.b16 %v251
  %v290 = vunpack.c.l.b16 %v252
  %v291 = vunpack.c.l.b16 %v253
  %v292 = vunpack.c.h.b16 %v252
  %v293 = vunpack.c.h.b16 %v253
  %v294 = vunpack.c.l.b16 %v254
  %v295 = vunpack.c.l.b16 %v255
  %v296 = vunpack.c.h.b16 %v254
  %v297 = vunpack.c.h.b16 %v255
  %v298 = vunpack.c.l.b16 %v256
  %v299 = vunpack.c.l.b16 %v257
  %v300 = vunpack.c.h.b16 %v256
  %v301 = vunpack.c.h.b16 %v257
  %v302 = vunpack.c.l.b16 %v258
  %v303 = vunpack.c.l.b16 %v259
  %v304 = vunpack.c.h.b16 %v258
  %v305 = vunpack.c.h.b16 %v259
  %v306 = vunpack.c.l.b16 %v260
  %v307 = vunpack.c.l.b16 %v261
  %v308 = vunpack.c.h.b16 %v260
  %v309 = vunpack.c.h.b16 %v261
  %v310 = vpack.c.b16 %v279, %v278
  %v311 = vpack.c.b16 %v281, %v280
  %v312 = vpack.c.b16 %v283, %v282
  %v313 = vpack.c.b16 %v285, %v284
  %v314 = vpack.c.b16 %v287, %v286
  %v315 = vpack.c.b16 %v289, %v288
  %v316 = vpack.c.b16 %v291, %v290
  %v317 = vpack.c.b16 %v293, %v292
  %v318 = vpack.c.b16 %v295, %v294
  %v319 = vpack.c.b16 %v297, %v296
  %v320 = vpack.c.b16 %v299, %v298
  %v321 = vpack.c.b16 %v301, %v300
  %v322 = vpack.c.b16 %v303, %v302
  %v323 = vpack.c.b16 %v305, %v304
  %v324 = vpack.c.b16 %v307, %v306
  %v325 = vpack.c.b16 %v309, %v308
  %342 = vst [vmem:[%s3] sm:$0xff] %v310
  %343 = vst [vmem:[%s3 + $0x8] sm:$0xff] %v311
  %344 = vst [vmem:[%s3 + $0x10] sm:$0xff] %v312
  %345 = vst [vmem:[%s3 + $0x18] sm:$0xff] %v313
  %346 = vst [vmem:[%s3 + $0x20] sm:$0xff] %v314
  %347 = vst [vmem:[%s3 + $0x28] sm:$0xff] %v315
  %348 = vst [vmem:[%s3 + $0x30] sm:$0xff] %v316
  %349 = vst [vmem:[%s3 + $0x38] sm:$0xff] %v317
  %350 = vst [vmem:[%s3 + $0x40] sm:$0xff] %v318
  %351 = vst [vmem:[%s3 + $0x48] sm:$0xff] %v319
  %352 = vst [vmem:[%s3 + $0x50] sm:$0xff] %v320
  %353 = vst [vmem:[%s3 + $0x58] sm:$0xff] %v321
  %354 = vst [vmem:[%s3 + $0x60] sm:$0xff] %v322
  %355 = vst [vmem:[%s3 + $0x68] sm:$0xff] %v323
  %356 = vst [vmem:[%s3 + $0x70] sm:$0xff] %v324
  %357 = vst [vmem:[%s3 + $0x78] sm:$0xff] %v325
  // Predicated region
  $region14: #{_lambda_.12} parent=0 // pred_check
    _
  $region15: #{_lambda_.12} parent=0 // pred_check_branch
    %359 = sbr.rel (0) target = $region17
  $region16: #{_lambda_.12} parent=0 // pred_region
    _
  $region17: #{_lambda_.12} parent=0 // pred_fallthru
    _
  // Predicated region
  $region18: #{_lambda_.12} parent=0 // pred_check
    _
  $region19: #{_lambda_.12} parent=0 // pred_check_branch
    %361 = sbr.rel (0) target = $region21
  $region20: #{_lambda_.12} parent=0 // pred_region
    _
  $region21: #{_lambda_.12} parent=0 // pred_fallthru
    _

// kernel: _lambda_.13
$region0: #{_lambda_.13}
  #allocation0 [shape = 'u32[]', space=smem, size = 0x4, offset = 0x4, fixed_abs, tag = 'smem constant byte address 0x4 - core index']
  #allocation1 [shape = 'u32[144,128]{1,0:T(1,128)}', space=vmem, size = 0x12000, scoped, tag = 'internal scratch']
  %s0 = inlined_call_operand.vmem [shape: bf16[8,9,33,16], index: 0, kind: input, shape index: {}]
  %s1 = inlined_call_operand.vmem [shape: bf16[4,16,8], index: 1, kind: input, shape index: {}]
  %s2 = inlined_call_operand.vmem [shape: f32[1,8], index: 2, kind: input, shape index: {}]
  %s3 = inlined_call_operand.vmem [shape: bf16[2048,8], index: 3, kind: output, shape index: {0}]
  %s4 = inlined_call_operand.vmem [shape: f32[8,2,8], index: 4, kind: output, shape index: {1}]
  %5 = xla_tuple %s3, %s4
  %s6 = sld [smem:[#allocation0]]
  $region53: #{_lambda_.13} parent=0
    _
  %s8 = ssub.s32 1, %s6
  %s9 = scalar_select 0, %s8, %s6
  loop: start=0, step=1, limit=10
  $region2: #{_lambda_.13} parent=0 // loop_pre_header
    _
  $region3: #{_lambda_.13} parent=0 // loop_header
    %s11 = sphi 0, %s15
    %p12 = scmp.ge.s32.totalorder %s11, 10
    %s18 = sphi 0, %s30
    %s19 = sphi 0, %s26
    %s20 = sphi 0, %s18
    %s21 = sphi 0, %s19
    %s22 = sphi 0, %s20
    %s23 = sphi 0, %s21
    %s37 = sphi 0, %s39
    %s40 = sphi 0, %s37
    %s41 = sphi 0, %s40
    %s57 = sphi 0, %s41
    %s61 = sphi 0, %s61
    %s63 = sphi 0, %s61
    %s64 = sphi 0, %s63
    %s78 = sphi 0, %s64
    %s82 = sphi 0, %s82
    %s84 = sphi 0, %s82
    %s85 = sphi 0, %s84
    %s99 = sphi 0, %s85
    %s109 = sphi 0, %s111
    %s112 = sphi 0, %s109
    %s113 = sphi 0, %s112
    %s129 = sphi 0, %s113
    %s139 = sphi 0, %s141
    %s142 = sphi 0, %s139
    %s143 = sphi 0, %s142
    %s159 = sphi 0, %s143
  $region4: #{_lambda_.13} parent=0 // loop_header_branch
    %14 = sbr.rel (%p12) target = $region8
  $region5: #{_lambda_.13} parent=0 // loop_body
    %s16 = ssub.s32 %s11, 1
    %s17 = ssub.s32 %s11, 2
    %s24 = sadd.s32 1, %s19
    %p25 = scmp.ge.s32.totalorder %s24, 4
    %s26 = scalar_select %p25, 0, %s24
    %s27 = sadd.s32 1, %s18
    %s28 = scalar_select %p25, %s27, %s18
    %p29 = scmp.ge.s32.totalorder %s28, 2
    %s30 = scalar_select %p29, 0, %s28
    %s31 = smul.u32 %s18, 4
    %s32 = sadd.s32 %s31, %s19
    %s33 = smul.u32 %s30, 4
    %s34 = sadd.s32 %s33, %s26
    %s35 = ssub.s32 %s32, %s34
    %p36 = scmp.eq.s32.totalorder %s35, 0
    %s38 = sadd.s32 %s37, 1
    %s39 = scalar_select %p36, %s37, %s38
    %p42 = pneg %p36
    %p43 = scmp.eq.s32.totalorder %s11, 7
    %p44 = por %p42, %p43
    %p45 = scmp.ne.s32.totalorder %s37, %s40
    %p46 = scmp.eq.s32.totalorder %s11, 0
    %p47 = por %p45, %p46
    %p48 = scmp.ne.s32.totalorder %s37, %s40
    %p49 = scmp.eq.s32.totalorder %s16, 7
    %p50 = por %p48, %p49
    %p51 = scmp.ne.s32.totalorder %s40, %s41
    %p52 = scmp.eq.s32.totalorder %s16, 0
    %p53 = por %p51, %p52
    %p54 = scmp.ne.s32.totalorder %s40, %s41
    %p55 = scmp.eq.s32.totalorder %s17, 7
    %p56 = por %p54, %p55
    %p58 = scmp.ne.s32.totalorder %s41, %s57
    %p59 = scmp.eq.s32.totalorder %s17, 0
    %p60 = por %p58, %p59
    %s62 = sadd.s32 %s61, 1
    %p65 = scmp.eq.s32.totalorder %s11, 7
    %p66 = scmp.ne.s32.totalorder %s61, %s63
    %p67 = scmp.eq.s32.totalorder %s11, 0
    %p68 = por %p66, %p67
    %p69 = scmp.ne.s32.totalorder %s61, %s63
    %p70 = scmp.eq.s32.totalorder %s16, 7
    %p71 = por %p69, %p70
    %p72 = scmp.ne.s32.totalorder %s63, %s64
    %p73 = scmp.eq.s32.totalorder %s16, 0
    %p74 = por %p72, %p73
    %p75 = scmp.ne.s32.totalorder %s63, %s64
    %p76 = scmp.eq.s32.totalorder %s17, 7
    %p77 = por %p75, %p76
    %p79 = scmp.ne.s32.totalorder %s64, %s78
    %p80 = scmp.eq.s32.totalorder %s17, 0
    %p81 = por %p79, %p80
    %s83 = sadd.s32 %s82, 1
    %p86 = scmp.eq.s32.totalorder %s11, 7
    %p87 = scmp.ne.s32.totalorder %s82, %s84
    %p88 = scmp.eq.s32.totalorder %s11, 0
    %p89 = por %p87, %p88
    %p90 = scmp.ne.s32.totalorder %s82, %s84
    %p91 = scmp.eq.s32.totalorder %s16, 7
    %p92 = por %p90, %p91
    %p93 = scmp.ne.s32.totalorder %s84, %s85
    %p94 = scmp.eq.s32.totalorder %s16, 0
    %p95 = por %p93, %p94
    %p96 = scmp.ne.s32.totalorder %s84, %s85
    %p97 = scmp.eq.s32.totalorder %s17, 7
    %p98 = por %p96, %p97
    %p100 = scmp.ne.s32.totalorder %s85, %s99
    %p101 = scmp.eq.s32.totalorder %s17, 0
    %p102 = por %p100, %p101
    %s103 = smul.u32 %s18, 4
    %s104 = sadd.s32 %s103, %s19
    %s105 = smul.u32 %s30, 4
    %s106 = sadd.s32 %s105, %s26
    %s107 = ssub.s32 %s104, %s106
    %p108 = scmp.eq.s32.totalorder %s107, 0
    %s110 = sadd.s32 %s109, 1
    %s111 = scalar_select %p108, %s109, %s110
    %p114 = pneg %p108
    %p115 = scmp.eq.s32.totalorder %s11, 7
    %p116 = por %p114, %p115
    %p117 = scmp.ne.s32.totalorder %s109, %s112
    %p118 = scmp.eq.s32.totalorder %s11, 0
    %p119 = por %p117, %p118
    %p120 = scmp.ne.s32.totalorder %s109, %s112
    %p121 = scmp.eq.s32.totalorder %s16, 7
    %p122 = por %p120, %p121
    %p123 = scmp.ne.s32.totalorder %s112, %s113
    %p124 = scmp.eq.s32.totalorder %s16, 0
    %p125 = por %p123, %p124
    %p126 = scmp.ne.s32.totalorder %s112, %s113
    %p127 = scmp.eq.s32.totalorder %s17, 7
    %p128 = por %p126, %p127
    %p130 = scmp.ne.s32.totalorder %s113, %s129
    %p131 = scmp.eq.s32.totalorder %s17, 0
    %p132 = por %p130, %p131
    %s133 = smul.u32 %s18, 4
    %s134 = sadd.s32 %s133, %s19
    %s135 = smul.u32 %s30, 4
    %s136 = sadd.s32 %s135, %s26
    %s137 = ssub.s32 %s134, %s136
    %p138 = scmp.eq.s32.totalorder %s137, 0
    %s140 = sadd.s32 %s139, 1
    %s141 = scalar_select %p138, %s139, %s140
    %p144 = pneg %p138
    %p145 = scmp.eq.s32.totalorder %s11, 7
    %p146 = por %p144, %p145
    %p147 = scmp.ne.s32.totalorder %s139, %s142
    %p148 = scmp.eq.s32.totalorder %s11, 0
    %p149 = por %p147, %p148
    %p150 = scmp.ne.s32.totalorder %s139, %s142
    %p151 = scmp.eq.s32.totalorder %s16, 7
    %p152 = por %p150, %p151
    %p153 = scmp.ne.s32.totalorder %s142, %s143
    %p154 = scmp.eq.s32.totalorder %s16, 0
    %p155 = por %p153, %p154
    %p156 = scmp.ne.s32.totalorder %s142, %s143
    %p157 = scmp.eq.s32.totalorder %s17, 7
    %p158 = por %p156, %p157
    %p160 = scmp.ne.s32.totalorder %s143, %s159
    %p161 = scmp.eq.s32.totalorder %s17, 0
    %p162 = por %p160, %p161
    %p163 = scmp.le.s32.totalorder 1, %s11
    %p164 = scmp.lt.s32.totalorder %s11, 9
    %p165 = pnand %p163, %p164
    %p166 = pneg %p165
    // Predicated region
    $region9: #{_lambda_.13} parent=5 // pred_check
      _
    $region10: #{_lambda_.13} parent=5 // pred_check_branch
      %168 = sbr.rel (%p165) target = $region12
    $region11: #{_lambda_.13} parent=5 // pred_region
      %s169 = ssub.s32 %s11, 1
      // Predicated region
      $region13: #{_lambda_.13} parent=11 // pred_check
        %p170 = pneg %p74
      $region14: #{_lambda_.13} parent=11 // pred_check_branch
        %172 = sbr.rel (%p170) target = $region16
      $region15: #{_lambda_.13} parent=11 // pred_region
        _
      $region16: #{_lambda_.13} parent=11 // pred_fallthru
        _
      // Predicated region
      $region17: #{_lambda_.13} parent=11 // pred_check
        %p173 = pneg %p95
      $region18: #{_lambda_.13} parent=11 // pred_check_branch
        %175 = sbr.rel (%p173) target = $region20
      $region19: #{_lambda_.13} parent=11 // pred_region
        _
      $region20: #{_lambda_.13} parent=11 // pred_fallthru
        _
    $region12: #{_lambda_.13} parent=5 // pred_fallthru
      _
    %p176 = scmp.lt.s32.totalorder %s11, 8
    // Predicated region
    $region21: #{_lambda_.13} parent=5 // pred_check
      %p177 = pneg %p176
    $region22: #{_lambda_.13} parent=5 // pred_check_branch
      %179 = sbr.rel (%p177) target = $region24
    $region23: #{_lambda_.13} parent=5 // pred_region
      // Predicated region
      $region25: #{_lambda_.13} parent=23 // pred_check
        %p180 = pneg %p47
      $region26: #{_lambda_.13} parent=23 // pred_check_branch
        %182 = sbr.rel (%p180) target = $region28
      $region27: #{_lambda_.13} parent=23 // pred_region
        %s183 = smul.u32 %s18, 4
        %s184 = sadd.s32 %s183, %s19
        %p185 = scmp.lt.s32.totalorder %s184, 7
        %s186 = scalar_select %p185, %s184, 7
        %s187 = smul.addr %s186, 45
        %s188 = smul.addr %s187, 4
        %s189 = scalar_lea.vmem %s0, %s188
        %s190 = smul.u32 %s18, 4
        %s191 = sadd.s32 %s190, %s19
      $region28: #{_lambda_.13} parent=23 // pred_fallthru
        _
    $region24: #{_lambda_.13} parent=5 // pred_fallthru
      _
    %p192 = scmp.le.s32.totalorder 1, %s11
    %p193 = scmp.lt.s32.totalorder %s11, 9
    %p194 = pnand %p192, %p193
    %p195 = pneg %p194
    // Predicated region
    $region29: #{_lambda_.13} parent=5 // pred_check
      _
    $region30: #{_lambda_.13} parent=5 // pred_check_branch
      %197 = sbr.rel (%p194) target = $region32
    $region31: #{_lambda_.13} parent=5 // pred_region
      %s198 = ssub.s32 %s11, 1
      %s199 = smul.u32 %s20, 4
      %s200 = sadd.s32 %s199, %s21
      %p201 = scmp.lt.s32.totalorder %s200, 7
      %s202 = scalar_select %p201, %s200, 7
      %s203 = smul.addr %s202, 45
      %s204 = smul.addr %s203, 4
      %s205 = scalar_lea.vmem %s0, %s204
      %p206 = pneg %p53
      %p207 = pneg %p50
      %p208 = pneg %p74
      %p209 = pneg %p71
      %p210 = pneg %p95
      %p211 = pneg %p92
      %p212 = pneg %p125
      %p213 = pneg %p122
      %s214 = smul.u32 %s20, 4
      %s215 = sadd.s32 %s214, %s21
      %s216 = smul.u32 32, %s215
      %p217 = scmp.lt.s32.totalorder %s216, 255
      %s218 = scalar_select %p217, %s216, 255
      %s219 = smul.addr %s218, 4
      %s220 = scalar_lea.vmem %s3, %s219
      %p221 = pneg %p155
      %p222 = pneg %p152
      %s223 = smul.u32 %s20, 4
      %s224 = sadd.s32 %s223, %s21
      %p225 = scmp.lt.s32.totalorder %s224, 7
      %s226 = scalar_select %p225, %s224, 7
      %s227 = smul.addr %s226, 2
      %s228 = scalar_lea.vmem %s4, %s227
      %s229 = smul.u32 %s20, 4
      %s230 = sadd.s32 %s229, %s21
      %p231 = scmp.lt.s32.totalorder %s230, 7
      %s232 = scalar_select %p231, %s230, 7
      %s233 = smul.addr %s232, 45
      %s234 = smul.addr %s233, 4
      %s235 = scalar_lea.vmem %s0, %s234
      %s236 = smul.u32 %s20, 4
      %s237 = sadd.s32 %s236, %s21
      %s238 = smul.u32 %s20, 4
      %s239 = sadd.s32 %s238, %s21
      %s240 = smul.u32 32, %s239
      %p241 = scmp.lt.s32.totalorder %s240, 255
      %s242 = scalar_select %p241, %s240, 255
      %s243 = smul.addr %s242, 4
      %s244 = scalar_lea.vmem %s3, %s243
      %s245 = smul.u32 %s20, 4
      %s246 = sadd.s32 %s245, %s21
      %s247 = smul.u32 32, %s246
      %s248 = smul.u32 %s20, 4
      %s249 = sadd.s32 %s248, %s21
      %p250 = scmp.lt.s32.totalorder %s249, 7
      %s251 = scalar_select %p250, %s249, 7
      %s252 = smul.addr %s251, 2
      %s253 = scalar_lea.vmem %s4, %s252
      %s254 = smul.u32 %s20, 4
      %s255 = sadd.s32 %s254, %s21
      %v257 = vld [vmem:[%s235] sm:$0xf]
      %v258 = vld [vmem:[%s235 + $0x4] sm:$0xf]
      %v259 = vld [vmem:[%s235 + $0x8] sm:$0xf]
      %v260 = vld [vmem:[%s235 + $0xc] sm:$0xf]
      %v261 = vld [vmem:[%s235 + $0x14] sm:$0xf]
      %v262 = vld [vmem:[%s235 + $0x18] sm:$0xf]
      %v263 = vld [vmem:[%s235 + $0x1c] sm:$0xf]
      %v264 = vld [vmem:[%s235 + $0x20] sm:$0xf]
      %v265 = vld [vmem:[%s235 + $0x28] sm:$0xf]
      %v266 = vld [vmem:[%s235 + $0x2c] sm:$0xf]
      %v267 = vld [vmem:[%s235 + $0x30] sm:$0xf]
      %v268 = vld [vmem:[%s235 + $0x34] sm:$0xf]
      %v269 = vld [vmem:[%s235 + $0x3c] sm:$0xf]
      %v270 = vld [vmem:[%s235 + $0x40] sm:$0xf]
      %v271 = vld [vmem:[%s235 + $0x44] sm:$0xf]
      %v272 = vld [vmem:[%s235 + $0x48] sm:$0xf]
      %v273 = vld [vmem:[%s235 + $0x50] sm:$0xf]
      %v274 = vld [vmem:[%s235 + $0x54] sm:$0xf]
      %v275 = vld [vmem:[%s235 + $0x58] sm:$0xf]
      %v276 = vld [vmem:[%s235 + $0x5c] sm:$0xf]
      %v277 = vld [vmem:[%s235 + $0x64] sm:$0xf]
      %v278 = vld [vmem:[%s235 + $0x68] sm:$0xf]
      %v279 = vld [vmem:[%s235 + $0x6c] sm:$0xf]
      %v280 = vld [vmem:[%s235 + $0x70] sm:$0xf]
      %v281 = vld [vmem:[%s235 + $0x78] sm:$0xf]
      %v282 = vld [vmem:[%s235 + $0x7c] sm:$0xf]
      %v283 = vld [vmem:[%s235 + $0x80] sm:$0xf]
      %v284 = vld [vmem:[%s235 + $0x84] sm:$0xf]
      %v285 = vld [vmem:[%s235 + $0x8c] sm:$0xf]
      %v286 = vld [vmem:[%s235 + $0x90] sm:$0xf]
      %v287 = vld [vmem:[%s235 + $0x94] sm:$0xf]
      %v288 = vld [vmem:[%s235 + $0x98] sm:$0xf]
      %v289 = vld [vmem:[%s1] sm:$0xf]
      %v290 = vld [vmem:[%s1 + $0x4] sm:$0xf]
      %v291 = vld [vmem:[%s235 + $0x10] sm:$0x1]
      %v292 = vld [vmem:[%s235 + $0x24] sm:$0x1]
      %v293 = vld [vmem:[%s235 + $0x38] sm:$0x1]
      %v294 = vld [vmem:[%s235 + $0x4c] sm:$0x1]
      %v295 = vld [vmem:[%s235 + $0x60] sm:$0x1]
      %v296 = vld [vmem:[%s235 + $0x74] sm:$0x1]
      %v297 = vld [vmem:[%s235 + $0x88] sm:$0x1]
      %v298 = vld [vmem:[%s235 + $0x9c] sm:$0x1]
      %vm299 = vsmask.f32 3328
      %vm300 = vsmask.f32 7440
      %vm301 = vmor %vm299, %vm300
      %v303 = vshrl.u32 %v257, 16
      %v305 = vrot.slane %v303, 4
      %v306 = vshll.u32 %v257, 16
      %v308 = vrot.slane %v306, 5
      %v309 = vor.u32 %v305, %v308
      %v310 = vrot.slane %v309, 4
      %v312 = vshll.u32 %v258, 16
      %v314 = vrot.slane %v312, 5
      %v315 = vsel %vm301, %v310, %v314
      %v316 = vshrl.u32 %v258, 16
      %v318 = vrot.slane %v316, 4
      %v319 = vor.u32 %v318, %v314
      %v320 = vrot.slane %v319, 4
      %v322 = vshll.u32 %v259, 16
      %v324 = vrot.slane %v322, 5
      %v325 = vsel %vm301, %v320, %v324
      %v326 = vshrl.u32 %v259, 16
      %v328 = vrot.slane %v326, 4
      %v329 = vor.u32 %v328, %v324
      %v330 = vrot.slane %v329, 4
      %v332 = vshll.u32 %v260, 16
      %v334 = vrot.slane %v332, 5
      %v335 = vsel %vm301, %v330, %v334
      %v336 = vshrl.u32 %v260, 16
      %v338 = vrot.slane %v336, 4
      %v339 = vor.u32 %v338, %v334
      %v340 = vrot.slane %v339, 4
      %v342 = vshll.u32 %v291, 16
      %v344 = vrot.slane %v342, 5
      %v345 = vsel %vm301, %v340, %v344
      %v347 = vshrl.u32 %v261, 16
      %v349 = vrot.slane %v347, 4
      %v350 = vshll.u32 %v261, 16
      %v352 = vrot.slane %v350, 5
      %v353 = vor.u32 %v349, %v352
      %v354 = vrot.slane %v353, 4
      %v356 = vshll.u32 %v262, 16
      %v358 = vrot.slane %v356, 5
      %v359 = vsel %vm301, %v354, %v358
      %v360 = vshrl.u32 %v262, 16
      %v362 = vrot.slane %v360, 4
      %v363 = vor.u32 %v362, %v358
      %v364 = vrot.slane %v363, 4
      %v366 = vshll.u32 %v263, 16
      %v368 = vrot.slane %v366, 5
      %v369 = vsel %vm301, %v364, %v368
      %v370 = vshrl.u32 %v263, 16
      %v372 = vrot.slane %v370, 4
      %v373 = vor.u32 %v372, %v368
      %v374 = vrot.slane %v373, 4
      %v376 = vshll.u32 %v264, 16
      %v378 = vrot.slane %v376, 5
      %v379 = vsel %vm301, %v374, %v378
      %v380 = vshrl.u32 %v264, 16
      %v382 = vrot.slane %v380, 4
      %v383 = vor.u32 %v382, %v378
      %v384 = vrot.slane %v383, 4
      %v386 = vshll.u32 %v292, 16
      %v388 = vrot.slane %v386, 5
      %v389 = vsel %vm301, %v384, %v388
      %v391 = vshrl.u32 %v265, 16
      %v393 = vrot.slane %v391, 4
      %v394 = vshll.u32 %v265, 16
      %v396 = vrot.slane %v394, 5
      %v397 = vor.u32 %v393, %v396
      %v398 = vrot.slane %v397, 4
      %v400 = vshll.u32 %v266, 16
      %v402 = vrot.slane %v400, 5
      %v403 = vsel %vm301, %v398, %v402
      %v404 = vshrl.u32 %v266, 16
      %v406 = vrot.slane %v404, 4
      %v407 = vor.u32 %v406, %v402
      %v408 = vrot.slane %v407, 4
      %v410 = vshll.u32 %v267, 16
      %v412 = vrot.slane %v410, 5
      %v413 = vsel %vm301, %v408, %v412
      %v414 = vshrl.u32 %v267, 16
      %v416 = vrot.slane %v414, 4
      %v417 = vor.u32 %v416, %v412
      %v418 = vrot.slane %v417, 4
      %v420 = vshll.u32 %v268, 16
      %v422 = vrot.slane %v420, 5
      %v423 = vsel %vm301, %v418, %v422
      %v424 = vshrl.u32 %v268, 16
      %v426 = vrot.slane %v424, 4
      %v427 = vor.u32 %v426, %v422
      %v428 = vrot.slane %v427, 4
      %v430 = vshll.u32 %v293, 16
      %v432 = vrot.slane %v430, 5
      %v433 = vsel %vm301, %v428, %v432
      %v435 = vshrl.u32 %v269, 16
      %v437 = vrot.slane %v435, 4
      %v438 = vshll.u32 %v269, 16
      %v440 = vrot.slane %v438, 5
      %v441 = vor.u32 %v437, %v440
      %v442 = vrot.slane %v441, 4
      %v444 = vshll.u32 %v270, 16
      %v446 = vrot.slane %v444, 5
      %v447 = vsel %vm301, %v442, %v446
      %v448 = vshrl.u32 %v270, 16
      %v450 = vrot.slane %v448, 4
      %v451 = vor.u32 %v450, %v446
      %v452 = vrot.slane %v451, 4
      %v454 = vshll.u32 %v271, 16
      %v456 = vrot.slane %v454, 5
      %v457 = vsel %vm301, %v452, %v456
      %v458 = vshrl.u32 %v271, 16
      %v460 = vrot.slane %v458, 4
      %v461 = vor.u32 %v460, %v456
      %v462 = vrot.slane %v461, 4
      %v464 = vshll.u32 %v272, 16
      %v466 = vrot.slane %v464, 5
      %v467 = vsel %vm301, %v462, %v466
      %v468 = vshrl.u32 %v272, 16
      %v470 = vrot.slane %v468, 4
      %v471 = vor.u32 %v470, %v466
      %v472 = vrot.slane %v471, 4
      %v474 = vshll.u32 %v294, 16
      %v476 = vrot.slane %v474, 5
      %v477 = vsel %vm301, %v472, %v476
      %v479 = vshrl.u32 %v273, 16
      %v481 = vrot.slane %v479, 4
      %v482 = vshll.u32 %v273, 16
      %v484 = vrot.slane %v482, 5
      %v485 = vor.u32 %v481, %v484
      %v486 = vrot.slane %v485, 4
      %v488 = vshll.u32 %v274, 16
      %v490 = vrot.slane %v488, 5
      %v491 = vsel %vm301, %v486, %v490
      %v492 = vshrl.u32 %v274, 16
      %v494 = vrot.slane %v492, 4
      %v495 = vor.u32 %v494, %v490
      %v496 = vrot.slane %v495, 4
      %v498 = vshll.u32 %v275, 16
      %v500 = vrot.slane %v498, 5
      %v501 = vsel %vm301, %v496, %v500
      %v502 = vshrl.u32 %v275, 16
      %v504 = vrot.slane %v502, 4
      %v505 = vor.u32 %v504, %v500
      %v506 = vrot.slane %v505, 4
      %v508 = vshll.u32 %v276, 16
      %v510 = vrot.slane %v508, 5
      %v511 = vsel %vm301, %v506, %v510
      %v512 = vshrl.u32 %v276, 16
      %v514 = vrot.slane %v512, 4
      %v515 = vor.u32 %v514, %v510
      %v516 = vrot.slane %v515, 4
      %v518 = vshll.u32 %v295, 16
      %v520 = vrot.slane %v518, 5
      %v521 = vsel %vm301, %v516, %v520
      %v523 = vshrl.u32 %v277, 16
      %v525 = vrot.slane %v523, 4
      %v526 = vshll.u32 %v277, 16
      %v528 = vrot.slane %v526, 5
      %v529 = vor.u32 %v525, %v528
      %v530 = vrot.slane %v529, 4
      %v532 = vshll.u32 %v278, 16
      %v534 = vrot.slane %v532, 5
      %v535 = vsel %vm301, %v530, %v534
      %v536 = vshrl.u32 %v278, 16
      %v538 = vrot.slane %v536, 4
      %v539 = vor.u32 %v538, %v534
      %v540 = vrot.slane %v539, 4
      %v542 = vshll.u32 %v279, 16
      %v544 = vrot.slane %v542, 5
      %v545 = vsel %vm301, %v540, %v544
      %v546 = vshrl.u32 %v279, 16
      %v548 = vrot.slane %v546, 4
      %v549 = vor.u32 %v548, %v544
      %v550 = vrot.slane %v549, 4
      %v552 = vshll.u32 %v280, 16
      %v554 = vrot.slane %v552, 5
      %v555 = vsel %vm301, %v550, %v554
      %v556 = vshrl.u32 %v280, 16
      %v558 = vrot.slane %v556, 4
      %v559 = vor.u32 %v558, %v554
      %v560 = vrot.slane %v559, 4
      %v562 = vshll.u32 %v296, 16
      %v564 = vrot.slane %v562, 5
      %v565 = vsel %vm301, %v560, %v564
      %v567 = vshrl.u32 %v281, 16
      %v569 = vrot.slane %v567, 4
      %v570 = vshll.u32 %v281, 16
      %v572 = vrot.slane %v570, 5
      %v573 = vor.u32 %v569, %v572
      %v574 = vrot.slane %v573, 4
      %v576 = vshll.u32 %v282, 16
      %v578 = vrot.slane %v576, 5
      %v579 = vsel %vm301, %v574, %v578
      %v580 = vshrl.u32 %v282, 16
      %v582 = vrot.slane %v580, 4
      %v583 = vor.u32 %v582, %v578
      %v584 = vrot.slane %v583, 4
      %v586 = vshll.u32 %v283, 16
      %v588 = vrot.slane %v586, 5
      %v589 = vsel %vm301, %v584, %v588
      %v590 = vshrl.u32 %v283, 16
      %v592 = vrot.slane %v590, 4
      %v593 = vor.u32 %v592, %v588
      %v594 = vrot.slane %v593, 4
      %v596 = vshll.u32 %v284, 16
      %v598 = vrot.slane %v596, 5
      %v599 = vsel %vm301, %v594, %v598
      %v600 = vshrl.u32 %v284, 16
      %v602 = vrot.slane %v600, 4
      %v603 = vor.u32 %v602, %v598
      %v604 = vrot.slane %v603, 4
      %v606 = vshll.u32 %v297, 16
      %v608 = vrot.slane %v606, 5
      %v609 = vsel %vm301, %v604, %v608
      %v611 = vshrl.u32 %v285, 16
      %v613 = vrot.slane %v611, 4
      %v614 = vshll.u32 %v285, 16
      %v616 = vrot.slane %v614, 5
      %v617 = vor.u32 %v613, %v616
      %v618 = vrot.slane %v617, 4
      %v620 = vshll.u32 %v286, 16
      %v622 = vrot.slane %v620, 5
      %v623 = vsel %vm301, %v618, %v622
      %v624 = vshrl.u32 %v286, 16
      %v626 = vrot.slane %v624, 4
      %v627 = vor.u32 %v626, %v622
      %v628 = vrot.slane %v627, 4
      %v630 = vshll.u32 %v287, 16
      %v632 = vrot.slane %v630, 5
      %v633 = vsel %vm301, %v628, %v632
      %v634 = vshrl.u32 %v287, 16
      %v636 = vrot.slane %v634, 4
      %v637 = vor.u32 %v636, %v632
      %v638 = vrot.slane %v637, 4
      %v640 = vshll.u32 %v288, 16
      %v642 = vrot.slane %v640, 5
      %v643 = vsel %vm301, %v638, %v642
      %v644 = vshrl.u32 %v288, 16
      %v646 = vrot.slane %v644, 4
      %v647 = vor.u32 %v646, %v642
      %v648 = vrot.slane %v647, 4
      %v650 = vshll.u32 %v298, 16
      %v652 = vrot.slane %v650, 5
      %v653 = vsel %vm301, %v648, %v652
      %s654 = scalar_lea.vmem %s1, 8
      %v655 = vld [vmem:[%s654] sm:$0xf]
      %v656 = vld [vmem:[%s654 + $0x4] sm:$0xf]
      %v657 = vunpack.c.l.b16 %v315
      %v658 = vunpack.c.l.b16 %v325
      %v659 = vunpack.c.l.b16 %v335
      %v660 = vunpack.c.l.b16 %v345
      %v661 = vunpack.c.l.b16 %v359
      %v662 = vunpack.c.l.b16 %v369
      %v663 = vunpack.c.l.b16 %v379
      %v664 = vunpack.c.l.b16 %v389
      %v665 = vunpack.c.l.b16 %v403
      %v666 = vunpack.c.l.b16 %v413
      %v667 = vunpack.c.l.b16 %v423
      %v668 = vunpack.c.l.b16 %v433
      %v669 = vunpack.c.l.b16 %v447
      %v670 = vunpack.c.l.b16 %v457
      %v671 = vunpack.c.l.b16 %v467
      %v672 = vunpack.c.l.b16 %v477
      %v673 = vunpack.c.l.b16 %v491
      %v674 = vunpack.c.l.b16 %v501
      %v675 = vunpack.c.l.b16 %v511
      %v676 = vunpack.c.l.b16 %v521
      %v677 = vunpack.c.l.b16 %v535
      %v678 = vunpack.c.l.b16 %v545
      %v679 = vunpack.c.l.b16 %v555
      %v680 = vunpack.c.l.b16 %v565
      %v681 = vunpack.c.l.b16 %v579
      %v682 = vunpack.c.l.b16 %v589
      %v683 = vunpack.c.l.b16 %v599
      %v684 = vunpack.c.l.b16 %v609
      %v685 = vunpack.c.l.b16 %v623
      %v686 = vunpack.c.l.b16 %v633
      %v687 = vunpack.c.l.b16 %v643
      %v688 = vunpack.c.l.b16 %v653
      %v689 = vpack.c.b16 %v658, %v657
      %v690 = vpack.c.b16 %v660, %v659
      %v691 = vpack.c.b16 %v662, %v661
      %v692 = vpack.c.b16 %v664, %v663
      %v693 = vpack.c.b16 %v666, %v665
      %v694 = vpack.c.b16 %v668, %v667
      %v695 = vpack.c.b16 %v670, %v669
      %v696 = vpack.c.b16 %v672, %v671
      %v697 = vpack.c.b16 %v674, %v673
      %v698 = vpack.c.b16 %v676, %v675
      %v699 = vpack.c.b16 %v678, %v677
      %v700 = vpack.c.b16 %v680, %v679
      %v701 = vpack.c.b16 %v682, %v681
      %v702 = vpack.c.b16 %v684, %v683
      %v703 = vpack.c.b16 %v686, %v685
      %v704 = vpack.c.b16 %v688, %v687
      %v707 = vunpack.c.l.b16 %v655
      %v708 = vunpack.c.l.b16 %v656
      %v709 = vpack.c.b16 %v708, %v707
      %vm711 = vcmask 130048
      %v713 = vsel %vm711, %v689, 0
      %v716 = vsel %vm711, %v690, 0
      %v719 = vsel %vm711, %v691, 0
      %v722 = vsel %vm711, %v692, 0
      %v725 = vsel %vm711, %v693, 0
      %v728 = vsel %vm711, %v694, 0
      %v731 = vsel %vm711, %v695, 0
      %v734 = vsel %vm711, %v696, 0
      %v737 = vsel %vm711, %v697, 0
      %v740 = vsel %vm711, %v698, 0
      %v743 = vsel %vm711, %v699, 0
      %v746 = vsel %vm711, %v700, 0
      %v749 = vsel %vm711, %v701, 0
      %v752 = vsel %vm711, %v702, 0
      %v755 = vsel %vm711, %v703, 0
      %v758 = vsel %vm711, %v704, 0
      %760 = vmatprep.subr.bf16.mxu0 0
      %761 = vmatpush1.bf16.msra.mxu0 %v709
      %762 = vmatprep.subr.bf16.mxu0 0
      %763 = vmatpush1.bf16.msra.mxu0 0
      %764 = vmatprep.subr.bf16.mxu0 0
      %765 = vmatpush1.bf16.msra.mxu0 0
      %766 = vmatprep.subr.bf16.mxu0 0
      %767 = vmatpush1.bf16.msra.mxu0 0
      %768 = vmatprep.subr.bf16.mxu0 0
      %769 = vmatpush1.bf16.msra.mxu0 0
      %770 = vmatprep.subr.bf16.mxu0 0
      %771 = vmatpush1.bf16.msra.mxu0 0
      %772 = vmatprep.subr.bf16.mxu0 0
      %773 = vmatpush1.bf16.msra.mxu0 0
      %774 = vmatprep.subr.bf16.mxu0 0
      %775 = vmatpush1.bf16.msra.mxu0 0
      %776 = vmatprep.subr.bf16.mxu0 0
      %777 = vmatpush1.bf16.msra.mxu0 0
      %778 = vmatprep.subr.bf16.mxu0 0
      %779 = vmatpush1.bf16.msra.mxu0 0
      %780 = vmatprep.subr.bf16.mxu0 0
      %781 = vmatpush1.bf16.msra.mxu0 0
      %782 = vmatprep.subr.bf16.mxu0 0
      %783 = vmatpush1.bf16.msra.mxu0 0
      %784 = vmatprep.subr.bf16.mxu0 0
      %785 = vmatpush1.bf16.msra.mxu0 0
      %786 = vmatprep.subr.bf16.mxu0 0
      %787 = vmatpush1.bf16.msra.mxu0 0
      %788 = vmatprep.subr.bf16.mxu0 0
      %789 = vmatpush1.bf16.msra.mxu0 0
      %790 = vmatprep.subr.bf16.mxu0 0
      %791 = vmatpush1.bf16.msra.mxu0 0
      %792 = vmatprep.mubr.bf16.mxu0 0
      %793 = vmatmul.mubr.bf16.gmra.mrb[0].mxu0 %v713
      %v794 = vpop.f32.mrb[0].mxu0
      %v795 = vadd.f32 0.0, %v794
      %v796 = vpop.f32.mrb[0].mxu0
      %v797 = vpop.f32.mrb[0].mxu0
      %v798 = vadd.f32 0.0, %v797
      %v799 = vpop.f32.mrb[0].mxu0
      %800 = vmatprep.mubr.bf16.mxu0 0
      %801 = vmatmul.mubr.bf16.gmra.mrb[0].mxu0 %v716
      %v802 = vpop.f32.mrb[0].mxu0
      %v803 = vadd.f32 0.0, %v802
      %v804 = vpop.f32.mrb[0].mxu0
      %v805 = vpop.f32.mrb[0].mxu0
      %v806 = vadd.f32 0.0, %v805
      %v807 = vpop.f32.mrb[0].mxu0
      %808 = vmatprep.mubr.bf16.mxu0 0
      %809 = vmatmul.mubr.bf16.gmra.mrb[0].mxu0 %v719
      %v810 = vpop.f32.mrb[0].mxu0
      %v811 = vadd.f32 0.0, %v810
      %v812 = vpop.f32.mrb[0].mxu0
      %v813 = vpop.f32.mrb[0].mxu0
      %v814 = vadd.f32 0.0, %v813
      %v815 = vpop.f32.mrb[0].mxu0
      %816 = vmatprep.mubr.bf16.mxu0 0
      %817 = vmatmul.mubr.bf16.gmra.mrb[0].mxu0 %v722
      %v818 = vpop.f32.mrb[0].mxu0
      %v819 = vadd.f32 0.0, %v818
      %v820 = vpop.f32.mrb[0].mxu0
      %v821 = vpop.f32.mrb[0].mxu0
      %v822 = vadd.f32 0.0, %v821
      %v823 = vpop.f32.mrb[0].mxu0
      %824 = vmatprep.mubr.bf16.mxu0 0
      %825 = vmatmul.mubr.bf16.gmra.mrb[0].mxu0 %v725
      %v826 = vpop.f32.mrb[0].mxu0
      %v827 = vadd.f32 0.0, %v826
      %v828 = vpop.f32.mrb[0].mxu0
      %v829 = vpop.f32.mrb[0].mxu0
      %v830 = vadd.f32 0.0, %v829
      %v831 = vpop.f32.mrb[0].mxu0
      %832 = vmatprep.mubr.bf16.mxu0 0
      %833 = vmatmul.mubr.bf16.gmra.mrb[0].mxu0 %v728
      %v834 = vpop.f32.mrb[0].mxu0
      %v835 = vadd.f32 0.0, %v834
      %v836 = vpop.f32.mrb[0].mxu0
      %v837 = vpop.f32.mrb[0].mxu0
      %v838 = vadd.f32 0.0, %v837
      %v839 = vpop.f32.mrb[0].mxu0
      %840 = vmatprep.mubr.bf16.mxu0 0
      %841 = vmatmul.mubr.bf16.gmra.mrb[0].mxu0 %v731
      %v842 = vpop.f32.mrb[0].mxu0
      %v843 = vadd.f32 0.0, %v842
      %v844 = vpop.f32.mrb[0].mxu0
      %v845 = vpop.f32.mrb[0].mxu0
      %v846 = vadd.f32 0.0, %v845
      %v847 = vpop.f32.mrb[0].mxu0
      %848 = vmatprep.mubr.bf16.mxu0 0
      %849 = vmatmul.mubr.bf16.gmra.mrb[0].mxu0 %v734
      %v850 = vpop.f32.mrb[0].mxu0
      %v851 = vadd.f32 0.0, %v850
      %v852 = vpop.f32.mrb[0].mxu0
      %v853 = vpop.f32.mrb[0].mxu0
      %v854 = vadd.f32 0.0, %v853
      %v855 = vpop.f32.mrb[0].mxu0
      %856 = vmatprep.mubr.bf16.mxu0 0
      %857 = vmatmul.mubr.bf16.gmra.mrb[0].mxu0 %v737
      %v858 = vpop.f32.mrb[0].mxu0
      %v859 = vadd.f32 0.0, %v858
      %v860 = vpop.f32.mrb[0].mxu0
      %v861 = vpop.f32.mrb[0].mxu0
      %v862 = vadd.f32 0.0, %v861
      %v863 = vpop.f32.mrb[0].mxu0
      %864 = vmatprep.mubr.bf16.mxu0 0
      %865 = vmatmul.mubr.bf16.gmra.mrb[0].mxu0 %v740
      %v866 = vpop.f32.mrb[0].mxu0
      %v867 = vadd.f32 0.0, %v866
      %v868 = vpop.f32.mrb[0].mxu0
      %v869 = vpop.f32.mrb[0].mxu0
      %v870 = vadd.f32 0.0, %v869
      %v871 = vpop.f32.mrb[0].mxu0
      %872 = vmatprep.mubr.bf16.mxu0 0
      %873 = vmatmul.mubr.bf16.gmra.mrb[0].mxu0 %v743
      %v874 = vpop.f32.mrb[0].mxu0
      %v875 = vadd.f32 0.0, %v874
      %v876 = vpop.f32.mrb[0].mxu0
      %v877 = vpop.f32.mrb[0].mxu0
      %v878 = vadd.f32 0.0, %v877
      %v879 = vpop.f32.mrb[0].mxu0
      %880 = vmatprep.mubr.bf16.mxu0 0
      %881 = vmatmul.mubr.bf16.gmra.mrb[0].mxu0 %v746
      %v882 = vpop.f32.mrb[0].mxu0
      %v883 = vadd.f32 0.0, %v882
      %v884 = vpop.f32.mrb[0].mxu0
      %v885 = vpop.f32.mrb[0].mxu0
      %v886 = vadd.f32 0.0, %v885
      %v887 = vpop.f32.mrb[0].mxu0
      %888 = vmatprep.mubr.bf16.mxu0 0
      %889 = vmatmul.mubr.bf16.gmra.mrb[0].mxu0 %v749
      %v890 = vpop.f32.mrb[0].mxu0
      %v891 = vadd.f32 0.0, %v890
      %v892 = vpop.f32.mrb[0].mxu0
      %v893 = vpop.f32.mrb[0].mxu0
      %v894 = vadd.f32 0.0, %v893
      %v895 = vpop.f32.mrb[0].mxu0
      %896 = vmatprep.mubr.bf16.mxu0 0
      %897 = vmatmul.mubr.bf16.gmra.mrb[0].mxu0 %v752
      %v898 = vpop.f32.mrb[0].mxu0
      %v899 = vadd.f32 0.0, %v898
      %v900 = vpop.f32.mrb[0].mxu0
      %v901 = vpop.f32.mrb[0].mxu0
      %v902 = vadd.f32 0.0, %v901
      %v903 = vpop.f32.mrb[0].mxu0
      %904 = vmatprep.mubr.bf16.mxu0 0
      %905 = vmatmul.mubr.bf16.gmra.mrb[0].mxu0 %v755
      %v906 = vpop.f32.mrb[0].mxu0
      %v907 = vadd.f32 0.0, %v906
      %v908 = vpop.f32.mrb[0].mxu0
      %v909 = vpop.f32.mrb[0].mxu0
      %v910 = vadd.f32 0.0, %v909
      %v911 = vpop.f32.mrb[0].mxu0
      %912 = vmatprep.mubr.bf16.mxu0 0
      %913 = vmatmul.mubr.bf16.gmra.mrb[0].mxu0 %v758
      %v914 = vpop.f32.mrb[0].mxu0
      %v915 = vadd.f32 0.0, %v914
      %v916 = vpop.f32.mrb[0].mxu0
      %v917 = vpop.f32.mrb[0].mxu0
      %v918 = vadd.f32 0.0, %v917
      %v919 = vpop.f32.mrb[0].mxu0
      %920 = vdwg.mxu0
      %v953 = vunpack.c.l.b16 %v257
      %v954 = vunpack.c.l.b16 %v258
      %v955 = vunpack.c.l.b16 %v259
      %v956 = vunpack.c.l.b16 %v260
      %v957 = vunpack.c.l.b16 %v261
      %v958 = vunpack.c.l.b16 %v262
      %v959 = vunpack.c.l.b16 %v263
      %v960 = vunpack.c.l.b16 %v264
      %v961 = vunpack.c.l.b16 %v265
      %v962 = vunpack.c.l.b16 %v266
      %v963 = vunpack.c.l.b16 %v267
      %v964 = vunpack.c.l.b16 %v268
      %v965 = vunpack.c.l.b16 %v269
      %v966 = vunpack.c.l.b16 %v270
      %v967 = vunpack.c.l.b16 %v271
      %v968 = vunpack.c.l.b16 %v272
      %v969 = vunpack.c.l.b16 %v273
      %v970 = vunpack.c.l.b16 %v274
      %v971 = vunpack.c.l.b16 %v275
      %v972 = vunpack.c.l.b16 %v276
      %v973 = vunpack.c.l.b16 %v277
      %v974 = vunpack.c.l.b16 %v278
      %v975 = vunpack.c.l.b16 %v279
      %v976 = vunpack.c.l.b16 %v280
      %v977 = vunpack.c.l.b16 %v281
      %v978 = vunpack.c.l.b16 %v282
      %v979 = vunpack.c.l.b16 %v283
      %v980 = vunpack.c.l.b16 %v284
      %v981 = vunpack.c.l.b16 %v285
      %v982 = vunpack.c.l.b16 %v286
      %v983 = vunpack.c.l.b16 %v287
      %v984 = vunpack.c.l.b16 %v288
      %v985 = vpack.c.b16 %v954, %v953
      %v986 = vpack.c.b16 %v956, %v955
      %v987 = vpack.c.b16 %v958, %v957
      %v988 = vpack.c.b16 %v960, %v959
      %v989 = vpack.c.b16 %v962, %v961
      %v990 = vpack.c.b16 %v964, %v963
      %v991 = vpack.c.b16 %v966, %v965
      %v992 = vpack.c.b16 %v968, %v967
      %v993 = vpack.c.b16 %v970, %v969
      %v994 = vpack.c.b16 %v972, %v971
      %v995 = vpack.c.b16 %v974, %v973
      %v996 = vpack.c.b16 %v976, %v975
      %v997 = vpack.c.b16 %v978, %v977
      %v998 = vpack.c.b16 %v980, %v979
      %v999 = vpack.c.b16 %v982, %v981
      %v1000 = vpack.c.b16 %v984, %v983
      %v1003 = vunpack.c.l.b16 %v289
      %v1004 = vunpack.c.l.b16 %v290
      %v1005 = vpack.c.b16 %v1004, %v1003
      %v1008 = vsel %vm711, %v985, 0
      %v1011 = vsel %vm711, %v986, 0
      %v1014 = vsel %vm711, %v987, 0
      %v1017 = vsel %vm711, %v988, 0
      %v1020 = vsel %vm711, %v989, 0
      %v1023 = vsel %vm711, %v990, 0
      %v1026 = vsel %vm711, %v991, 0
      %v1029 = vsel %vm711, %v992, 0
      %v1032 = vsel %vm711, %v993, 0
      %v1035 = vsel %vm711, %v994, 0
      %v1038 = vsel %vm711, %v995, 0
      %v1041 = vsel %vm711, %v996, 0
      %v1044 = vsel %vm711, %v997, 0
      %v1047 = vsel %vm711, %v998, 0
      %v1050 = vsel %vm711, %v999, 0
      %v1053 = vsel %vm711, %v1000, 0
      %1055 = vmatprep.subr.bf16.mxu0 0
      %1056 = vmatpush1.bf16.msra.mxu0 %v1005
      %1057 = vmatprep.subr.bf16.mxu0 0
      %1058 = vmatpush1.bf16.msra.mxu0 0
      %1059 = vmatprep.subr.bf16.mxu0 0
      %1060 = vmatpush1.bf16.msra.mxu0 0
      %1061 = vmatprep.subr.bf16.mxu0 0
      %1062 = vmatpush1.bf16.msra.mxu0 0
      %1063 = vmatprep.subr.bf16.mxu0 0
      %1064 = vmatpush1.bf16.msra.mxu0 0
      %1065 = vmatprep.subr.bf16.mxu0 0
      %1066 = vmatpush1.bf16.msra.mxu0 0
      %1067 = vmatprep.subr.bf16.mxu0 0
      %1068 = vmatpush1.bf16.msra.mxu0 0
      %1069 = vmatprep.subr.bf16.mxu0 0
      %1070 = vmatpush1.bf16.msra.mxu0 0
      %1071 = vmatprep.subr.bf16.mxu0 0
      %1072 = vmatpush1.bf16.msra.mxu0 0
      %1073 = vmatprep.subr.bf16.mxu0 0
      %1074 = vmatpush1.bf16.msra.mxu0 0
      %1075 = vmatprep.subr.bf16.mxu0 0
      %1076 = vmatpush1.bf16.msra.mxu0 0
      %1077 = vmatprep.subr.bf16.mxu0 0
      %1078 = vmatpush1.bf16.msra.mxu0 0
      %1079 = vmatprep.subr.bf16.mxu0 0
      %1080 = vmatpush1.bf16.msra.mxu0 0
      %1081 = vmatprep.subr.bf16.mxu0 0
      %1082 = vmatpush1.bf16.msra.mxu0 0
      %1083 = vmatprep.subr.bf16.mxu0 0
      %1084 = vmatpush1.bf16.msra.mxu0 0
      %1085 = vmatprep.subr.bf16.mxu0 0
      %1086 = vmatpush1.bf16.msra.mxu0 0
      %1087 = vmatprep.mubr.bf16.mxu0 0
      %1088 = vmatmul.mubr.bf16.gmra.mrb[0].mxu0 %v1008
      %v1089 = vpop.f32.mrb[0].mxu0
      %v1090 = vadd.f32 %v795, %v1089
      %v1091 = vpop.f32.mrb[0].mxu0
      %v1092 = vpop.f32.mrb[0].mxu0
      %v1093 = vadd.f32 %v798, %v1092
      %v1094 = vpop.f32.mrb[0].mxu0
      %1095 = vmatprep.mubr.bf16.mxu0 0
      %1096 = vmatmul.mubr.bf16.gmra.mrb[0].mxu0 %v1011
      %v1097 = vpop.f32.mrb[0].mxu0
      %v1098 = vadd.f32 %v803, %v1097
      %v1099 = vpop.f32.mrb[0].mxu0
      %v1100 = vpop.f32.mrb[0].mxu0
      %v1101 = vadd.f32 %v806, %v1100
      %v1102 = vpop.f32.mrb[0].mxu0
      %1103 = vmatprep.mubr.bf16.mxu0 0
      %1104 = vmatmul.mubr.bf16.gmra.mrb[0].mxu0 %v1014
      %v1105 = vpop.f32.mrb[0].mxu0
      %v1106 = vadd.f32 %v811, %v1105
      %v1107 = vpop.f32.mrb[0].mxu0
      %v1108 = vpop.f32.mrb[0].mxu0
      %v1109 = vadd.f32 %v814, %v1108
      %v1110 = vpop.f32.mrb[0].mxu0
      %1111 = vmatprep.mubr.bf16.mxu0 0
      %1112 = vmatmul.mubr.bf16.gmra.mrb[0].mxu0 %v1017
      %v1113 = vpop.f32.mrb[0].mxu0
      %v1114 = vadd.f32 %v819, %v1113
      %v1115 = vpop.f32.mrb[0].mxu0
      %v1116 = vpop.f32.mrb[0].mxu0
      %v1117 = vadd.f32 %v822, %v1116
      %v1118 = vpop.f32.mrb[0].mxu0
      %1119 = vmatprep.mubr.bf16.mxu0 0
      %1120 = vmatmul.mubr.bf16.gmra.mrb[0].mxu0 %v1020
      %v1121 = vpop.f32.mrb[0].mxu0
      %v1122 = vadd.f32 %v827, %v1121
      %v1123 = vpop.f32.mrb[0].mxu0
      %v1124 = vpop.f32.mrb[0].mxu0
      %v1125 = vadd.f32 %v830, %v1124
      %v1126 = vpop.f32.mrb[0].mxu0
      %1127 = vmatprep.mubr.bf16.mxu0 0
      %1128 = vmatmul.mubr.bf16.gmra.mrb[0].mxu0 %v1023
      %v1129 = vpop.f32.mrb[0].mxu0
      %v1130 = vadd.f32 %v835, %v1129
      %v1131 = vpop.f32.mrb[0].mxu0
      %v1132 = vpop.f32.mrb[0].mxu0
      %v1133 = vadd.f32 %v838, %v1132
      %v1134 = vpop.f32.mrb[0].mxu0
      %1135 = vmatprep.mubr.bf16.mxu0 0
      %1136 = vmatmul.mubr.bf16.gmra.mrb[0].mxu0 %v1026
      %v1137 = vpop.f32.mrb[0].mxu0
      %v1138 = vadd.f32 %v843, %v1137
      %v1139 = vpop.f32.mrb[0].mxu0
      %v1140 = vpop.f32.mrb[0].mxu0
      %v1141 = vadd.f32 %v846, %v1140
      %v1142 = vpop.f32.mrb[0].mxu0
      %1143 = vmatprep.mubr.bf16.mxu0 0
      %1144 = vmatmul.mubr.bf16.gmra.mrb[0].mxu0 %v1029
      %v1145 = vpop.f32.mrb[0].mxu0
      %v1146 = vadd.f32 %v851, %v1145
      %v1147 = vpop.f32.mrb[0].mxu0
      %v1148 = vpop.f32.mrb[0].mxu0
      %v1149 = vadd.f32 %v854, %v1148
      %v1150 = vpop.f32.mrb[0].mxu0
      %1151 = vmatprep.mubr.bf16.mxu0 0
      %1152 = vmatmul.mubr.bf16.gmra.mrb[0].mxu0 %v1032
      %v1153 = vpop.f32.mrb[0].mxu0
      %v1154 = vadd.f32 %v859, %v1153
      %v1155 = vpop.f32.mrb[0].mxu0
      %v1156 = vpop.f32.mrb[0].mxu0
      %v1157 = vadd.f32 %v862, %v1156
      %v1158 = vpop.f32.mrb[0].mxu0
      %1159 = vmatprep.mubr.bf16.mxu0 0
      %1160 = vmatmul.mubr.bf16.gmra.mrb[0].mxu0 %v1035
      %v1161 = vpop.f32.mrb[0].mxu0
      %v1162 = vadd.f32 %v867, %v1161
      %v1163 = vpop.f32.mrb[0].mxu0
      %v1164 = vpop.f32.mrb[0].mxu0
      %v1165 = vadd.f32 %v870, %v1164
      %v1166 = vpop.f32.mrb[0].mxu0
      %1167 = vmatprep.mubr.bf16.mxu0 0
      %1168 = vmatmul.mubr.bf16.gmra.mrb[0].mxu0 %v1038
      %v1169 = vpop.f32.mrb[0].mxu0
      %v1170 = vadd.f32 %v875, %v1169
      %v1171 = vpop.f32.mrb[0].mxu0
      %v1172 = vpop.f32.mrb[0].mxu0
      %v1173 = vadd.f32 %v878, %v1172
      %v1174 = vpop.f32.mrb[0].mxu0
      %1175 = vmatprep.mubr.bf16.mxu0 0
      %1176 = vmatmul.mubr.bf16.gmra.mrb[0].mxu0 %v1041
      %v1177 = vpop.f32.mrb[0].mxu0
      %v1178 = vadd.f32 %v883, %v1177
      %v1179 = vpop.f32.mrb[0].mxu0
      %v1180 = vpop.f32.mrb[0].mxu0
      %v1181 = vadd.f32 %v886, %v1180
      %v1182 = vpop.f32.mrb[0].mxu0
      %1183 = vmatprep.mubr.bf16.mxu0 0
      %1184 = vmatmul.mubr.bf16.gmra.mrb[0].mxu0 %v1044
      %v1185 = vpop.f32.mrb[0].mxu0
      %v1186 = vadd.f32 %v891, %v1185
      %v1187 = vpop.f32.mrb[0].mxu0
      %v1188 = vpop.f32.mrb[0].mxu0
      %v1189 = vadd.f32 %v894, %v1188
      %v1190 = vpop.f32.mrb[0].mxu0
      %1191 = vmatprep.mubr.bf16.mxu0 0
      %1192 = vmatmul.mubr.bf16.gmra.mrb[0].mxu0 %v1047
      %v1193 = vpop.f32.mrb[0].mxu0
      %v1194 = vadd.f32 %v899, %v1193
      %v1195 = vpop.f32.mrb[0].mxu0
      %v1196 = vpop.f32.mrb[0].mxu0
      %v1197 = vadd.f32 %v902, %v1196
      %v1198 = vpop.f32.mrb[0].mxu0
      %1199 = vmatprep.mubr.bf16.mxu0 0
      %1200 = vmatmul.mubr.bf16.gmra.mrb[0].mxu0 %v1050
      %v1201 = vpop.f32.mrb[0].mxu0
      %v1202 = vadd.f32 %v907, %v1201
      %v1203 = vpop.f32.mrb[0].mxu0
      %v1204 = vpop.f32.mrb[0].mxu0
      %v1205 = vadd.f32 %v910, %v1204
      %v1206 = vpop.f32.mrb[0].mxu0
      %1207 = vmatprep.mubr.bf16.mxu0 0
      %1208 = vmatmul.mubr.bf16.gmra.mrb[0].mxu0 %v1053
      %v1209 = vpop.f32.mrb[0].mxu0
      %v1210 = vadd.f32 %v915, %v1209
      %v1211 = vpop.f32.mrb[0].mxu0
      %v1212 = vpop.f32.mrb[0].mxu0
      %v1213 = vadd.f32 %v918, %v1212
      %v1214 = vpop.f32.mrb[0].mxu0
      %1215 = vdwg.mxu0
      %s1216 = scalar_lea.vmem %s235, 20
      %v1217 = vld [vmem:[%s1216] sm:$0xf]
      %v1218 = vld [vmem:[%s1216 + $0x4] sm:$0xf]
      %v1219 = vld [vmem:[%s1216 + $0x8] sm:$0xf]
      %v1220 = vld [vmem:[%s1216 + $0xc] sm:$0xf]
      %v1221 = vld [vmem:[%s1216 + $0x14] sm:$0xf]
      %v1222 = vld [vmem:[%s1216 + $0x18] sm:$0xf]
      %v1223 = vld [vmem:[%s1216 + $0x1c] sm:$0xf]
      %v1224 = vld [vmem:[%s1216 + $0x20] sm:$0xf]
      %v1225 = vld [vmem:[%s1216 + $0x28] sm:$0xf]
      %v1226 = vld [vmem:[%s1216 + $0x2c] sm:$0xf]
      %v1227 = vld [vmem:[%s1216 + $0x30] sm:$0xf]
      %v1228 = vld [vmem:[%s1216 + $0x34] sm:$0xf]
      %v1229 = vld [vmem:[%s1216 + $0x3c] sm:$0xf]
      %v1230 = vld [vmem:[%s1216 + $0x40] sm:$0xf]
      %v1231 = vld [vmem:[%s1216 + $0x44] sm:$0xf]
      %v1232 = vld [vmem:[%s1216 + $0x48] sm:$0xf]
      %v1233 = vld [vmem:[%s1216 + $0x50] sm:$0xf]
      %v1234 = vld [vmem:[%s1216 + $0x54] sm:$0xf]
      %v1235 = vld [vmem:[%s1216 + $0x58] sm:$0xf]
      %v1236 = vld [vmem:[%s1216 + $0x5c] sm:$0xf]
      %v1237 = vld [vmem:[%s1216 + $0x64] sm:$0xf]
      %v1238 = vld [vmem:[%s1216 + $0x68] sm:$0xf]
      %v1239 = vld [vmem:[%s1216 + $0x6c] sm:$0xf]
      %v1240 = vld [vmem:[%s1216 + $0x70] sm:$0xf]
      %v1241 = vld [vmem:[%s1216 + $0x78] sm:$0xf]
      %v1242 = vld [vmem:[%s1216 + $0x7c] sm:$0xf]
      %v1243 = vld [vmem:[%s1216 + $0x80] sm:$0xf]
      %v1244 = vld [vmem:[%s1216 + $0x84] sm:$0xf]
      %v1245 = vld [vmem:[%s1216 + $0x8c] sm:$0xf]
      %v1246 = vld [vmem:[%s1216 + $0x90] sm:$0xf]
      %v1247 = vld [vmem:[%s1216 + $0x94] sm:$0xf]
      %v1248 = vld [vmem:[%s1216 + $0x98] sm:$0xf]
      %s1249 = scalar_lea.vmem %s1, 16
      %v1250 = vld [vmem:[%s1249] sm:$0xf]
      %v1251 = vld [vmem:[%s1249 + $0x4] sm:$0xf]
      %v1284 = vunpack.c.l.b16 %v1217
      %v1285 = vunpack.c.l.b16 %v1218
      %v1286 = vunpack.c.l.b16 %v1219
      %v1287 = vunpack.c.l.b16 %v1220
      %v1288 = vunpack.c.l.b16 %v1221
      %v1289 = vunpack.c.l.b16 %v1222
      %v1290 = vunpack.c.l.b16 %v1223
      %v1291 = vunpack.c.l.b16 %v1224
      %v1292 = vunpack.c.l.b16 %v1225
      %v1293 = vunpack.c.l.b16 %v1226
      %v1294 = vunpack.c.l.b16 %v1227
      %v1295 = vunpack.c.l.b16 %v1228
      %v1296 = vunpack.c.l.b16 %v1229
      %v1297 = vunpack.c.l.b16 %v1230
      %v1298 = vunpack.c.l.b16 %v1231
      %v1299 = vunpack.c.l.b16 %v1232
      %v1300 = vunpack.c.l.b16 %v1233
      %v1301 = vunpack.c.l.b16 %v1234
      %v1302 = vunpack.c.l.b16 %v1235
      %v1303 = vunpack.c.l.b16 %v1236
      %v1304 = vunpack.c.l.b16 %v1237
      %v1305 = vunpack.c.l.b16 %v1238
      %v1306 = vunpack.c.l.b16 %v1239
      %v1307 = vunpack.c.l.b16 %v1240
      %v1308 = vunpack.c.l.b16 %v1241
      %v1309 = vunpack.c.l.b16 %v1242
      %v1310 = vunpack.c.l.b16 %v1243
      %v1311 = vunpack.c.l.b16 %v1244
      %v1312 = vunpack.c.l.b16 %v1245
      %v1313 = vunpack.c.l.b16 %v1246
      %v1314 = vunpack.c.l.b16 %v1247
      %v1315 = vunpack.c.l.b16 %v1248
      %v1316 = vpack.c.b16 %v1285, %v1284
      %v1317 = vpack.c.b16 %v1287, %v1286
      %v1318 = vpack.c.b16 %v1289, %v1288
      %v1319 = vpack.c.b16 %v1291, %v1290
      %v1320 = vpack.c.b16 %v1293, %v1292
      %v1321 = vpack.c.b16 %v1295, %v1294
      %v1322 = vpack.c.b16 %v1297, %v1296
      %v1323 = vpack.c.b16 %v1299, %v1298
      %v1324 = vpack.c.b16 %v1301, %v1300
      %v1325 = vpack.c.b16 %v1303, %v1302
      %v1326 = vpack.c.b16 %v1305, %v1304
      %v1327 = vpack.c.b16 %v1307, %v1306
      %v1328 = vpack.c.b16 %v1309, %v1308
      %v1329 = vpack.c.b16 %v1311, %v1310
      %v1330 = vpack.c.b16 %v1313, %v1312
      %v1331 = vpack.c.b16 %v1315, %v1314
      %v1334 = vunpack.c.l.b16 %v1250
      %v1335 = vunpack.c.l.b16 %v1251
      %v1336 = vpack.c.b16 %v1335, %v1334
      %v1339 = vsel %vm711, %v1316, 0
      %v1342 = vsel %vm711, %v1317, 0
      %v1345 = vsel %vm711, %v1318, 0
      %v1348 = vsel %vm711, %v1319, 0
      %v1351 = vsel %vm711, %v1320, 0
      %v1354 = vsel %vm711, %v1321, 0
      %v1357 = vsel %vm711, %v1322, 0
      %v1360 = vsel %vm711, %v1323, 0
      %v1363 = vsel %vm711, %v1324, 0
      %v1366 = vsel %vm711, %v1325, 0
      %v1369 = vsel %vm711, %v1326, 0
      %v1372 = vsel %vm711, %v1327, 0
      %v1375 = vsel %vm711, %v1328, 0
      %v1378 = vsel %vm711, %v1329, 0
      %v1381 = vsel %vm711, %v1330, 0
      %v1384 = vsel %vm711, %v1331, 0
      %1386 = vmatprep.subr.bf16.mxu0 0
      %1387 = vmatpush1.bf16.msra.mxu0 %v1336
      %1388 = vmatprep.subr.bf16.mxu0 0
      %1389 = vmatpush1.bf16.msra.mxu0 0
      %1390 = vmatprep.subr.bf16.mxu0 0
      %1391 = vmatpush1.bf16.msra.mxu0 0
      %1392 = vmatprep.subr.bf16.mxu0 0
      %1393 = vmatpush1.bf16.msra.mxu0 0
      %1394 = vmatprep.subr.bf16.mxu0 0
      %1395 = vmatpush1.bf16.msra.mxu0 0
      %1396 = vmatprep.subr.bf16.mxu0 0
      %1397 = vmatpush1.bf16.msra.mxu0 0
      %1398 = vmatprep.subr.bf16.mxu0 0
      %1399 = vmatpush1.bf16.msra.mxu0 0
      %1400 = vmatprep.subr.bf16.mxu0 0
      %1401 = vmatpush1.bf16.msra.mxu0 0
      %1402 = vmatprep.subr.bf16.mxu0 0
      %1403 = vmatpush1.bf16.msra.mxu0 0
      %1404 = vmatprep.subr.bf16.mxu0 0
      %1405 = vmatpush1.bf16.msra.mxu0 0
      %1406 = vmatprep.subr.bf16.mxu0 0
      %1407 = vmatpush1.bf16.msra.mxu0 0
      %1408 = vmatprep.subr.bf16.mxu0 0
      %1409 = vmatpush1.bf16.msra.mxu0 0
      %1410 = vmatprep.subr.bf16.mxu0 0
      %1411 = vmatpush1.bf16.msra.mxu0 0
      %1412 = vmatprep.subr.bf16.mxu0 0
      %1413 = vmatpush1.bf16.msra.mxu0 0
      %1414 = vmatprep.subr.bf16.mxu0 0
      %1415 = vmatpush1.bf16.msra.mxu0 0
      %1416 = vmatprep.subr.bf16.mxu0 0
      %1417 = vmatpush1.bf16.msra.mxu0 0
      %1418 = vmatprep.mubr.bf16.mxu0 0
      %1419 = vmatmul.mubr.bf16.gmra.mrb[0].mxu0 %v1339
      %v1420 = vpop.f32.mrb[0].mxu0
      %v1421 = vadd.f32 0.0, %v1420
      %v1422 = vpop.f32.mrb[0].mxu0
      %v1423 = vpop.f32.mrb[0].mxu0
      %v1424 = vadd.f32 0.0, %v1423
      %v1425 = vpop.f32.mrb[0].mxu0
      %1426 = vmatprep.mubr.bf16.mxu0 0
      %1427 = vmatmul.mubr.bf16.gmra.mrb[0].mxu0 %v1342
      %v1428 = vpop.f32.mrb[0].mxu0
      %v1429 = vadd.f32 0.0, %v1428
      %v1430 = vpop.f32.mrb[0].mxu0
      %v1431 = vpop.f32.mrb[0].mxu0
      %v1432 = vadd.f32 0.0, %v1431
      %v1433 = vpop.f32.mrb[0].mxu0
      %1434 = vmatprep.mubr.bf16.mxu0 0
      %1435 = vmatmul.mubr.bf16.gmra.mrb[0].mxu0 %v1345
      %v1436 = vpop.f32.mrb[0].mxu0
      %v1437 = vadd.f32 0.0, %v1436
      %v1438 = vpop.f32.mrb[0].mxu0
      %v1439 = vpop.f32.mrb[0].mxu0
      %v1440 = vadd.f32 0.0, %v1439
      %v1441 = vpop.f32.mrb[0].mxu0
      %1442 = vmatprep.mubr.bf16.mxu0 0
      %1443 = vmatmul.mubr.bf16.gmra.mrb[0].mxu0 %v1348
      %v1444 = vpop.f32.mrb[0].mxu0
      %v1445 = vadd.f32 0.0, %v1444
      %v1446 = vpop.f32.mrb[0].mxu0
      %v1447 = vpop.f32.mrb[0].mxu0
      %v1448 = vadd.f32 0.0, %v1447
      %v1449 = vpop.f32.mrb[0].mxu0
      %1450 = vmatprep.mubr.bf16.mxu0 0
      %1451 = vmatmul.mubr.bf16.gmra.mrb[0].mxu0 %v1351
      %v1452 = vpop.f32.mrb[0].mxu0
      %v1453 = vadd.f32 0.0, %v1452
      %v1454 = vpop.f32.mrb[0].mxu0
      %v1455 = vpop.f32.mrb[0].mxu0
      %v1456 = vadd.f32 0.0, %v1455
      %v1457 = vpop.f32.mrb[0].mxu0
      %1458 = vmatprep.mubr.bf16.mxu0 0
      %1459 = vmatmul.mubr.bf16.gmra.mrb[0].mxu0 %v1354
      %v1460 = vpop.f32.mrb[0].mxu0
      %v1461 = vadd.f32 0.0, %v1460
      %v1462 = vpop.f32.mrb[0].mxu0
      %v1463 = vpop.f32.mrb[0].mxu0
      %v1464 = vadd.f32 0.0, %v1463
      %v1465 = vpop.f32.mrb[0].mxu0
      %1466 = vmatprep.mubr.bf16.mxu0 0
      %1467 = vmatmul.mubr.bf16.gmra.mrb[0].mxu0 %v1357
      %v1468 = vpop.f32.mrb[0].mxu0
      %v1469 = vadd.f32 0.0, %v1468
      %v1470 = vpop.f32.mrb[0].mxu0
      %v1471 = vpop.f32.mrb[0].mxu0
      %v1472 = vadd.f32 0.0, %v1471
      %v1473 = vpop.f32.mrb[0].mxu0
      %1474 = vmatprep.mubr.bf16.mxu0 0
      %1475 = vmatmul.mubr.bf16.gmra.mrb[0].mxu0 %v1360
      %v1476 = vpop.f32.mrb[0].mxu0
      %v1477 = vadd.f32 0.0, %v1476
      %v1478 = vpop.f32.mrb[0].mxu0
      %v1479 = vpop.f32.mrb[0].mxu0
      %v1480 = vadd.f32 0.0, %v1479
      %v1481 = vpop.f32.mrb[0].mxu0
      %1482 = vmatprep.mubr.bf16.mxu0 0
      %1483 = vmatmul.mubr.bf16.gmra.mrb[0].mxu0 %v1363
      %v1484 = vpop.f32.mrb[0].mxu0
      %v1485 = vadd.f32 0.0, %v1484
      %v1486 = vpop.f32.mrb[0].mxu0
      %v1487 = vpop.f32.mrb[0].mxu0
      %v1488 = vadd.f32 0.0, %v1487
      %v1489 = vpop.f32.mrb[0].mxu0
      %1490 = vmatprep.mubr.bf16.mxu0 0
      %1491 = vmatmul.mubr.bf16.gmra.mrb[0].mxu0 %v1366
      %v1492 = vpop.f32.mrb[0].mxu0
      %v1493 = vadd.f32 0.0, %v1492
      %v1494 = vpop.f32.mrb[0].mxu0
      %v1495 = vpop.f32.mrb[0].mxu0
      %v1496 = vadd.f32 0.0, %v1495
      %v1497 = vpop.f32.mrb[0].mxu0
      %1498 = vmatprep.mubr.bf16.mxu0 0
      %1499 = vmatmul.mubr.bf16.gmra.mrb[0].mxu0 %v1369
      %v1500 = vpop.f32.mrb[0].mxu0
      %v1501 = vadd.f32 0.0, %v1500
      %v1502 = vpop.f32.mrb[0].mxu0
      %v1503 = vpop.f32.mrb[0].mxu0
      %v1504 = vadd.f32 0.0, %v1503
      %v1505 = vpop.f32.mrb[0].mxu0
      %1506 = vmatprep.mubr.bf16.mxu0 0
      %1507 = vmatmul.mubr.bf16.gmra.mrb[0].mxu0 %v1372
      %v1508 = vpop.f32.mrb[0].mxu0
      %v1509 = vadd.f32 0.0, %v1508
      %v1510 = vpop.f32.mrb[0].mxu0
      %v1511 = vpop.f32.mrb[0].mxu0
      %v1512 = vadd.f32 0.0, %v1511
      %v1513 = vpop.f32.mrb[0].mxu0
      %1514 = vmatprep.mubr.bf16.mxu0 0
      %1515 = vmatmul.mubr.bf16.gmra.mrb[0].mxu0 %v1375
      %v1516 = vpop.f32.mrb[0].mxu0
      %v1517 = vadd.f32 0.0, %v1516
      %v1518 = vpop.f32.mrb[0].mxu0
      %v1519 = vpop.f32.mrb[0].mxu0
      %v1520 = vadd.f32 0.0, %v1519
      %v1521 = vpop.f32.mrb[0].mxu0
      %1522 = vmatprep.mubr.bf16.mxu0 0
      %1523 = vmatmul.mubr.bf16.gmra.mrb[0].mxu0 %v1378
      %v1524 = vpop.f32.mrb[0].mxu0
      %v1525 = vadd.f32 0.0, %v1524
      %v1526 = vpop.f32.mrb[0].mxu0
      %v1527 = vpop.f32.mrb[0].mxu0
      %v1528 = vadd.f32 0.0, %v1527
      %v1529 = vpop.f32.mrb[0].mxu0
      %1530 = vmatprep.mubr.bf16.mxu0 0
      %1531 = vmatmul.mubr.bf16.gmra.mrb[0].mxu0 %v1381
      %v1532 = vpop.f32.mrb[0].mxu0
      %v1533 = vadd.f32 0.0, %v1532
      %v1534 = vpop.f32.mrb[0].mxu0
      %v1535 = vpop.f32.mrb[0].mxu0
      %v1536 = vadd.f32 0.0, %v1535
      %v1537 = vpop.f32.mrb[0].mxu0
      %1538 = vmatprep.mubr.bf16.mxu0 0
      %1539 = vmatmul.mubr.bf16.gmra.mrb[0].mxu0 %v1384
      %v1540 = vpop.f32.mrb[0].mxu0
      %v1541 = vadd.f32 0.0, %v1540
      %v1542 = vpop.f32.mrb[0].mxu0
      %v1543 = vpop.f32.mrb[0].mxu0
      %v1544 = vadd.f32 0.0, %v1543
      %v1545 = vpop.f32.mrb[0].mxu0
      %1546 = vdwg.mxu0
      %v1547 = vadd.f32 %v1090, %v1421
      %v1548 = vadd.f32 %v1093, %v1424
      %v1549 = vadd.f32 %v1098, %v1429
      %v1550 = vadd.f32 %v1101, %v1432
      %v1551 = vadd.f32 %v1106, %v1437
      %v1552 = vadd.f32 %v1109, %v1440
      %v1553 = vadd.f32 %v1114, %v1445
      %v1554 = vadd.f32 %v1117, %v1448
      %v1555 = vadd.f32 %v1122, %v1453
      %v1556 = vadd.f32 %v1125, %v1456
      %v1557 = vadd.f32 %v1130, %v1461
      %v1558 = vadd.f32 %v1133, %v1464
      %v1559 = vadd.f32 %v1138, %v1469
      %v1560 = vadd.f32 %v1141, %v1472
      %v1561 = vadd.f32 %v1146, %v1477
      %v1562 = vadd.f32 %v1149, %v1480
      %v1563 = vadd.f32 %v1154, %v1485
      %v1564 = vadd.f32 %v1157, %v1488
      %v1565 = vadd.f32 %v1162, %v1493
      %v1566 = vadd.f32 %v1165, %v1496
      %v1567 = vadd.f32 %v1170, %v1501
      %v1568 = vadd.f32 %v1173, %v1504
      %v1569 = vadd.f32 %v1178, %v1509
      %v1570 = vadd.f32 %v1181, %v1512
      %v1571 = vadd.f32 %v1186, %v1517
      %v1572 = vadd.f32 %v1189, %v1520
      %v1573 = vadd.f32 %v1194, %v1525
      %v1574 = vadd.f32 %v1197, %v1528
      %v1575 = vadd.f32 %v1202, %v1533
      %v1576 = vadd.f32 %v1205, %v1536
      %v1577 = vadd.f32 %v1210, %v1541
      %v1578 = vadd.f32 %v1213, %v1544
      %v1579 = vld [vmem:[%s1216] sm:$0xf]
      %v1580 = vld [vmem:[%s1216 + $0x4] sm:$0xf]
      %v1581 = vld [vmem:[%s1216 + $0x8] sm:$0xf]
      %v1582 = vld [vmem:[%s1216 + $0xc] sm:$0xf]
      %v1583 = vld [vmem:[%s1216 + $0x10] sm:$0x1]
      %v1584 = vld [vmem:[%s1216 + $0x14] sm:$0xf]
      %v1585 = vld [vmem:[%s1216 + $0x18] sm:$0xf]
      %v1586 = vld [vmem:[%s1216 + $0x1c] sm:$0xf]
      %v1587 = vld [vmem:[%s1216 + $0x20] sm:$0xf]
      %v1588 = vld [vmem:[%s1216 + $0x24] sm:$0x1]
      %v1589 = vld [vmem:[%s1216 + $0x28] sm:$0xf]
      %v1590 = vld [vmem:[%s1216 + $0x2c] sm:$0xf]
      %v1591 = vld [vmem:[%s1216 + $0x30] sm:$0xf]
      %v1592 = vld [vmem:[%s1216 + $0x34] sm:$0xf]
      %v1593 = vld [vmem:[%s1216 + $0x38] sm:$0x1]
      %v1594 = vld [vmem:[%s1216 + $0x3c] sm:$0xf]
      %v1595 = vld [vmem:[%s1216 + $0x40] sm:$0xf]
      %v1596 = vld [vmem:[%s1216 + $0x44] sm:$0xf]
      %v1597 = vld [vmem:[%s1216 + $0x48] sm:$0xf]
      %v1598 = vld [vmem:[%s1216 + $0x4c] sm:$0x1]
      %v1599 = vld [vmem:[%s1216 + $0x50] sm:$0xf]
      %v1600 = vld [vmem:[%s1216 + $0x54] sm:$0xf]
      %v1601 = vld [vmem:[%s1216 + $0x58] sm:$0xf]
      %v1602 = vld [vmem:[%s1216 + $0x5c] sm:$0xf]
      %v1603 = vld [vmem:[%s1216 + $0x60] sm:$0x1]
      %v1604 = vld [vmem:[%s1216 + $0x64] sm:$0xf]
      %v1605 = vld [vmem:[%s1216 + $0x68] sm:$0xf]
      %v1606 = vld [vmem:[%s1216 + $0x6c] sm:$0xf]
      %v1607 = vld [vmem:[%s1216 + $0x70] sm:$0xf]
      %v1608 = vld [vmem:[%s1216 + $0x74] sm:$0x1]
      %v1609 = vld [vmem:[%s1216 + $0x78] sm:$0xf]
      %v1610 = vld [vmem:[%s1216 + $0x7c] sm:$0xf]
      %v1611 = vld [vmem:[%s1216 + $0x80] sm:$0xf]
      %v1612 = vld [vmem:[%s1216 + $0x84] sm:$0xf]
      %v1613 = vld [vmem:[%s1216 + $0x88] sm:$0x1]
      %v1614 = vld [vmem:[%s1216 + $0x8c] sm:$0xf]
      %v1615 = vld [vmem:[%s1216 + $0x90] sm:$0xf]
      %v1616 = vld [vmem:[%s1216 + $0x94] sm:$0xf]
      %v1617 = vld [vmem:[%s1216 + $0x98] sm:$0xf]
      %v1618 = vld [vmem:[%s1216 + $0x9c] sm:$0x1]
      %v1620 = vshrl.u32 %v1579, 16
      %v1622 = vrot.slane %v1620, 4
      %v1623 = vshll.u32 %v1579, 16
      %v1625 = vrot.slane %v1623, 5
      %v1626 = vor.u32 %v1622, %v1625
      %v1627 = vrot.slane %v1626, 4
      %v1629 = vshll.u32 %v1580, 16
      %v1631 = vrot.slane %v1629, 5
      %v1632 = vsel %vm301, %v1627, %v1631
      %v1633 = vshrl.u32 %v1580, 16
      %v1635 = vrot.slane %v1633, 4
      %v1636 = vor.u32 %v1635, %v1631
      %v1637 = vrot.slane %v1636, 4
      %v1639 = vshll.u32 %v1581, 16
      %v1641 = vrot.slane %v1639, 5
      %v1642 = vsel %vm301, %v1637, %v1641
      %v1643 = vshrl.u32 %v1581, 16
      %v1645 = vrot.slane %v1643, 4
      %v1646 = vor.u32 %v1645, %v1641
      %v1647 = vrot.slane %v1646, 4
      %v1649 = vshll.u32 %v1582, 16
      %v1651 = vrot.slane %v1649, 5
      %v1652 = vsel %vm301, %v1647, %v1651
      %v1653 = vshrl.u32 %v1582, 16
      %v1655 = vrot.slane %v1653, 4
      %v1656 = vor.u32 %v1655, %v1651
      %v1657 = vrot.slane %v1656, 4
      %v1659 = vshll.u32 %v1583, 16
      %v1661 = vrot.slane %v1659, 5
      %v1662 = vsel %vm301, %v1657, %v1661
      %v1664 = vshrl.u32 %v1584, 16
      %v1666 = vrot.slane %v1664, 4
      %v1667 = vshll.u32 %v1584, 16
      %v1669 = vrot.slane %v1667, 5
      %v1670 = vor.u32 %v1666, %v1669
      %v1671 = vrot.slane %v1670, 4
      %v1673 = vshll.u32 %v1585, 16
      %v1675 = vrot.slane %v1673, 5
      %v1676 = vsel %vm301, %v1671, %v1675
      %v1677 = vshrl.u32 %v1585, 16
      %v1679 = vrot.slane %v1677, 4
      %v1680 = vor.u32 %v1679, %v1675
      %v1681 = vrot.slane %v1680, 4
      %v1683 = vshll.u32 %v1586, 16
      %v1685 = vrot.slane %v1683, 5
      %v1686 = vsel %vm301, %v1681, %v1685
      %v1687 = vshrl.u32 %v1586, 16
      %v1689 = vrot.slane %v1687, 4
      %v1690 = vor.u32 %v1689, %v1685
      %v1691 = vrot.slane %v1690, 4
      %v1693 = vshll.u32 %v1587, 16
      %v1695 = vrot.slane %v1693, 5
      %v1696 = vsel %vm301, %v1691, %v1695
      %v1697 = vshrl.u32 %v1587, 16
      %v1699 = vrot.slane %v1697, 4
      %v1700 = vor.u32 %v1699, %v1695
      %v1701 = vrot.slane %v1700, 4
      %v1703 = vshll.u32 %v1588, 16
      %v1705 = vrot.slane %v1703, 5
      %v1706 = vsel %vm301, %v1701, %v1705
      %v1708 = vshrl.u32 %v1589, 16
      %v1710 = vrot.slane %v1708, 4
      %v1711 = vshll.u32 %v1589, 16
      %v1713 = vrot.slane %v1711, 5
      %v1714 = vor.u32 %v1710, %v1713
      %v1715 = vrot.slane %v1714, 4
      %v1717 = vshll.u32 %v1590, 16
      %v1719 = vrot.slane %v1717, 5
      %v1720 = vsel %vm301, %v1715, %v1719
      %v1721 = vshrl.u32 %v1590, 16
      %v1723 = vrot.slane %v1721, 4
      %v1724 = vor.u32 %v1723, %v1719
      %v1725 = vrot.slane %v1724, 4
      %v1727 = vshll.u32 %v1591, 16
      %v1729 = vrot.slane %v1727, 5
      %v1730 = vsel %vm301, %v1725, %v1729
      %v1731 = vshrl.u32 %v1591, 16
      %v1733 = vrot.slane %v1731, 4
      %v1734 = vor.u32 %v1733, %v1729
      %v1735 = vrot.slane %v1734, 4
      %v1737 = vshll.u32 %v1592, 16
      %v1739 = vrot.slane %v1737, 5
      %v1740 = vsel %vm301, %v1735, %v1739
      %v1741 = vshrl.u32 %v1592, 16
      %v1743 = vrot.slane %v1741, 4
      %v1744 = vor.u32 %v1743, %v1739
      %v1745 = vrot.slane %v1744, 4
      %v1747 = vshll.u32 %v1593, 16
      %v1749 = vrot.slane %v1747, 5
      %v1750 = vsel %vm301, %v1745, %v1749
      %v1752 = vshrl.u32 %v1594, 16
      %v1754 = vrot.slane %v1752, 4
      %v1755 = vshll.u32 %v1594, 16
      %v1757 = vrot.slane %v1755, 5
      %v1758 = vor.u32 %v1754, %v1757
      %v1759 = vrot.slane %v1758, 4
      %v1761 = vshll.u32 %v1595, 16
      %v1763 = vrot.slane %v1761, 5
      %v1764 = vsel %vm301, %v1759, %v1763
      %v1765 = vshrl.u32 %v1595, 16
      %v1767 = vrot.slane %v1765, 4
      %v1768 = vor.u32 %v1767, %v1763
      %v1769 = vrot.slane %v1768, 4
      %v1771 = vshll.u32 %v1596, 16
      %v1773 = vrot.slane %v1771, 5
      %v1774 = vsel %vm301, %v1769, %v1773
      %v1775 = vshrl.u32 %v1596, 16
      %v1777 = vrot.slane %v1775, 4
      %v1778 = vor.u32 %v1777, %v1773
      %v1779 = vrot.slane %v1778, 4
      %v1781 = vshll.u32 %v1597, 16
      %v1783 = vrot.slane %v1781, 5
      %v1784 = vsel %vm301, %v1779, %v1783
      %v1785 = vshrl.u32 %v1597, 16
      %v1787 = vrot.slane %v1785, 4
      %v1788 = vor.u32 %v1787, %v1783
      %v1789 = vrot.slane %v1788, 4
      %v1791 = vshll.u32 %v1598, 16
      %v1793 = vrot.slane %v1791, 5
      %v1794 = vsel %vm301, %v1789, %v1793
      %v1796 = vshrl.u32 %v1599, 16
      %v1798 = vrot.slane %v1796, 4
      %v1799 = vshll.u32 %v1599, 16
      %v1801 = vrot.slane %v1799, 5
      %v1802 = vor.u32 %v1798, %v1801
      %v1803 = vrot.slane %v1802, 4
      %v1805 = vshll.u32 %v1600, 16
      %v1807 = vrot.slane %v1805, 5
      %v1808 = vsel %vm301, %v1803, %v1807
      %v1809 = vshrl.u32 %v1600, 16
      %v1811 = vrot.slane %v1809, 4
      %v1812 = vor.u32 %v1811, %v1807
      %v1813 = vrot.slane %v1812, 4
      %v1815 = vshll.u32 %v1601, 16
      %v1817 = vrot.slane %v1815, 5
      %v1818 = vsel %vm301, %v1813, %v1817
      %v1819 = vshrl.u32 %v1601, 16
      %v1821 = vrot.slane %v1819, 4
      %v1822 = vor.u32 %v1821, %v1817
      %v1823 = vrot.slane %v1822, 4
      %v1825 = vshll.u32 %v1602, 16
      %v1827 = vrot.slane %v1825, 5
      %v1828 = vsel %vm301, %v1823, %v1827
      %v1829 = vshrl.u32 %v1602, 16
      %v1831 = vrot.slane %v1829, 4
      %v1832 = vor.u32 %v1831, %v1827
      %v1833 = vrot.slane %v1832, 4
      %v1835 = vshll.u32 %v1603, 16
      %v1837 = vrot.slane %v1835, 5
      %v1838 = vsel %vm301, %v1833, %v1837
      %v1840 = vshrl.u32 %v1604, 16
      %v1842 = vrot.slane %v1840, 4
      %v1843 = vshll.u32 %v1604, 16
      %v1845 = vrot.slane %v1843, 5
      %v1846 = vor.u32 %v1842, %v1845
      %v1847 = vrot.slane %v1846, 4
      %v1849 = vshll.u32 %v1605, 16
      %v1851 = vrot.slane %v1849, 5
      %v1852 = vsel %vm301, %v1847, %v1851
      %v1853 = vshrl.u32 %v1605, 16
      %v1855 = vrot.slane %v1853, 4
      %v1856 = vor.u32 %v1855, %v1851
      %v1857 = vrot.slane %v1856, 4
      %v1859 = vshll.u32 %v1606, 16
      %v1861 = vrot.slane %v1859, 5
      %v1862 = vsel %vm301, %v1857, %v1861
      %v1863 = vshrl.u32 %v1606, 16
      %v1865 = vrot.slane %v1863, 4
      %v1866 = vor.u32 %v1865, %v1861
      %v1867 = vrot.slane %v1866, 4
      %v1869 = vshll.u32 %v1607, 16
      %v1871 = vrot.slane %v1869, 5
      %v1872 = vsel %vm301, %v1867, %v1871
      %v1873 = vshrl.u32 %v1607, 16
      %v1875 = vrot.slane %v1873, 4
      %v1876 = vor.u32 %v1875, %v1871
      %v1877 = vrot.slane %v1876, 4
      %v1879 = vshll.u32 %v1608, 16
      %v1881 = vrot.slane %v1879, 5
      %v1882 = vsel %vm301, %v1877, %v1881
      %v1884 = vshrl.u32 %v1609, 16
      %v1886 = vrot.slane %v1884, 4
      %v1887 = vshll.u32 %v1609, 16
      %v1889 = vrot.slane %v1887, 5
      %v1890 = vor.u32 %v1886, %v1889
      %v1891 = vrot.slane %v1890, 4
      %v1893 = vshll.u32 %v1610, 16
      %v1895 = vrot.slane %v1893, 5
      %v1896 = vsel %vm301, %v1891, %v1895
      %v1897 = vshrl.u32 %v1610, 16
      %v1899 = vrot.slane %v1897, 4
      %v1900 = vor.u32 %v1899, %v1895
      %v1901 = vrot.slane %v1900, 4
      %v1903 = vshll.u32 %v1611, 16
      %v1905 = vrot.slane %v1903, 5
      %v1906 = vsel %vm301, %v1901, %v1905
      %v1907 = vshrl.u32 %v1611, 16
      %v1909 = vrot.slane %v1907, 4
      %v1910 = vor.u32 %v1909, %v1905
      %v1911 = vrot.slane %v1910, 4
      %v1913 = vshll.u32 %v1612, 16
      %v1915 = vrot.slane %v1913, 5
      %v1916 = vsel %vm301, %v1911, %v1915
      %v1917 = vshrl.u32 %v1612, 16
      %v1919 = vrot.slane %v1917, 4
      %v1920 = vor.u32 %v1919, %v1915
      %v1921 = vrot.slane %v1920, 4
      %v1923 = vshll.u32 %v1613, 16
      %v1925 = vrot.slane %v1923, 5
      %v1926 = vsel %vm301, %v1921, %v1925
      %v1928 = vshrl.u32 %v1614, 16
      %v1930 = vrot.slane %v1928, 4
      %v1931 = vshll.u32 %v1614, 16
      %v1933 = vrot.slane %v1931, 5
      %v1934 = vor.u32 %v1930, %v1933
      %v1935 = vrot.slane %v1934, 4
      %v1937 = vshll.u32 %v1615, 16
      %v1939 = vrot.slane %v1937, 5
      %v1940 = vsel %vm301, %v1935, %v1939
      %v1941 = vshrl.u32 %v1615, 16
      %v1943 = vrot.slane %v1941, 4
      %v1944 = vor.u32 %v1943, %v1939
      %v1945 = vrot.slane %v1944, 4
      %v1947 = vshll.u32 %v1616, 16
      %v1949 = vrot.slane %v1947, 5
      %v1950 = vsel %vm301, %v1945, %v1949
      %v1951 = vshrl.u32 %v1616, 16
      %v1953 = vrot.slane %v1951, 4
      %v1954 = vor.u32 %v1953, %v1949
      %v1955 = vrot.slane %v1954, 4
      %v1957 = vshll.u32 %v1617, 16
      %v1959 = vrot.slane %v1957, 5
      %v1960 = vsel %vm301, %v1955, %v1959
      %v1961 = vshrl.u32 %v1617, 16
      %v1963 = vrot.slane %v1961, 4
      %v1964 = vor.u32 %v1963, %v1959
      %v1965 = vrot.slane %v1964, 4
      %v1967 = vshll.u32 %v1618, 16
      %v1969 = vrot.slane %v1967, 5
      %v1970 = vsel %vm301, %v1965, %v1969
      %s1971 = scalar_lea.vmem %s1, 24
      %v1972 = vld [vmem:[%s1971] sm:$0xf]
      %v1973 = vld [vmem:[%s1971 + $0x4] sm:$0xf]
      %v1974 = vunpack.c.l.b16 %v1632
      %v1975 = vunpack.c.l.b16 %v1642
      %v1976 = vunpack.c.l.b16 %v1652
      %v1977 = vunpack.c.l.b16 %v1662
      %v1978 = vunpack.c.l.b16 %v1676
      %v1979 = vunpack.c.l.b16 %v1686
      %v1980 = vunpack.c.l.b16 %v1696
      %v1981 = vunpack.c.l.b16 %v1706
      %v1982 = vunpack.c.l.b16 %v1720
      %v1983 = vunpack.c.l.b16 %v1730
      %v1984 = vunpack.c.l.b16 %v1740
      %v1985 = vunpack.c.l.b16 %v1750
      %v1986 = vunpack.c.l.b16 %v1764
      %v1987 = vunpack.c.l.b16 %v1774
      %v1988 = vunpack.c.l.b16 %v1784
      %v1989 = vunpack.c.l.b16 %v1794
      %v1990 = vunpack.c.l.b16 %v1808
      %v1991 = vunpack.c.l.b16 %v1818
      %v1992 = vunpack.c.l.b16 %v1828
      %v1993 = vunpack.c.l.b16 %v1838
      %v1994 = vunpack.c.l.b16 %v1852
      %v1995 = vunpack.c.l.b16 %v1862
      %v1996 = vunpack.c.l.b16 %v1872
      %v1997 = vunpack.c.l.b16 %v1882
      %v1998 = vunpack.c.l.b16 %v1896
      %v1999 = vunpack.c.l.b16 %v1906
      %v2000 = vunpack.c.l.b16 %v1916
      %v2001 = vunpack.c.l.b16 %v1926
      %v2002 = vunpack.c.l.b16 %v1940
      %v2003 = vunpack.c.l.b16 %v1950
      %v2004 = vunpack.c.l.b16 %v1960
      %v2005 = vunpack.c.l.b16 %v1970
      %v2006 = vpack.c.b16 %v1975, %v1974
      %v2007 = vpack.c.b16 %v1977, %v1976
      %v2008 = vpack.c.b16 %v1979, %v1978
      %v2009 = vpack.c.b16 %v1981, %v1980
      %v2010 = vpack.c.b16 %v1983, %v1982
      %v2011 = vpack.c.b16 %v1985, %v1984
      %v2012 = vpack.c.b16 %v1987, %v1986
      %v2013 = vpack.c.b16 %v1989, %v1988
      %v2014 = vpack.c.b16 %v1991, %v1990
      %v2015 = vpack.c.b16 %v1993, %v1992
      %v2016 = vpack.c.b16 %v1995, %v1994
      %v2017 = vpack.c.b16 %v1997, %v1996
      %v2018 = vpack.c.b16 %v1999, %v1998
      %v2019 = vpack.c.b16 %v2001, %v2000
      %v2020 = vpack.c.b16 %v2003, %v2002
      %v2021 = vpack.c.b16 %v2005, %v2004
      %v2024 = vunpack.c.l.b16 %v1972
      %v2025 = vunpack.c.l.b16 %v1973
      %v2026 = vpack.c.b16 %v2025, %v2024
      %v2029 = vsel %vm711, %v2006, 0
      %v2032 = vsel %vm711, %v2007, 0
      %v2035 = vsel %vm711, %v2008, 0
      %v2038 = vsel %vm711, %v2009, 0
      %v2041 = vsel %vm711, %v2010, 0
      %v2044 = vsel %vm711, %v2011, 0
      %v2047 = vsel %vm711, %v2012, 0
      %v2050 = vsel %vm711, %v2013, 0
      %v2053 = vsel %vm711, %v2014, 0
      %v2056 = vsel %vm711, %v2015, 0
      %v2059 = vsel %vm711, %v2016, 0
      %v2062 = vsel %vm711, %v2017, 0
      %v2065 = vsel %vm711, %v2018, 0
      %v2068 = vsel %vm711, %v2019, 0
      %v2071 = vsel %vm711, %v2020, 0
      %v2074 = vsel %vm711, %v2021, 0
      %2076 = vmatprep.subr.bf16.mxu0 0
      %2077 = vmatpush1.bf16.msra.mxu0 %v2026
      %2078 = vmatprep.subr.bf16.mxu0 0
      %2079 = vmatpush1.bf16.msra.mxu0 0
      %2080 = vmatprep.subr.bf16.mxu0 0
      %2081 = vmatpush1.bf16.msra.mxu0 0
      %2082 = vmatprep.subr.bf16.mxu0 0
      %2083 = vmatpush1.bf16.msra.mxu0 0
      %2084 = vmatprep.subr.bf16.mxu0 0
      %2085 = vmatpush1.bf16.msra.mxu0 0
      %2086 = vmatprep.subr.bf16.mxu0 0
      %2087 = vmatpush1.bf16.msra.mxu0 0
      %2088 = vmatprep.subr.bf16.mxu0 0
      %2089 = vmatpush1.bf16.msra.mxu0 0
      %2090 = vmatprep.subr.bf16.mxu0 0
      %2091 = vmatpush1.bf16.msra.mxu0 0
      %2092 = vmatprep.subr.bf16.mxu0 0
      %2093 = vmatpush1.bf16.msra.mxu0 0
      %2094 = vmatprep.subr.bf16.mxu0 0
      %2095 = vmatpush1.bf16.msra.mxu0 0
      %2096 = vmatprep.subr.bf16.mxu0 0
      %2097 = vmatpush1.bf16.msra.mxu0 0
      %2098 = vmatprep.subr.bf16.mxu0 0
      %2099 = vmatpush1.bf16.msra.mxu0 0
      %2100 = vmatprep.subr.bf16.mxu0 0
      %2101 = vmatpush1.bf16.msra.mxu0 0
      %2102 = vmatprep.subr.bf16.mxu0 0
      %2103 = vmatpush1.bf16.msra.mxu0 0
      %2104 = vmatprep.subr.bf16.mxu0 0
      %2105 = vmatpush1.bf16.msra.mxu0 0
      %2106 = vmatprep.subr.bf16.mxu0 0
      %2107 = vmatpush1.bf16.msra.mxu0 0
      %2108 = vmatprep.mubr.bf16.mxu0 0
      %2109 = vmatmul.mubr.bf16.gmra.mrb[0].mxu0 %v2029
      %v2110 = vpop.f32.mrb[0].mxu0
      %v2111 = vadd.f32 0.0, %v2110
      %v2112 = vpop.f32.mrb[0].mxu0
      %v2113 = vpop.f32.mrb[0].mxu0
      %v2114 = vadd.f32 0.0, %v2113
      %v2115 = vpop.f32.mrb[0].mxu0
      %2116 = vmatprep.mubr.bf16.mxu0 0
      %2117 = vmatmul.mubr.bf16.gmra.mrb[0].mxu0 %v2032
      %v2118 = vpop.f32.mrb[0].mxu0
      %v2119 = vadd.f32 0.0, %v2118
      %v2120 = vpop.f32.mrb[0].mxu0
      %v2121 = vpop.f32.mrb[0].mxu0
      %v2122 = vadd.f32 0.0, %v2121
      %v2123 = vpop.f32.mrb[0].mxu0
      %2124 = vmatprep.mubr.bf16.mxu0 0
      %2125 = vmatmul.mubr.bf16.gmra.mrb[0].mxu0 %v2035
      %v2126 = vpop.f32.mrb[0].mxu0
      %v2127 = vadd.f32 0.0, %v2126
      %v2128 = vpop.f32.mrb[0].mxu0
      %v2129 = vpop.f32.mrb[0].mxu0
      %v2130 = vadd.f32 0.0, %v2129
      %v2131 = vpop.f32.mrb[0].mxu0
      %2132 = vmatprep.mubr.bf16.mxu0 0
      %2133 = vmatmul.mubr.bf16.gmra.mrb[0].mxu0 %v2038
      %v2134 = vpop.f32.mrb[0].mxu0
      %v2135 = vadd.f32 0.0, %v2134
      %v2136 = vpop.f32.mrb[0].mxu0
      %v2137 = vpop.f32.mrb[0].mxu0
      %v2138 = vadd.f32 0.0, %v2137
      %v2139 = vpop.f32.mrb[0].mxu0
      %2140 = vmatprep.mubr.bf16.mxu0 0
      %2141 = vmatmul.mubr.bf16.gmra.mrb[0].mxu0 %v2041
      %v2142 = vpop.f32.mrb[0].mxu0
      %v2143 = vadd.f32 0.0, %v2142
      %v2144 = vpop.f32.mrb[0].mxu0
      %v2145 = vpop.f32.mrb[0].mxu0
      %v2146 = vadd.f32 0.0, %v2145
      %v2147 = vpop.f32.mrb[0].mxu0
      %2148 = vmatprep.mubr.bf16.mxu0 0
      %2149 = vmatmul.mubr.bf16.gmra.mrb[0].mxu0 %v2044
      %v2150 = vpop.f32.mrb[0].mxu0
      %v2151 = vadd.f32 0.0, %v2150
      %v2152 = vpop.f32.mrb[0].mxu0
      %v2153 = vpop.f32.mrb[0].mxu0
      %v2154 = vadd.f32 0.0, %v2153
      %v2155 = vpop.f32.mrb[0].mxu0
      %2156 = vmatprep.mubr.bf16.mxu0 0
      %2157 = vmatmul.mubr.bf16.gmra.mrb[0].mxu0 %v2047
      %v2158 = vpop.f32.mrb[0].mxu0
      %v2159 = vadd.f32 0.0, %v2158
      %v2160 = vpop.f32.mrb[0].mxu0
      %v2161 = vpop.f32.mrb[0].mxu0
      %v2162 = vadd.f32 0.0, %v2161
      %v2163 = vpop.f32.mrb[0].mxu0
      %2164 = vmatprep.mubr.bf16.mxu0 0
      %2165 = vmatmul.mubr.bf16.gmra.mrb[0].mxu0 %v2050
      %v2166 = vpop.f32.mrb[0].mxu0
      %v2167 = vadd.f32 0.0, %v2166
      %v2168 = vpop.f32.mrb[0].mxu0
      %v2169 = vpop.f32.mrb[0].mxu0
      %v2170 = vadd.f32 0.0, %v2169
      %v2171 = vpop.f32.mrb[0].mxu0
      %2172 = vmatprep.mubr.bf16.mxu0 0
      %2173 = vmatmul.mubr.bf16.gmra.mrb[0].mxu0 %v2053
      %v2174 = vpop.f32.mrb[0].mxu0
      %v2175 = vadd.f32 0.0, %v2174
      %v2176 = vpop.f32.mrb[0].mxu0
      %v2177 = vpop.f32.mrb[0].mxu0
      %v2178 = vadd.f32 0.0, %v2177
      %v2179 = vpop.f32.mrb[0].mxu0
      %2180 = vmatprep.mubr.bf16.mxu0 0
      %2181 = vmatmul.mubr.bf16.gmra.mrb[0].mxu0 %v2056
      %v2182 = vpop.f32.mrb[0].mxu0
      %v2183 = vadd.f32 0.0, %v2182
      %v2184 = vpop.f32.mrb[0].mxu0
      %v2185 = vpop.f32.mrb[0].mxu0
      %v2186 = vadd.f32 0.0, %v2185
      %v2187 = vpop.f32.mrb[0].mxu0
      %2188 = vmatprep.mubr.bf16.mxu0 0
      %2189 = vmatmul.mubr.bf16.gmra.mrb[0].mxu0 %v2059
      %v2190 = vpop.f32.mrb[0].mxu0
      %v2191 = vadd.f32 0.0, %v2190
      %v2192 = vpop.f32.mrb[0].mxu0
      %v2193 = vpop.f32.mrb[0].mxu0
      %v2194 = vadd.f32 0.0, %v2193
      %v2195 = vpop.f32.mrb[0].mxu0
      %2196 = vmatprep.mubr.bf16.mxu0 0
      %2197 = vmatmul.mubr.bf16.gmra.mrb[0].mxu0 %v2062
      %v2198 = vpop.f32.mrb[0].mxu0
      %v2199 = vadd.f32 0.0, %v2198
      %v2200 = vpop.f32.mrb[0].mxu0
      %v2201 = vpop.f32.mrb[0].mxu0
      %v2202 = vadd.f32 0.0, %v2201
      %v2203 = vpop.f32.mrb[0].mxu0
      %2204 = vmatprep.mubr.bf16.mxu0 0
      %2205 = vmatmul.mubr.bf16.gmra.mrb[0].mxu0 %v2065
      %v2206 = vpop.f32.mrb[0].mxu0
      %v2207 = vadd.f32 0.0, %v2206
      %v2208 = vpop.f32.mrb[0].mxu0
      %v2209 = vpop.f32.mrb[0].mxu0
      %v2210 = vadd.f32 0.0, %v2209
      %v2211 = vpop.f32.mrb[0].mxu0
      %2212 = vmatprep.mubr.bf16.mxu0 0
      %2213 = vmatmul.mubr.bf16.gmra.mrb[0].mxu0 %v2068
      %v2214 = vpop.f32.mrb[0].mxu0
      %v2215 = vadd.f32 0.0, %v2214
      %v2216 = vpop.f32.mrb[0].mxu0
      %v2217 = vpop.f32.mrb[0].mxu0
      %v2218 = vadd.f32 0.0, %v2217
      %v2219 = vpop.f32.mrb[0].mxu0
      %2220 = vmatprep.mubr.bf16.mxu0 0
      %2221 = vmatmul.mubr.bf16.gmra.mrb[0].mxu0 %v2071
      %v2222 = vpop.f32.mrb[0].mxu0
      %v2223 = vadd.f32 0.0, %v2222
      %v2224 = vpop.f32.mrb[0].mxu0
      %v2225 = vpop.f32.mrb[0].mxu0
      %v2226 = vadd.f32 0.0, %v2225
      %v2227 = vpop.f32.mrb[0].mxu0
      %2228 = vmatprep.mubr.bf16.mxu0 0
      %2229 = vmatmul.mubr.bf16.gmra.mrb[0].mxu0 %v2074
      %v2230 = vpop.f32.mrb[0].mxu0
      %v2231 = vadd.f32 0.0, %v2230
      %v2232 = vpop.f32.mrb[0].mxu0
      %v2233 = vpop.f32.mrb[0].mxu0
      %v2234 = vadd.f32 0.0, %v2233
      %v2235 = vpop.f32.mrb[0].mxu0
      %2236 = vdwg.mxu0
      %v2237 = vadd.f32 %v1547, %v2111
      %v2238 = vadd.f32 %v1548, %v2114
      %v2239 = vadd.f32 %v1549, %v2119
      %v2240 = vadd.f32 %v1550, %v2122
      %v2241 = vadd.f32 %v1551, %v2127
      %v2242 = vadd.f32 %v1552, %v2130
      %v2243 = vadd.f32 %v1553, %v2135
      %v2244 = vadd.f32 %v1554, %v2138
      %v2245 = vadd.f32 %v1555, %v2143
      %v2246 = vadd.f32 %v1556, %v2146
      %v2247 = vadd.f32 %v1557, %v2151
      %v2248 = vadd.f32 %v1558, %v2154
      %v2249 = vadd.f32 %v1559, %v2159
      %v2250 = vadd.f32 %v1560, %v2162
      %v2251 = vadd.f32 %v1561, %v2167
      %v2252 = vadd.f32 %v1562, %v2170
      %v2253 = vadd.f32 %v1563, %v2175
      %v2254 = vadd.f32 %v1564, %v2178
      %v2255 = vadd.f32 %v1565, %v2183
      %v2256 = vadd.f32 %v1566, %v2186
      %v2257 = vadd.f32 %v1567, %v2191
      %v2258 = vadd.f32 %v1568, %v2194
      %v2259 = vadd.f32 %v1569, %v2199
      %v2260 = vadd.f32 %v1570, %v2202
      %v2261 = vadd.f32 %v1571, %v2207
      %v2262 = vadd.f32 %v1572, %v2210
      %v2263 = vadd.f32 %v1573, %v2215
      %v2264 = vadd.f32 %v1574, %v2218
      %v2265 = vadd.f32 %v1575, %v2223
      %v2266 = vadd.f32 %v1576, %v2226
      %v2267 = vadd.f32 %v1577, %v2231
      %v2268 = vadd.f32 %v1578, %v2234
      %v2269 = vld [vmem:[%s2] sm:$0x1]
      %v2271 = vlaneseq
      %v2272 = vshrl.u32 %v2271, 7
      %v2273 = vsub.s32 0, %v2272
      %v2274 = vrot.slane %v2269, %v2273
      %v2276 = vadd.f32 %v2237, %v2274
      %v2277 = vadd.f32 %v2238, %v2274
      %v2278 = vadd.f32 %v2239, %v2274
      %v2279 = vadd.f32 %v2240, %v2274
      %v2280 = vadd.f32 %v2241, %v2274
      %v2281 = vadd.f32 %v2242, %v2274
      %v2282 = vadd.f32 %v2243, %v2274
      %v2283 = vadd.f32 %v2244, %v2274
      %v2284 = vadd.f32 %v2245, %v2274
      %v2285 = vadd.f32 %v2246, %v2274
      %v2286 = vadd.f32 %v2247, %v2274
      %v2287 = vadd.f32 %v2248, %v2274
      %v2288 = vadd.f32 %v2249, %v2274
      %v2289 = vadd.f32 %v2250, %v2274
      %v2290 = vadd.f32 %v2251, %v2274
      %v2291 = vadd.f32 %v2252, %v2274
      %v2292 = vadd.f32 %v2253, %v2274
      %v2293 = vadd.f32 %v2254, %v2274
      %v2294 = vadd.f32 %v2255, %v2274
      %v2295 = vadd.f32 %v2256, %v2274
      %v2296 = vadd.f32 %v2257, %v2274
      %v2297 = vadd.f32 %v2258, %v2274
      %v2298 = vadd.f32 %v2259, %v2274
      %v2299 = vadd.f32 %v2260, %v2274
      %v2300 = vadd.f32 %v2261, %v2274
      %v2301 = vadd.f32 %v2262, %v2274
      %v2302 = vadd.f32 %v2263, %v2274
      %v2303 = vadd.f32 %v2264, %v2274
      %v2304 = vadd.f32 %v2265, %v2274
      %v2305 = vadd.f32 %v2266, %v2274
      %v2306 = vadd.f32 %v2267, %v2274
      %v2307 = vadd.f32 %v2268, %v2274
      %v2308 = vpack.c.bf16 %v2277, %v2276
      %v2309 = vpack.c.bf16 %v2279, %v2278
      %v2310 = vpack.c.bf16 %v2281, %v2280
      %v2311 = vpack.c.bf16 %v2283, %v2282
      %v2312 = vpack.c.bf16 %v2285, %v2284
      %v2313 = vpack.c.bf16 %v2287, %v2286
      %v2314 = vpack.c.bf16 %v2289, %v2288
      %v2315 = vpack.c.bf16 %v2291, %v2290
      %v2316 = vpack.c.bf16 %v2293, %v2292
      %v2317 = vpack.c.bf16 %v2295, %v2294
      %v2318 = vpack.c.bf16 %v2297, %v2296
      %v2319 = vpack.c.bf16 %v2299, %v2298
      %v2320 = vpack.c.bf16 %v2301, %v2300
      %v2321 = vpack.c.bf16 %v2303, %v2302
      %v2322 = vpack.c.bf16 %v2305, %v2304
      %v2323 = vpack.c.bf16 %v2307, %v2306
      %v2340 = vunpack.c.l.b16 %v2308
      %v2341 = vunpack.c.h.b16 %v2308
      %v2342 = vunpack.c.l.b16 %v2309
      %v2343 = vunpack.c.h.b16 %v2309
      %v2344 = vunpack.c.l.b16 %v2310
      %v2345 = vunpack.c.h.b16 %v2310
      %v2346 = vunpack.c.l.b16 %v2311
      %v2347 = vunpack.c.h.b16 %v2311
      %v2348 = vunpack.c.l.b16 %v2312
      %v2349 = vunpack.c.h.b16 %v2312
      %v2350 = vunpack.c.l.b16 %v2313
      %v2351 = vunpack.c.h.b16 %v2313
      %v2352 = vunpack.c.l.b16 %v2314
      %v2353 = vunpack.c.h.b16 %v2314
      %v2354 = vunpack.c.l.b16 %v2315
      %v2355 = vunpack.c.h.b16 %v2315
      %v2356 = vunpack.c.l.b16 %v2316
      %v2357 = vunpack.c.h.b16 %v2316
      %v2358 = vunpack.c.l.b16 %v2317
      %v2359 = vunpack.c.h.b16 %v2317
      %v2360 = vunpack.c.l.b16 %v2318
      %v2361 = vunpack.c.h.b16 %v2318
      %v2362 = vunpack.c.l.b16 %v2319
      %v2363 = vunpack.c.h.b16 %v2319
      %v2364 = vunpack.c.l.b16 %v2320
      %v2365 = vunpack.c.h.b16 %v2320
      %v2366 = vunpack.c.l.b16 %v2321
      %v2367 = vunpack.c.h.b16 %v2321
      %v2368 = vunpack.c.l.b16 %v2322
      %v2369 = vunpack.c.h.b16 %v2322
      %v2370 = vunpack.c.l.b16 %v2323
      %v2371 = vunpack.c.h.b16 %v2323
      %v2372 = vpack.c.b16 %v2340, %v2340
      %v2373 = vpack.c.b16 %v2341, %v2341
      %v2374 = vpack.c.b16 %v2342, %v2342
      %v2375 = vpack.c.b16 %v2343, %v2343
      %v2376 = vpack.c.b16 %v2344, %v2344
      %v2377 = vpack.c.b16 %v2345, %v2345
      %v2378 = vpack.c.b16 %v2346, %v2346
      %v2379 = vpack.c.b16 %v2347, %v2347
      %v2380 = vpack.c.b16 %v2348, %v2348
      %v2381 = vpack.c.b16 %v2349, %v2349
      %v2382 = vpack.c.b16 %v2350, %v2350
      %v2383 = vpack.c.b16 %v2351, %v2351
      %v2384 = vpack.c.b16 %v2352, %v2352
      %v2385 = vpack.c.b16 %v2353, %v2353
      %v2386 = vpack.c.b16 %v2354, %v2354
      %v2387 = vpack.c.b16 %v2355, %v2355
      %v2388 = vpack.c.b16 %v2356, %v2356
      %v2389 = vpack.c.b16 %v2357, %v2357
      %v2390 = vpack.c.b16 %v2358, %v2358
      %v2391 = vpack.c.b16 %v2359, %v2359
      %v2392 = vpack.c.b16 %v2360, %v2360
      %v2393 = vpack.c.b16 %v2361, %v2361
      %v2394 = vpack.c.b16 %v2362, %v2362
      %v2395 = vpack.c.b16 %v2363, %v2363
      %v2396 = vpack.c.b16 %v2364, %v2364
      %v2397 = vpack.c.b16 %v2365, %v2365
      %v2398 = vpack.c.b16 %v2366, %v2366
      %v2399 = vpack.c.b16 %v2367, %v2367
      %v2400 = vpack.c.b16 %v2368, %v2368
      %v2401 = vpack.c.b16 %v2369, %v2369
      %v2402 = vpack.c.b16 %v2370, %v2370
      %v2403 = vpack.c.b16 %v2371, %v2371
      %vm2436 = vcmask 60416
      %2437 = vst.msk [vmem:[%s244] sm:$0xf] %vm2436, %v2372
      %2438 = vst.msk [vmem:[%s244 + $0x4] sm:$0xf] %vm2436, %v2373
      %2439 = vst.msk [vmem:[%s244 + $0x8] sm:$0xf] %vm2436, %v2374
      %2440 = vst.msk [vmem:[%s244 + $0xc] sm:$0xf] %vm2436, %v2375
      %2441 = vst.msk [vmem:[%s244 + $0x10] sm:$0xf] %vm2436, %v2376
      %2442 = vst.msk [vmem:[%s244 + $0x14] sm:$0xf] %vm2436, %v2377
      %2443 = vst.msk [vmem:[%s244 + $0x18] sm:$0xf] %vm2436, %v2378
      %2444 = vst.msk [vmem:[%s244 + $0x1c] sm:$0xf] %vm2436, %v2379
      %2445 = vst.msk [vmem:[%s244 + $0x20] sm:$0xf] %vm2436, %v2380
      %2446 = vst.msk [vmem:[%s244 + $0x24] sm:$0xf] %vm2436, %v2381
      %2447 = vst.msk [vmem:[%s244 + $0x28] sm:$0xf] %vm2436, %v2382
      %2448 = vst.msk [vmem:[%s244 + $0x2c] sm:$0xf] %vm2436, %v2383
      %2449 = vst.msk [vmem:[%s244 + $0x30] sm:$0xf] %vm2436, %v2384
      %2450 = vst.msk [vmem:[%s244 + $0x34] sm:$0xf] %vm2436, %v2385
      %2451 = vst.msk [vmem:[%s244 + $0x38] sm:$0xf] %vm2436, %v2386
      %2452 = vst.msk [vmem:[%s244 + $0x3c] sm:$0xf] %vm2436, %v2387
      %2453 = vst.msk [vmem:[%s244 + $0x40] sm:$0xf] %vm2436, %v2388
      %2454 = vst.msk [vmem:[%s244 + $0x44] sm:$0xf] %vm2436, %v2389
      %2455 = vst.msk [vmem:[%s244 + $0x48] sm:$0xf] %vm2436, %v2390
      %2456 = vst.msk [vmem:[%s244 + $0x4c] sm:$0xf] %vm2436, %v2391
      %2457 = vst.msk [vmem:[%s244 + $0x50] sm:$0xf] %vm2436, %v2392
      %2458 = vst.msk [vmem:[%s244 + $0x54] sm:$0xf] %vm2436, %v2393
      %2459 = vst.msk [vmem:[%s244 + $0x58] sm:$0xf] %vm2436, %v2394
      %2460 = vst.msk [vmem:[%s244 + $0x5c] sm:$0xf] %vm2436, %v2395
      %2461 = vst.msk [vmem:[%s244 + $0x60] sm:$0xf] %vm2436, %v2396
      %2462 = vst.msk [vmem:[%s244 + $0x64] sm:$0xf] %vm2436, %v2397
      %2463 = vst.msk [vmem:[%s244 + $0x68] sm:$0xf] %vm2436, %v2398
      %2464 = vst.msk [vmem:[%s244 + $0x6c] sm:$0xf] %vm2436, %v2399
      %2465 = vst.msk [vmem:[%s244 + $0x70] sm:$0xf] %vm2436, %v2400
      %2466 = vst.msk [vmem:[%s244 + $0x74] sm:$0xf] %vm2436, %v2401
      %2467 = vst.msk [vmem:[%s244 + $0x78] sm:$0xf] %vm2436, %v2402
      %2468 = vst.msk [vmem:[%s244 + $0x7c] sm:$0xf] %vm2436, %v2403
      %vm2469 = vcmask 64512
      %v2470 = vsel %vm2469, %v2276, 0.0
      %v2471 = vsel %vm2469, %v2277, 0.0
      %v2472 = vadd.f32 %v2470, %v2471
      %v2473 = vsel %vm2469, %v2278, 0.0
      %v2474 = vadd.f32 %v2472, %v2473
      %v2475 = vsel %vm2469, %v2279, 0.0
      %v2476 = vadd.f32 %v2474, %v2475
      %v2477 = vsel %vm2469, %v2280, 0.0
      %v2478 = vadd.f32 %v2476, %v2477
      %v2479 = vsel %vm2469, %v2281, 0.0
      %v2480 = vadd.f32 %v2478, %v2479
      %v2481 = vsel %vm2469, %v2282, 0.0
      %v2482 = vadd.f32 %v2480, %v2481
      %v2483 = vsel %vm2469, %v2283, 0.0
      %v2484 = vadd.f32 %v2482, %v2483
      %v2485 = vsel %vm2469, %v2284, 0.0
      %v2486 = vadd.f32 %v2484, %v2485
      %v2487 = vsel %vm2469, %v2285, 0.0
      %v2488 = vadd.f32 %v2486, %v2487
      %v2489 = vsel %vm2469, %v2286, 0.0
      %v2490 = vadd.f32 %v2488, %v2489
      %v2491 = vsel %vm2469, %v2287, 0.0
      %v2492 = vadd.f32 %v2490, %v2491
      %v2493 = vsel %vm2469, %v2288, 0.0
      %v2494 = vadd.f32 %v2492, %v2493
      %v2495 = vsel %vm2469, %v2289, 0.0
      %v2496 = vadd.f32 %v2494, %v2495
      %v2497 = vsel %vm2469, %v2290, 0.0
      %v2498 = vadd.f32 %v2496, %v2497
      %v2499 = vsel %vm2469, %v2291, 0.0
      %v2500 = vadd.f32 %v2498, %v2499
      %v2501 = vsel %vm2469, %v2292, 0.0
      %v2502 = vadd.f32 %v2500, %v2501
      %v2503 = vsel %vm2469, %v2293, 0.0
      %v2504 = vadd.f32 %v2502, %v2503
      %v2505 = vsel %vm2469, %v2294, 0.0
      %v2506 = vadd.f32 %v2504, %v2505
      %v2507 = vsel %vm2469, %v2295, 0.0
      %v2508 = vadd.f32 %v2506, %v2507
      %v2509 = vsel %vm2469, %v2296, 0.0
      %v2510 = vadd.f32 %v2508, %v2509
      %v2511 = vsel %vm2469, %v2297, 0.0
      %v2512 = vadd.f32 %v2510, %v2511
      %v2513 = vsel %vm2469, %v2298, 0.0
      %v2514 = vadd.f32 %v2512, %v2513
      %v2515 = vsel %vm2469, %v2299, 0.0
      %v2516 = vadd.f32 %v2514, %v2515
      %v2517 = vsel %vm2469, %v2300, 0.0
      %v2518 = vadd.f32 %v2516, %v2517
      %v2519 = vsel %vm2469, %v2301, 0.0
      %v2520 = vadd.f32 %v2518, %v2519
      %v2521 = vsel %vm2469, %v2302, 0.0
      %v2522 = vadd.f32 %v2520, %v2521
      %v2523 = vsel %vm2469, %v2303, 0.0
      %v2524 = vadd.f32 %v2522, %v2523
      %v2525 = vsel %vm2469, %v2304, 0.0
      %v2526 = vadd.f32 %v2524, %v2525
      %v2527 = vsel %vm2469, %v2305, 0.0
      %v2528 = vadd.f32 %v2526, %v2527
      %v2529 = vsel %vm2469, %v2306, 0.0
      %v2530 = vadd.f32 %v2528, %v2529
      %v2531 = vsel %vm2469, %v2307, 0.0
      %v2532 = vadd.f32 %v2530, %v2531
      %v2533 = vrot.slane %v2532, 4
      %v2534 = vadd.f32 %v2532, %v2533
      %v2535 = vrot.slane %v2534, 2
      %v2536 = vadd.f32 %v2534, %v2535
      %v2537 = vrot.slane %v2536, 1
      %v2538 = vadd.f32 %v2536, %v2537
      %v2539 = vmul.f32 %v2538, 0.00390625
      %v2540 = vsub.f32 %v2276, %v2539
      %v2541 = vsub.f32 %v2277, %v2539
      %v2542 = vsub.f32 %v2278, %v2539
      %v2543 = vsub.f32 %v2279, %v2539
      %v2544 = vsub.f32 %v2280, %v2539
      %v2545 = vsub.f32 %v2281, %v2539
      %v2546 = vsub.f32 %v2282, %v2539
      %v2547 = vsub.f32 %v2283, %v2539
      %v2548 = vsub.f32 %v2284, %v2539
      %v2549 = vsub.f32 %v2285, %v2539
      %v2550 = vsub.f32 %v2286, %v2539
      %v2551 = vsub.f32 %v2287, %v2539
      %v2552 = vsub.f32 %v2288, %v2539
      %v2553 = vsub.f32 %v2289, %v2539
      %v2554 = vsub.f32 %v2290, %v2539
      %v2555 = vsub.f32 %v2291, %v2539
      %v2556 = vsub.f32 %v2292, %v2539
      %v2557 = vsub.f32 %v2293, %v2539
      %v2558 = vsub.f32 %v2294, %v2539
      %v2559 = vsub.f32 %v2295, %v2539
      %v2560 = vsub.f32 %v2296, %v2539
      %v2561 = vsub.f32 %v2297, %v2539
      %v2562 = vsub.f32 %v2298, %v2539
      %v2563 = vsub.f32 %v2299, %v2539
      %v2564 = vsub.f32 %v2300, %v2539
      %v2565 = vsub.f32 %v2301, %v2539
      %v2566 = vsub.f32 %v2302, %v2539
      %v2567 = vsub.f32 %v2303, %v2539
      %v2568 = vsub.f32 %v2304, %v2539
      %v2569 = vsub.f32 %v2305, %v2539
      %v2570 = vsub.f32 %v2306, %v2539
      %v2571 = vsub.f32 %v2307, %v2539
      %v2572 = vmul.f32 %v2540, %v2540
      %v2573 = vmul.f32 %v2541, %v2541
      %v2574 = vmul.f32 %v2542, %v2542
      %v2575 = vmul.f32 %v2543, %v2543
      %v2576 = vmul.f32 %v2544, %v2544
      %v2577 = vmul.f32 %v2545, %v2545
      %v2578 = vmul.f32 %v2546, %v2546
      %v2579 = vmul.f32 %v2547, %v2547
      %v2580 = vmul.f32 %v2548, %v2548
      %v2581 = vmul.f32 %v2549, %v2549
      %v2582 = vmul.f32 %v2550, %v2550
      %v2583 = vmul.f32 %v2551, %v2551
      %v2584 = vmul.f32 %v2552, %v2552
      %v2585 = vmul.f32 %v2553, %v2553
      %v2586 = vmul.f32 %v2554, %v2554
      %v2587 = vmul.f32 %v2555, %v2555
      %v2588 = vmul.f32 %v2556, %v2556
      %v2589 = vmul.f32 %v2557, %v2557
      %v2590 = vmul.f32 %v2558, %v2558
      %v2591 = vmul.f32 %v2559, %v2559
      %v2592 = vmul.f32 %v2560, %v2560
      %v2593 = vmul.f32 %v2561, %v2561
      %v2594 = vmul.f32 %v2562, %v2562
      %v2595 = vmul.f32 %v2563, %v2563
      %v2596 = vmul.f32 %v2564, %v2564
      %v2597 = vmul.f32 %v2565, %v2565
      %v2598 = vmul.f32 %v2566, %v2566
      %v2599 = vmul.f32 %v2567, %v2567
      %v2600 = vmul.f32 %v2568, %v2568
      %v2601 = vmul.f32 %v2569, %v2569
      %v2602 = vmul.f32 %v2570, %v2570
      %v2603 = vmul.f32 %v2571, %v2571
      %v2604 = vsel %vm2469, %v2572, 0.0
      %v2605 = vsel %vm2469, %v2573, 0.0
      %v2606 = vadd.f32 %v2604, %v2605
      %v2607 = vsel %vm2469, %v2574, 0.0
      %v2608 = vadd.f32 %v2606, %v2607
      %v2609 = vsel %vm2469, %v2575, 0.0
      %v2610 = vadd.f32 %v2608, %v2609
      %v2611 = vsel %vm2469, %v2576, 0.0
      %v2612 = vadd.f32 %v2610, %v2611
      %v2613 = vsel %vm2469, %v2577, 0.0
      %v2614 = vadd.f32 %v2612, %v2613
      %v2615 = vsel %vm2469, %v2578, 0.0
      %v2616 = vadd.f32 %v2614, %v2615
      %v2617 = vsel %vm2469, %v2579, 0.0
      %v2618 = vadd.f32 %v2616, %v2617
      %v2619 = vsel %vm2469, %v2580, 0.0
      %v2620 = vadd.f32 %v2618, %v2619
      %v2621 = vsel %vm2469, %v2581, 0.0
      %v2622 = vadd.f32 %v2620, %v2621
      %v2623 = vsel %vm2469, %v2582, 0.0
      %v2624 = vadd.f32 %v2622, %v2623
      %v2625 = vsel %vm2469, %v2583, 0.0
      %v2626 = vadd.f32 %v2624, %v2625
      %v2627 = vsel %vm2469, %v2584, 0.0
      %v2628 = vadd.f32 %v2626, %v2627
      %v2629 = vsel %vm2469, %v2585, 0.0
      %v2630 = vadd.f32 %v2628, %v2629
      %v2631 = vsel %vm2469, %v2586, 0.0
      %v2632 = vadd.f32 %v2630, %v2631
      %v2633 = vsel %vm2469, %v2587, 0.0
      %v2634 = vadd.f32 %v2632, %v2633
      %v2635 = vsel %vm2469, %v2588, 0.0
      %v2636 = vadd.f32 %v2634, %v2635
      %v2637 = vsel %vm2469, %v2589, 0.0
      %v2638 = vadd.f32 %v2636, %v2637
      %v2639 = vsel %vm2469, %v2590, 0.0
      %v2640 = vadd.f32 %v2638, %v2639
      %v2641 = vsel %vm2469, %v2591, 0.0
      %v2642 = vadd.f32 %v2640, %v2641
      %v2643 = vsel %vm2469, %v2592, 0.0
      %v2644 = vadd.f32 %v2642, %v2643
      %v2645 = vsel %vm2469, %v2593, 0.0
      %v2646 = vadd.f32 %v2644, %v2645
      %v2647 = vsel %vm2469, %v2594, 0.0
      %v2648 = vadd.f32 %v2646, %v2647
      %v2649 = vsel %vm2469, %v2595, 0.0
      %v2650 = vadd.f32 %v2648, %v2649
      %v2651 = vsel %vm2469, %v2596, 0.0
      %v2652 = vadd.f32 %v2650, %v2651
      %v2653 = vsel %vm2469, %v2597, 0.0
      %v2654 = vadd.f32 %v2652, %v2653
      %v2655 = vsel %vm2469, %v2598, 0.0
      %v2656 = vadd.f32 %v2654, %v2655
      %v2657 = vsel %vm2469, %v2599, 0.0
      %v2658 = vadd.f32 %v2656, %v2657
      %v2659 = vsel %vm2469, %v2600, 0.0
      %v2660 = vadd.f32 %v2658, %v2659
      %v2661 = vsel %vm2469, %v2601, 0.0
      %v2662 = vadd.f32 %v2660, %v2661
      %v2663 = vsel %vm2469, %v2602, 0.0
      %v2664 = vadd.f32 %v2662, %v2663
      %v2665 = vsel %vm2469, %v2603, 0.0
      %v2666 = vadd.f32 %v2664, %v2665
      %v2667 = vrot.slane %v2666, 4
      %v2668 = vadd.f32 %v2666, %v2667
      %v2669 = vrot.slane %v2668, 2
      %v2670 = vadd.f32 %v2668, %v2669
      %v2671 = vrot.slane %v2670, 1
      %v2672 = vadd.f32 %v2670, %v2671
      %vm2673 = vcmask 1040384
      %v2674 = vsel %vm2673, %v2538, %v2672
      %vm2675 = vcmask 58368
      %2676 = vst.msk [vmem:[%s253] sm:$0x3] %vm2675, %v2674
      %s2677 = smul.u32 %s20, 4
      %s2678 = sadd.s32 %s2677, %s21
      %s2679 = smul.u32 32, %s2678
      %p2680 = scmp.lt.s32.totalorder %s2679, 255
      %s2681 = scalar_select %p2680, %s2679, 255
      %s2682 = smul.addr %s2681, 4
      %s2683 = scalar_lea.vmem %s3, %s2682
      %s2684 = smul.u32 %s20, 4
      %s2685 = sadd.s32 %s2684, %s21
      %p2686 = scmp.lt.s32.totalorder %s2685, 7
      %s2687 = scalar_select %p2686, %s2685, 7
      %s2688 = smul.addr %s2687, 2
      %s2689 = scalar_lea.vmem %s4, %s2688
      // Predicated region
      $region33: #{_lambda_.13} parent=31 // pred_check
        %p2690 = pneg %p122
      $region34: #{_lambda_.13} parent=31 // pred_check_branch
        %2692 = sbr.rel (%p2690) target = $region36
      $region35: #{_lambda_.13} parent=31 // pred_region
        %s2693 = smul.u32 %s20, 4
        %s2694 = sadd.s32 %s2693, %s21
        %s2695 = smul.u32 32, %s2694
      $region36: #{_lambda_.13} parent=31 // pred_fallthru
        _
      // Predicated region
      $region37: #{_lambda_.13} parent=31 // pred_check
        %p2696 = pneg %p152
      $region38: #{_lambda_.13} parent=31 // pred_check_branch
        %2698 = sbr.rel (%p2696) target = $region40
      $region39: #{_lambda_.13} parent=31 // pred_region
        %s2699 = smul.u32 %s20, 4
        %s2700 = sadd.s32 %s2699, %s21
      $region40: #{_lambda_.13} parent=31 // pred_fallthru
        _
    $region32: #{_lambda_.13} parent=5 // pred_fallthru
      _
    %p2701 = scmp.le.s32.totalorder 2, %s11
    // Predicated region
    $region41: #{_lambda_.13} parent=5 // pred_check
      %p2702 = pneg %p2701
    $region42: #{_lambda_.13} parent=5 // pred_check_branch
      %2704 = sbr.rel (%p2702) target = $region44
    $region43: #{_lambda_.13} parent=5 // pred_region
      %s2705 = ssub.s32 %s11, 2
      // Predicated region
      $region45: #{_lambda_.13} parent=43 // pred_check
        %p2706 = pneg %p128
      $region46: #{_lambda_.13} parent=43 // pred_check_branch
        %2708 = sbr.rel (%p2706) target = $region48
      $region47: #{_lambda_.13} parent=43 // pred_region
        %s2709 = smul.u32 %s22, 4
        %s2710 = sadd.s32 %s2709, %s23
        %s2711 = smul.u32 32, %s2710
        %p2712 = scmp.lt.s32.totalorder %s2711, 255
        %s2713 = scalar_select %p2712, %s2711, 255
        %s2714 = smul.addr %s2713, 4
        %s2715 = scalar_lea.vmem %s3, %s2714
      $region48: #{_lambda_.13} parent=43 // pred_fallthru
        _
      // Predicated region
      $region49: #{_lambda_.13} parent=43 // pred_check
        %p2716 = pneg %p158
      $region50: #{_lambda_.13} parent=43 // pred_check_branch
        %2718 = sbr.rel (%p2716) target = $region52
      $region51: #{_lambda_.13} parent=43 // pred_region
        %s2719 = smul.u32 %s22, 4
        %s2720 = sadd.s32 %s2719, %s23
        %p2721 = scmp.lt.s32.totalorder %s2720, 7
        %s2722 = scalar_select %p2721, %s2720, 7
        %s2723 = smul.addr %s2722, 2
        %s2724 = scalar_lea.vmem %s4, %s2723
      $region52: #{_lambda_.13} parent=43 // pred_fallthru
        _
    $region44: #{_lambda_.13} parent=5 // pred_fallthru
      _
  $region6: #{_lambda_.13} parent=0 // loop_footer
    %s15 = sadd.s32 1, %s11
  $region7: #{_lambda_.13} parent=0 // loop_footer_branch
    %10 = sbr.rel target = $region3
  $region8: #{_lambda_.13} parent=0 // loop_exit
    _

// kernel: tile.48
$region0: #{tile.48}
  #allocation0 [shape = 's32[1]{0}', space=sflag, size = 0x4, scoped, tag = 'scoped memory for tile.48']
  %s0 = inlined_call_operand.vmem [shape: f32[8], index: 0, kind: input, shape index: {}]
  %s1 = inlined_call_operand.vmem [shape: f32[32,8], index: 1, kind: output, shape index: {}]
  // Predicated region
  $region2: #{tile.48} parent=0 // pred_check
    _
  $region3: #{tile.48} parent=0 // pred_check_branch
    %3 = sbr.rel (0) target = $region5
  $region4: #{tile.48} parent=0 // pred_region
    _
  $region5: #{tile.48} parent=0 // pred_fallthru
    _
  %v4 = vld [vmem:[%s0] ss:$0 sm:$0xff]
  %5 = vst [vmem:[%s1] sm:$0xff] %v4
  %s6 = scalar_lea.vmem %s1, 8
  %7 = vst [vmem:[%s6] sm:$0xff] %v4
  %s8 = scalar_lea.vmem %s1, 16
  %9 = vst [vmem:[%s8] sm:$0xff] %v4
  %s10 = scalar_lea.vmem %s1, 24
  %11 = vst [vmem:[%s10] sm:$0xff] %v4

// kernel: tile.49
$region0: #{tile.49}
  %s0 = inlined_call_operand.vmem [shape: f32[32,8], index: 0, kind: input, shape index: {}]
  %s1 = inlined_call_operand.vmem [shape: f32[1,256], index: 1, kind: output, shape index: {}]
  $region1: #{tile.49} parent=0
    #allocation0 [shape = 'u8[8192]{0}', space=vmem, size = 0x2000, scoped, tag = 'scoped mem for output reshape']
    %s2 = smov 3
    %v3 = vld [vmem:[%s0] ss:$16 sm:%s2]
    %vm4 = vcmask 64512
    %5 = vst.msk [vmem:[#allocation0] ss:$8 sm:$0x3] %vm4, %v3
    %s6 = scalar_lea.vmem %s0, 15
    %s7 = smov 3
    %v8 = vld [vmem:[%s6] ss:$16 sm:%s7]
    %9 = vrot.lane.b32.xlu0 %v8, 120
    %v10 = vpop.permute.xlu0 %9
    %vm11 = vcmask 1048512
    %12 = vst.msk [vmem:[#allocation0] ss:$8 sm:$0x3] %vm11, %v10
    %s13 = scalar_lea.vmem %s0, 14
    %s14 = smov 3
    %v15 = vld [vmem:[%s13] ss:$16 sm:%s14]
    %16 = vrot.lane.b32.xlu0 %v15, 112
    %v17 = vpop.permute.xlu0 %16
    %vm18 = vcmask 982912
    %19 = vst.msk [vmem:[#allocation0] ss:$8 sm:$0x3] %vm18, %v17
    %s20 = scalar_lea.vmem %s0, 13
    %s21 = smov 3
    %v22 = vld [vmem:[%s20] ss:$16 sm:%s21]
    %23 = vrot.lane.b32.xlu0 %v22, 104
    %v24 = vpop.permute.xlu0 %23
    %vm25 = vcmask 917312
    %26 = vst.msk [vmem:[#allocation0] ss:$8 sm:$0x3] %vm25, %v24
    %s27 = scalar_lea.vmem %s0, 12
    %s28 = smov 3
    %v29 = vld [vmem:[%s27] ss:$16 sm:%s28]
    %30 = vrot.lane.b32.xlu0 %v29, 96
    %v31 = vpop.permute.xlu0 %30
    %vm32 = vcmask 851712
    %33 = vst.msk [vmem:[#allocation0] ss:$8 sm:$0x3] %vm32, %v31
    %s34 = scalar_lea.vmem %s0, 11
    %s35 = smov 3
    %v36 = vld [vmem:[%s34] ss:$16 sm:%s35]
    %37 = vrot.lane.b32.xlu0 %v36, 88
    %v38 = vpop.permute.xlu0 %37
    %vm39 = vcmask 786112
    %40 = vst.msk [vmem:[#allocation0] ss:$8 sm:$0x3] %vm39, %v38
    %s41 = scalar_lea.vmem %s0, 10
    %s42 = smov 3
    %v43 = vld [vmem:[%s41] ss:$16 sm:%s42]
    %44 = vrot.lane.b32.xlu0 %v43, 80
    %v45 = vpop.permute.xlu0 %44
    %vm46 = vcmask 720512
    %47 = vst.msk [vmem:[#allocation0] ss:$8 sm:$0x3] %vm46, %v45
    %s48 = scalar_lea.vmem %s0, 9
    %s49 = smov 3
    %v50 = vld [vmem:[%s48] ss:$16 sm:%s49]
    %51 = vrot.lane.b32.xlu0 %v50, 72
    %v52 = vpop.permute.xlu0 %51
    %vm53 = vcmask 654912
    %54 = vst.msk [vmem:[#allocation0] ss:$8 sm:$0x3] %vm53, %v52
    %s55 = scalar_lea.vmem %s0, 8
    %s56 = smov 3
    %v57 = vld [vmem:[%s55] ss:$16 sm:%s56]
    %58 = vrot.lane.b32.xlu0 %v57, 64
    %v59 = vpop.permute.xlu0 %58
    %vm60 = vcmask 589312
    %61 = vst.msk [vmem:[#allocation0] ss:$8 sm:$0x3] %vm60, %v59
    %s62 = scalar_lea.vmem %s0, 7
    %s63 = smov 3
    %v64 = vld [vmem:[%s62] ss:$16 sm:%s63]
    %65 = vrot.lane.b32.xlu0 %v64, 56
    %v66 = vpop.permute.xlu0 %65
    %vm67 = vcmask 523712
    %68 = vst.msk [vmem:[#allocation0] ss:$8 sm:$0x3] %vm67, %v66
    %s69 = scalar_lea.vmem %s0, 6
    %s70 = smov 3
    %v71 = vld [vmem:[%s69] ss:$16 sm:%s70]
    %72 = vrot.lane.b32.xlu0 %v71, 48
    %v73 = vpop.permute.xlu0 %72
    %vm74 = vcmask 458112
    %75 = vst.msk [vmem:[#allocation0] ss:$8 sm:$0x3] %vm74, %v73
    %s76 = scalar_lea.vmem %s0, 5
    %s77 = smov 3
    %v78 = vld [vmem:[%s76] ss:$16 sm:%s77]
    %79 = vrot.lane.b32.xlu0 %v78, 40
    %v80 = vpop.permute.xlu0 %79
    %vm81 = vcmask 392512
    %82 = vst.msk [vmem:[#allocation0] ss:$8 sm:$0x3] %vm81, %v80
    %s83 = scalar_lea.vmem %s0, 4
    %s84 = smov 3
    %v85 = vld [vmem:[%s83] ss:$16 sm:%s84]
    %86 = vrot.lane.b32.xlu0 %v85, 32
    %v87 = vpop.permute.xlu0 %86
    %vm88 = vcmask 326912
    %89 = vst.msk [vmem:[#allocation0] ss:$8 sm:$0x3] %vm88, %v87
    %s90 = scalar_lea.vmem %s0, 3
    %s91 = smov 3
    %v92 = vld [vmem:[%s90] ss:$16 sm:%s91]
    %93 = vrot.lane.b32.xlu0 %v92, 24
    %v94 = vpop.permute.xlu0 %93
    %vm95 = vcmask 261312
    %96 = vst.msk [vmem:[#allocation0] ss:$8 sm:$0x3] %vm95, %v94
    %s97 = scalar_lea.vmem %s0, 2
    %s98 = smov 3
    %v99 = vld [vmem:[%s97] ss:$16 sm:%s98]
    %100 = vrot.lane.b32.xlu0 %v99, 16
    %v101 = vpop.permute.xlu0 %100
    %vm102 = vcmask 195712
    %103 = vst.msk [vmem:[#allocation0] ss:$8 sm:$0x3] %vm102, %v101
    %s104 = scalar_lea.vmem %s0, 1
    %s105 = smov 3
    %v106 = vld [vmem:[%s104] ss:$16 sm:%s105]
    %107 = vrot.lane.b32.xlu0 %v106, 8
    %v108 = vpop.permute.xlu0 %107
    %vm109 = vcmask 130112
    %110 = vst.msk [vmem:[#allocation0] ss:$8 sm:$0x3] %vm109, %v108
    %s112 = sshllo.u32 0, 1
    %v114 = vld [vmem:[#allocation0] sm:%s112]
    %s115 = sshllo.u32 0, 1
    %116 = vst [vmem:[%s1] sm:%s115] %v114
    %s117 = scalar_lea.vmem [#allocation0], 8
    %v118 = vld [vmem:[%s117] sm:%s112]
    %s119 = sshllo.u32 0, 1
    %s120 = scalar_lea.vmem %s1, 1
    %121 = vst [vmem:[%s120] sm:%s119] %v118

// kernel: _lambda_.14
$region0: #{_lambda_.14}
  #allocation0 [shape = 'u32[]', space=smem, size = 0x4, offset = 0x4, fixed_abs, tag = 'smem constant byte address 0x4 - core index']
  #allocation1 [shape = 'u32[144,128]{1,0:T(1,128)}', space=vmem, size = 0x12000, scoped, tag = 'internal scratch']
  %s0 = inlined_call_operand.vmem [shape: bf16[64,256], index: 0, kind: input, shape index: {}]
  %s1 = inlined_call_operand.vmem [shape: f32[1,256], index: 1, kind: input, shape index: {}]
  %s2 = inlined_call_operand.vmem [shape: f32[1,256], index: 2, kind: input, shape index: {}]
  %s3 = inlined_call_operand.vmem [shape: bf16[64,256], index: 3, kind: output, shape index: {}]
  %s4 = sld [smem:[#allocation0]]
  $region22: #{_lambda_.14} parent=0
    _
  %s6 = ssub.s32 1, %s4
  %s7 = scalar_select 0, %s6, %s4
  // Predicated region
  $region2: #{_lambda_.14} parent=0 // pred_check
    _
  $region3: #{_lambda_.14} parent=0 // pred_check_branch
    %9 = sbr.rel (0) target = $region5
  $region4: #{_lambda_.14} parent=0 // pred_region
    _
  $region5: #{_lambda_.14} parent=0 // pred_fallthru
    _
  // Predicated region
  $region6: #{_lambda_.14} parent=0 // pred_check
    _
  $region7: #{_lambda_.14} parent=0 // pred_check_branch
    %11 = sbr.rel (0) target = $region9
  $region8: #{_lambda_.14} parent=0 // pred_region
    _
  $region9: #{_lambda_.14} parent=0 // pred_fallthru
    _
  // Predicated region
  $region10: #{_lambda_.14} parent=0 // pred_check
    _
  $region11: #{_lambda_.14} parent=0 // pred_check_branch
    %13 = sbr.rel (0) target = $region13
  $region12: #{_lambda_.14} parent=0 // pred_region
    _
  $region13: #{_lambda_.14} parent=0 // pred_fallthru
    _
  %v14 = vld [vmem:[%s0] sm:$0xff]
  %v15 = vld [vmem:[%s0 + $0x8] sm:$0xff]
  %v16 = vld [vmem:[%s0 + $0x10] sm:$0xff]
  %v17 = vld [vmem:[%s0 + $0x18] sm:$0xff]
  %v18 = vld [vmem:[%s0 + $0x20] sm:$0xff]
  %v19 = vld [vmem:[%s0 + $0x28] sm:$0xff]
  %v20 = vld [vmem:[%s0 + $0x30] sm:$0xff]
  %v21 = vld [vmem:[%s0 + $0x38] sm:$0xff]
  %v22 = vunpack.c.l.bf16 %v14
  %v23 = vunpack.c.h.bf16 %v14
  %v24 = vunpack.c.l.bf16 %v15
  %v25 = vunpack.c.h.bf16 %v15
  %v26 = vunpack.c.l.bf16 %v16
  %v27 = vunpack.c.h.bf16 %v16
  %v28 = vunpack.c.l.bf16 %v17
  %v29 = vunpack.c.h.bf16 %v17
  %v30 = vunpack.c.l.bf16 %v18
  %v31 = vunpack.c.h.bf16 %v18
  %v32 = vunpack.c.l.bf16 %v19
  %v33 = vunpack.c.h.bf16 %v19
  %v34 = vunpack.c.l.bf16 %v20
  %v35 = vunpack.c.h.bf16 %v20
  %v36 = vunpack.c.l.bf16 %v21
  %v37 = vunpack.c.h.bf16 %v21
  %v38 = vld [vmem:[%s1] sm:$0x3]
  %v40 = vlaneseq
  %v41 = vshrl.u32 %v40, 7
  %v42 = vsub.s32 0, %v41
  %v43 = vrot.slane %v38, %v42
  %v44 = vlaneseq
  %v45 = vshrl.u32 %v44, 7
  %v46 = vsub.s32 1, %v45
  %v47 = vrot.slane %v38, %v46
  %v50 = vmul.f32 %v22, %v43
  %v51 = vmul.f32 %v23, %v47
  %v52 = vmul.f32 %v24, %v43
  %v53 = vmul.f32 %v25, %v47
  %v54 = vmul.f32 %v26, %v43
  %v55 = vmul.f32 %v27, %v47
  %v56 = vmul.f32 %v28, %v43
  %v57 = vmul.f32 %v29, %v47
  %v58 = vmul.f32 %v30, %v43
  %v59 = vmul.f32 %v31, %v47
  %v60 = vmul.f32 %v32, %v43
  %v61 = vmul.f32 %v33, %v47
  %v62 = vmul.f32 %v34, %v43
  %v63 = vmul.f32 %v35, %v47
  %v64 = vmul.f32 %v36, %v43
  %v65 = vmul.f32 %v37, %v47
  %v66 = vld [vmem:[%s2] sm:$0x3]
  %v68 = vlaneseq
  %v69 = vshrl.u32 %v68, 7
  %v70 = vsub.s32 0, %v69
  %v71 = vrot.slane %v66, %v70
  %v72 = vlaneseq
  %v73 = vshrl.u32 %v72, 7
  %v74 = vsub.s32 1, %v73
  %v75 = vrot.slane %v66, %v74
  %v78 = vadd.f32 %v50, %v71
  %v79 = vadd.f32 %v51, %v75
  %v80 = vadd.f32 %v52, %v71
  %v81 = vadd.f32 %v53, %v75
  %v82 = vadd.f32 %v54, %v71
  %v83 = vadd.f32 %v55, %v75
  %v84 = vadd.f32 %v56, %v71
  %v85 = vadd.f32 %v57, %v75
  %v86 = vadd.f32 %v58, %v71
  %v87 = vadd.f32 %v59, %v75
  %v88 = vadd.f32 %v60, %v71
  %v89 = vadd.f32 %v61, %v75
  %v90 = vadd.f32 %v62, %v71
  %v91 = vadd.f32 %v63, %v75
  %v92 = vadd.f32 %v64, %v71
  %v93 = vadd.f32 %v65, %v75
  %vm94 = vcmp.ge.f32.partialorder %v78, 0.0
  %vm95 = vcmp.ge.f32.partialorder %v79, 0.0
  %vm96 = vcmp.ge.f32.partialorder %v80, 0.0
  %vm97 = vcmp.ge.f32.partialorder %v81, 0.0
  %vm98 = vcmp.ge.f32.partialorder %v82, 0.0
  %vm99 = vcmp.ge.f32.partialorder %v83, 0.0
  %vm100 = vcmp.ge.f32.partialorder %v84, 0.0
  %vm101 = vcmp.ge.f32.partialorder %v85, 0.0
  %vm102 = vcmp.ge.f32.partialorder %v86, 0.0
  %vm103 = vcmp.ge.f32.partialorder %v87, 0.0
  %vm104 = vcmp.ge.f32.partialorder %v88, 0.0
  %vm105 = vcmp.ge.f32.partialorder %v89, 0.0
  %vm106 = vcmp.ge.f32.partialorder %v90, 0.0
  %vm107 = vcmp.ge.f32.partialorder %v91, 0.0
  %vm108 = vcmp.ge.f32.partialorder %v92, 0.0
  %vm109 = vcmp.ge.f32.partialorder %v93, 0.0
  %v110 = vmul.f32 %v78, 0.2
  %v111 = vmul.f32 %v79, 0.2
  %v112 = vmul.f32 %v80, 0.2
  %v113 = vmul.f32 %v81, 0.2
  %v114 = vmul.f32 %v82, 0.2
  %v115 = vmul.f32 %v83, 0.2
  %v116 = vmul.f32 %v84, 0.2
  %v117 = vmul.f32 %v85, 0.2
  %v118 = vmul.f32 %v86, 0.2
  %v119 = vmul.f32 %v87, 0.2
  %v120 = vmul.f32 %v88, 0.2
  %v121 = vmul.f32 %v89, 0.2
  %v122 = vmul.f32 %v90, 0.2
  %v123 = vmul.f32 %v91, 0.2
  %v124 = vmul.f32 %v92, 0.2
  %v125 = vmul.f32 %v93, 0.2
  %v126 = vsel %vm94, %v78, %v110
  %v127 = vsel %vm95, %v79, %v111
  %v128 = vsel %vm96, %v80, %v112
  %v129 = vsel %vm97, %v81, %v113
  %v130 = vsel %vm98, %v82, %v114
  %v131 = vsel %vm99, %v83, %v115
  %v132 = vsel %vm100, %v84, %v116
  %v133 = vsel %vm101, %v85, %v117
  %v134 = vsel %vm102, %v86, %v118
  %v135 = vsel %vm103, %v87, %v119
  %v136 = vsel %vm104, %v88, %v120
  %v137 = vsel %vm105, %v89, %v121
  %v138 = vsel %vm106, %v90, %v122
  %v139 = vsel %vm107, %v91, %v123
  %v140 = vsel %vm108, %v92, %v124
  %v141 = vsel %vm109, %v93, %v125
  %v142 = vpack.c.bf16 %v128, %v126
  %v143 = vpack.c.bf16 %v129, %v127
  %v144 = vpack.c.bf16 %v132, %v130
  %v145 = vpack.c.bf16 %v133, %v131
  %v146 = vpack.c.bf16 %v136, %v134
  %v147 = vpack.c.bf16 %v137, %v135
  %v148 = vpack.c.bf16 %v140, %v138
  %v149 = vpack.c.bf16 %v141, %v139
  %v158 = vunpack.c.l.b16 %v142
  %v159 = vunpack.c.l.b16 %v143
  %v160 = vunpack.c.h.b16 %v142
  %v161 = vunpack.c.h.b16 %v143
  %v162 = vunpack.c.l.b16 %v144
  %v163 = vunpack.c.l.b16 %v145
  %v164 = vunpack.c.h.b16 %v144
  %v165 = vunpack.c.h.b16 %v145
  %v166 = vunpack.c.l.b16 %v146
  %v167 = vunpack.c.l.b16 %v147
  %v168 = vunpack.c.h.b16 %v146
  %v169 = vunpack.c.h.b16 %v147
  %v170 = vunpack.c.l.b16 %v148
  %v171 = vunpack.c.l.b16 %v149
  %v172 = vunpack.c.h.b16 %v148
  %v173 = vunpack.c.h.b16 %v149
  %v174 = vpack.c.b16 %v159, %v158
  %v175 = vpack.c.b16 %v161, %v160
  %v176 = vpack.c.b16 %v163, %v162
  %v177 = vpack.c.b16 %v165, %v164
  %v178 = vpack.c.b16 %v167, %v166
  %v179 = vpack.c.b16 %v169, %v168
  %v180 = vpack.c.b16 %v171, %v170
  %v181 = vpack.c.b16 %v173, %v172
  %190 = vst [vmem:[%s3] sm:$0xff] %v174
  %191 = vst [vmem:[%s3 + $0x8] sm:$0xff] %v175
  %192 = vst [vmem:[%s3 + $0x10] sm:$0xff] %v176
  %193 = vst [vmem:[%s3 + $0x18] sm:$0xff] %v177
  %194 = vst [vmem:[%s3 + $0x20] sm:$0xff] %v178
  %195 = vst [vmem:[%s3 + $0x28] sm:$0xff] %v179
  %196 = vst [vmem:[%s3 + $0x30] sm:$0xff] %v180
  %197 = vst [vmem:[%s3 + $0x38] sm:$0xff] %v181
  // Predicated region
  $region14: #{_lambda_.14} parent=0 // pred_check
    _
  $region15: #{_lambda_.14} parent=0 // pred_check_branch
    %199 = sbr.rel (0) target = $region17
  $region16: #{_lambda_.14} parent=0 // pred_region
    _
  $region17: #{_lambda_.14} parent=0 // pred_fallthru
    _
  // Predicated region
  $region18: #{_lambda_.14} parent=0 // pred_check
    _
  $region19: #{_lambda_.14} parent=0 // pred_check_branch
    %201 = sbr.rel (0) target = $region21
  $region20: #{_lambda_.14} parent=0 // pred_region
    _
  $region21: #{_lambda_.14} parent=0 // pred_fallthru
    _

// kernel: _lambda_.15
$region0: #{_lambda_.15}
  #allocation0 [shape = 'u32[]', space=smem, size = 0x4, offset = 0x4, fixed_abs, tag = 'smem constant byte address 0x4 - core index']
  #allocation1 [shape = 'u32[144,128]{1,0:T(1,128)}', space=vmem, size = 0x12000, scoped, tag = 'internal scratch']
  %s0 = inlined_call_operand.vmem [shape: bf16[8,5,17,32], index: 0, kind: input, shape index: {}]
  %s1 = inlined_call_operand.vmem [shape: bf16[4,32,16], index: 1, kind: input, shape index: {}]
  %s2 = inlined_call_operand.vmem [shape: f32[1,16], index: 2, kind: input, shape index: {}]
  %s3 = inlined_call_operand.vmem [shape: bf16[512,16], index: 3, kind: output, shape index: {0}]
  %s4 = inlined_call_operand.vmem [shape: f32[8,2,16], index: 4, kind: output, shape index: {1}]
  %5 = xla_tuple %s3, %s4
  %s6 = sld [smem:[#allocation0]]
  $region53: #{_lambda_.15} parent=0
    _
  %s8 = ssub.s32 1, %s6
  %s9 = scalar_select 0, %s8, %s6
  loop: start=0, step=1, limit=10
  $region2: #{_lambda_.15} parent=0 // loop_pre_header
    _
  $region3: #{_lambda_.15} parent=0 // loop_header
    %s11 = sphi 0, %s15
    %p12 = scmp.ge.s32.totalorder %s11, 10
    %s18 = sphi 0, %s30
    %s19 = sphi 0, %s26
    %s20 = sphi 0, %s18
    %s21 = sphi 0, %s19
    %s22 = sphi 0, %s20
    %s23 = sphi 0, %s21
    %s37 = sphi 0, %s39
    %s40 = sphi 0, %s37
    %s41 = sphi 0, %s40
    %s57 = sphi 0, %s41
    %s61 = sphi 0, %s61
    %s63 = sphi 0, %s61
    %s64 = sphi 0, %s63
    %s78 = sphi 0, %s64
    %s82 = sphi 0, %s82
    %s84 = sphi 0, %s82
    %s85 = sphi 0, %s84
    %s99 = sphi 0, %s85
    %s109 = sphi 0, %s111
    %s112 = sphi 0, %s109
    %s113 = sphi 0, %s112
    %s129 = sphi 0, %s113
    %s139 = sphi 0, %s141
    %s142 = sphi 0, %s139
    %s143 = sphi 0, %s142
    %s159 = sphi 0, %s143
  $region4: #{_lambda_.15} parent=0 // loop_header_branch
    %14 = sbr.rel (%p12) target = $region8
  $region5: #{_lambda_.15} parent=0 // loop_body
    %s16 = ssub.s32 %s11, 1
    %s17 = ssub.s32 %s11, 2
    %s24 = sadd.s32 1, %s19
    %p25 = scmp.ge.s32.totalorder %s24, 4
    %s26 = scalar_select %p25, 0, %s24
    %s27 = sadd.s32 1, %s18
    %s28 = scalar_select %p25, %s27, %s18
    %p29 = scmp.ge.s32.totalorder %s28, 2
    %s30 = scalar_select %p29, 0, %s28
    %s31 = smul.u32 %s18, 4
    %s32 = sadd.s32 %s31, %s19
    %s33 = smul.u32 %s30, 4
    %s34 = sadd.s32 %s33, %s26
    %s35 = ssub.s32 %s32, %s34
    %p36 = scmp.eq.s32.totalorder %s35, 0
    %s38 = sadd.s32 %s37, 1
    %s39 = scalar_select %p36, %s37, %s38
    %p42 = pneg %p36
    %p43 = scmp.eq.s32.totalorder %s11, 7
    %p44 = por %p42, %p43
    %p45 = scmp.ne.s32.totalorder %s37, %s40
    %p46 = scmp.eq.s32.totalorder %s11, 0
    %p47 = por %p45, %p46
    %p48 = scmp.ne.s32.totalorder %s37, %s40
    %p49 = scmp.eq.s32.totalorder %s16, 7
    %p50 = por %p48, %p49
    %p51 = scmp.ne.s32.totalorder %s40, %s41
    %p52 = scmp.eq.s32.totalorder %s16, 0
    %p53 = por %p51, %p52
    %p54 = scmp.ne.s32.totalorder %s40, %s41
    %p55 = scmp.eq.s32.totalorder %s17, 7
    %p56 = por %p54, %p55
    %p58 = scmp.ne.s32.totalorder %s41, %s57
    %p59 = scmp.eq.s32.totalorder %s17, 0
    %p60 = por %p58, %p59
    %s62 = sadd.s32 %s61, 1
    %p65 = scmp.eq.s32.totalorder %s11, 7
    %p66 = scmp.ne.s32.totalorder %s61, %s63
    %p67 = scmp.eq.s32.totalorder %s11, 0
    %p68 = por %p66, %p67
    %p69 = scmp.ne.s32.totalorder %s61, %s63
    %p70 = scmp.eq.s32.totalorder %s16, 7
    %p71 = por %p69, %p70
    %p72 = scmp.ne.s32.totalorder %s63, %s64
    %p73 = scmp.eq.s32.totalorder %s16, 0
    %p74 = por %p72, %p73
    %p75 = scmp.ne.s32.totalorder %s63, %s64
    %p76 = scmp.eq.s32.totalorder %s17, 7
    %p77 = por %p75, %p76
    %p79 = scmp.ne.s32.totalorder %s64, %s78
    %p80 = scmp.eq.s32.totalorder %s17, 0
    %p81 = por %p79, %p80
    %s83 = sadd.s32 %s82, 1
    %p86 = scmp.eq.s32.totalorder %s11, 7
    %p87 = scmp.ne.s32.totalorder %s82, %s84
    %p88 = scmp.eq.s32.totalorder %s11, 0
    %p89 = por %p87, %p88
    %p90 = scmp.ne.s32.totalorder %s82, %s84
    %p91 = scmp.eq.s32.totalorder %s16, 7
    %p92 = por %p90, %p91
    %p93 = scmp.ne.s32.totalorder %s84, %s85
    %p94 = scmp.eq.s32.totalorder %s16, 0
    %p95 = por %p93, %p94
    %p96 = scmp.ne.s32.totalorder %s84, %s85
    %p97 = scmp.eq.s32.totalorder %s17, 7
    %p98 = por %p96, %p97
    %p100 = scmp.ne.s32.totalorder %s85, %s99
    %p101 = scmp.eq.s32.totalorder %s17, 0
    %p102 = por %p100, %p101
    %s103 = smul.u32 %s18, 4
    %s104 = sadd.s32 %s103, %s19
    %s105 = smul.u32 %s30, 4
    %s106 = sadd.s32 %s105, %s26
    %s107 = ssub.s32 %s104, %s106
    %p108 = scmp.eq.s32.totalorder %s107, 0
    %s110 = sadd.s32 %s109, 1
    %s111 = scalar_select %p108, %s109, %s110
    %p114 = pneg %p108
    %p115 = scmp.eq.s32.totalorder %s11, 7
    %p116 = por %p114, %p115
    %p117 = scmp.ne.s32.totalorder %s109, %s112
    %p118 = scmp.eq.s32.totalorder %s11, 0
    %p119 = por %p117, %p118
    %p120 = scmp.ne.s32.totalorder %s109, %s112
    %p121 = scmp.eq.s32.totalorder %s16, 7
    %p122 = por %p120, %p121
    %p123 = scmp.ne.s32.totalorder %s112, %s113
    %p124 = scmp.eq.s32.totalorder %s16, 0
    %p125 = por %p123, %p124
    %p126 = scmp.ne.s32.totalorder %s112, %s113
    %p127 = scmp.eq.s32.totalorder %s17, 7
    %p128 = por %p126, %p127
    %p130 = scmp.ne.s32.totalorder %s113, %s129
    %p131 = scmp.eq.s32.totalorder %s17, 0
    %p132 = por %p130, %p131
    %s133 = smul.u32 %s18, 4
    %s134 = sadd.s32 %s133, %s19
    %s135 = smul.u32 %s30, 4
    %s136 = sadd.s32 %s135, %s26
    %s137 = ssub.s32 %s134, %s136
    %p138 = scmp.eq.s32.totalorder %s137, 0
    %s140 = sadd.s32 %s139, 1
    %s141 = scalar_select %p138, %s139, %s140
    %p144 = pneg %p138
    %p145 = scmp.eq.s32.totalorder %s11, 7
    %p146 = por %p144, %p145
    %p147 = scmp.ne.s32.totalorder %s139, %s142
    %p148 = scmp.eq.s32.totalorder %s11, 0
    %p149 = por %p147, %p148
    %p150 = scmp.ne.s32.totalorder %s139, %s142
    %p151 = scmp.eq.s32.totalorder %s16, 7
    %p152 = por %p150, %p151
    %p153 = scmp.ne.s32.totalorder %s142, %s143
    %p154 = scmp.eq.s32.totalorder %s16, 0
    %p155 = por %p153, %p154
    %p156 = scmp.ne.s32.totalorder %s142, %s143
    %p157 = scmp.eq.s32.totalorder %s17, 7
    %p158 = por %p156, %p157
    %p160 = scmp.ne.s32.totalorder %s143, %s159
    %p161 = scmp.eq.s32.totalorder %s17, 0
    %p162 = por %p160, %p161
    %p163 = scmp.le.s32.totalorder 1, %s11
    %p164 = scmp.lt.s32.totalorder %s11, 9
    %p165 = pnand %p163, %p164
    %p166 = pneg %p165
    // Predicated region
    $region9: #{_lambda_.15} parent=5 // pred_check
      _
    $region10: #{_lambda_.15} parent=5 // pred_check_branch
      %168 = sbr.rel (%p165) target = $region12
    $region11: #{_lambda_.15} parent=5 // pred_region
      %s169 = ssub.s32 %s11, 1
      // Predicated region
      $region13: #{_lambda_.15} parent=11 // pred_check
        %p170 = pneg %p74
      $region14: #{_lambda_.15} parent=11 // pred_check_branch
        %172 = sbr.rel (%p170) target = $region16
      $region15: #{_lambda_.15} parent=11 // pred_region
        _
      $region16: #{_lambda_.15} parent=11 // pred_fallthru
        _
      // Predicated region
      $region17: #{_lambda_.15} parent=11 // pred_check
        %p173 = pneg %p95
      $region18: #{_lambda_.15} parent=11 // pred_check_branch
        %175 = sbr.rel (%p173) target = $region20
      $region19: #{_lambda_.15} parent=11 // pred_region
        _
      $region20: #{_lambda_.15} parent=11 // pred_fallthru
        _
    $region12: #{_lambda_.15} parent=5 // pred_fallthru
      _
    %p176 = scmp.lt.s32.totalorder %s11, 8
    // Predicated region
    $region21: #{_lambda_.15} parent=5 // pred_check
      %p177 = pneg %p176
    $region22: #{_lambda_.15} parent=5 // pred_check_branch
      %179 = sbr.rel (%p177) target = $region24
    $region23: #{_lambda_.15} parent=5 // pred_region
      // Predicated region
      $region25: #{_lambda_.15} parent=23 // pred_check
        %p180 = pneg %p47
      $region26: #{_lambda_.15} parent=23 // pred_check_branch
        %182 = sbr.rel (%p180) target = $region28
      $region27: #{_lambda_.15} parent=23 // pred_region
        %s183 = smul.u32 %s18, 4
        %s184 = sadd.s32 %s183, %s19
        %p185 = scmp.lt.s32.totalorder %s184, 7
        %s186 = scalar_select %p185, %s184, 7
        %s187 = smul.addr %s186, 15
        %s188 = smul.addr %s187, 4
        %s189 = scalar_lea.vmem %s0, %s188
        %s190 = smul.u32 %s18, 4
        %s191 = sadd.s32 %s190, %s19
      $region28: #{_lambda_.15} parent=23 // pred_fallthru
        _
    $region24: #{_lambda_.15} parent=5 // pred_fallthru
      _
    %p192 = scmp.le.s32.totalorder 1, %s11
    %p193 = scmp.lt.s32.totalorder %s11, 9
    %p194 = pnand %p192, %p193
    %p195 = pneg %p194
    // Predicated region
    $region29: #{_lambda_.15} parent=5 // pred_check
      _
    $region30: #{_lambda_.15} parent=5 // pred_check_branch
      %197 = sbr.rel (%p194) target = $region32
    $region31: #{_lambda_.15} parent=5 // pred_region
      %s198 = ssub.s32 %s11, 1
      %s199 = smul.u32 %s20, 4
      %s200 = sadd.s32 %s199, %s21
      %p201 = scmp.lt.s32.totalorder %s200, 7
      %s202 = scalar_select %p201, %s200, 7
      %s203 = smul.addr %s202, 15
      %s204 = smul.addr %s203, 4
      %s205 = scalar_lea.vmem %s0, %s204
      %p206 = pneg %p53
      %p207 = pneg %p50
      %p208 = pneg %p74
      %p209 = pneg %p71
      %p210 = pneg %p95
      %p211 = pneg %p92
      %p212 = pneg %p125
      %p213 = pneg %p122
      %s214 = smul.u32 %s20, 4
      %s215 = sadd.s32 %s214, %s21
      %s216 = smul.u32 8, %s215
      %p217 = scmp.lt.s32.totalorder %s216, 63
      %s218 = scalar_select %p217, %s216, 63
      %s219 = smul.addr %s218, 4
      %s220 = scalar_lea.vmem %s3, %s219
      %p221 = pneg %p155
      %p222 = pneg %p152
      %s223 = smul.u32 %s20, 4
      %s224 = sadd.s32 %s223, %s21
      %p225 = scmp.lt.s32.totalorder %s224, 7
      %s226 = scalar_select %p225, %s224, 7
      %s227 = smul.addr %s226, 2
      %s228 = scalar_lea.vmem %s4, %s227
      %s229 = smul.u32 %s20, 4
      %s230 = sadd.s32 %s229, %s21
      %p231 = scmp.lt.s32.totalorder %s230, 7
      %s232 = scalar_select %p231, %s230, 7
      %s233 = smul.addr %s232, 15
      %s234 = smul.addr %s233, 4
      %s235 = scalar_lea.vmem %s0, %s234
      %s236 = smul.u32 %s20, 4
      %s237 = sadd.s32 %s236, %s21
      %s238 = smul.u32 %s20, 4
      %s239 = sadd.s32 %s238, %s21
      %s240 = smul.u32 8, %s239
      %p241 = scmp.lt.s32.totalorder %s240, 63
      %s242 = scalar_select %p241, %s240, 63
      %s243 = smul.addr %s242, 4
      %s244 = scalar_lea.vmem %s3, %s243
      %s245 = smul.u32 %s20, 4
      %s246 = sadd.s32 %s245, %s21
      %s247 = smul.u32 8, %s246
      %s248 = smul.u32 %s20, 4
      %s249 = sadd.s32 %s248, %s21
      %p250 = scmp.lt.s32.totalorder %s249, 7
      %s251 = scalar_select %p250, %s249, 7
      %s252 = smul.addr %s251, 2
      %s253 = scalar_lea.vmem %s4, %s252
      %s254 = smul.u32 %s20, 4
      %s255 = sadd.s32 %s254, %s21
      %v257 = vld [vmem:[%s235] sm:$0xf]
      %v258 = vld [vmem:[%s235 + $0x4] sm:$0xf]
      %v259 = vld [vmem:[%s235 + $0xc] sm:$0xf]
      %v260 = vld [vmem:[%s235 + $0x10] sm:$0xf]
      %v261 = vld [vmem:[%s235 + $0x18] sm:$0xf]
      %v262 = vld [vmem:[%s235 + $0x1c] sm:$0xf]
      %v263 = vld [vmem:[%s235 + $0x24] sm:$0xf]
      %v264 = vld [vmem:[%s235 + $0x28] sm:$0xf]
      %v265 = vld [vmem:[%s1] sm:$0xf]
      %v266 = vld [vmem:[%s1 + $0x4] sm:$0xf]
      %v267 = vld [vmem:[%s1 + $0x8] sm:$0xf]
      %v268 = vld [vmem:[%s1 + $0xc] sm:$0xf]
      %v269 = vld [vmem:[%s235 + $0x8] sm:$0x1]
      %v270 = vld [vmem:[%s235 + $0x14] sm:$0x1]
      %v271 = vld [vmem:[%s235 + $0x20] sm:$0x1]
      %v272 = vld [vmem:[%s235 + $0x2c] sm:$0x1]
      %vm273 = vsmask.f32 3328
      %vm274 = vsmask.f32 7440
      %vm275 = vmor %vm273, %vm274
      %v277 = vshrl.u32 %v257, 16
      %v279 = vrot.slane %v277, 4
      %v280 = vshll.u32 %v257, 16
      %v282 = vrot.slane %v280, 5
      %v283 = vor.u32 %v279, %v282
      %v284 = vrot.slane %v283, 4
      %v286 = vshll.u32 %v258, 16
      %v288 = vrot.slane %v286, 5
      %v289 = vsel %vm275, %v284, %v288
      %v290 = vshrl.u32 %v258, 16
      %v292 = vrot.slane %v290, 4
      %v293 = vor.u32 %v292, %v288
      %v294 = vrot.slane %v293, 4
      %v296 = vshll.u32 %v269, 16
      %v298 = vrot.slane %v296, 5
      %v299 = vsel %vm275, %v294, %v298
      %v301 = vshrl.u32 %v259, 16
      %v303 = vrot.slane %v301, 4
      %v304 = vshll.u32 %v259, 16
      %v306 = vrot.slane %v304, 5
      %v307 = vor.u32 %v303, %v306
      %v308 = vrot.slane %v307, 4
      %v310 = vshll.u32 %v260, 16
      %v312 = vrot.slane %v310, 5
      %v313 = vsel %vm275, %v308, %v312
      %v314 = vshrl.u32 %v260, 16
      %v316 = vrot.slane %v314, 4
      %v317 = vor.u32 %v316, %v312
      %v318 = vrot.slane %v317, 4
      %v320 = vshll.u32 %v270, 16
      %v322 = vrot.slane %v320, 5
      %v323 = vsel %vm275, %v318, %v322
      %v325 = vshrl.u32 %v261, 16
      %v327 = vrot.slane %v325, 4
      %v328 = vshll.u32 %v261, 16
      %v330 = vrot.slane %v328, 5
      %v331 = vor.u32 %v327, %v330
      %v332 = vrot.slane %v331, 4
      %v334 = vshll.u32 %v262, 16
      %v336 = vrot.slane %v334, 5
      %v337 = vsel %vm275, %v332, %v336
      %v338 = vshrl.u32 %v262, 16
      %v340 = vrot.slane %v338, 4
      %v341 = vor.u32 %v340, %v336
      %v342 = vrot.slane %v341, 4
      %v344 = vshll.u32 %v271, 16
      %v346 = vrot.slane %v344, 5
      %v347 = vsel %vm275, %v342, %v346
      %v349 = vshrl.u32 %v263, 16
      %v351 = vrot.slane %v349, 4
      %v352 = vshll.u32 %v263, 16
      %v354 = vrot.slane %v352, 5
      %v355 = vor.u32 %v351, %v354
      %v356 = vrot.slane %v355, 4
      %v358 = vshll.u32 %v264, 16
      %v360 = vrot.slane %v358, 5
      %v361 = vsel %vm275, %v356, %v360
      %v362 = vshrl.u32 %v264, 16
      %v364 = vrot.slane %v362, 4
      %v365 = vor.u32 %v364, %v360
      %v366 = vrot.slane %v365, 4
      %v368 = vshll.u32 %v272, 16
      %v370 = vrot.slane %v368, 5
      %v371 = vsel %vm275, %v366, %v370
      %s372 = scalar_lea.vmem %s1, 16
      %v373 = vld [vmem:[%s372] sm:$0xf]
      %v374 = vld [vmem:[%s372 + $0x4] sm:$0xf]
      %v375 = vld [vmem:[%s372 + $0x8] sm:$0xf]
      %v376 = vld [vmem:[%s372 + $0xc] sm:$0xf]
      %v377 = vunpack.c.l.b16 %v289
      %v378 = vunpack.c.l.b16 %v299
      %v379 = vunpack.c.l.b16 %v313
      %v380 = vunpack.c.l.b16 %v323
      %v381 = vunpack.c.l.b16 %v337
      %v382 = vunpack.c.l.b16 %v347
      %v383 = vunpack.c.l.b16 %v361
      %v384 = vunpack.c.l.b16 %v371
      %v385 = vpack.c.b16 %v378, %v377
      %v386 = vpack.c.b16 %v380, %v379
      %v387 = vpack.c.b16 %v382, %v381
      %v388 = vpack.c.b16 %v384, %v383
      %v393 = vunpack.c.l.b16 %v373
      %v394 = vunpack.c.l.b16 %v374
      %v395 = vunpack.c.l.b16 %v375
      %v396 = vunpack.c.l.b16 %v376
      %v397 = vpack.c.b16 %v394, %v393
      %v398 = vpack.c.b16 %v396, %v395
      %vm401 = vcmask 261120
      %v403 = vsel %vm401, %v385, 0
      %v406 = vsel %vm401, %v386, 0
      %v409 = vsel %vm401, %v387, 0
      %v412 = vsel %vm401, %v388, 0
      %414 = vmatprep.subr.bf16.mxu0 0
      %415 = vmatpush1.bf16.msra.mxu0 %v397
      %416 = vmatprep.subr.bf16.mxu0 0
      %417 = vmatpush1.bf16.msra.mxu0 %v398
      %418 = vmatprep.subr.bf16.mxu0 0
      %419 = vmatpush1.bf16.msra.mxu0 0
      %420 = vmatprep.subr.bf16.mxu0 0
      %421 = vmatpush1.bf16.msra.mxu0 0
      %422 = vmatprep.subr.bf16.mxu0 0
      %423 = vmatpush1.bf16.msra.mxu0 0
      %424 = vmatprep.subr.bf16.mxu0 0
      %425 = vmatpush1.bf16.msra.mxu0 0
      %426 = vmatprep.subr.bf16.mxu0 0
      %427 = vmatpush1.bf16.msra.mxu0 0
      %428 = vmatprep.subr.bf16.mxu0 0
      %429 = vmatpush1.bf16.msra.mxu0 0
      %430 = vmatprep.subr.bf16.mxu0 0
      %431 = vmatpush1.bf16.msra.mxu0 0
      %432 = vmatprep.subr.bf16.mxu0 0
      %433 = vmatpush1.bf16.msra.mxu0 0
      %434 = vmatprep.subr.bf16.mxu0 0
      %435 = vmatpush1.bf16.msra.mxu0 0
      %436 = vmatprep.subr.bf16.mxu0 0
      %437 = vmatpush1.bf16.msra.mxu0 0
      %438 = vmatprep.subr.bf16.mxu0 0
      %439 = vmatpush1.bf16.msra.mxu0 0
      %440 = vmatprep.subr.bf16.mxu0 0
      %441 = vmatpush1.bf16.msra.mxu0 0
      %442 = vmatprep.subr.bf16.mxu0 0
      %443 = vmatpush1.bf16.msra.mxu0 0
      %444 = vmatprep.subr.bf16.mxu0 0
      %445 = vmatpush1.bf16.msra.mxu0 0
      %446 = vmatprep.mubr.bf16.mxu0 0
      %447 = vmatmul.mubr.bf16.gmra.mrb[0].mxu0 %v403
      %v448 = vpop.f32.mrb[0].mxu0
      %v449 = vadd.f32 0.0, %v448
      %v450 = vpop.f32.mrb[0].mxu0
      %v451 = vpop.f32.mrb[0].mxu0
      %v452 = vadd.f32 0.0, %v451
      %v453 = vpop.f32.mrb[0].mxu0
      %454 = vmatprep.mubr.bf16.mxu0 0
      %455 = vmatmul.mubr.bf16.gmra.mrb[0].mxu0 %v406
      %v456 = vpop.f32.mrb[0].mxu0
      %v457 = vadd.f32 0.0, %v456
      %v458 = vpop.f32.mrb[0].mxu0
      %v459 = vpop.f32.mrb[0].mxu0
      %v460 = vadd.f32 0.0, %v459
      %v461 = vpop.f32.mrb[0].mxu0
      %462 = vmatprep.mubr.bf16.mxu0 0
      %463 = vmatmul.mubr.bf16.gmra.mrb[0].mxu0 %v409
      %v464 = vpop.f32.mrb[0].mxu0
      %v465 = vadd.f32 0.0, %v464
      %v466 = vpop.f32.mrb[0].mxu0
      %v467 = vpop.f32.mrb[0].mxu0
      %v468 = vadd.f32 0.0, %v467
      %v469 = vpop.f32.mrb[0].mxu0
      %470 = vmatprep.mubr.bf16.mxu0 0
      %471 = vmatmul.mubr.bf16.gmra.mrb[0].mxu0 %v412
      %v472 = vpop.f32.mrb[0].mxu0
      %v473 = vadd.f32 0.0, %v472
      %v474 = vpop.f32.mrb[0].mxu0
      %v475 = vpop.f32.mrb[0].mxu0
      %v476 = vadd.f32 0.0, %v475
      %v477 = vpop.f32.mrb[0].mxu0
      %478 = vdwg.mxu0
      %v487 = vunpack.c.l.b16 %v257
      %v488 = vunpack.c.l.b16 %v258
      %v489 = vunpack.c.l.b16 %v259
      %v490 = vunpack.c.l.b16 %v260
      %v491 = vunpack.c.l.b16 %v261
      %v492 = vunpack.c.l.b16 %v262
      %v493 = vunpack.c.l.b16 %v263
      %v494 = vunpack.c.l.b16 %v264
      %v495 = vpack.c.b16 %v488, %v487
      %v496 = vpack.c.b16 %v490, %v489
      %v497 = vpack.c.b16 %v492, %v491
      %v498 = vpack.c.b16 %v494, %v493
      %v503 = vunpack.c.l.b16 %v265
      %v504 = vunpack.c.l.b16 %v266
      %v505 = vunpack.c.l.b16 %v267
      %v506 = vunpack.c.l.b16 %v268
      %v507 = vpack.c.b16 %v504, %v503
      %v508 = vpack.c.b16 %v506, %v505
      %v512 = vsel %vm401, %v495, 0
      %v515 = vsel %vm401, %v496, 0
      %v518 = vsel %vm401, %v497, 0
      %v521 = vsel %vm401, %v498, 0
      %523 = vmatprep.subr.bf16.mxu0 0
      %524 = vmatpush1.bf16.msra.mxu0 %v507
      %525 = vmatprep.subr.bf16.mxu0 0
      %526 = vmatpush1.bf16.msra.mxu0 %v508
      %527 = vmatprep.subr.bf16.mxu0 0
      %528 = vmatpush1.bf16.msra.mxu0 0
      %529 = vmatprep.subr.bf16.mxu0 0
      %530 = vmatpush1.bf16.msra.mxu0 0
      %531 = vmatprep.subr.bf16.mxu0 0
      %532 = vmatpush1.bf16.msra.mxu0 0
      %533 = vmatprep.subr.bf16.mxu0 0
      %534 = vmatpush1.bf16.msra.mxu0 0
      %535 = vmatprep.subr.bf16.mxu0 0
      %536 = vmatpush1.bf16.msra.mxu0 0
      %537 = vmatprep.subr.bf16.mxu0 0
      %538 = vmatpush1.bf16.msra.mxu0 0
      %539 = vmatprep.subr.bf16.mxu0 0
      %540 = vmatpush1.bf16.msra.mxu0 0
      %541 = vmatprep.subr.bf16.mxu0 0
      %542 = vmatpush1.bf16.msra.mxu0 0
      %543 = vmatprep.subr.bf16.mxu0 0
      %544 = vmatpush1.bf16.msra.mxu0 0
      %545 = vmatprep.subr.bf16.mxu0 0
      %546 = vmatpush1.bf16.msra.mxu0 0
      %547 = vmatprep.subr.bf16.mxu0 0
      %548 = vmatpush1.bf16.msra.mxu0 0
      %549 = vmatprep.subr.bf16.mxu0 0
      %550 = vmatpush1.bf16.msra.mxu0 0
      %551 = vmatprep.subr.bf16.mxu0 0
      %552 = vmatpush1.bf16.msra.mxu0 0
      %553 = vmatprep.subr.bf16.mxu0 0
      %554 = vmatpush1.bf16.msra.mxu0 0
      %555 = vmatprep.mubr.bf16.mxu0 0
      %556 = vmatmul.mubr.bf16.gmra.mrb[0].mxu0 %v512
      %v557 = vpop.f32.mrb[0].mxu0
      %v558 = vadd.f32 %v449, %v557
      %v559 = vpop.f32.mrb[0].mxu0
      %v560 = vpop.f32.mrb[0].mxu0
      %v561 = vadd.f32 %v452, %v560
      %v562 = vpop.f32.mrb[0].mxu0
      %563 = vmatprep.mubr.bf16.mxu0 0
      %564 = vmatmul.mubr.bf16.gmra.mrb[0].mxu0 %v515
      %v565 = vpop.f32.mrb[0].mxu0
      %v566 = vadd.f32 %v457, %v565
      %v567 = vpop.f32.mrb[0].mxu0
      %v568 = vpop.f32.mrb[0].mxu0
      %v569 = vadd.f32 %v460, %v568
      %v570 = vpop.f32.mrb[0].mxu0
      %571 = vmatprep.mubr.bf16.mxu0 0
      %572 = vmatmul.mubr.bf16.gmra.mrb[0].mxu0 %v518
      %v573 = vpop.f32.mrb[0].mxu0
      %v574 = vadd.f32 %v465, %v573
      %v575 = vpop.f32.mrb[0].mxu0
      %v576 = vpop.f32.mrb[0].mxu0
      %v577 = vadd.f32 %v468, %v576
      %v578 = vpop.f32.mrb[0].mxu0
      %579 = vmatprep.mubr.bf16.mxu0 0
      %580 = vmatmul.mubr.bf16.gmra.mrb[0].mxu0 %v521
      %v581 = vpop.f32.mrb[0].mxu0
      %v582 = vadd.f32 %v473, %v581
      %v583 = vpop.f32.mrb[0].mxu0
      %v584 = vpop.f32.mrb[0].mxu0
      %v585 = vadd.f32 %v476, %v584
      %v586 = vpop.f32.mrb[0].mxu0
      %587 = vdwg.mxu0
      %s588 = scalar_lea.vmem %s235, 12
      %v589 = vld [vmem:[%s588] sm:$0xf]
      %v590 = vld [vmem:[%s588 + $0x4] sm:$0xf]
      %v591 = vld [vmem:[%s588 + $0xc] sm:$0xf]
      %v592 = vld [vmem:[%s588 + $0x10] sm:$0xf]
      %v593 = vld [vmem:[%s588 + $0x18] sm:$0xf]
      %v594 = vld [vmem:[%s588 + $0x1c] sm:$0xf]
      %v595 = vld [vmem:[%s588 + $0x24] sm:$0xf]
      %v596 = vld [vmem:[%s588 + $0x28] sm:$0xf]
      %s597 = scalar_lea.vmem %s1, 32
      %v598 = vld [vmem:[%s597] sm:$0xf]
      %v599 = vld [vmem:[%s597 + $0x4] sm:$0xf]
      %v600 = vld [vmem:[%s597 + $0x8] sm:$0xf]
      %v601 = vld [vmem:[%s597 + $0xc] sm:$0xf]
      %v610 = vunpack.c.l.b16 %v589
      %v611 = vunpack.c.l.b16 %v590
      %v612 = vunpack.c.l.b16 %v591
      %v613 = vunpack.c.l.b16 %v592
      %v614 = vunpack.c.l.b16 %v593
      %v615 = vunpack.c.l.b16 %v594
      %v616 = vunpack.c.l.b16 %v595
      %v617 = vunpack.c.l.b16 %v596
      %v618 = vpack.c.b16 %v611, %v610
      %v619 = vpack.c.b16 %v613, %v612
      %v620 = vpack.c.b16 %v615, %v614
      %v621 = vpack.c.b16 %v617, %v616
      %v626 = vunpack.c.l.b16 %v598
      %v627 = vunpack.c.l.b16 %v599
      %v628 = vunpack.c.l.b16 %v600
      %v629 = vunpack.c.l.b16 %v601
      %v630 = vpack.c.b16 %v627, %v626
      %v631 = vpack.c.b16 %v629, %v628
      %v635 = vsel %vm401, %v618, 0
      %v638 = vsel %vm401, %v619, 0
      %v641 = vsel %vm401, %v620, 0
      %v644 = vsel %vm401, %v621, 0
      %646 = vmatprep.subr.bf16.mxu0 0
      %647 = vmatpush1.bf16.msra.mxu0 %v630
      %648 = vmatprep.subr.bf16.mxu0 0
      %649 = vmatpush1.bf16.msra.mxu0 %v631
      %650 = vmatprep.subr.bf16.mxu0 0
      %651 = vmatpush1.bf16.msra.mxu0 0
      %652 = vmatprep.subr.bf16.mxu0 0
      %653 = vmatpush1.bf16.msra.mxu0 0
      %654 = vmatprep.subr.bf16.mxu0 0
      %655 = vmatpush1.bf16.msra.mxu0 0
      %656 = vmatprep.subr.bf16.mxu0 0
      %657 = vmatpush1.bf16.msra.mxu0 0
      %658 = vmatprep.subr.bf16.mxu0 0
      %659 = vmatpush1.bf16.msra.mxu0 0
      %660 = vmatprep.subr.bf16.mxu0 0
      %661 = vmatpush1.bf16.msra.mxu0 0
      %662 = vmatprep.subr.bf16.mxu0 0
      %663 = vmatpush1.bf16.msra.mxu0 0
      %664 = vmatprep.subr.bf16.mxu0 0
      %665 = vmatpush1.bf16.msra.mxu0 0
      %666 = vmatprep.subr.bf16.mxu0 0
      %667 = vmatpush1.bf16.msra.mxu0 0
      %668 = vmatprep.subr.bf16.mxu0 0
      %669 = vmatpush1.bf16.msra.mxu0 0
      %670 = vmatprep.subr.bf16.mxu0 0
      %671 = vmatpush1.bf16.msra.mxu0 0
      %672 = vmatprep.subr.bf16.mxu0 0
      %673 = vmatpush1.bf16.msra.mxu0 0
      %674 = vmatprep.subr.bf16.mxu0 0
      %675 = vmatpush1.bf16.msra.mxu0 0
      %676 = vmatprep.subr.bf16.mxu0 0
      %677 = vmatpush1.bf16.msra.mxu0 0
      %678 = vmatprep.mubr.bf16.mxu0 0
      %679 = vmatmul.mubr.bf16.gmra.mrb[0].mxu0 %v635
      %v680 = vpop.f32.mrb[0].mxu0
      %v681 = vadd.f32 0.0, %v680
      %v682 = vpop.f32.mrb[0].mxu0
      %v683 = vpop.f32.mrb[0].mxu0
      %v684 = vadd.f32 0.0, %v683
      %v685 = vpop.f32.mrb[0].mxu0
      %686 = vmatprep.mubr.bf16.mxu0 0
      %687 = vmatmul.mubr.bf16.gmra.mrb[0].mxu0 %v638
      %v688 = vpop.f32.mrb[0].mxu0
      %v689 = vadd.f32 0.0, %v688
      %v690 = vpop.f32.mrb[0].mxu0
      %v691 = vpop.f32.mrb[0].mxu0
      %v692 = vadd.f32 0.0, %v691
      %v693 = vpop.f32.mrb[0].mxu0
      %694 = vmatprep.mubr.bf16.mxu0 0
      %695 = vmatmul.mubr.bf16.gmra.mrb[0].mxu0 %v641
      %v696 = vpop.f32.mrb[0].mxu0
      %v697 = vadd.f32 0.0, %v696
      %v698 = vpop.f32.mrb[0].mxu0
      %v699 = vpop.f32.mrb[0].mxu0
      %v700 = vadd.f32 0.0, %v699
      %v701 = vpop.f32.mrb[0].mxu0
      %702 = vmatprep.mubr.bf16.mxu0 0
      %703 = vmatmul.mubr.bf16.gmra.mrb[0].mxu0 %v644
      %v704 = vpop.f32.mrb[0].mxu0
      %v705 = vadd.f32 0.0, %v704
      %v706 = vpop.f32.mrb[0].mxu0
      %v707 = vpop.f32.mrb[0].mxu0
      %v708 = vadd.f32 0.0, %v707
      %v709 = vpop.f32.mrb[0].mxu0
      %710 = vdwg.mxu0
      %v711 = vadd.f32 %v558, %v681
      %v712 = vadd.f32 %v561, %v684
      %v713 = vadd.f32 %v566, %v689
      %v714 = vadd.f32 %v569, %v692
      %v715 = vadd.f32 %v574, %v697
      %v716 = vadd.f32 %v577, %v700
      %v717 = vadd.f32 %v582, %v705
      %v718 = vadd.f32 %v585, %v708
      %v719 = vld [vmem:[%s588] sm:$0xf]
      %v720 = vld [vmem:[%s588 + $0x4] sm:$0xf]
      %v721 = vld [vmem:[%s588 + $0x8] sm:$0x1]
      %v722 = vld [vmem:[%s588 + $0xc] sm:$0xf]
      %v723 = vld [vmem:[%s588 + $0x10] sm:$0xf]
      %v724 = vld [vmem:[%s588 + $0x14] sm:$0x1]
      %v725 = vld [vmem:[%s588 + $0x18] sm:$0xf]
      %v726 = vld [vmem:[%s588 + $0x1c] sm:$0xf]
      %v727 = vld [vmem:[%s588 + $0x20] sm:$0x1]
      %v728 = vld [vmem:[%s588 + $0x24] sm:$0xf]
      %v729 = vld [vmem:[%s588 + $0x28] sm:$0xf]
      %v730 = vld [vmem:[%s588 + $0x2c] sm:$0x1]
      %v732 = vshrl.u32 %v719, 16
      %v734 = vrot.slane %v732, 4
      %v735 = vshll.u32 %v719, 16
      %v737 = vrot.slane %v735, 5
      %v738 = vor.u32 %v734, %v737
      %v739 = vrot.slane %v738, 4
      %v741 = vshll.u32 %v720, 16
      %v743 = vrot.slane %v741, 5
      %v744 = vsel %vm275, %v739, %v743
      %v745 = vshrl.u32 %v720, 16
      %v747 = vrot.slane %v745, 4
      %v748 = vor.u32 %v747, %v743
      %v749 = vrot.slane %v748, 4
      %v751 = vshll.u32 %v721, 16
      %v753 = vrot.slane %v751, 5
      %v754 = vsel %vm275, %v749, %v753
      %v756 = vshrl.u32 %v722, 16
      %v758 = vrot.slane %v756, 4
      %v759 = vshll.u32 %v722, 16
      %v761 = vrot.slane %v759, 5
      %v762 = vor.u32 %v758, %v761
      %v763 = vrot.slane %v762, 4
      %v765 = vshll.u32 %v723, 16
      %v767 = vrot.slane %v765, 5
      %v768 = vsel %vm275, %v763, %v767
      %v769 = vshrl.u32 %v723, 16
      %v771 = vrot.slane %v769, 4
      %v772 = vor.u32 %v771, %v767
      %v773 = vrot.slane %v772, 4
      %v775 = vshll.u32 %v724, 16
      %v777 = vrot.slane %v775, 5
      %v778 = vsel %vm275, %v773, %v777
      %v780 = vshrl.u32 %v725, 16
      %v782 = vrot.slane %v780, 4
      %v783 = vshll.u32 %v725, 16
      %v785 = vrot.slane %v783, 5
      %v786 = vor.u32 %v782, %v785
      %v787 = vrot.slane %v786, 4
      %v789 = vshll.u32 %v726, 16
      %v791 = vrot.slane %v789, 5
      %v792 = vsel %vm275, %v787, %v791
      %v793 = vshrl.u32 %v726, 16
      %v795 = vrot.slane %v793, 4
      %v796 = vor.u32 %v795, %v791
      %v797 = vrot.slane %v796, 4
      %v799 = vshll.u32 %v727, 16
      %v801 = vrot.slane %v799, 5
      %v802 = vsel %vm275, %v797, %v801
      %v804 = vshrl.u32 %v728, 16
      %v806 = vrot.slane %v804, 4
      %v807 = vshll.u32 %v728, 16
      %v809 = vrot.slane %v807, 5
      %v810 = vor.u32 %v806, %v809
      %v811 = vrot.slane %v810, 4
      %v813 = vshll.u32 %v729, 16
      %v815 = vrot.slane %v813, 5
      %v816 = vsel %vm275, %v811, %v815
      %v817 = vshrl.u32 %v729, 16
      %v819 = vrot.slane %v817, 4
      %v820 = vor.u32 %v819, %v815
      %v821 = vrot.slane %v820, 4
      %v823 = vshll.u32 %v730, 16
      %v825 = vrot.slane %v823, 5
      %v826 = vsel %vm275, %v821, %v825
      %s827 = scalar_lea.vmem %s1, 48
      %v828 = vld [vmem:[%s827] sm:$0xf]
      %v829 = vld [vmem:[%s827 + $0x4] sm:$0xf]
      %v830 = vld [vmem:[%s827 + $0x8] sm:$0xf]
      %v831 = vld [vmem:[%s827 + $0xc] sm:$0xf]
      %v832 = vunpack.c.l.b16 %v744
      %v833 = vunpack.c.l.b16 %v754
      %v834 = vunpack.c.l.b16 %v768
      %v835 = vunpack.c.l.b16 %v778
      %v836 = vunpack.c.l.b16 %v792
      %v837 = vunpack.c.l.b16 %v802
      %v838 = vunpack.c.l.b16 %v816
      %v839 = vunpack.c.l.b16 %v826
      %v840 = vpack.c.b16 %v833, %v832
      %v841 = vpack.c.b16 %v835, %v834
      %v842 = vpack.c.b16 %v837, %v836
      %v843 = vpack.c.b16 %v839, %v838
      %v848 = vunpack.c.l.b16 %v828
      %v849 = vunpack.c.l.b16 %v829
      %v850 = vunpack.c.l.b16 %v830
      %v851 = vunpack.c.l.b16 %v831
      %v852 = vpack.c.b16 %v849, %v848
      %v853 = vpack.c.b16 %v851, %v850
      %v857 = vsel %vm401, %v840, 0
      %v860 = vsel %vm401, %v841, 0
      %v863 = vsel %vm401, %v842, 0
      %v866 = vsel %vm401, %v843, 0
      %868 = vmatprep.subr.bf16.mxu0 0
      %869 = vmatpush1.bf16.msra.mxu0 %v852
      %870 = vmatprep.subr.bf16.mxu0 0
      %871 = vmatpush1.bf16.msra.mxu0 %v853
      %872 = vmatprep.subr.bf16.mxu0 0
      %873 = vmatpush1.bf16.msra.mxu0 0
      %874 = vmatprep.subr.bf16.mxu0 0
      %875 = vmatpush1.bf16.msra.mxu0 0
      %876 = vmatprep.subr.bf16.mxu0 0
      %877 = vmatpush1.bf16.msra.mxu0 0
      %878 = vmatprep.subr.bf16.mxu0 0
      %879 = vmatpush1.bf16.msra.mxu0 0
      %880 = vmatprep.subr.bf16.mxu0 0
      %881 = vmatpush1.bf16.msra.mxu0 0
      %882 = vmatprep.subr.bf16.mxu0 0
      %883 = vmatpush1.bf16.msra.mxu0 0
      %884 = vmatprep.subr.bf16.mxu0 0
      %885 = vmatpush1.bf16.msra.mxu0 0
      %886 = vmatprep.subr.bf16.mxu0 0
      %887 = vmatpush1.bf16.msra.mxu0 0
      %888 = vmatprep.subr.bf16.mxu0 0
      %889 = vmatpush1.bf16.msra.mxu0 0
      %890 = vmatprep.subr.bf16.mxu0 0
      %891 = vmatpush1.bf16.msra.mxu0 0
      %892 = vmatprep.subr.bf16.mxu0 0
      %893 = vmatpush1.bf16.msra.mxu0 0
      %894 = vmatprep.subr.bf16.mxu0 0
      %895 = vmatpush1.bf16.msra.mxu0 0
      %896 = vmatprep.subr.bf16.mxu0 0
      %897 = vmatpush1.bf16.msra.mxu0 0
      %898 = vmatprep.subr.bf16.mxu0 0
      %899 = vmatpush1.bf16.msra.mxu0 0
      %900 = vmatprep.mubr.bf16.mxu0 0
      %901 = vmatmul.mubr.bf16.gmra.mrb[0].mxu0 %v857
      %v902 = vpop.f32.mrb[0].mxu0
      %v903 = vadd.f32 0.0, %v902
      %v904 = vpop.f32.mrb[0].mxu0
      %v905 = vpop.f32.mrb[0].mxu0
      %v906 = vadd.f32 0.0, %v905
      %v907 = vpop.f32.mrb[0].mxu0
      %908 = vmatprep.mubr.bf16.mxu0 0
      %909 = vmatmul.mubr.bf16.gmra.mrb[0].mxu0 %v860
      %v910 = vpop.f32.mrb[0].mxu0
      %v911 = vadd.f32 0.0, %v910
      %v912 = vpop.f32.mrb[0].mxu0
      %v913 = vpop.f32.mrb[0].mxu0
      %v914 = vadd.f32 0.0, %v913
      %v915 = vpop.f32.mrb[0].mxu0
      %916 = vmatprep.mubr.bf16.mxu0 0
      %917 = vmatmul.mubr.bf16.gmra.mrb[0].mxu0 %v863
      %v918 = vpop.f32.mrb[0].mxu0
      %v919 = vadd.f32 0.0, %v918
      %v920 = vpop.f32.mrb[0].mxu0
      %v921 = vpop.f32.mrb[0].mxu0
      %v922 = vadd.f32 0.0, %v921
      %v923 = vpop.f32.mrb[0].mxu0
      %924 = vmatprep.mubr.bf16.mxu0 0
      %925 = vmatmul.mubr.bf16.gmra.mrb[0].mxu0 %v866
      %v926 = vpop.f32.mrb[0].mxu0
      %v927 = vadd.f32 0.0, %v926
      %v928 = vpop.f32.mrb[0].mxu0
      %v929 = vpop.f32.mrb[0].mxu0
      %v930 = vadd.f32 0.0, %v929
      %v931 = vpop.f32.mrb[0].mxu0
      %932 = vdwg.mxu0
      %v933 = vadd.f32 %v711, %v903
      %v934 = vadd.f32 %v712, %v906
      %v935 = vadd.f32 %v713, %v911
      %v936 = vadd.f32 %v714, %v914
      %v937 = vadd.f32 %v715, %v919
      %v938 = vadd.f32 %v716, %v922
      %v939 = vadd.f32 %v717, %v927
      %v940 = vadd.f32 %v718, %v930
      %v941 = vld [vmem:[%s2] sm:$0x1]
      %v943 = vlaneseq
      %v944 = vshrl.u32 %v943, 7
      %v945 = vsub.s32 0, %v944
      %v946 = vrot.slane %v941, %v945
      %v948 = vadd.f32 %v933, %v946
      %v949 = vadd.f32 %v934, %v946
      %v950 = vadd.f32 %v935, %v946
      %v951 = vadd.f32 %v936, %v946
      %v952 = vadd.f32 %v937, %v946
      %v953 = vadd.f32 %v938, %v946
      %v954 = vadd.f32 %v939, %v946
      %v955 = vadd.f32 %v940, %v946
      %v956 = vpack.c.bf16 %v949, %v948
      %v957 = vpack.c.bf16 %v951, %v950
      %v958 = vpack.c.bf16 %v953, %v952
      %v959 = vpack.c.bf16 %v955, %v954
      %v964 = vunpack.c.l.b16 %v956
      %v965 = vunpack.c.h.b16 %v956
      %v966 = vunpack.c.l.b16 %v957
      %v967 = vunpack.c.h.b16 %v957
      %v968 = vunpack.c.l.b16 %v958
      %v969 = vunpack.c.h.b16 %v958
      %v970 = vunpack.c.l.b16 %v959
      %v971 = vunpack.c.h.b16 %v959
      %v972 = vpack.c.b16 %v964, %v964
      %v973 = vpack.c.b16 %v965, %v965
      %v974 = vpack.c.b16 %v966, %v966
      %v975 = vpack.c.b16 %v967, %v967
      %v976 = vpack.c.b16 %v968, %v968
      %v977 = vpack.c.b16 %v969, %v969
      %v978 = vpack.c.b16 %v970, %v970
      %v979 = vpack.c.b16 %v971, %v971
      %vm988 = vcmask 125952
      %989 = vst.msk [vmem:[%s244] sm:$0xf] %vm988, %v972
      %990 = vst.msk [vmem:[%s244 + $0x4] sm:$0xf] %vm988, %v973
      %991 = vst.msk [vmem:[%s244 + $0x8] sm:$0xf] %vm988, %v974
      %992 = vst.msk [vmem:[%s244 + $0xc] sm:$0xf] %vm988, %v975
      %993 = vst.msk [vmem:[%s244 + $0x10] sm:$0xf] %vm988, %v976
      %994 = vst.msk [vmem:[%s244 + $0x14] sm:$0xf] %vm988, %v977
      %995 = vst.msk [vmem:[%s244 + $0x18] sm:$0xf] %vm988, %v978
      %996 = vst.msk [vmem:[%s244 + $0x1c] sm:$0xf] %vm988, %v979
      %vm997 = vcmask 130048
      %v998 = vsel %vm997, %v948, 0.0
      %v999 = vsel %vm997, %v949, 0.0
      %v1000 = vadd.f32 %v998, %v999
      %v1001 = vsel %vm997, %v950, 0.0
      %v1002 = vadd.f32 %v1000, %v1001
      %v1003 = vsel %vm997, %v951, 0.0
      %v1004 = vadd.f32 %v1002, %v1003
      %v1005 = vsel %vm997, %v952, 0.0
      %v1006 = vadd.f32 %v1004, %v1005
      %v1007 = vsel %vm997, %v953, 0.0
      %v1008 = vadd.f32 %v1006, %v1007
      %v1009 = vsel %vm997, %v954, 0.0
      %v1010 = vadd.f32 %v1008, %v1009
      %v1011 = vsel %vm997, %v955, 0.0
      %v1012 = vadd.f32 %v1010, %v1011
      %v1013 = vrot.slane %v1012, 4
      %v1014 = vadd.f32 %v1012, %v1013
      %v1015 = vrot.slane %v1014, 2
      %v1016 = vadd.f32 %v1014, %v1015
      %v1017 = vrot.slane %v1016, 1
      %v1018 = vadd.f32 %v1016, %v1017
      %v1019 = vmul.f32 %v1018, 0.015625
      %v1020 = vsub.f32 %v948, %v1019
      %v1021 = vsub.f32 %v949, %v1019
      %v1022 = vsub.f32 %v950, %v1019
      %v1023 = vsub.f32 %v951, %v1019
      %v1024 = vsub.f32 %v952, %v1019
      %v1025 = vsub.f32 %v953, %v1019
      %v1026 = vsub.f32 %v954, %v1019
      %v1027 = vsub.f32 %v955, %v1019
      %v1028 = vmul.f32 %v1020, %v1020
      %v1029 = vmul.f32 %v1021, %v1021
      %v1030 = vmul.f32 %v1022, %v1022
      %v1031 = vmul.f32 %v1023, %v1023
      %v1032 = vmul.f32 %v1024, %v1024
      %v1033 = vmul.f32 %v1025, %v1025
      %v1034 = vmul.f32 %v1026, %v1026
      %v1035 = vmul.f32 %v1027, %v1027
      %v1036 = vsel %vm997, %v1028, 0.0
      %v1037 = vsel %vm997, %v1029, 0.0
      %v1038 = vadd.f32 %v1036, %v1037
      %v1039 = vsel %vm997, %v1030, 0.0
      %v1040 = vadd.f32 %v1038, %v1039
      %v1041 = vsel %vm997, %v1031, 0.0
      %v1042 = vadd.f32 %v1040, %v1041
      %v1043 = vsel %vm997, %v1032, 0.0
      %v1044 = vadd.f32 %v1042, %v1043
      %v1045 = vsel %vm997, %v1033, 0.0
      %v1046 = vadd.f32 %v1044, %v1045
      %v1047 = vsel %vm997, %v1034, 0.0
      %v1048 = vadd.f32 %v1046, %v1047
      %v1049 = vsel %vm997, %v1035, 0.0
      %v1050 = vadd.f32 %v1048, %v1049
      %v1051 = vrot.slane %v1050, 4
      %v1052 = vadd.f32 %v1050, %v1051
      %v1053 = vrot.slane %v1052, 2
      %v1054 = vadd.f32 %v1052, %v1053
      %v1055 = vrot.slane %v1054, 1
      %v1056 = vadd.f32 %v1054, %v1055
      %vm1057 = vcmask 1040384
      %v1058 = vsel %vm1057, %v1018, %v1056
      %vm1059 = vcmask 123904
      %1060 = vst.msk [vmem:[%s253] sm:$0x3] %vm1059, %v1058
      %s1061 = smul.u32 %s20, 4
      %s1062 = sadd.s32 %s1061, %s21
      %s1063 = smul.u32 8, %s1062
      %p1064 = scmp.lt.s32.totalorder %s1063, 63
      %s1065 = scalar_select %p1064, %s1063, 63
      %s1066 = smul.addr %s1065, 4
      %s1067 = scalar_lea.vmem %s3, %s1066
      %s1068 = smul.u32 %s20, 4
      %s1069 = sadd.s32 %s1068, %s21
      %p1070 = scmp.lt.s32.totalorder %s1069, 7
      %s1071 = scalar_select %p1070, %s1069, 7
      %s1072 = smul.addr %s1071, 2
      %s1073 = scalar_lea.vmem %s4, %s1072
      // Predicated region
      $region33: #{_lambda_.15} parent=31 // pred_check
        %p1074 = pneg %p122
      $region34: #{_lambda_.15} parent=31 // pred_check_branch
        %1076 = sbr.rel (%p1074) target = $region36
      $region35: #{_lambda_.15} parent=31 // pred_region
        %s1077 = smul.u32 %s20, 4
        %s1078 = sadd.s32 %s1077, %s21
        %s1079 = smul.u32 8, %s1078
      $region36: #{_lambda_.15} parent=31 // pred_fallthru
        _
      // Predicated region
      $region37: #{_lambda_.15} parent=31 // pred_check
        %p1080 = pneg %p152
      $region38: #{_lambda_.15} parent=31 // pred_check_branch
        %1082 = sbr.rel (%p1080) target = $region40
      $region39: #{_lambda_.15} parent=31 // pred_region
        %s1083 = smul.u32 %s20, 4
        %s1084 = sadd.s32 %s1083, %s21
      $region40: #{_lambda_.15} parent=31 // pred_fallthru
        _
    $region32: #{_lambda_.15} parent=5 // pred_fallthru
      _
    %p1085 = scmp.le.s32.totalorder 2, %s11
    // Predicated region
    $region41: #{_lambda_.15} parent=5 // pred_check
      %p1086 = pneg %p1085
    $region42: #{_lambda_.15} parent=5 // pred_check_branch
      %1088 = sbr.rel (%p1086) target = $region44
    $region43: #{_lambda_.15} parent=5 // pred_region
      %s1089 = ssub.s32 %s11, 2
      // Predicated region
      $region45: #{_lambda_.15} parent=43 // pred_check
        %p1090 = pneg %p128
      $region46: #{_lambda_.15} parent=43 // pred_check_branch
        %1092 = sbr.rel (%p1090) target = $region48
      $region47: #{_lambda_.15} parent=43 // pred_region
        %s1093 = smul.u32 %s22, 4
        %s1094 = sadd.s32 %s1093, %s23
        %s1095 = smul.u32 8, %s1094
        %p1096 = scmp.lt.s32.totalorder %s1095, 63
        %s1097 = scalar_select %p1096, %s1095, 63
        %s1098 = smul.addr %s1097, 4
        %s1099 = scalar_lea.vmem %s3, %s1098
      $region48: #{_lambda_.15} parent=43 // pred_fallthru
        _
      // Predicated region
      $region49: #{_lambda_.15} parent=43 // pred_check
        %p1100 = pneg %p158
      $region50: #{_lambda_.15} parent=43 // pred_check_branch
        %1102 = sbr.rel (%p1100) target = $region52
      $region51: #{_lambda_.15} parent=43 // pred_region
        %s1103 = smul.u32 %s22, 4
        %s1104 = sadd.s32 %s1103, %s23
        %p1105 = scmp.lt.s32.totalorder %s1104, 7
        %s1106 = scalar_select %p1105, %s1104, 7
        %s1107 = smul.addr %s1106, 2
        %s1108 = scalar_lea.vmem %s4, %s1107
      $region52: #{_lambda_.15} parent=43 // pred_fallthru
        _
    $region44: #{_lambda_.15} parent=5 // pred_fallthru
      _
  $region6: #{_lambda_.15} parent=0 // loop_footer
    %s15 = sadd.s32 1, %s11
  $region7: #{_lambda_.15} parent=0 // loop_footer_branch
    %10 = sbr.rel target = $region3
  $region8: #{_lambda_.15} parent=0 // loop_exit
    _

// kernel: tile.58
$region0: #{tile.58}
  #allocation0 [shape = 's32[1]{0}', space=sflag, size = 0x4, scoped, tag = 'scoped memory for tile.58']
  %s0 = inlined_call_operand.vmem [shape: f32[16], index: 0, kind: input, shape index: {}]
  %s1 = inlined_call_operand.vmem [shape: f32[16,16], index: 1, kind: output, shape index: {}]
  // Predicated region
  $region2: #{tile.58} parent=0 // pred_check
    _
  $region3: #{tile.58} parent=0 // pred_check_branch
    %3 = sbr.rel (0) target = $region5
  $region4: #{tile.58} parent=0 // pred_region
    _
  $region5: #{tile.58} parent=0 // pred_fallthru
    _
  %v4 = vld [vmem:[%s0] ss:$0 sm:$0xff]
  %5 = vst [vmem:[%s1] sm:$0xff] %v4
  %s6 = scalar_lea.vmem %s1, 8
  %7 = vst [vmem:[%s6] sm:$0xff] %v4

// kernel: tile.59
$region0: #{tile.59}
  %s0 = inlined_call_operand.vmem [shape: f32[16,16], index: 0, kind: input, shape index: {}]
  %s1 = inlined_call_operand.vmem [shape: f32[1,256], index: 1, kind: output, shape index: {}]
  $region1: #{tile.59} parent=0
    #allocation0 [shape = 'u8[8192]{0}', space=vmem, size = 0x2000, scoped, tag = 'scoped mem for output reshape']
    %s2 = smov 3
    %v3 = vld [vmem:[%s0] ss:$8 sm:%s2]
    %vm4 = vcmask 130048
    %5 = vst.msk [vmem:[#allocation0] ss:$8 sm:$0x3] %vm4, %v3
    %s6 = scalar_lea.vmem %s0, 7
    %s7 = smov 3
    %v8 = vld [vmem:[%s6] ss:$8 sm:%s7]
    %9 = vrot.lane.b32.xlu0 %v8, 112
    %v10 = vpop.permute.xlu0 %9
    %vm11 = vcmask 1048448
    %12 = vst.msk [vmem:[#allocation0] ss:$8 sm:$0x3] %vm11, %v10
    %s13 = scalar_lea.vmem %s0, 6
    %s14 = smov 3
    %v15 = vld [vmem:[%s13] ss:$8 sm:%s14]
    %16 = vrot.lane.b32.xlu0 %v15, 96
    %v17 = vpop.permute.xlu0 %16
    %vm18 = vcmask 917248
    %19 = vst.msk [vmem:[#allocation0] ss:$8 sm:$0x3] %vm18, %v17
    %s20 = scalar_lea.vmem %s0, 5
    %s21 = smov 3
    %v22 = vld [vmem:[%s20] ss:$8 sm:%s21]
    %23 = vrot.lane.b32.xlu0 %v22, 80
    %v24 = vpop.permute.xlu0 %23
    %vm25 = vcmask 786048
    %26 = vst.msk [vmem:[#allocation0] ss:$8 sm:$0x3] %vm25, %v24
    %s27 = scalar_lea.vmem %s0, 4
    %s28 = smov 3
    %v29 = vld [vmem:[%s27] ss:$8 sm:%s28]
    %30 = vrot.lane.b32.xlu0 %v29, 64
    %v31 = vpop.permute.xlu0 %30
    %vm32 = vcmask 654848
    %33 = vst.msk [vmem:[#allocation0] ss:$8 sm:$0x3] %vm32, %v31
    %s34 = scalar_lea.vmem %s0, 3
    %s35 = smov 3
    %v36 = vld [vmem:[%s34] ss:$8 sm:%s35]
    %37 = vrot.lane.b32.xlu0 %v36, 48
    %v38 = vpop.permute.xlu0 %37
    %vm39 = vcmask 523648
    %40 = vst.msk [vmem:[#allocation0] ss:$8 sm:$0x3] %vm39, %v38
    %s41 = scalar_lea.vmem %s0, 2
    %s42 = smov 3
    %v43 = vld [vmem:[%s41] ss:$8 sm:%s42]
    %44 = vrot.lane.b32.xlu0 %v43, 32
    %v45 = vpop.permute.xlu0 %44
    %vm46 = vcmask 392448
    %47 = vst.msk [vmem:[#allocation0] ss:$8 sm:$0x3] %vm46, %v45
    %s48 = scalar_lea.vmem %s0, 1
    %s49 = smov 3
    %v50 = vld [vmem:[%s48] ss:$8 sm:%s49]
    %51 = vrot.lane.b32.xlu0 %v50, 16
    %v52 = vpop.permute.xlu0 %51
    %vm53 = vcmask 261248
    %54 = vst.msk [vmem:[#allocation0] ss:$8 sm:$0x3] %vm53, %v52
    %s56 = sshllo.u32 0, 1
    %v58 = vld [vmem:[#allocation0] sm:%s56]
    %s59 = sshllo.u32 0, 1
    %60 = vst [vmem:[%s1] sm:%s59] %v58
    %s61 = scalar_lea.vmem [#allocation0], 8
    %v62 = vld [vmem:[%s61] sm:%s56]
    %s63 = sshllo.u32 0, 1
    %s64 = scalar_lea.vmem %s1, 1
    %65 = vst [vmem:[%s64] sm:%s63] %v62

// kernel: _lambda_.16
$region0: #{_lambda_.16}
  #allocation0 [shape = 'u32[]', space=smem, size = 0x4, offset = 0x4, fixed_abs, tag = 'smem constant byte address 0x4 - core index']
  #allocation1 [shape = 'u32[144,128]{1,0:T(1,128)}', space=vmem, size = 0x12000, scoped, tag = 'internal scratch']
  %s0 = inlined_call_operand.vmem [shape: bf16[32,256], index: 0, kind: input, shape index: {}]
  %s1 = inlined_call_operand.vmem [shape: f32[1,256], index: 1, kind: input, shape index: {}]
  %s2 = inlined_call_operand.vmem [shape: f32[1,256], index: 2, kind: input, shape index: {}]
  %s3 = inlined_call_operand.vmem [shape: bf16[32,256], index: 3, kind: output, shape index: {}]
  %s4 = sld [smem:[#allocation0]]
  $region22: #{_lambda_.16} parent=0
    _
  %s6 = ssub.s32 1, %s4
  %s7 = scalar_select 0, %s6, %s4
  // Predicated region
  $region2: #{_lambda_.16} parent=0 // pred_check
    _
  $region3: #{_lambda_.16} parent=0 // pred_check_branch
    %9 = sbr.rel (0) target = $region5
  $region4: #{_lambda_.16} parent=0 // pred_region
    _
  $region5: #{_lambda_.16} parent=0 // pred_fallthru
    _
  // Predicated region
  $region6: #{_lambda_.16} parent=0 // pred_check
    _
  $region7: #{_lambda_.16} parent=0 // pred_check_branch
    %11 = sbr.rel (0) target = $region9
  $region8: #{_lambda_.16} parent=0 // pred_region
    _
  $region9: #{_lambda_.16} parent=0 // pred_fallthru
    _
  // Predicated region
  $region10: #{_lambda_.16} parent=0 // pred_check
    _
  $region11: #{_lambda_.16} parent=0 // pred_check_branch
    %13 = sbr.rel (0) target = $region13
  $region12: #{_lambda_.16} parent=0 // pred_region
    _
  $region13: #{_lambda_.16} parent=0 // pred_fallthru
    _
  %v14 = vld [vmem:[%s0] sm:$0xff]
  %v15 = vld [vmem:[%s0 + $0x8] sm:$0xff]
  %v16 = vld [vmem:[%s0 + $0x10] sm:$0xff]
  %v17 = vld [vmem:[%s0 + $0x18] sm:$0xff]
  %v18 = vunpack.c.l.bf16 %v14
  %v19 = vunpack.c.h.bf16 %v14
  %v20 = vunpack.c.l.bf16 %v15
  %v21 = vunpack.c.h.bf16 %v15
  %v22 = vunpack.c.l.bf16 %v16
  %v23 = vunpack.c.h.bf16 %v16
  %v24 = vunpack.c.l.bf16 %v17
  %v25 = vunpack.c.h.bf16 %v17
  %v26 = vld [vmem:[%s1] sm:$0x3]
  %v28 = vlaneseq
  %v29 = vshrl.u32 %v28, 7
  %v30 = vsub.s32 0, %v29
  %v31 = vrot.slane %v26, %v30
  %v32 = vlaneseq
  %v33 = vshrl.u32 %v32, 7
  %v34 = vsub.s32 1, %v33
  %v35 = vrot.slane %v26, %v34
  %v38 = vmul.f32 %v18, %v31
  %v39 = vmul.f32 %v19, %v35
  %v40 = vmul.f32 %v20, %v31
  %v41 = vmul.f32 %v21, %v35
  %v42 = vmul.f32 %v22, %v31
  %v43 = vmul.f32 %v23, %v35
  %v44 = vmul.f32 %v24, %v31
  %v45 = vmul.f32 %v25, %v35
  %v46 = vld [vmem:[%s2] sm:$0x3]
  %v48 = vlaneseq
  %v49 = vshrl.u32 %v48, 7
  %v50 = vsub.s32 0, %v49
  %v51 = vrot.slane %v46, %v50
  %v52 = vlaneseq
  %v53 = vshrl.u32 %v52, 7
  %v54 = vsub.s32 1, %v53
  %v55 = vrot.slane %v46, %v54
  %v58 = vadd.f32 %v38, %v51
  %v59 = vadd.f32 %v39, %v55
  %v60 = vadd.f32 %v40, %v51
  %v61 = vadd.f32 %v41, %v55
  %v62 = vadd.f32 %v42, %v51
  %v63 = vadd.f32 %v43, %v55
  %v64 = vadd.f32 %v44, %v51
  %v65 = vadd.f32 %v45, %v55
  %vm66 = vcmp.ge.f32.partialorder %v58, 0.0
  %vm67 = vcmp.ge.f32.partialorder %v59, 0.0
  %vm68 = vcmp.ge.f32.partialorder %v60, 0.0
  %vm69 = vcmp.ge.f32.partialorder %v61, 0.0
  %vm70 = vcmp.ge.f32.partialorder %v62, 0.0
  %vm71 = vcmp.ge.f32.partialorder %v63, 0.0
  %vm72 = vcmp.ge.f32.partialorder %v64, 0.0
  %vm73 = vcmp.ge.f32.partialorder %v65, 0.0
  %v74 = vmul.f32 %v58, 0.2
  %v75 = vmul.f32 %v59, 0.2
  %v76 = vmul.f32 %v60, 0.2
  %v77 = vmul.f32 %v61, 0.2
  %v78 = vmul.f32 %v62, 0.2
  %v79 = vmul.f32 %v63, 0.2
  %v80 = vmul.f32 %v64, 0.2
  %v81 = vmul.f32 %v65, 0.2
  %v82 = vsel %vm66, %v58, %v74
  %v83 = vsel %vm67, %v59, %v75
  %v84 = vsel %vm68, %v60, %v76
  %v85 = vsel %vm69, %v61, %v77
  %v86 = vsel %vm70, %v62, %v78
  %v87 = vsel %vm71, %v63, %v79
  %v88 = vsel %vm72, %v64, %v80
  %v89 = vsel %vm73, %v65, %v81
  %v90 = vpack.c.bf16 %v84, %v82
  %v91 = vpack.c.bf16 %v85, %v83
  %v92 = vpack.c.bf16 %v88, %v86
  %v93 = vpack.c.bf16 %v89, %v87
  %v98 = vunpack.c.l.b16 %v90
  %v99 = vunpack.c.l.b16 %v91
  %v100 = vunpack.c.h.b16 %v90
  %v101 = vunpack.c.h.b16 %v91
  %v102 = vunpack.c.l.b16 %v92
  %v103 = vunpack.c.l.b16 %v93
  %v104 = vunpack.c.h.b16 %v92
  %v105 = vunpack.c.h.b16 %v93
  %v106 = vpack.c.b16 %v99, %v98
  %v107 = vpack.c.b16 %v101, %v100
  %v108 = vpack.c.b16 %v103, %v102
  %v109 = vpack.c.b16 %v105, %v104
  %114 = vst [vmem:[%s3] sm:$0xff] %v106
  %115 = vst [vmem:[%s3 + $0x8] sm:$0xff] %v107
  %116 = vst [vmem:[%s3 + $0x10] sm:$0xff] %v108
  %117 = vst [vmem:[%s3 + $0x18] sm:$0xff] %v109
  // Predicated region
  $region14: #{_lambda_.16} parent=0 // pred_check
    _
  $region15: #{_lambda_.16} parent=0 // pred_check_branch
    %119 = sbr.rel (0) target = $region17
  $region16: #{_lambda_.16} parent=0 // pred_region
    _
  $region17: #{_lambda_.16} parent=0 // pred_fallthru
    _
  // Predicated region
  $region18: #{_lambda_.16} parent=0 // pred_check
    _
  $region19: #{_lambda_.16} parent=0 // pred_check_branch
    %121 = sbr.rel (0) target = $region21
  $region20: #{_lambda_.16} parent=0 // pred_region
    _
  $region21: #{_lambda_.16} parent=0 // pred_fallthru
    _

// kernel: _lambda_.17
$region0: #{_lambda_.17}
  #allocation0 [shape = 'u32[]', space=smem, size = 0x4, offset = 0x4, fixed_abs, tag = 'smem constant byte address 0x4 - core index']
  #allocation1 [shape = 'u32[144,128]{1,0:T(1,128)}', space=vmem, size = 0x12000, scoped, tag = 'internal scratch']
  %s0 = inlined_call_operand.vmem [shape: bf16[128,144], index: 0, kind: input, shape index: {}]
  %s1 = inlined_call_operand.vmem [shape: bf16[144,32], index: 1, kind: input, shape index: {}]
  %s2 = inlined_call_operand.vmem [shape: f32[1,32], index: 2, kind: input, shape index: {}]
  %s3 = inlined_call_operand.vmem [shape: f32[2,32], index: 3, kind: input, shape index: {}]
  %s4 = inlined_call_operand.vmem [shape: bf16[128,32], index: 4, kind: output, shape index: {}]
  %s5 = sld [smem:[#allocation0]]
  $region26: #{_lambda_.17} parent=0
    _
  %s7 = ssub.s32 1, %s5
  %s8 = scalar_select 0, %s7, %s5
  // Predicated region
  $region2: #{_lambda_.17} parent=0 // pred_check
    _
  $region3: #{_lambda_.17} parent=0 // pred_check_branch
    %10 = sbr.rel (0) target = $region5
  $region4: #{_lambda_.17} parent=0 // pred_region
    _
  $region5: #{_lambda_.17} parent=0 // pred_fallthru
    _
  // Predicated region
  $region6: #{_lambda_.17} parent=0 // pred_check
    _
  $region7: #{_lambda_.17} parent=0 // pred_check_branch
    %12 = sbr.rel (0) target = $region9
  $region8: #{_lambda_.17} parent=0 // pred_region
    _
  $region9: #{_lambda_.17} parent=0 // pred_fallthru
    _
  // Predicated region
  $region10: #{_lambda_.17} parent=0 // pred_check
    _
  $region11: #{_lambda_.17} parent=0 // pred_check_branch
    %14 = sbr.rel (0) target = $region13
  $region12: #{_lambda_.17} parent=0 // pred_region
    _
  $region13: #{_lambda_.17} parent=0 // pred_fallthru
    _
  // Predicated region
  $region14: #{_lambda_.17} parent=0 // pred_check
    _
  $region15: #{_lambda_.17} parent=0 // pred_check_branch
    %16 = sbr.rel (0) target = $region17
  $region16: #{_lambda_.17} parent=0 // pred_region
    _
  $region17: #{_lambda_.17} parent=0 // pred_fallthru
    _
  %v18 = vld [vmem:[%s0] sm:$0xff]
  %v19 = vld [vmem:[%s0 + $0x8] sm:$0xff]
  %v20 = vld [vmem:[%s0 + $0x10] sm:$0xff]
  %v21 = vld [vmem:[%s0 + $0x18] sm:$0xff]
  %v22 = vld [vmem:[%s0 + $0x20] sm:$0xff]
  %v23 = vld [vmem:[%s0 + $0x28] sm:$0xff]
  %v24 = vld [vmem:[%s0 + $0x30] sm:$0xff]
  %v25 = vld [vmem:[%s0 + $0x38] sm:$0xff]
  %v26 = vld [vmem:[%s0 + $0x40] sm:$0xff]
  %v27 = vld [vmem:[%s0 + $0x48] sm:$0xff]
  %v28 = vld [vmem:[%s0 + $0x50] sm:$0xff]
  %v29 = vld [vmem:[%s0 + $0x58] sm:$0xff]
  %v30 = vld [vmem:[%s0 + $0x60] sm:$0xff]
  %v31 = vld [vmem:[%s0 + $0x68] sm:$0xff]
  %v32 = vld [vmem:[%s0 + $0x70] sm:$0xff]
  %v33 = vld [vmem:[%s0 + $0x78] sm:$0xff]
  %v34 = vld [vmem:[%s1] sm:$0xf]
  %v35 = vld [vmem:[%s1 + $0x4] sm:$0xf]
  %v36 = vld [vmem:[%s1 + $0x8] sm:$0xf]
  %v37 = vld [vmem:[%s1 + $0xc] sm:$0xf]
  %v38 = vld [vmem:[%s1 + $0x10] sm:$0xf]
  %v39 = vld [vmem:[%s1 + $0x14] sm:$0xf]
  %v40 = vld [vmem:[%s1 + $0x18] sm:$0xf]
  %v41 = vld [vmem:[%s1 + $0x1c] sm:$0xf]
  %v42 = vld [vmem:[%s1 + $0x20] sm:$0xf]
  %v43 = vld [vmem:[%s1 + $0x24] sm:$0xf]
  %v44 = vld [vmem:[%s1 + $0x28] sm:$0xf]
  %v45 = vld [vmem:[%s1 + $0x2c] sm:$0xf]
  %v46 = vld [vmem:[%s1 + $0x30] sm:$0xf]
  %v47 = vld [vmem:[%s1 + $0x34] sm:$0xf]
  %v48 = vld [vmem:[%s1 + $0x38] sm:$0xf]
  %v49 = vld [vmem:[%s1 + $0x3c] sm:$0xf]
  %v50 = vld [vmem:[%s1 + $0x40] sm:$0xf]
  %v51 = vld [vmem:[%s1 + $0x44] sm:$0xf]
  %v52 = vld [vmem:[%s2] sm:$0x1]
  %v54 = vlaneseq
  %v55 = vshrl.u32 %v54, 7
  %v56 = vsub.s32 0, %v55
  %v57 = vrot.slane %v52, %v56
  %v75 = vunpack.c.l.b16 %v18
  %v76 = vunpack.c.h.b16 %v18
  %v77 = vunpack.c.l.b16 %v19
  %v78 = vunpack.c.h.b16 %v19
  %v79 = vunpack.c.l.b16 %v20
  %v80 = vunpack.c.h.b16 %v20
  %v81 = vunpack.c.l.b16 %v21
  %v82 = vunpack.c.h.b16 %v21
  %v83 = vunpack.c.l.b16 %v22
  %v84 = vunpack.c.h.b16 %v22
  %v85 = vunpack.c.l.b16 %v23
  %v86 = vunpack.c.h.b16 %v23
  %v87 = vunpack.c.l.b16 %v24
  %v88 = vunpack.c.h.b16 %v24
  %v89 = vunpack.c.l.b16 %v25
  %v90 = vunpack.c.h.b16 %v25
  %v91 = vunpack.c.l.b16 %v26
  %v92 = vunpack.c.h.b16 %v26
  %v93 = vunpack.c.l.b16 %v27
  %v94 = vunpack.c.h.b16 %v27
  %v95 = vunpack.c.l.b16 %v28
  %v96 = vunpack.c.h.b16 %v28
  %v97 = vunpack.c.l.b16 %v29
  %v98 = vunpack.c.h.b16 %v29
  %v99 = vunpack.c.l.b16 %v30
  %v100 = vunpack.c.h.b16 %v30
  %v101 = vunpack.c.l.b16 %v31
  %v102 = vunpack.c.h.b16 %v31
  %v103 = vunpack.c.l.b16 %v32
  %v104 = vunpack.c.h.b16 %v32
  %v105 = vunpack.c.l.b16 %v33
  %v106 = vunpack.c.h.b16 %v33
  %v107 = vpack.c.b16 %v77, %v75
  %v108 = vpack.c.b16 %v78, %v76
  %v109 = vpack.c.b16 %v81, %v79
  %v110 = vpack.c.b16 %v82, %v80
  %v111 = vpack.c.b16 %v85, %v83
  %v112 = vpack.c.b16 %v86, %v84
  %v113 = vpack.c.b16 %v89, %v87
  %v114 = vpack.c.b16 %v90, %v88
  %v115 = vpack.c.b16 %v93, %v91
  %v116 = vpack.c.b16 %v94, %v92
  %v117 = vpack.c.b16 %v97, %v95
  %v118 = vpack.c.b16 %v98, %v96
  %v119 = vpack.c.b16 %v101, %v99
  %v120 = vpack.c.b16 %v102, %v100
  %v121 = vpack.c.b16 %v105, %v103
  %v122 = vpack.c.b16 %v106, %v104
  %v149 = vunpack.c.l.b16 %v34
  %v150 = vunpack.c.l.b16 %v35
  %v151 = vunpack.c.l.b16 %v36
  %v152 = vunpack.c.l.b16 %v37
  %v153 = vunpack.c.l.b16 %v38
  %v154 = vunpack.c.l.b16 %v39
  %v155 = vunpack.c.l.b16 %v40
  %v156 = vunpack.c.l.b16 %v41
  %v157 = vunpack.c.l.b16 %v42
  %v158 = vunpack.c.l.b16 %v43
  %v159 = vunpack.c.l.b16 %v44
  %v160 = vunpack.c.l.b16 %v45
  %v161 = vunpack.c.l.b16 %v46
  %v162 = vunpack.c.l.b16 %v47
  %v163 = vunpack.c.l.b16 %v48
  %v164 = vunpack.c.l.b16 %v49
  %v165 = vunpack.c.l.b16 %v50
  %v166 = vunpack.c.l.b16 %v51
  %v167 = vpack.c.b16 %v150, %v149
  %v168 = vpack.c.b16 %v152, %v151
  %v169 = vpack.c.b16 %v154, %v153
  %v170 = vpack.c.b16 %v156, %v155
  %v171 = vpack.c.b16 %v158, %v157
  %v172 = vpack.c.b16 %v160, %v159
  %v173 = vpack.c.b16 %v162, %v161
  %v174 = vpack.c.b16 %v164, %v163
  %v175 = vpack.c.b16 %v166, %v165
  %vm185 = vcmask 130048
  %v187 = vsel %vm185, %v108, 0
  %v190 = vsel %vm185, %v110, 0
  %v193 = vsel %vm185, %v112, 0
  %v196 = vsel %vm185, %v114, 0
  %v199 = vsel %vm185, %v116, 0
  %v202 = vsel %vm185, %v118, 0
  %v205 = vsel %vm185, %v120, 0
  %v208 = vsel %vm185, %v122, 0
  %210 = vmatprep.subr.bf16.mxu0 0
  %211 = vmatpush1.bf16.msra.mxu0 %v167
  %212 = vmatprep.subr.bf16.mxu0 0
  %213 = vmatpush1.bf16.msra.mxu0 %v168
  %214 = vmatprep.subr.bf16.mxu0 0
  %215 = vmatpush1.bf16.msra.mxu0 %v169
  %216 = vmatprep.subr.bf16.mxu0 0
  %217 = vmatpush1.bf16.msra.mxu0 %v170
  %218 = vmatprep.subr.bf16.mxu0 0
  %219 = vmatpush1.bf16.msra.mxu0 %v171
  %220 = vmatprep.subr.bf16.mxu0 0
  %221 = vmatpush1.bf16.msra.mxu0 %v172
  %222 = vmatprep.subr.bf16.mxu0 0
  %223 = vmatpush1.bf16.msra.mxu0 %v173
  %224 = vmatprep.subr.bf16.mxu0 0
  %225 = vmatpush1.bf16.msra.mxu0 %v174
  %226 = vmatprep.subr.bf16.mxu0 0
  %227 = vmatpush1.bf16.msra.mxu0 %v175
  %228 = vmatprep.subr.bf16.mxu0 0
  %229 = vmatpush1.bf16.msra.mxu0 0
  %230 = vmatprep.subr.bf16.mxu0 0
  %231 = vmatpush1.bf16.msra.mxu0 0
  %232 = vmatprep.subr.bf16.mxu0 0
  %233 = vmatpush1.bf16.msra.mxu0 0
  %234 = vmatprep.subr.bf16.mxu0 0
  %235 = vmatpush1.bf16.msra.mxu0 0
  %236 = vmatprep.subr.bf16.mxu0 0
  %237 = vmatpush1.bf16.msra.mxu0 0
  %238 = vmatprep.subr.bf16.mxu0 0
  %239 = vmatpush1.bf16.msra.mxu0 0
  %240 = vmatprep.subr.bf16.mxu0 0
  %241 = vmatpush1.bf16.msra.mxu0 0
  %242 = vmatprep.mubr.bf16.mxu0 %v187
  %243 = vmatmul.mubr.bf16.gmra.mrb[0].mxu0 %v107
  %v244 = vpop.f32.mrb[0].mxu0
  %v245 = vadd.f32 %v57, %v244
  %v246 = vpop.f32.mrb[0].mxu0
  %v247 = vpop.f32.mrb[0].mxu0
  %v248 = vadd.f32 %v57, %v247
  %v249 = vpop.f32.mrb[0].mxu0
  %250 = vmatprep.mubr.bf16.mxu0 %v190
  %251 = vmatmul.mubr.bf16.gmra.mrb[0].mxu0 %v109
  %v252 = vpop.f32.mrb[0].mxu0
  %v253 = vadd.f32 %v57, %v252
  %v254 = vpop.f32.mrb[0].mxu0
  %v255 = vpop.f32.mrb[0].mxu0
  %v256 = vadd.f32 %v57, %v255
  %v257 = vpop.f32.mrb[0].mxu0
  %258 = vmatprep.mubr.bf16.mxu0 %v193
  %259 = vmatmul.mubr.bf16.gmra.mrb[0].mxu0 %v111
  %v260 = vpop.f32.mrb[0].mxu0
  %v261 = vadd.f32 %v57, %v260
  %v262 = vpop.f32.mrb[0].mxu0
  %v263 = vpop.f32.mrb[0].mxu0
  %v264 = vadd.f32 %v57, %v263
  %v265 = vpop.f32.mrb[0].mxu0
  %266 = vmatprep.mubr.bf16.mxu0 %v196
  %267 = vmatmul.mubr.bf16.gmra.mrb[0].mxu0 %v113
  %v268 = vpop.f32.mrb[0].mxu0
  %v269 = vadd.f32 %v57, %v268
  %v270 = vpop.f32.mrb[0].mxu0
  %v271 = vpop.f32.mrb[0].mxu0
  %v272 = vadd.f32 %v57, %v271
  %v273 = vpop.f32.mrb[0].mxu0
  %274 = vmatprep.mubr.bf16.mxu0 %v199
  %275 = vmatmul.mubr.bf16.gmra.mrb[0].mxu0 %v115
  %v276 = vpop.f32.mrb[0].mxu0
  %v277 = vadd.f32 %v57, %v276
  %v278 = vpop.f32.mrb[0].mxu0
  %v279 = vpop.f32.mrb[0].mxu0
  %v280 = vadd.f32 %v57, %v279
  %v281 = vpop.f32.mrb[0].mxu0
  %282 = vmatprep.mubr.bf16.mxu0 %v202
  %283 = vmatmul.mubr.bf16.gmra.mrb[0].mxu0 %v117
  %v284 = vpop.f32.mrb[0].mxu0
  %v285 = vadd.f32 %v57, %v284
  %v286 = vpop.f32.mrb[0].mxu0
  %v287 = vpop.f32.mrb[0].mxu0
  %v288 = vadd.f32 %v57, %v287
  %v289 = vpop.f32.mrb[0].mxu0
  %290 = vmatprep.mubr.bf16.mxu0 %v205
  %291 = vmatmul.mubr.bf16.gmra.mrb[0].mxu0 %v119
  %v292 = vpop.f32.mrb[0].mxu0
  %v293 = vadd.f32 %v57, %v292
  %v294 = vpop.f32.mrb[0].mxu0
  %v295 = vpop.f32.mrb[0].mxu0
  %v296 = vadd.f32 %v57, %v295
  %v297 = vpop.f32.mrb[0].mxu0
  %298 = vmatprep.mubr.bf16.mxu0 %v208
  %299 = vmatmul.mubr.bf16.gmra.mrb[0].mxu0 %v121
  %v300 = vpop.f32.mrb[0].mxu0
  %v301 = vadd.f32 %v57, %v300
  %v302 = vpop.f32.mrb[0].mxu0
  %v303 = vpop.f32.mrb[0].mxu0
  %v304 = vadd.f32 %v57, %v303
  %v305 = vpop.f32.mrb[0].mxu0
  %306 = vdwg.mxu0
  %vm307 = vcmask 261120
  %v308 = vsel %vm307, %v245, 0.0
  %v309 = vsel %vm307, %v248, 0.0
  %v310 = vadd.f32 %v308, %v309
  %v311 = vsel %vm307, %v253, 0.0
  %v312 = vadd.f32 %v310, %v311
  %v313 = vsel %vm307, %v256, 0.0
  %v314 = vadd.f32 %v312, %v313
  %v315 = vsel %vm307, %v261, 0.0
  %v316 = vadd.f32 %v314, %v315
  %v317 = vsel %vm307, %v264, 0.0
  %v318 = vadd.f32 %v316, %v317
  %v319 = vsel %vm307, %v269, 0.0
  %v320 = vadd.f32 %v318, %v319
  %v321 = vsel %vm307, %v272, 0.0
  %v322 = vadd.f32 %v320, %v321
  %v323 = vsel %vm307, %v277, 0.0
  %v324 = vadd.f32 %v322, %v323
  %v325 = vsel %vm307, %v280, 0.0
  %v326 = vadd.f32 %v324, %v325
  %v327 = vsel %vm307, %v285, 0.0
  %v328 = vadd.f32 %v326, %v327
  %v329 = vsel %vm307, %v288, 0.0
  %v330 = vadd.f32 %v328, %v329
  %v331 = vsel %vm307, %v293, 0.0
  %v332 = vadd.f32 %v330, %v331
  %v333 = vsel %vm307, %v296, 0.0
  %v334 = vadd.f32 %v332, %v333
  %v335 = vsel %vm307, %v301, 0.0
  %v336 = vadd.f32 %v334, %v335
  %v337 = vsel %vm307, %v304, 0.0
  %v338 = vadd.f32 %v336, %v337
  %v339 = vrot.slane %v338, 4
  %v340 = vadd.f32 %v338, %v339
  %v341 = vrot.slane %v340, 2
  %v342 = vadd.f32 %v340, %v341
  %v343 = vrot.slane %v342, 1
  %v344 = vadd.f32 %v342, %v343
  %v345 = vrcp.pop 128.0
  %v346 = vmul.f32 %v344, %v345
  %v347 = vsub.f32 %v245, %v346
  %v348 = vsub.f32 %v248, %v346
  %v349 = vsub.f32 %v253, %v346
  %v350 = vsub.f32 %v256, %v346
  %v351 = vsub.f32 %v261, %v346
  %v352 = vsub.f32 %v264, %v346
  %v353 = vsub.f32 %v269, %v346
  %v354 = vsub.f32 %v272, %v346
  %v355 = vsub.f32 %v277, %v346
  %v356 = vsub.f32 %v280, %v346
  %v357 = vsub.f32 %v285, %v346
  %v358 = vsub.f32 %v288, %v346
  %v359 = vsub.f32 %v293, %v346
  %v360 = vsub.f32 %v296, %v346
  %v361 = vsub.f32 %v301, %v346
  %v362 = vsub.f32 %v304, %v346
  %v363 = vmul.f32 %v347, %v347
  %v364 = vmul.f32 %v348, %v348
  %v365 = vmul.f32 %v349, %v349
  %v366 = vmul.f32 %v350, %v350
  %v367 = vmul.f32 %v351, %v351
  %v368 = vmul.f32 %v352, %v352
  %v369 = vmul.f32 %v353, %v353
  %v370 = vmul.f32 %v354, %v354
  %v371 = vmul.f32 %v355, %v355
  %v372 = vmul.f32 %v356, %v356
  %v373 = vmul.f32 %v357, %v357
  %v374 = vmul.f32 %v358, %v358
  %v375 = vmul.f32 %v359, %v359
  %v376 = vmul.f32 %v360, %v360
  %v377 = vmul.f32 %v361, %v361
  %v378 = vmul.f32 %v362, %v362
  %v379 = vsel %vm307, %v363, 0.0
  %v380 = vsel %vm307, %v364, 0.0
  %v381 = vadd.f32 %v379, %v380
  %v382 = vsel %vm307, %v365, 0.0
  %v383 = vadd.f32 %v381, %v382
  %v384 = vsel %vm307, %v366, 0.0
  %v385 = vadd.f32 %v383, %v384
  %v386 = vsel %vm307, %v367, 0.0
  %v387 = vadd.f32 %v385, %v386
  %v388 = vsel %vm307, %v368, 0.0
  %v389 = vadd.f32 %v387, %v388
  %v390 = vsel %vm307, %v369, 0.0
  %v391 = vadd.f32 %v389, %v390
  %v392 = vsel %vm307, %v370, 0.0
  %v393 = vadd.f32 %v391, %v392
  %v394 = vsel %vm307, %v371, 0.0
  %v395 = vadd.f32 %v393, %v394
  %v396 = vsel %vm307, %v372, 0.0
  %v397 = vadd.f32 %v395, %v396
  %v398 = vsel %vm307, %v373, 0.0
  %v399 = vadd.f32 %v397, %v398
  %v400 = vsel %vm307, %v374, 0.0
  %v401 = vadd.f32 %v399, %v400
  %v402 = vsel %vm307, %v375, 0.0
  %v403 = vadd.f32 %v401, %v402
  %v404 = vsel %vm307, %v376, 0.0
  %v405 = vadd.f32 %v403, %v404
  %v406 = vsel %vm307, %v377, 0.0
  %v407 = vadd.f32 %v405, %v406
  %v408 = vsel %vm307, %v378, 0.0
  %v409 = vadd.f32 %v407, %v408
  %v410 = vrot.slane %v409, 4
  %v411 = vadd.f32 %v409, %v410
  %v412 = vrot.slane %v411, 2
  %v413 = vadd.f32 %v411, %v412
  %v414 = vrot.slane %v413, 1
  %v415 = vadd.f32 %v413, %v414
  %v416 = vmul.f32 %v415, %v345
  %v417 = vld [vmem:[%s3] sm:$0x1]
  %v418 = vadd.f32 %v416, 1e-05
  %v419 = vrsqrt.pop %v418
  %v420 = vmul.f32 %v417, %v419
  %v421 = vlaneseq
  %v422 = vshrl.u32 %v421, 7
  %v423 = vsub.s32 0, %v422
  %v424 = vrot.slane %v420, %v423
  %v425 = vmul.f32 %v347, %v424
  %v426 = vmul.f32 %v348, %v424
  %v427 = vmul.f32 %v349, %v424
  %v428 = vmul.f32 %v350, %v424
  %v429 = vmul.f32 %v351, %v424
  %v430 = vmul.f32 %v352, %v424
  %v431 = vmul.f32 %v353, %v424
  %v432 = vmul.f32 %v354, %v424
  %v433 = vmul.f32 %v355, %v424
  %v434 = vmul.f32 %v356, %v424
  %v435 = vmul.f32 %v357, %v424
  %v436 = vmul.f32 %v358, %v424
  %v437 = vmul.f32 %v359, %v424
  %v438 = vmul.f32 %v360, %v424
  %v439 = vmul.f32 %v361, %v424
  %v440 = vmul.f32 %v362, %v424
  %v441 = vld [vmem:[%s3 + $0x1] sm:$0x1]
  %v442 = vlaneseq
  %v443 = vshrl.u32 %v442, 7
  %v444 = vsub.s32 0, %v443
  %v445 = vrot.slane %v441, %v444
  %v446 = vadd.f32 %v425, %v445
  %v447 = vadd.f32 %v426, %v445
  %v448 = vadd.f32 %v427, %v445
  %v449 = vadd.f32 %v428, %v445
  %v450 = vadd.f32 %v429, %v445
  %v451 = vadd.f32 %v430, %v445
  %v452 = vadd.f32 %v431, %v445
  %v453 = vadd.f32 %v432, %v445
  %v454 = vadd.f32 %v433, %v445
  %v455 = vadd.f32 %v434, %v445
  %v456 = vadd.f32 %v435, %v445
  %v457 = vadd.f32 %v436, %v445
  %v458 = vadd.f32 %v437, %v445
  %v459 = vadd.f32 %v438, %v445
  %v460 = vadd.f32 %v439, %v445
  %v461 = vadd.f32 %v440, %v445
  %vm462 = vcmp.ge.f32.partialorder %v446, 0.0
  %vm463 = vcmp.ge.f32.partialorder %v447, 0.0
  %vm464 = vcmp.ge.f32.partialorder %v448, 0.0
  %vm465 = vcmp.ge.f32.partialorder %v449, 0.0
  %vm466 = vcmp.ge.f32.partialorder %v450, 0.0
  %vm467 = vcmp.ge.f32.partialorder %v451, 0.0
  %vm468 = vcmp.ge.f32.partialorder %v452, 0.0
  %vm469 = vcmp.ge.f32.partialorder %v453, 0.0
  %vm470 = vcmp.ge.f32.partialorder %v454, 0.0
  %vm471 = vcmp.ge.f32.partialorder %v455, 0.0
  %vm472 = vcmp.ge.f32.partialorder %v456, 0.0
  %vm473 = vcmp.ge.f32.partialorder %v457, 0.0
  %vm474 = vcmp.ge.f32.partialorder %v458, 0.0
  %vm475 = vcmp.ge.f32.partialorder %v459, 0.0
  %vm476 = vcmp.ge.f32.partialorder %v460, 0.0
  %vm477 = vcmp.ge.f32.partialorder %v461, 0.0
  %v478 = vmul.f32 %v446, 0.2
  %v479 = vmul.f32 %v447, 0.2
  %v480 = vmul.f32 %v448, 0.2
  %v481 = vmul.f32 %v449, 0.2
  %v482 = vmul.f32 %v450, 0.2
  %v483 = vmul.f32 %v451, 0.2
  %v484 = vmul.f32 %v452, 0.2
  %v485 = vmul.f32 %v453, 0.2
  %v486 = vmul.f32 %v454, 0.2
  %v487 = vmul.f32 %v455, 0.2
  %v488 = vmul.f32 %v456, 0.2
  %v489 = vmul.f32 %v457, 0.2
  %v490 = vmul.f32 %v458, 0.2
  %v491 = vmul.f32 %v459, 0.2
  %v492 = vmul.f32 %v460, 0.2
  %v493 = vmul.f32 %v461, 0.2
  %v494 = vsel %vm462, %v446, %v478
  %v495 = vsel %vm463, %v447, %v479
  %v496 = vsel %vm464, %v448, %v480
  %v497 = vsel %vm465, %v449, %v481
  %v498 = vsel %vm466, %v450, %v482
  %v499 = vsel %vm467, %v451, %v483
  %v500 = vsel %vm468, %v452, %v484
  %v501 = vsel %vm469, %v453, %v485
  %v502 = vsel %vm470, %v454, %v486
  %v503 = vsel %vm471, %v455, %v487
  %v504 = vsel %vm472, %v456, %v488
  %v505 = vsel %vm473, %v457, %v489
  %v506 = vsel %vm474, %v458, %v490
  %v507 = vsel %vm475, %v459, %v491
  %v508 = vsel %vm476, %v460, %v492
  %v509 = vsel %vm477, %v461, %v493
  %v510 = vpack.c.bf16 %v495, %v494
  %v511 = vpack.c.bf16 %v497, %v496
  %v512 = vpack.c.bf16 %v499, %v498
  %v513 = vpack.c.bf16 %v501, %v500
  %v514 = vpack.c.bf16 %v503, %v502
  %v515 = vpack.c.bf16 %v505, %v504
  %v516 = vpack.c.bf16 %v507, %v506
  %v517 = vpack.c.bf16 %v509, %v508
  %v526 = vunpack.c.l.b16 %v510
  %v527 = vunpack.c.h.b16 %v510
  %v528 = vunpack.c.l.b16 %v511
  %v529 = vunpack.c.h.b16 %v511
  %v530 = vunpack.c.l.b16 %v512
  %v531 = vunpack.c.h.b16 %v512
  %v532 = vunpack.c.l.b16 %v513
  %v533 = vunpack.c.h.b16 %v513
  %v534 = vunpack.c.l.b16 %v514
  %v535 = vunpack.c.h.b16 %v514
  %v536 = vunpack.c.l.b16 %v515
  %v537 = vunpack.c.h.b16 %v515
  %v538 = vunpack.c.l.b16 %v516
  %v539 = vunpack.c.h.b16 %v516
  %v540 = vunpack.c.l.b16 %v517
  %v541 = vunpack.c.h.b16 %v517
  %v542 = vpack.c.b16 %v526, %v526
  %v543 = vpack.c.b16 %v527, %v527
  %v544 = vpack.c.b16 %v528, %v528
  %v545 = vpack.c.b16 %v529, %v529
  %v546 = vpack.c.b16 %v530, %v530
  %v547 = vpack.c.b16 %v531, %v531
  %v548 = vpack.c.b16 %v532, %v532
  %v549 = vpack.c.b16 %v533, %v533
  %v550 = vpack.c.b16 %v534, %v534
  %v551 = vpack.c.b16 %v535, %v535
  %v552 = vpack.c.b16 %v536, %v536
  %v553 = vpack.c.b16 %v537, %v537
  %v554 = vpack.c.b16 %v538, %v538
  %v555 = vpack.c.b16 %v539, %v539
  %v556 = vpack.c.b16 %v540, %v540
  %v557 = vpack.c.b16 %v541, %v541
  %vm574 = vcmask 257024
  %575 = vst.msk [vmem:[%s4] sm:$0xf] %vm574, %v542
  %576 = vst.msk [vmem:[%s4 + $0x4] sm:$0xf] %vm574, %v543
  %577 = vst.msk [vmem:[%s4 + $0x8] sm:$0xf] %vm574, %v544
  %578 = vst.msk [vmem:[%s4 + $0xc] sm:$0xf] %vm574, %v545
  %579 = vst.msk [vmem:[%s4 + $0x10] sm:$0xf] %vm574, %v546
  %580 = vst.msk [vmem:[%s4 + $0x14] sm:$0xf] %vm574, %v547
  %581 = vst.msk [vmem:[%s4 + $0x18] sm:$0xf] %vm574, %v548
  %582 = vst.msk [vmem:[%s4 + $0x1c] sm:$0xf] %vm574, %v549
  %583 = vst.msk [vmem:[%s4 + $0x20] sm:$0xf] %vm574, %v550
  %584 = vst.msk [vmem:[%s4 + $0x24] sm:$0xf] %vm574, %v551
  %585 = vst.msk [vmem:[%s4 + $0x28] sm:$0xf] %vm574, %v552
  %586 = vst.msk [vmem:[%s4 + $0x2c] sm:$0xf] %vm574, %v553
  %587 = vst.msk [vmem:[%s4 + $0x30] sm:$0xf] %vm574, %v554
  %588 = vst.msk [vmem:[%s4 + $0x34] sm:$0xf] %vm574, %v555
  %589 = vst.msk [vmem:[%s4 + $0x38] sm:$0xf] %vm574, %v556
  %590 = vst.msk [vmem:[%s4 + $0x3c] sm:$0xf] %vm574, %v557
  // Predicated region
  $region18: #{_lambda_.17} parent=0 // pred_check
    _
  $region19: #{_lambda_.17} parent=0 // pred_check_branch
    %592 = sbr.rel (0) target = $region21
  $region20: #{_lambda_.17} parent=0 // pred_region
    _
  $region21: #{_lambda_.17} parent=0 // pred_fallthru
    _
  // Predicated region
  $region22: #{_lambda_.17} parent=0 // pred_check
    _
  $region23: #{_lambda_.17} parent=0 // pred_check_branch
    %594 = sbr.rel (0) target = $region25
  $region24: #{_lambda_.17} parent=0 // pred_region
    _
  $region25: #{_lambda_.17} parent=0 // pred_fallthru
    _

// kernel: _lambda_.18
$region0: #{_lambda_.18}
  #allocation0 [shape = 'u32[]', space=smem, size = 0x4, offset = 0x4, fixed_abs, tag = 'smem constant byte address 0x4 - core index']
  #allocation1 [shape = 'u32[144,128]{1,0:T(1,128)}', space=vmem, size = 0x12000, scoped, tag = 'internal scratch']
  %s0 = inlined_call_operand.vmem [shape: bf16[32,288], index: 0, kind: input, shape index: {}]
  %s1 = inlined_call_operand.vmem [shape: bf16[288,32], index: 1, kind: input, shape index: {}]
  %s2 = inlined_call_operand.vmem [shape: f32[1,32], index: 2, kind: input, shape index: {}]
  %s3 = inlined_call_operand.vmem [shape: f32[2,32], index: 3, kind: input, shape index: {}]
  %s4 = inlined_call_operand.vmem [shape: bf16[32,32], index: 4, kind: output, shape index: {}]
  %s5 = sld [smem:[#allocation0]]
  $region26: #{_lambda_.18} parent=0
    _
  %s7 = ssub.s32 1, %s5
  %s8 = scalar_select 0, %s7, %s5
  // Predicated region
  $region2: #{_lambda_.18} parent=0 // pred_check
    _
  $region3: #{_lambda_.18} parent=0 // pred_check_branch
    %10 = sbr.rel (0) target = $region5
  $region4: #{_lambda_.18} parent=0 // pred_region
    _
  $region5: #{_lambda_.18} parent=0 // pred_fallthru
    _
  // Predicated region
  $region6: #{_lambda_.18} parent=0 // pred_check
    _
  $region7: #{_lambda_.18} parent=0 // pred_check_branch
    %12 = sbr.rel (0) target = $region9
  $region8: #{_lambda_.18} parent=0 // pred_region
    _
  $region9: #{_lambda_.18} parent=0 // pred_fallthru
    _
  // Predicated region
  $region10: #{_lambda_.18} parent=0 // pred_check
    _
  $region11: #{_lambda_.18} parent=0 // pred_check_branch
    %14 = sbr.rel (0) target = $region13
  $region12: #{_lambda_.18} parent=0 // pred_region
    _
  $region13: #{_lambda_.18} parent=0 // pred_fallthru
    _
  // Predicated region
  $region14: #{_lambda_.18} parent=0 // pred_check
    _
  $region15: #{_lambda_.18} parent=0 // pred_check_branch
    %16 = sbr.rel (0) target = $region17
  $region16: #{_lambda_.18} parent=0 // pred_region
    _
  $region17: #{_lambda_.18} parent=0 // pred_fallthru
    _
  %v18 = vld [vmem:[%s0] sm:$0xff]
  %v19 = vld [vmem:[%s0 + $0x8] sm:$0xf]
  %v20 = vld [vmem:[%s0 + $0xc] sm:$0xff]
  %v21 = vld [vmem:[%s0 + $0x14] sm:$0xf]
  %v22 = vld [vmem:[%s0 + $0x18] sm:$0xff]
  %v23 = vld [vmem:[%s0 + $0x20] sm:$0xf]
  %v24 = vld [vmem:[%s0 + $0x24] sm:$0xff]
  %v25 = vld [vmem:[%s0 + $0x2c] sm:$0xf]
  %v26 = vld [vmem:[%s1] sm:$0xf]
  %v27 = vld [vmem:[%s1 + $0x4] sm:$0xf]
  %v28 = vld [vmem:[%s1 + $0x8] sm:$0xf]
  %v29 = vld [vmem:[%s1 + $0xc] sm:$0xf]
  %v30 = vld [vmem:[%s1 + $0x10] sm:$0xf]
  %v31 = vld [vmem:[%s1 + $0x14] sm:$0xf]
  %v32 = vld [vmem:[%s1 + $0x18] sm:$0xf]
  %v33 = vld [vmem:[%s1 + $0x1c] sm:$0xf]
  %v34 = vld [vmem:[%s1 + $0x20] sm:$0xf]
  %v35 = vld [vmem:[%s1 + $0x24] sm:$0xf]
  %v36 = vld [vmem:[%s1 + $0x28] sm:$0xf]
  %v37 = vld [vmem:[%s1 + $0x2c] sm:$0xf]
  %v38 = vld [vmem:[%s1 + $0x30] sm:$0xf]
  %v39 = vld [vmem:[%s1 + $0x34] sm:$0xf]
  %v40 = vld [vmem:[%s1 + $0x38] sm:$0xf]
  %v41 = vld [vmem:[%s1 + $0x3c] sm:$0xf]
  %v42 = vld [vmem:[%s1 + $0x40] sm:$0xf]
  %v43 = vld [vmem:[%s1 + $0x44] sm:$0xf]
  %v44 = vld [vmem:[%s1 + $0x48] sm:$0xf]
  %v45 = vld [vmem:[%s1 + $0x4c] sm:$0xf]
  %v46 = vld [vmem:[%s1 + $0x50] sm:$0xf]
  %v47 = vld [vmem:[%s1 + $0x54] sm:$0xf]
  %v48 = vld [vmem:[%s1 + $0x58] sm:$0xf]
  %v49 = vld [vmem:[%s1 + $0x5c] sm:$0xf]
  %v50 = vld [vmem:[%s1 + $0x60] sm:$0xf]
  %v51 = vld [vmem:[%s1 + $0x64] sm:$0xf]
  %v52 = vld [vmem:[%s1 + $0x68] sm:$0xf]
  %v53 = vld [vmem:[%s1 + $0x6c] sm:$0xf]
  %v54 = vld [vmem:[%s1 + $0x70] sm:$0xf]
  %v55 = vld [vmem:[%s1 + $0x74] sm:$0xf]
  %v56 = vld [vmem:[%s1 + $0x78] sm:$0xf]
  %v57 = vld [vmem:[%s1 + $0x7c] sm:$0xf]
  %v58 = vld [vmem:[%s1 + $0x80] sm:$0xf]
  %v59 = vld [vmem:[%s1 + $0x84] sm:$0xf]
  %v60 = vld [vmem:[%s1 + $0x88] sm:$0xf]
  %v61 = vld [vmem:[%s1 + $0x8c] sm:$0xf]
  %v62 = vld [vmem:[%s2] sm:$0x1]
  %v64 = vlaneseq
  %v65 = vshrl.u32 %v64, 7
  %v66 = vsub.s32 0, %v65
  %v67 = vrot.slane %v62, %v66
  %v77 = vunpack.c.l.b16 %v18
  %v78 = vunpack.c.h.b16 %v18
  %v79 = vunpack.c.l.b16 %v19
  %v80 = vunpack.c.l.b16 %v20
  %v81 = vunpack.c.h.b16 %v20
  %v82 = vunpack.c.l.b16 %v21
  %v83 = vunpack.c.l.b16 %v22
  %v84 = vunpack.c.h.b16 %v22
  %v85 = vunpack.c.l.b16 %v23
  %v86 = vunpack.c.l.b16 %v24
  %v87 = vunpack.c.h.b16 %v24
  %v88 = vunpack.c.l.b16 %v25
  %v89 = vpack.c.b16 %v80, %v77
  %v90 = vpack.c.b16 %v81, %v78
  %v91 = vpack.c.b16 %v82, %v79
  %v92 = vpack.c.b16 %v86, %v83
  %v93 = vpack.c.b16 %v87, %v84
  %v94 = vpack.c.b16 %v88, %v85
  %v135 = vunpack.c.l.b16 %v26
  %v136 = vunpack.c.l.b16 %v27
  %v137 = vunpack.c.l.b16 %v28
  %v138 = vunpack.c.l.b16 %v29
  %v139 = vunpack.c.l.b16 %v30
  %v140 = vunpack.c.l.b16 %v31
  %v141 = vunpack.c.l.b16 %v32
  %v142 = vunpack.c.l.b16 %v33
  %v143 = vunpack.c.l.b16 %v34
  %v144 = vunpack.c.l.b16 %v35
  %v145 = vunpack.c.l.b16 %v36
  %v146 = vunpack.c.l.b16 %v37
  %v147 = vunpack.c.l.b16 %v38
  %v148 = vunpack.c.l.b16 %v39
  %v149 = vunpack.c.l.b16 %v40
  %v150 = vunpack.c.l.b16 %v41
  %v151 = vunpack.c.l.b16 %v42
  %v152 = vunpack.c.l.b16 %v43
  %v153 = vunpack.c.l.b16 %v44
  %v154 = vunpack.c.l.b16 %v45
  %v155 = vunpack.c.l.b16 %v46
  %v156 = vunpack.c.l.b16 %v47
  %v157 = vunpack.c.l.b16 %v48
  %v158 = vunpack.c.l.b16 %v49
  %v159 = vunpack.c.l.b16 %v50
  %v160 = vunpack.c.l.b16 %v51
  %v161 = vunpack.c.l.b16 %v52
  %v162 = vunpack.c.l.b16 %v53
  %v163 = vunpack.c.l.b16 %v54
  %v164 = vunpack.c.l.b16 %v55
  %v165 = vunpack.c.l.b16 %v56
  %v166 = vunpack.c.l.b16 %v57
  %v167 = vunpack.c.l.b16 %v58
  %v168 = vunpack.c.l.b16 %v59
  %v169 = vunpack.c.l.b16 %v60
  %v170 = vunpack.c.l.b16 %v61
  %v171 = vpack.c.b16 %v136, %v135
  %v172 = vpack.c.b16 %v138, %v137
  %v173 = vpack.c.b16 %v140, %v139
  %v174 = vpack.c.b16 %v142, %v141
  %v175 = vpack.c.b16 %v144, %v143
  %v176 = vpack.c.b16 %v146, %v145
  %v177 = vpack.c.b16 %v148, %v147
  %v178 = vpack.c.b16 %v150, %v149
  %v179 = vpack.c.b16 %v152, %v151
  %v180 = vpack.c.b16 %v154, %v153
  %v181 = vpack.c.b16 %v156, %v155
  %v182 = vpack.c.b16 %v158, %v157
  %v183 = vpack.c.b16 %v160, %v159
  %v184 = vpack.c.b16 %v162, %v161
  %v185 = vpack.c.b16 %v164, %v163
  %v186 = vpack.c.b16 %v166, %v165
  %v187 = vpack.c.b16 %v168, %v167
  %v188 = vpack.c.b16 %v170, %v169
  %vm207 = vcmask 261120
  %v209 = vsel %vm207, %v91, 0
  %v212 = vsel %vm207, %v94, 0
  %214 = vmatprep.subr.bf16.mxu0 0
  %215 = vmatpush1.bf16.msra.mxu0 %v171
  %216 = vmatprep.subr.bf16.mxu0 0
  %217 = vmatpush1.bf16.msra.mxu0 %v172
  %218 = vmatprep.subr.bf16.mxu0 0
  %219 = vmatpush1.bf16.msra.mxu0 %v173
  %220 = vmatprep.subr.bf16.mxu0 0
  %221 = vmatpush1.bf16.msra.mxu0 %v174
  %222 = vmatprep.subr.bf16.mxu0 0
  %223 = vmatpush1.bf16.msra.mxu0 %v175
  %224 = vmatprep.subr.bf16.mxu0 0
  %225 = vmatpush1.bf16.msra.mxu0 %v176
  %226 = vmatprep.subr.bf16.mxu0 0
  %227 = vmatpush1.bf16.msra.mxu0 %v177
  %228 = vmatprep.subr.bf16.mxu0 0
  %229 = vmatpush1.bf16.msra.mxu0 %v178
  %230 = vmatprep.subr.bf16.mxu0 0
  %231 = vmatpush1.bf16.msra.mxu0 %v179
  %232 = vmatprep.subr.bf16.mxu0 0
  %233 = vmatpush1.bf16.msra.mxu0 %v180
  %234 = vmatprep.subr.bf16.mxu0 0
  %235 = vmatpush1.bf16.msra.mxu0 %v181
  %236 = vmatprep.subr.bf16.mxu0 0
  %237 = vmatpush1.bf16.msra.mxu0 %v182
  %238 = vmatprep.subr.bf16.mxu0 0
  %239 = vmatpush1.bf16.msra.mxu0 %v183
  %240 = vmatprep.subr.bf16.mxu0 0
  %241 = vmatpush1.bf16.msra.mxu0 %v184
  %242 = vmatprep.subr.bf16.mxu0 0
  %243 = vmatpush1.bf16.msra.mxu0 %v185
  %244 = vmatprep.subr.bf16.mxu0 0
  %245 = vmatpush1.bf16.msra.mxu0 %v186
  %246 = vmatprep.mubr.bf16.mxu0 %v90
  %247 = vmatmul.mubr.bf16.gmra.mrb[0].mxu0 %v89
  %v248 = vpop.f32.mrb[0].mxu0
  %v249 = vadd.f32 %v67, %v248
  %v250 = vpop.f32.mrb[0].mxu0
  %v251 = vpop.f32.mrb[0].mxu0
  %v252 = vadd.f32 %v67, %v251
  %v253 = vpop.f32.mrb[0].mxu0
  %254 = vmatprep.mubr.bf16.mxu0 %v93
  %255 = vmatmul.mubr.bf16.gmra.mrb[0].mxu0 %v92
  %v256 = vpop.f32.mrb[0].mxu0
  %v257 = vadd.f32 %v67, %v256
  %v258 = vpop.f32.mrb[0].mxu0
  %v259 = vpop.f32.mrb[0].mxu0
  %v260 = vadd.f32 %v67, %v259
  %v261 = vpop.f32.mrb[0].mxu0
  %262 = vdwg.mxu0
  %263 = vmatprep.subr.bf16.mxu0 0
  %264 = vmatpush1.bf16.msra.mxu0 %v187
  %265 = vmatprep.subr.bf16.mxu0 0
  %266 = vmatpush1.bf16.msra.mxu0 %v188
  %267 = vmatprep.subr.bf16.mxu0 0
  %268 = vmatpush1.bf16.msra.mxu0 0
  %269 = vmatprep.subr.bf16.mxu0 0
  %270 = vmatpush1.bf16.msra.mxu0 0
  %271 = vmatprep.subr.bf16.mxu0 0
  %272 = vmatpush1.bf16.msra.mxu0 0
  %273 = vmatprep.subr.bf16.mxu0 0
  %274 = vmatpush1.bf16.msra.mxu0 0
  %275 = vmatprep.subr.bf16.mxu0 0
  %276 = vmatpush1.bf16.msra.mxu0 0
  %277 = vmatprep.subr.bf16.mxu0 0
  %278 = vmatpush1.bf16.msra.mxu0 0
  %279 = vmatprep.subr.bf16.mxu0 0
  %280 = vmatpush1.bf16.msra.mxu0 0
  %281 = vmatprep.subr.bf16.mxu0 0
  %282 = vmatpush1.bf16.msra.mxu0 0
  %283 = vmatprep.subr.bf16.mxu0 0
  %284 = vmatpush1.bf16.msra.mxu0 0
  %285 = vmatprep.subr.bf16.mxu0 0
  %286 = vmatpush1.bf16.msra.mxu0 0
  %287 = vmatprep.subr.bf16.mxu0 0
  %288 = vmatpush1.bf16.msra.mxu0 0
  %289 = vmatprep.subr.bf16.mxu0 0
  %290 = vmatpush1.bf16.msra.mxu0 0
  %291 = vmatprep.subr.bf16.mxu0 0
  %292 = vmatpush1.bf16.msra.mxu0 0
  %293 = vmatprep.subr.bf16.mxu0 0
  %294 = vmatpush1.bf16.msra.mxu0 0
  %295 = vmatprep.mubr.bf16.mxu0 0
  %296 = vmatmul.mubr.bf16.gmra.mrb[0].mxu0 %v209
  %v297 = vpop.f32.mrb[0].mxu0
  %v298 = vadd.f32 %v249, %v297
  %v299 = vpop.f32.mrb[0].mxu0
  %v300 = vpop.f32.mrb[0].mxu0
  %v301 = vadd.f32 %v252, %v300
  %v302 = vpop.f32.mrb[0].mxu0
  %303 = vmatprep.mubr.bf16.mxu0 0
  %304 = vmatmul.mubr.bf16.gmra.mrb[0].mxu0 %v212
  %v305 = vpop.f32.mrb[0].mxu0
  %v306 = vadd.f32 %v257, %v305
  %v307 = vpop.f32.mrb[0].mxu0
  %v308 = vpop.f32.mrb[0].mxu0
  %v309 = vadd.f32 %v260, %v308
  %v310 = vpop.f32.mrb[0].mxu0
  %311 = vdwg.mxu0
  %v312 = vsel %vm207, %v298, 0.0
  %v313 = vsel %vm207, %v301, 0.0
  %v314 = vadd.f32 %v312, %v313
  %v315 = vsel %vm207, %v306, 0.0
  %v316 = vadd.f32 %v314, %v315
  %v317 = vsel %vm207, %v309, 0.0
  %v318 = vadd.f32 %v316, %v317
  %v319 = vrot.slane %v318, 4
  %v320 = vadd.f32 %v318, %v319
  %v321 = vrot.slane %v320, 2
  %v322 = vadd.f32 %v320, %v321
  %v323 = vrot.slane %v322, 1
  %v324 = vadd.f32 %v322, %v323
  %v325 = vrcp.pop 32.0
  %v326 = vmul.f32 %v324, %v325
  %v327 = vsub.f32 %v298, %v326
  %v328 = vsub.f32 %v301, %v326
  %v329 = vsub.f32 %v306, %v326
  %v330 = vsub.f32 %v309, %v326
  %v331 = vmul.f32 %v327, %v327
  %v332 = vmul.f32 %v328, %v328
  %v333 = vmul.f32 %v329, %v329
  %v334 = vmul.f32 %v330, %v330
  %v335 = vsel %vm207, %v331, 0.0
  %v336 = vsel %vm207, %v332, 0.0
  %v337 = vadd.f32 %v335, %v336
  %v338 = vsel %vm207, %v333, 0.0
  %v339 = vadd.f32 %v337, %v338
  %v340 = vsel %vm207, %v334, 0.0
  %v341 = vadd.f32 %v339, %v340
  %v342 = vrot.slane %v341, 4
  %v343 = vadd.f32 %v341, %v342
  %v344 = vrot.slane %v343, 2
  %v345 = vadd.f32 %v343, %v344
  %v346 = vrot.slane %v345, 1
  %v347 = vadd.f32 %v345, %v346
  %v348 = vmul.f32 %v347, %v325
  %v349 = vld [vmem:[%s3] sm:$0x1]
  %v350 = vadd.f32 %v348, 1e-05
  %v351 = vrsqrt.pop %v350
  %v352 = vmul.f32 %v349, %v351
  %v353 = vlaneseq
  %v354 = vshrl.u32 %v353, 7
  %v355 = vsub.s32 0, %v354
  %v356 = vrot.slane %v352, %v355
  %v357 = vmul.f32 %v327, %v356
  %v358 = vmul.f32 %v328, %v356
  %v359 = vmul.f32 %v329, %v356
  %v360 = vmul.f32 %v330, %v356
  %v361 = vld [vmem:[%s3 + $0x1] sm:$0x1]
  %v362 = vlaneseq
  %v363 = vshrl.u32 %v362, 7
  %v364 = vsub.s32 0, %v363
  %v365 = vrot.slane %v361, %v364
  %v366 = vadd.f32 %v357, %v365
  %v367 = vadd.f32 %v358, %v365
  %v368 = vadd.f32 %v359, %v365
  %v369 = vadd.f32 %v360, %v365
  %vm370 = vcmp.ge.f32.partialorder %v366, 0.0
  %vm371 = vcmp.ge.f32.partialorder %v367, 0.0
  %vm372 = vcmp.ge.f32.partialorder %v368, 0.0
  %vm373 = vcmp.ge.f32.partialorder %v369, 0.0
  %v374 = vmul.f32 %v366, 0.2
  %v375 = vmul.f32 %v367, 0.2
  %v376 = vmul.f32 %v368, 0.2
  %v377 = vmul.f32 %v369, 0.2
  %v378 = vsel %vm370, %v366, %v374
  %v379 = vsel %vm371, %v367, %v375
  %v380 = vsel %vm372, %v368, %v376
  %v381 = vsel %vm373, %v369, %v377
  %v382 = vpack.c.bf16 %v379, %v378
  %v383 = vpack.c.bf16 %v381, %v380
  %v386 = vunpack.c.l.b16 %v382
  %v387 = vunpack.c.h.b16 %v382
  %v388 = vunpack.c.l.b16 %v383
  %v389 = vunpack.c.h.b16 %v383
  %v390 = vpack.c.b16 %v386, %v386
  %v391 = vpack.c.b16 %v387, %v387
  %v392 = vpack.c.b16 %v388, %v388
  %v393 = vpack.c.b16 %v389, %v389
  %vm398 = vcmask 257024
  %399 = vst.msk [vmem:[%s4] sm:$0xf] %vm398, %v390
  %400 = vst.msk [vmem:[%s4 + $0x4] sm:$0xf] %vm398, %v391
  %401 = vst.msk [vmem:[%s4 + $0x8] sm:$0xf] %vm398, %v392
  %402 = vst.msk [vmem:[%s4 + $0xc] sm:$0xf] %vm398, %v393
  // Predicated region
  $region18: #{_lambda_.18} parent=0 // pred_check
    _
  $region19: #{_lambda_.18} parent=0 // pred_check_branch
    %404 = sbr.rel (0) target = $region21
  $region20: #{_lambda_.18} parent=0 // pred_region
    _
  $region21: #{_lambda_.18} parent=0 // pred_fallthru
    _
  // Predicated region
  $region22: #{_lambda_.18} parent=0 // pred_check
    _
  $region23: #{_lambda_.18} parent=0 // pred_check_branch
    %406 = sbr.rel (0) target = $region25
  $region24: #{_lambda_.18} parent=0 // pred_region
    _
  $region25: #{_lambda_.18} parent=0 // pred_fallthru
    _

// kernel: _lambda_.19
$region0: #{_lambda_.19}
  #allocation0 [shape = 'u32[]', space=smem, size = 0x4, offset = 0x4, fixed_abs, tag = 'smem constant byte address 0x4 - core index']
  #allocation1 [shape = 'u32[144,128]{1,0:T(1,128)}', space=vmem, size = 0x12000, scoped, tag = 'internal scratch']
  %s0 = inlined_call_operand.vmem [shape: bf16[8,288], index: 0, kind: input, shape index: {}]
  %s1 = inlined_call_operand.vmem [shape: bf16[288,32], index: 1, kind: input, shape index: {}]
  %s2 = inlined_call_operand.vmem [shape: f32[1,32], index: 2, kind: input, shape index: {}]
  %s3 = inlined_call_operand.vmem [shape: f32[2,32], index: 3, kind: input, shape index: {}]
  %s4 = inlined_call_operand.vmem [shape: bf16[8,32], index: 4, kind: output, shape index: {}]
  %s5 = sld [smem:[#allocation0]]
  $region26: #{_lambda_.19} parent=0
    _
  %s7 = ssub.s32 1, %s5
  %s8 = scalar_select 0, %s7, %s5
  // Predicated region
  $region2: #{_lambda_.19} parent=0 // pred_check
    _
  $region3: #{_lambda_.19} parent=0 // pred_check_branch
    %10 = sbr.rel (0) target = $region5
  $region4: #{_lambda_.19} parent=0 // pred_region
    _
  $region5: #{_lambda_.19} parent=0 // pred_fallthru
    _
  // Predicated region
  $region6: #{_lambda_.19} parent=0 // pred_check
    _
  $region7: #{_lambda_.19} parent=0 // pred_check_branch
    %12 = sbr.rel (0) target = $region9
  $region8: #{_lambda_.19} parent=0 // pred_region
    _
  $region9: #{_lambda_.19} parent=0 // pred_fallthru
    _
  // Predicated region
  $region10: #{_lambda_.19} parent=0 // pred_check
    _
  $region11: #{_lambda_.19} parent=0 // pred_check_branch
    %14 = sbr.rel (0) target = $region13
  $region12: #{_lambda_.19} parent=0 // pred_region
    _
  $region13: #{_lambda_.19} parent=0 // pred_fallthru
    _
  // Predicated region
  $region14: #{_lambda_.19} parent=0 // pred_check
    _
  $region15: #{_lambda_.19} parent=0 // pred_check_branch
    %16 = sbr.rel (0) target = $region17
  $region16: #{_lambda_.19} parent=0 // pred_region
    _
  $region17: #{_lambda_.19} parent=0 // pred_fallthru
    _
  %v18 = vld [vmem:[%s0] sm:$0xff]
  %v19 = vld [vmem:[%s0 + $0x8] sm:$0xf]
  %v20 = vld [vmem:[%s1] sm:$0xf]
  %v21 = vld [vmem:[%s1 + $0x4] sm:$0xf]
  %v22 = vld [vmem:[%s1 + $0x8] sm:$0xf]
  %v23 = vld [vmem:[%s1 + $0xc] sm:$0xf]
  %v24 = vld [vmem:[%s1 + $0x10] sm:$0xf]
  %v25 = vld [vmem:[%s1 + $0x14] sm:$0xf]
  %v26 = vld [vmem:[%s1 + $0x18] sm:$0xf]
  %v27 = vld [vmem:[%s1 + $0x1c] sm:$0xf]
  %v28 = vld [vmem:[%s1 + $0x20] sm:$0xf]
  %v29 = vld [vmem:[%s1 + $0x24] sm:$0xf]
  %v30 = vld [vmem:[%s1 + $0x28] sm:$0xf]
  %v31 = vld [vmem:[%s1 + $0x2c] sm:$0xf]
  %v32 = vld [vmem:[%s1 + $0x30] sm:$0xf]
  %v33 = vld [vmem:[%s1 + $0x34] sm:$0xf]
  %v34 = vld [vmem:[%s1 + $0x38] sm:$0xf]
  %v35 = vld [vmem:[%s1 + $0x3c] sm:$0xf]
  %v36 = vld [vmem:[%s1 + $0x40] sm:$0xf]
  %v37 = vld [vmem:[%s1 + $0x44] sm:$0xf]
  %v38 = vld [vmem:[%s1 + $0x48] sm:$0xf]
  %v39 = vld [vmem:[%s1 + $0x4c] sm:$0xf]
  %v40 = vld [vmem:[%s1 + $0x50] sm:$0xf]
  %v41 = vld [vmem:[%s1 + $0x54] sm:$0xf]
  %v42 = vld [vmem:[%s1 + $0x58] sm:$0xf]
  %v43 = vld [vmem:[%s1 + $0x5c] sm:$0xf]
  %v44 = vld [vmem:[%s1 + $0x60] sm:$0xf]
  %v45 = vld [vmem:[%s1 + $0x64] sm:$0xf]
  %v46 = vld [vmem:[%s1 + $0x68] sm:$0xf]
  %v47 = vld [vmem:[%s1 + $0x6c] sm:$0xf]
  %v48 = vld [vmem:[%s1 + $0x70] sm:$0xf]
  %v49 = vld [vmem:[%s1 + $0x74] sm:$0xf]
  %v50 = vld [vmem:[%s1 + $0x78] sm:$0xf]
  %v51 = vld [vmem:[%s1 + $0x7c] sm:$0xf]
  %v52 = vld [vmem:[%s1 + $0x80] sm:$0xf]
  %v53 = vld [vmem:[%s1 + $0x84] sm:$0xf]
  %v54 = vld [vmem:[%s1 + $0x88] sm:$0xf]
  %v55 = vld [vmem:[%s1 + $0x8c] sm:$0xf]
  %v56 = vld [vmem:[%s2] sm:$0x1]
  %v58 = vlaneseq
  %v59 = vshrl.u32 %v58, 7
  %v60 = vsub.s32 0, %v59
  %v61 = vrot.slane %v56, %v60
  %v65 = vunpack.c.l.b16 %v18
  %v66 = vunpack.c.h.b16 %v18
  %v67 = vunpack.c.l.b16 %v19
  %v68 = vpack.c.b16 %v65, %v65
  %v69 = vpack.c.b16 %v66, %v66
  %v70 = vpack.c.b16 %v67, %v67
  %v109 = vunpack.c.l.b16 %v20
  %v110 = vunpack.c.l.b16 %v21
  %v111 = vunpack.c.l.b16 %v22
  %v112 = vunpack.c.l.b16 %v23
  %v113 = vunpack.c.l.b16 %v24
  %v114 = vunpack.c.l.b16 %v25
  %v115 = vunpack.c.l.b16 %v26
  %v116 = vunpack.c.l.b16 %v27
  %v117 = vunpack.c.l.b16 %v28
  %v118 = vunpack.c.l.b16 %v29
  %v119 = vunpack.c.l.b16 %v30
  %v120 = vunpack.c.l.b16 %v31
  %v121 = vunpack.c.l.b16 %v32
  %v122 = vunpack.c.l.b16 %v33
  %v123 = vunpack.c.l.b16 %v34
  %v124 = vunpack.c.l.b16 %v35
  %v125 = vunpack.c.l.b16 %v36
  %v126 = vunpack.c.l.b16 %v37
  %v127 = vunpack.c.l.b16 %v38
  %v128 = vunpack.c.l.b16 %v39
  %v129 = vunpack.c.l.b16 %v40
  %v130 = vunpack.c.l.b16 %v41
  %v131 = vunpack.c.l.b16 %v42
  %v132 = vunpack.c.l.b16 %v43
  %v133 = vunpack.c.l.b16 %v44
  %v134 = vunpack.c.l.b16 %v45
  %v135 = vunpack.c.l.b16 %v46
  %v136 = vunpack.c.l.b16 %v47
  %v137 = vunpack.c.l.b16 %v48
  %v138 = vunpack.c.l.b16 %v49
  %v139 = vunpack.c.l.b16 %v50
  %v140 = vunpack.c.l.b16 %v51
  %v141 = vunpack.c.l.b16 %v52
  %v142 = vunpack.c.l.b16 %v53
  %v143 = vunpack.c.l.b16 %v54
  %v144 = vunpack.c.l.b16 %v55
  %v145 = vpack.c.b16 %v110, %v109
  %v146 = vpack.c.b16 %v112, %v111
  %v147 = vpack.c.b16 %v114, %v113
  %v148 = vpack.c.b16 %v116, %v115
  %v149 = vpack.c.b16 %v118, %v117
  %v150 = vpack.c.b16 %v120, %v119
  %v151 = vpack.c.b16 %v122, %v121
  %v152 = vpack.c.b16 %v124, %v123
  %v153 = vpack.c.b16 %v126, %v125
  %v154 = vpack.c.b16 %v128, %v127
  %v155 = vpack.c.b16 %v130, %v129
  %v156 = vpack.c.b16 %v132, %v131
  %v157 = vpack.c.b16 %v134, %v133
  %v158 = vpack.c.b16 %v136, %v135
  %v159 = vpack.c.b16 %v138, %v137
  %v160 = vpack.c.b16 %v140, %v139
  %v161 = vpack.c.b16 %v142, %v141
  %v162 = vpack.c.b16 %v144, %v143
  %vm181 = vcmask 261120
  %v183 = vsel %vm181, %v70, 0
  %185 = vmatprep.subr.bf16.mxu0 0
  %186 = vmatpush1.bf16.msra.mxu0 %v145
  %187 = vmatprep.subr.bf16.mxu0 0
  %188 = vmatpush1.bf16.msra.mxu0 %v146
  %189 = vmatprep.subr.bf16.mxu0 0
  %190 = vmatpush1.bf16.msra.mxu0 %v147
  %191 = vmatprep.subr.bf16.mxu0 0
  %192 = vmatpush1.bf16.msra.mxu0 %v148
  %193 = vmatprep.subr.bf16.mxu0 0
  %194 = vmatpush1.bf16.msra.mxu0 %v149
  %195 = vmatprep.subr.bf16.mxu0 0
  %196 = vmatpush1.bf16.msra.mxu0 %v150
  %197 = vmatprep.subr.bf16.mxu0 0
  %198 = vmatpush1.bf16.msra.mxu0 %v151
  %199 = vmatprep.subr.bf16.mxu0 0
  %200 = vmatpush1.bf16.msra.mxu0 %v152
  %201 = vmatprep.subr.bf16.mxu0 0
  %202 = vmatpush1.bf16.msra.mxu0 %v153
  %203 = vmatprep.subr.bf16.mxu0 0
  %204 = vmatpush1.bf16.msra.mxu0 %v154
  %205 = vmatprep.subr.bf16.mxu0 0
  %206 = vmatpush1.bf16.msra.mxu0 %v155
  %207 = vmatprep.subr.bf16.mxu0 0
  %208 = vmatpush1.bf16.msra.mxu0 %v156
  %209 = vmatprep.subr.bf16.mxu0 0
  %210 = vmatpush1.bf16.msra.mxu0 %v157
  %211 = vmatprep.subr.bf16.mxu0 0
  %212 = vmatpush1.bf16.msra.mxu0 %v158
  %213 = vmatprep.subr.bf16.mxu0 0
  %214 = vmatpush1.bf16.msra.mxu0 %v159
  %215 = vmatprep.subr.bf16.mxu0 0
  %216 = vmatpush1.bf16.msra.mxu0 %v160
  %217 = vmatprep.mubr.bf16.mxu0 %v69
  %218 = vmatmul.mubr.bf16.gmra.mrb[0].mxu0 %v68
  %v219 = vpop.f32.mrb[0].mxu0
  %v220 = vadd.f32 %v61, %v219
  %v221 = vpop.f32.mrb[0].mxu0
  %v222 = vpop.f32.mrb[0].mxu0
  %v223 = vpop.f32.mrb[0].mxu0
  %224 = vdwg.mxu0
  %225 = vmatprep.subr.bf16.mxu0 0
  %226 = vmatpush1.bf16.msra.mxu0 %v161
  %227 = vmatprep.subr.bf16.mxu0 0
  %228 = vmatpush1.bf16.msra.mxu0 %v162
  %229 = vmatprep.subr.bf16.mxu0 0
  %230 = vmatpush1.bf16.msra.mxu0 0
  %231 = vmatprep.subr.bf16.mxu0 0
  %232 = vmatpush1.bf16.msra.mxu0 0
  %233 = vmatprep.subr.bf16.mxu0 0
  %234 = vmatpush1.bf16.msra.mxu0 0
  %235 = vmatprep.subr.bf16.mxu0 0
  %236 = vmatpush1.bf16.msra.mxu0 0
  %237 = vmatprep.subr.bf16.mxu0 0
  %238 = vmatpush1.bf16.msra.mxu0 0
  %239 = vmatprep.subr.bf16.mxu0 0
  %240 = vmatpush1.bf16.msra.mxu0 0
  %241 = vmatprep.subr.bf16.mxu0 0
  %242 = vmatpush1.bf16.msra.mxu0 0
  %243 = vmatprep.subr.bf16.mxu0 0
  %244 = vmatpush1.bf16.msra.mxu0 0
  %245 = vmatprep.subr.bf16.mxu0 0
  %246 = vmatpush1.bf16.msra.mxu0 0
  %247 = vmatprep.subr.bf16.mxu0 0
  %248 = vmatpush1.bf16.msra.mxu0 0
  %249 = vmatprep.subr.bf16.mxu0 0
  %250 = vmatpush1.bf16.msra.mxu0 0
  %251 = vmatprep.subr.bf16.mxu0 0
  %252 = vmatpush1.bf16.msra.mxu0 0
  %253 = vmatprep.subr.bf16.mxu0 0
  %254 = vmatpush1.bf16.msra.mxu0 0
  %255 = vmatprep.subr.bf16.mxu0 0
  %256 = vmatpush1.bf16.msra.mxu0 0
  %257 = vmatprep.mubr.bf16.mxu0 0
  %258 = vmatmul.mubr.bf16.gmra.mrb[0].mxu0 %v183
  %v259 = vpop.f32.mrb[0].mxu0
  %v260 = vadd.f32 %v220, %v259
  %v261 = vpop.f32.mrb[0].mxu0
  %v262 = vpop.f32.mrb[0].mxu0
  %v263 = vpop.f32.mrb[0].mxu0
  %264 = vdwg.mxu0
  %v265 = vsel %vm181, %v260, 0.0
  %v266 = vrot.slane %v265, 4
  %v267 = vadd.f32 %v265, %v266
  %v268 = vrot.slane %v267, 2
  %v269 = vadd.f32 %v267, %v268
  %v270 = vrot.slane %v269, 1
  %v271 = vadd.f32 %v269, %v270
  %v272 = vrcp.pop 8.0
  %v273 = vmul.f32 %v271, %v272
  %v274 = vsub.f32 %v260, %v273
  %v275 = vmul.f32 %v274, %v274
  %v276 = vsel %vm181, %v275, 0.0
  %v277 = vrot.slane %v276, 4
  %v278 = vadd.f32 %v276, %v277
  %v279 = vrot.slane %v278, 2
  %v280 = vadd.f32 %v278, %v279
  %v281 = vrot.slane %v280, 1
  %v282 = vadd.f32 %v280, %v281
  %v283 = vmul.f32 %v282, %v272
  %v284 = vld [vmem:[%s3] sm:$0x1]
  %v285 = vadd.f32 %v283, 1e-05
  %v286 = vrsqrt.pop %v285
  %v287 = vmul.f32 %v284, %v286
  %v288 = vlaneseq
  %v289 = vshrl.u32 %v288, 7
  %v290 = vsub.s32 0, %v289
  %v291 = vrot.slane %v287, %v290
  %v292 = vmul.f32 %v274, %v291
  %v293 = vld [vmem:[%s3 + $0x1] sm:$0x1]
  %v294 = vlaneseq
  %v295 = vshrl.u32 %v294, 7
  %v296 = vsub.s32 0, %v295
  %v297 = vrot.slane %v293, %v296
  %v298 = vadd.f32 %v292, %v297
  %vm299 = vcmp.ge.f32.partialorder %v298, 0.0
  %v300 = vmul.f32 %v298, 0.2
  %v301 = vsel %vm299, %v298, %v300
  %v302 = vpack.c.bf16 %v301, %v301
  %vm303 = vcmask 257024
  %304 = vst.msk [vmem:[%s4] sm:$0xf] %vm303, %v302
  // Predicated region
  $region18: #{_lambda_.19} parent=0 // pred_check
    _
  $region19: #{_lambda_.19} parent=0 // pred_check_branch
    %306 = sbr.rel (0) target = $region21
  $region20: #{_lambda_.19} parent=0 // pred_region
    _
  $region21: #{_lambda_.19} parent=0 // pred_fallthru
    _
  // Predicated region
  $region22: #{_lambda_.19} parent=0 // pred_check
    _
  $region23: #{_lambda_.19} parent=0 // pred_check_branch
    %308 = sbr.rel (0) target = $region25
  $region24: #{_lambda_.19} parent=0 // pred_region
    _
  $region25: #{_lambda_.19} parent=0 // pred_fallthru
    _

// kernel: _lambda_.20
$region0: #{_lambda_.20}
  #allocation0 [shape = 'u32[]', space=smem, size = 0x4, offset = 0x4, fixed_abs, tag = 'smem constant byte address 0x4 - core index']
  #allocation1 [shape = 'u32[144,128]{1,0:T(1,128)}', space=vmem, size = 0x12000, scoped, tag = 'internal scratch']
  %s0 = inlined_call_operand.vmem [shape: bf16[2,128], index: 0, kind: input, shape index: {}]
  %s1 = inlined_call_operand.vmem [shape: bf16[128,32], index: 1, kind: input, shape index: {}]
  %s2 = inlined_call_operand.vmem [shape: f32[1,32], index: 2, kind: input, shape index: {}]
  %s3 = inlined_call_operand.vmem [shape: f32[2,32], index: 3, kind: input, shape index: {}]
  %s4 = inlined_call_operand.vmem [shape: bf16[2,32], index: 4, kind: output, shape index: {}]
  %s5 = sld [smem:[#allocation0]]
  $region26: #{_lambda_.20} parent=0
    _
  %s7 = ssub.s32 1, %s5
  %s8 = scalar_select 0, %s7, %s5
  // Predicated region
  $region2: #{_lambda_.20} parent=0 // pred_check
    _
  $region3: #{_lambda_.20} parent=0 // pred_check_branch
    %10 = sbr.rel (0) target = $region5
  $region4: #{_lambda_.20} parent=0 // pred_region
    _
  $region5: #{_lambda_.20} parent=0 // pred_fallthru
    _
  // Predicated region
  $region6: #{_lambda_.20} parent=0 // pred_check
    _
  $region7: #{_lambda_.20} parent=0 // pred_check_branch
    %12 = sbr.rel (0) target = $region9
  $region8: #{_lambda_.20} parent=0 // pred_region
    _
  $region9: #{_lambda_.20} parent=0 // pred_fallthru
    _
  // Predicated region
  $region10: #{_lambda_.20} parent=0 // pred_check
    _
  $region11: #{_lambda_.20} parent=0 // pred_check_branch
    %14 = sbr.rel (0) target = $region13
  $region12: #{_lambda_.20} parent=0 // pred_region
    _
  $region13: #{_lambda_.20} parent=0 // pred_fallthru
    _
  // Predicated region
  $region14: #{_lambda_.20} parent=0 // pred_check
    _
  $region15: #{_lambda_.20} parent=0 // pred_check_branch
    %16 = sbr.rel (0) target = $region17
  $region16: #{_lambda_.20} parent=0 // pred_region
    _
  $region17: #{_lambda_.20} parent=0 // pred_fallthru
    _
  %v18 = vld [vmem:[%s0] sm:$0x1]
  %v19 = vld [vmem:[%s1] sm:$0xf]
  %v20 = vld [vmem:[%s1 + $0x4] sm:$0xf]
  %v21 = vld [vmem:[%s1 + $0x8] sm:$0xf]
  %v22 = vld [vmem:[%s1 + $0xc] sm:$0xf]
  %v23 = vld [vmem:[%s1 + $0x10] sm:$0xf]
  %v24 = vld [vmem:[%s1 + $0x14] sm:$0xf]
  %v25 = vld [vmem:[%s1 + $0x18] sm:$0xf]
  %v26 = vld [vmem:[%s1 + $0x1c] sm:$0xf]
  %v27 = vld [vmem:[%s1 + $0x20] sm:$0xf]
  %v28 = vld [vmem:[%s1 + $0x24] sm:$0xf]
  %v29 = vld [vmem:[%s1 + $0x28] sm:$0xf]
  %v30 = vld [vmem:[%s1 + $0x2c] sm:$0xf]
  %v31 = vld [vmem:[%s1 + $0x30] sm:$0xf]
  %v32 = vld [vmem:[%s1 + $0x34] sm:$0xf]
  %v33 = vld [vmem:[%s1 + $0x38] sm:$0xf]
  %v34 = vld [vmem:[%s1 + $0x3c] sm:$0xf]
  %v35 = vld [vmem:[%s2] sm:$0x1]
  %v37 = vlaneseq
  %v38 = vshrl.u32 %v37, 7
  %v39 = vsub.s32 0, %v38
  %v40 = vrot.slane %v35, %v39
  %v58 = vunpack.c.l.b16 %v19
  %v59 = vunpack.c.l.b16 %v20
  %v60 = vunpack.c.l.b16 %v21
  %v61 = vunpack.c.l.b16 %v22
  %v62 = vunpack.c.l.b16 %v23
  %v63 = vunpack.c.l.b16 %v24
  %v64 = vunpack.c.l.b16 %v25
  %v65 = vunpack.c.l.b16 %v26
  %v66 = vunpack.c.l.b16 %v27
  %v67 = vunpack.c.l.b16 %v28
  %v68 = vunpack.c.l.b16 %v29
  %v69 = vunpack.c.l.b16 %v30
  %v70 = vunpack.c.l.b16 %v31
  %v71 = vunpack.c.l.b16 %v32
  %v72 = vunpack.c.l.b16 %v33
  %v73 = vunpack.c.l.b16 %v34
  %v74 = vpack.c.b16 %v59, %v58
  %v75 = vpack.c.b16 %v61, %v60
  %v76 = vpack.c.b16 %v63, %v62
  %v77 = vpack.c.b16 %v65, %v64
  %v78 = vpack.c.b16 %v67, %v66
  %v79 = vpack.c.b16 %v69, %v68
  %v80 = vpack.c.b16 %v71, %v70
  %v81 = vpack.c.b16 %v73, %v72
  %90 = vmatprep.subr.bf16.mxu0 0
  %91 = vmatpush1.bf16.msra.mxu0 %v74
  %92 = vmatprep.subr.bf16.mxu0 0
  %93 = vmatpush1.bf16.msra.mxu0 %v75
  %94 = vmatprep.subr.bf16.mxu0 0
  %95 = vmatpush1.bf16.msra.mxu0 %v76
  %96 = vmatprep.subr.bf16.mxu0 0
  %97 = vmatpush1.bf16.msra.mxu0 %v77
  %98 = vmatprep.subr.bf16.mxu0 0
  %99 = vmatpush1.bf16.msra.mxu0 %v78
  %100 = vmatprep.subr.bf16.mxu0 0
  %101 = vmatpush1.bf16.msra.mxu0 %v79
  %102 = vmatprep.subr.bf16.mxu0 0
  %103 = vmatpush1.bf16.msra.mxu0 %v80
  %104 = vmatprep.subr.bf16.mxu0 0
  %105 = vmatpush1.bf16.msra.mxu0 %v81
  %106 = vmatprep.subr.bf16.mxu0 0
  %107 = vmatpush1.bf16.msra.mxu0 0
  %108 = vmatprep.subr.bf16.mxu0 0
  %109 = vmatpush1.bf16.msra.mxu0 0
  %110 = vmatprep.subr.bf16.mxu0 0
  %111 = vmatpush1.bf16.msra.mxu0 0
  %112 = vmatprep.subr.bf16.mxu0 0
  %113 = vmatpush1.bf16.msra.mxu0 0
  %114 = vmatprep.subr.bf16.mxu0 0
  %115 = vmatpush1.bf16.msra.mxu0 0
  %116 = vmatprep.subr.bf16.mxu0 0
  %117 = vmatpush1.bf16.msra.mxu0 0
  %118 = vmatprep.subr.bf16.mxu0 0
  %119 = vmatpush1.bf16.msra.mxu0 0
  %120 = vmatprep.subr.bf16.mxu0 0
  %121 = vmatpush1.bf16.msra.mxu0 0
  %122 = vmatprep.mubr.bf16.mxu0 0
  %123 = vmatmul.mubr.bf16.gmra.mrb[0].mxu0 %v18
  %v124 = vpop.f32.mrb[0].mxu0
  %v125 = vadd.f32 %v40, %v124
  %v126 = vpop.f32.mrb[0].mxu0
  %v127 = vpop.f32.mrb[0].mxu0
  %v128 = vpop.f32.mrb[0].mxu0
  %129 = vdwg.mxu0
  %vm130 = vcmask 254976
  %v131 = vsel %vm130, %v125, 0.0
  %v132 = vrot.slane %v131, 4
  %v133 = vadd.f32 %v131, %v132
  %v134 = vrot.slane %v133, 2
  %v135 = vadd.f32 %v133, %v134
  %v136 = vrot.slane %v135, 1
  %v137 = vadd.f32 %v135, %v136
  %v138 = vrcp.pop 2.0
  %v139 = vmul.f32 %v137, %v138
  %v140 = vsub.f32 %v125, %v139
  %v141 = vmul.f32 %v140, %v140
  %v142 = vsel %vm130, %v141, 0.0
  %v143 = vrot.slane %v142, 4
  %v144 = vadd.f32 %v142, %v143
  %v145 = vrot.slane %v144, 2
  %v146 = vadd.f32 %v144, %v145
  %v147 = vrot.slane %v146, 1
  %v148 = vadd.f32 %v146, %v147
  %v149 = vmul.f32 %v148, %v138
  %v150 = vld [vmem:[%s3] sm:$0x1]
  %v151 = vadd.f32 %v149, 1e-05
  %v152 = vrsqrt.pop %v151
  %v153 = vmul.f32 %v150, %v152
  %v154 = vlaneseq
  %v155 = vshrl.u32 %v154, 7
  %v156 = vsub.s32 0, %v155
  %v157 = vrot.slane %v153, %v156
  %v158 = vmul.f32 %v140, %v157
  %v159 = vld [vmem:[%s3 + $0x1] sm:$0x1]
  %v160 = vlaneseq
  %v161 = vshrl.u32 %v160, 7
  %v162 = vsub.s32 0, %v161
  %v163 = vrot.slane %v159, %v162
  %v164 = vadd.f32 %v158, %v163
  %vm165 = vcmp.ge.f32.partialorder %v164, 0.0
  %v166 = vmul.f32 %v164, 0.2
  %v167 = vsel %vm165, %v164, %v166
  %v168 = vpack.c.bf16 %v167, %v167
  %vm169 = vcmask 253952
  %170 = vst.msk [vmem:[%s4] sm:$0x1] %vm169, %v168
  // Predicated region
  $region18: #{_lambda_.20} parent=0 // pred_check
    _
  $region19: #{_lambda_.20} parent=0 // pred_check_branch
    %172 = sbr.rel (0) target = $region21
  $region20: #{_lambda_.20} parent=0 // pred_region
    _
  $region21: #{_lambda_.20} parent=0 // pred_fallthru
    _
  // Predicated region
  $region22: #{_lambda_.20} parent=0 // pred_check
    _
  $region23: #{_lambda_.20} parent=0 // pred_check_branch
    %174 = sbr.rel (0) target = $region25
  $region24: #{_lambda_.20} parent=0 // pred_region
    _
  $region25: #{_lambda_.20} parent=0 // pred_fallthru
    _

// kernel: _lambda_.21
$region0: #{_lambda_.21}
  #allocation0 [shape = 'u32[]', space=smem, size = 0x4, offset = 0x4, fixed_abs, tag = 'smem constant byte address 0x4 - core index']
  #allocation1 [shape = 'u32[144,128]{1,0:T(1,128)}', space=vmem, size = 0x12000, scoped, tag = 'internal scratch']
  %s0 = inlined_call_operand.vmem [shape: f32[2,32], index: 0, kind: input, shape index: {}]
  %s1 = inlined_call_operand.vmem [shape: f32[2,32,8], index: 1, kind: input, shape index: {}]
  %s2 = inlined_call_operand.vmem [shape: f32[2,8], index: 2, kind: input, shape index: {}]
  %s3 = inlined_call_operand.vmem [shape: f32[2,8], index: 3, kind: input, shape index: {}]
  %s4 = inlined_call_operand.hbm [shape: f32[2,8], index: 4, kind: output, shape index: {}]
  %s5 = sld [smem:[#allocation0]]
  $region26: #{_lambda_.21} parent=0
    _
  %s7 = ssub.s32 1, %s5
  %s8 = scalar_select 0, %s7, %s5
  $region1: #{_lambda_.21} parent=0
    #allocation2 [shape = 'u8[1024]{0}', space=vmem, size = 0x400, scoped, tag = 'output window, operand 0, single buffered']
    #allocation3 [shape = 's32[1]{0}', space=sflag, size = 0x4, scoped, tag = 'scoped memory for _lambda_.21']
    %9 = vsyncpa [#allocation3], 0
    // Predicated region
    $region2: #{_lambda_.21} parent=1 // pred_check
      _
    $region3: #{_lambda_.21} parent=1 // pred_check_branch
      %11 = sbr.rel (0) target = $region5
    $region4: #{_lambda_.21} parent=1 // pred_region
      _
    $region5: #{_lambda_.21} parent=1 // pred_fallthru
      _
    // Predicated region
    $region6: #{_lambda_.21} parent=1 // pred_check
      _
    $region7: #{_lambda_.21} parent=1 // pred_check_branch
      %13 = sbr.rel (0) target = $region9
    $region8: #{_lambda_.21} parent=1 // pred_region
      _
    $region9: #{_lambda_.21} parent=1 // pred_fallthru
      _
    // Predicated region
    $region10: #{_lambda_.21} parent=1 // pred_check
      _
    $region11: #{_lambda_.21} parent=1 // pred_check_branch
      %15 = sbr.rel (0) target = $region13
    $region12: #{_lambda_.21} parent=1 // pred_region
      _
    $region13: #{_lambda_.21} parent=1 // pred_fallthru
      _
    // Predicated region
    $region14: #{_lambda_.21} parent=1 // pred_check
      _
    $region15: #{_lambda_.21} parent=1 // pred_check_branch
      %17 = sbr.rel (0) target = $region17
    $region16: #{_lambda_.21} parent=1 // pred_region
      _
    $region17: #{_lambda_.21} parent=1 // pred_fallthru
      _
    %v18 = vld [vmem:[%s0] sm:$0x3]
    %v19 = vld [vmem:[%s1] sm:$0xff]
    %v20 = vld [vmem:[%s1 + $0x8] sm:$0xff]
    %v21 = vld [vmem:[%s1 + $0x10] sm:$0xff]
    %v22 = vld [vmem:[%s1 + $0x18] sm:$0xff]
    %v23 = vld [vmem:[%s2] sm:$0x1]
    %v24 = vlaneseq
    %v25 = vshrl.u32 %v24, 7
    %v26 = vsub.s32 0, %v25
    %v27 = vrot.slane %v23, %v26
    %vm28 = vcmask 261120
    %v30 = vsel %vm28, %v18, 0
    %32 = vmatprep.subr.mxu0 0.0
    %33 = vmatpush1.msra.mxu0 %v19
    %34 = vmatprep.subr.mxu0 0.0
    %35 = vmatpush1.msra.mxu0 %v20
    %36 = vmatprep.subr.mxu0 0.0
    %37 = vmatpush1.msra.mxu0 %v21
    %38 = vmatprep.subr.mxu0 0.0
    %39 = vmatpush1.msra.mxu0 %v22
    %40 = vmatprep.subr.mxu0 0.0
    %41 = vmatpush1.msra.mxu0 0.0
    %42 = vmatprep.subr.mxu0 0.0
    %43 = vmatpush1.msra.mxu0 0.0
    %44 = vmatprep.subr.mxu0 0.0
    %45 = vmatpush1.msra.mxu0 0.0
    %46 = vmatprep.subr.mxu0 0.0
    %47 = vmatpush1.msra.mxu0 0.0
    %48 = vmatprep.subr.mxu0 0.0
    %49 = vmatpush1.msra.mxu0 0.0
    %50 = vmatprep.subr.mxu0 0.0
    %51 = vmatpush1.msra.mxu0 0.0
    %52 = vmatprep.subr.mxu0 0.0
    %53 = vmatpush1.msra.mxu0 0.0
    %54 = vmatprep.subr.mxu0 0.0
    %55 = vmatpush1.msra.mxu0 0.0
    %56 = vmatprep.subr.mxu0 0.0
    %57 = vmatpush1.msra.mxu0 0.0
    %58 = vmatprep.subr.mxu0 0.0
    %59 = vmatpush1.msra.mxu0 0.0
    %60 = vmatprep.subr.mxu0 0.0
    %61 = vmatpush1.msra.mxu0 0.0
    %62 = vmatprep.subr.mxu0 0.0
    %63 = vmatpush1.msra.mxu0 0.0
    %64 = vmatprep.subr.mxu0 0.0
    %65 = vmatpush1.msra.mxu0 0.0
    %66 = vmatprep.subr.mxu0 0.0
    %67 = vmatpush1.msra.mxu0 0.0
    %68 = vmatprep.subr.mxu0 0.0
    %69 = vmatpush1.msra.mxu0 0.0
    %70 = vmatprep.subr.mxu0 0.0
    %71 = vmatpush1.msra.mxu0 0.0
    %72 = vmatprep.subr.mxu0 0.0
    %73 = vmatpush1.msra.mxu0 0.0
    %74 = vmatprep.subr.mxu0 0.0
    %75 = vmatpush1.msra.mxu0 0.0
    %76 = vmatprep.subr.mxu0 0.0
    %77 = vmatpush1.msra.mxu0 0.0
    %78 = vmatprep.subr.mxu0 0.0
    %79 = vmatpush1.msra.mxu0 0.0
    %80 = vmatprep.subr.mxu0 0.0
    %81 = vmatpush1.msra.mxu0 0.0
    %82 = vmatprep.subr.mxu0 0.0
    %83 = vmatpush1.msra.mxu0 0.0
    %84 = vmatprep.subr.mxu0 0.0
    %85 = vmatpush1.msra.mxu0 0.0
    %86 = vmatprep.subr.mxu0 0.0
    %87 = vmatpush1.msra.mxu0 0.0
    %88 = vmatprep.subr.mxu0 0.0
    %89 = vmatpush1.msra.mxu0 0.0
    %90 = vmatprep.subr.mxu0 0.0
    %91 = vmatpush1.msra.mxu0 0.0
    %92 = vmatprep.subr.mxu0 0.0
    %93 = vmatpush1.msra.mxu0 0.0
    %94 = vmatprep.subr.mxu0 0.0
    %95 = vmatpush1.msra.mxu0 0.0
    %96 = vmatprep.mubr.f32.mxu0 0.0
    %97 = vmatmul.mubr.f32.gmra.mrb[0].mxu0 %v30
    %v98 = vpop.f32.mrb[0].mxu0
    %v99 = vadd.f32 %v27, %v98
    %v100 = vpop.f32.mrb[0].mxu0
    %101 = vdwg.mxu0
    %s102 = scalar_lea.vmem %s1, 32
    %v103 = vld [vmem:[%s102] sm:$0xff]
    %v104 = vld [vmem:[%s102 + $0x8] sm:$0xff]
    %v105 = vld [vmem:[%s102 + $0x10] sm:$0xff]
    %v106 = vld [vmem:[%s102 + $0x18] sm:$0xff]
    %v107 = vld [vmem:[%s2 + $0x1] sm:$0x1]
    %v108 = vlaneseq
    %v109 = vshrl.u32 %v108, 7
    %v110 = vsub.s32 0, %v109
    %v111 = vrot.slane %v107, %v110
    %112 = vmatprep.subr.mxu0 0.0
    %113 = vmatpush1.msra.mxu0 %v103
    %114 = vmatprep.subr.mxu0 0.0
    %115 = vmatpush1.msra.mxu0 %v104
    %116 = vmatprep.subr.mxu0 0.0
    %117 = vmatpush1.msra.mxu0 %v105
    %118 = vmatprep.subr.mxu0 0.0
    %119 = vmatpush1.msra.mxu0 %v106
    %120 = vmatprep.subr.mxu0 0.0
    %121 = vmatpush1.msra.mxu0 0.0
    %122 = vmatprep.subr.mxu0 0.0
    %123 = vmatpush1.msra.mxu0 0.0
    %124 = vmatprep.subr.mxu0 0.0
    %125 = vmatpush1.msra.mxu0 0.0
    %126 = vmatprep.subr.mxu0 0.0
    %127 = vmatpush1.msra.mxu0 0.0
    %128 = vmatprep.subr.mxu0 0.0
    %129 = vmatpush1.msra.mxu0 0.0
    %130 = vmatprep.subr.mxu0 0.0
    %131 = vmatpush1.msra.mxu0 0.0
    %132 = vmatprep.subr.mxu0 0.0
    %133 = vmatpush1.msra.mxu0 0.0
    %134 = vmatprep.subr.mxu0 0.0
    %135 = vmatpush1.msra.mxu0 0.0
    %136 = vmatprep.subr.mxu0 0.0
    %137 = vmatpush1.msra.mxu0 0.0
    %138 = vmatprep.subr.mxu0 0.0
    %139 = vmatpush1.msra.mxu0 0.0
    %140 = vmatprep.subr.mxu0 0.0
    %141 = vmatpush1.msra.mxu0 0.0
    %142 = vmatprep.subr.mxu0 0.0
    %143 = vmatpush1.msra.mxu0 0.0
    %144 = vmatprep.subr.mxu0 0.0
    %145 = vmatpush1.msra.mxu0 0.0
    %146 = vmatprep.subr.mxu0 0.0
    %147 = vmatpush1.msra.mxu0 0.0
    %148 = vmatprep.subr.mxu0 0.0
    %149 = vmatpush1.msra.mxu0 0.0
    %150 = vmatprep.subr.mxu0 0.0
    %151 = vmatpush1.msra.mxu0 0.0
    %152 = vmatprep.subr.mxu0 0.0
    %153 = vmatpush1.msra.mxu0 0.0
    %154 = vmatprep.subr.mxu0 0.0
    %155 = vmatpush1.msra.mxu0 0.0
    %156 = vmatprep.subr.mxu0 0.0
    %157 = vmatpush1.msra.mxu0 0.0
    %158 = vmatprep.subr.mxu0 0.0
    %159 = vmatpush1.msra.mxu0 0.0
    %160 = vmatprep.subr.mxu0 0.0
    %161 = vmatpush1.msra.mxu0 0.0
    %162 = vmatprep.subr.mxu0 0.0
    %163 = vmatpush1.msra.mxu0 0.0
    %164 = vmatprep.subr.mxu0 0.0
    %165 = vmatpush1.msra.mxu0 0.0
    %166 = vmatprep.subr.mxu0 0.0
    %167 = vmatpush1.msra.mxu0 0.0
    %168 = vmatprep.subr.mxu0 0.0
    %169 = vmatpush1.msra.mxu0 0.0
    %170 = vmatprep.subr.mxu0 0.0
    %171 = vmatpush1.msra.mxu0 0.0
    %172 = vmatprep.subr.mxu0 0.0
    %173 = vmatpush1.msra.mxu0 0.0
    %174 = vmatprep.subr.mxu0 0.0
    %175 = vmatpush1.msra.mxu0 0.0
    %176 = vmatprep.mubr.f32.mxu0 0.0
    %177 = vmatmul.mubr.f32.gmra.mrb[0].mxu0 %v30
    %v178 = vpop.f32.mrb[0].mxu0
    %v179 = vadd.f32 %v111, %v178
    %v180 = vpop.f32.mrb[0].mxu0
    %181 = vdwg.mxu0
    %v182 = vld [vmem:[%s3] sm:$0x3]
    %v183 = vmul.f32 %v179, 0.5
    %v184 = vmul.f32 %v183, 1.442695
    %v185 = vpow.pop %v184
    %v186 = vmul.f32 %v182, %v185
    %v187 = vadd.f32 %v186, %v99
    %vm188 = vcmask 58368
    %189 = vst.msk [vmem:[#allocation2] sm:$0x3] %vm188, %v187
    // Predicated region
    $region18: #{_lambda_.21} parent=1 // pred_check
      _
    $region19: #{_lambda_.21} parent=1 // pred_check_branch
      %191 = sbr.rel (0) target = $region21
    $region20: #{_lambda_.21} parent=1 // pred_region
      %s193 = ssub.s32 32, 32
      %194 = vsyncadd [#allocation3], %s193
      %s196 = sshll.u32 [#allocation2], 4
      %s197 = int_to_ptr.vmem [resolvable:$true] %s196
      %199 = dma.vmem_to_hbm [thread:$0]  %s197, 32, %s4, [#allocation3]
    $region21: #{_lambda_.21} parent=1 // pred_fallthru
      _
    // Predicated region
    $region22: #{_lambda_.21} parent=1 // pred_check
      _
    $region23: #{_lambda_.21} parent=1 // pred_check_branch
      %201 = sbr.rel (0) target = $region25
    $region24: #{_lambda_.21} parent=1 // pred_region
      %202 = dma.done [#allocation3], 32
    $region25: #{_lambda_.21} parent=1 // pred_fallthru
      _
    %203 = vsyncpa [#allocation3], 1

</llo_original>
